<compile_context>
chip_gen: v7x
topology: tpu7x:2x2x1
jax: 0.10.0
libtpu: 0.0.40
codegen_flags: <defaults>
</compile_context>

<pallas_src>
import math
import functools

import jax
import jax.numpy as jnp
import numpy as np
from jax.experimental import pallas as pl
from jax.experimental.pallas import tpu as pltpu


# ----------------------------- Pallas kernel -------------------------------
def encoder_layer_kernel(
    x_ref, mask_ref, pb_ref,
    wqkv_ref, bqkv_ref, wo_ref, bo_ref,
    ln1g_ref, ln1b_ref,
    w1_ref, b1_ref, w2_ref, b2_ref,
    ln2g_ref, ln2b_ref,
    out_ref, *att_ref,
    num_heads, batch_block):
    H = num_heads
    Bt = batch_block
    x = x_ref[...]                                   # (Bt, S, E) f32
    _, S, E = x.shape
    D = E // H
    BH = Bt * H

    # (Bt, S, E) -> (Bt*S, E): fills the MXU M dim for every dense matmul.
    x2 = x.reshape(Bt * S, E)

    # Fused QKV projection: one (Bt*S, E) x (E, 3E) bf16 matmul, fp32 accum.
    # Wq/bq were pre-scaled by 1/sqrt(D) in the wrapper, so q is pre-scaled.
    qkv = jnp.dot(x2.astype(jnp.bfloat16), wqkv_ref[...],
                  preferred_element_type=jnp.float32) + bqkv_ref[...]

    def to_heads(t):                                 # (Bt*S, E) -> (Bt*H, S, D)
        # single relayout per tensor (f32), replaces Bt*H lane slices
        t = jnp.transpose(t.reshape(Bt, S, H, D), (0, 2, 1, 3))
        return t.reshape(BH, S, D)

    qh = to_heads(qkv[:, 0:E]).astype(jnp.bfloat16)
    kh = to_heads(qkv[:, E:2 * E]).astype(jnp.bfloat16)
    vh = to_heads(qkv[:, 2 * E:3 * E]).astype(jnp.bfloat16)

    # One batched q @ k^T over all (batch, head) pairs (pre-scaled by 1/sqrt(D)).
    logits = jnp.einsum('bqd,bkd->bqk', qh, kh,
                        preferred_element_type=jnp.float32)   # (Bt*H, S, S)
    logits = logits.reshape(Bt, H, S, S)

    # position bias already /sqrt(D) and already carries rp_mask * -1e9;
    # padding mask is added once per batch row, broadcast over heads.
    nb = mask_ref[...] * (-1000000000.0)                       # (Bt, S, S)
    logits = logits + pb_ref[...][None, :, :, :] + nb[:, None, :, :]

    if att_ref:                                   # optional "real_attention"
        att_ref[0][...] = logits                  # one store per grid step

    # softmax (approx reciprocal runs on the EUP slot; intentional ~2^-12 err)
    m = jnp.max(logits, axis=-1, keepdims=True)
    e = jnp.exp(logits - m)
    p = e * pl.reciprocal(jnp.sum(e, axis=-1, keepdims=True), approx=True)

    # One batched p @ v, then a single relayout back to (Bt*S, E) — no concats.
    ctx = jnp.einsum('bqk,bkd->bqd',
                     p.reshape(BH, S, S).astype(jnp.bfloat16), vh,
                     preferred_element_type=jnp.float32)       # (Bt*H, S, D)
    ctx = jnp.transpose(ctx.reshape(Bt, H, S, D), (0, 2, 1, 3)).reshape(Bt * S, E)

    attn_out = jnp.dot(ctx.astype(jnp.bfloat16), wo_ref[...],
                       preferred_element_type=jnp.float32) + bo_ref[...]

    # residual + LayerNorm 1 (dropout == identity in eval)
    h1 = x2 + attn_out
    mu1 = jnp.mean(h1, axis=-1, keepdims=True)
    var1 = jnp.mean((h1 - mu1) ** 2, axis=-1, keepdims=True)
    ln1 = (h1 - mu1) * jax.lax.rsqrt(var1 + 1e-6) * ln1g_ref[...] + ln1b_ref[...]

    # Intermediate (Linear + ReLU) and Output (Linear + residual + LayerNorm)
    inter = jnp.maximum(
        jnp.dot(ln1.astype(jnp.bfloat16), w1_ref[...],
                preferred_element_type=jnp.float32) + b1_ref[...], 0.0)
    ffn = jnp.dot(inter.astype(jnp.bfloat16), w2_ref[...],
                  preferred_element_type=jnp.float32) + b2_ref[...]

    h2 = ffn + ln1
    mu2 = jnp.mean(h2, axis=-1, keepdims=True)
    var2 = jnp.mean((h2 - mu2) ** 2, axis=-1, keepdims=True)
    ln2 = (h2 - mu2) * jax.lax.rsqrt(var2 + 1e-6) * ln2g_ref[...] + ln2b_ref[...]

    out_ref[...] = ln2.reshape(Bt, S, E)


# ----------------------------- wrapper --------------------------------------
def encoder_layer_forward(x, mask3d, pb, rpm, params, num_heads,
                          batch_block=None, return_attention=True):
    B, S, E = x.shape
    H = num_heads
    D = E // H
    HID = params["w1"].shape[1]
    # Default: one grid step (best on single-TC v5e/v6e).  On v7x pass
    # batch_block=B//2 so grid=(2,) shards across both TensorCores.
    Bt = B if batch_block is None else batch_block
    assert B % Bt == 0

    inv_scale = 1.0 / math.sqrt(D)
    # Fold 1/sqrt(D) into Wq/bq + position bias, and rp_mask * -1e9 into the
    # position bias (all constants, folded once outside the kernel).
    wqkv = jnp.concatenate(
        [params["wq"] * inv_scale, params["wk"], params["wv"]],
        axis=1).astype(jnp.bfloat16)
    bqkv = jnp.concatenate(
        [params["bq"] * inv_scale, params["bk"], params["bv"]], axis=1)
    pb_add = pb * inv_scale + rpm[None] * (-1000000000.0)        # (H, S, S)

    kernel = functools.partial(encoder_layer_kernel,
                               num_heads=H, batch_block=Bt)

    def replicated(shape):
        n = len(shape)
        return pl.BlockSpec(shape, lambda i, _n=n: (0,) * _n)

    in_specs = [
        pl.BlockSpec((Bt, S, E), lambda i: (i, 0, 0)),       # x
        pl.BlockSpec((Bt, S, S), lambda i: (i, 0, 0)),       # padding mask
        replicated((H, S, S)),                               # pos bias (+rp mask)
        replicated((E, 3 * E)), replicated((1, 3 * E)),      # Wqkv(bf16), bqkv
        replicated((E, E)), replicated((1, E)),              # Wo(bf16), bo
        replicated((1, E)), replicated((1, E)),              # LN1 gamma, beta
        replicated((E, HID)), replicated((1, HID)),          # W1(bf16), b1
        replicated((HID, E)), replicated((1, E)),            # W2(bf16), b2
        replicated((1, E)), replicated((1, E)),              # LN2 gamma, beta
    ]
    out_specs = [pl.BlockSpec((Bt, S, E), lambda i: (i, 0, 0))]
    out_shape = [jax.ShapeDtypeStruct((B, S, E), jnp.float32)]
    if return_attention:
        out_specs.append(pl.BlockSpec((Bt, H, S, S), lambda i: (i, 0, 0, 0)))
        out_shape.append(jax.ShapeDtypeStruct((B, H, S, S), jnp.float32))

    flops = int(B * (2 * S * E * 3 * E            # fused QKV
                     + 4 * H * S * S * D          # q k^T and p @ v
                     + 2 * S * E * E              # output projection
                     + 4 * S * E * HID))          # two FFN matmuls
    bytes_accessed = int(
        4 * (2 * B * S * E + B * S * S + H * S * S
             + (B * H * S * S if return_attention else 0))
        + 2 * (E * 3 * E + E * E + 2 * E * HID)   # bf16 weights
        + 4 * (3 * E + 6 * E + HID))              # biases / LN params
    cost = pl.CostEstimate(flops=flops,
                           transcendentals=int(B * H * S * S),
                           bytes_accessed=bytes_accessed)

    res = pl.pallas_call(
        kernel,
        grid=(B // Bt,),
        in_specs=in_specs,
        out_specs=out_specs,
        out_shape=out_shape,
        compiler_params=pltpu.CompilerParams(
            dimension_semantics=("parallel",),
            vmem_limit_bytes=32 * 1024 * 1024),
        cost_estimate=cost,
    )(x, mask3d, pb_add,
      wqkv, bqkv,
      params["wo"].astype(jnp.bfloat16), params["bo"],
      params["ln1g"], params["ln1b"],
      params["w1"].astype(jnp.bfloat16), params["b1"],
      params["w2"].astype(jnp.bfloat16), params["b2"],
      params["ln2g"], params["ln2b"])

    if return_attention:
        return res[0], res[1]
    return res[0]


# ------------------- relative position bias (glue, plain JAX) ---------------
def compute_bias(seq_len, emb_table, num_buckets=16, max_distance=16):
    ctx = jnp.arange(seq_len, dtype=jnp.int32)[:, None]
    mem = jnp.arange(seq_len, dtype=jnp.int32)[None, :]
    rel = mem - ctx                                       # memory - context
    relp = -jnp.minimum(rel, 0)                           # bidirectional=False
    max_exact = num_buckets // 2
    is_small = relp < max_exact
    relf = relp.astype(jnp.float32)
    large = max_exact + (
        jnp.log(jnp.maximum(relf, 1.0) / max_exact)
        / math.log(max_distance / max_exact)
        * (num_buckets - max_exact)
    ).astype(jnp.int32)
    large = jnp.minimum(large, num_buckets - 1)
    bucket = jnp.where(is_small, relp, large)             # (S, S)
    bucket2 = bucket.T + bucket
    rp_mask = (bucket2 == (max_distance - 1)).astype(jnp.float32)
    values = emb_table[bucket2]                           # (S, S, H)
    pb = jnp.transpose(values, (2, 0, 1))                 # (H, S, S)
    return pb, rp_mask


# ----------------------------- pure-JAX reference ---------------------------
def reference_forward(x, mask3d, pb, rpm, params, num_heads):
    B, S, E = x.shape
    H = num_heads
    D = E // H
    q = x @ params["wq"] + params["bq"][0]
    k = x @ params["wk"] + params["bk"][0]
    v = x @ params["wv"] + params["bv"][0]
    split = lambda t: t.reshape(B, S, H, D).transpose(0, 2, 1, 3)
    qh, kh, vh = split(q), split(k), split(v)
    logits = jnp.einsum("bhqd,bhkd->bhqk", qh, kh)
    logits = (logits + pb[None]) / math.sqrt(D)
    logits = logits + mask3d[:, None] * (-1e9) + rpm[None, None] * (-1e9)
    att = logits
    w = jax.nn.softmax(logits, axis=-1)
    ctx = jnp.einsum("bhqk,bhkd->bhqd", w, vh)
    concat = ctx.transpose(0, 2, 1, 3).reshape(B, S, E)
    attn_out = concat @ params["wo"] + params["bo"][0]

    def ln(t, g, b):
        mu = t.mean(-1, keepdims=True)
        var = ((t - mu) ** 2).mean(-1, keepdims=True)
        return (t - mu) / jnp.sqrt(var + 1e-6) * g + b

    h1 = ln(x + attn_out, params["ln1g"][0], params["ln1b"][0])
    inter = jnp.maximum(h1 @ params["w1"] + params["b1"][0], 0.0)
    ffn = inter @ params["w2"] + params["b2"][0]
    out = ln(ffn + h1, params["ln2g"][0], params["ln2b"][0])
    return out, att


# ----------------------------- main ------------------------------------------
if __name__ == "__main__":
    B, S, E, H, HID = 4, 16, 32, 4, 64      # embed=32, heads=4, hidden(FFN)=64
    NUM_BUCKETS = 16

    key = jax.random.PRNGKey(0)
    ks = jax.random.split(key, 20)

    def lin(k, i, o, scale=0.1):
        return (scale * jax.random.normal(k, (i, o))).astype(jnp.float32)

    params = dict(
        wq=lin(ks[0], E, E), bq=lin(ks[1], 1, E, 0.02),
        wk=lin(ks[2], E, E), bk=lin(ks[3], 1, E, 0.02),
        wv=lin(ks[4], E, E), bv=lin(ks[5], 1, E, 0.02),
        wo=lin(ks[6], E, E), bo=lin(ks[7], 1, E, 0.02),
        ln1g=jnp.ones((1, E), jnp.float32), ln1b=jnp.zeros((1, E), jnp.float32),
        w1=lin(ks[8], E, HID), b1=lin(ks[9], 1, HID, 0.02),
        w2=lin(ks[10], HID, E), b2=lin(ks[11], 1, E, 0.02),
        ln2g=jnp.ones((1, E), jnp.float32), ln2b=jnp.zeros((1, E), jnp.float32),
    )
    rel_emb_table = (0.1 * jax.random.normal(ks[12], (NUM_BUCKETS, H))).astype(jnp.float32)

    x = jax.random.normal(ks[13], (B, S, E), jnp.float32)

    # padding mask: (B,1,1,S)-style key mask, broadcast to (B,S,S) for the kernel
    mask_key = (jnp.zeros((B, S), jnp.float32)
                .at[1, S - 3:].set(1.0)
                .at[3, S - 5:].set(1.0))
    mask3d = jnp.broadcast_to(mask_key[:, None, :], (B, S, S))

    pb, rpm = compute_bias(S, rel_emb_table, num_buckets=NUM_BUCKETS, max_distance=16)

    # default batch_block=None -> single grid step (best on v5e/v6e); on v7x
    # use batch_block=B//2 to shard two steps across the two TensorCores.
    out, att = encoder_layer_forward(x, mask3d, pb, rpm, params,
                                     num_heads=H, return_attention=True)
    out = jax.block_until_ready(out)
    att = jax.block_until_ready(att)

    ref_out, ref_att = reference_forward(x, mask3d, pb, rpm, params, num_heads=H)

    # Tolerances relaxed intentionally: bf16 MXU operands (fp32 accumulation),
    # approx reciprocal in the softmax, and the 1/sqrt(D) / rp_mask constant
    # folding reassociate low-order fp32 bits.
    np.testing.assert_allclose(np.asarray(out), np.asarray(ref_out),
                               atol=5e-2, rtol=5e-2)
    np.testing.assert_allclose(np.asarray(att), np.asarray(ref_att),
                               atol=5e-2, rtol=1e-3)

    print("KERNEL_OK")
</pallas_src>

<mosaic_0001>
module attributes {stable_mosaic.version = 11 : i64} {
  func.func @encoder_layer_kernel(%arg0: i32, %arg1: memref<4x16x32xf32, #tpu.memory_space<vmem>>, %arg2: memref<4x16x16xf32, #tpu.memory_space<vmem>>, %arg3: memref<4x16x16xf32, #tpu.memory_space<vmem>>, %arg4: memref<32x96xbf16, #tpu.memory_space<vmem>>, %arg5: memref<1x96xf32, #tpu.memory_space<vmem>>, %arg6: memref<32x32xbf16, #tpu.memory_space<vmem>>, %arg7: memref<1x32xf32, #tpu.memory_space<vmem>>, %arg8: memref<1x32xf32, #tpu.memory_space<vmem>>, %arg9: memref<1x32xf32, #tpu.memory_space<vmem>>, %arg10: memref<32x64xbf16, #tpu.memory_space<vmem>>, %arg11: memref<1x64xf32, #tpu.memory_space<vmem>>, %arg12: memref<64x32xbf16, #tpu.memory_space<vmem>>, %arg13: memref<1x32xf32, #tpu.memory_space<vmem>>, %arg14: memref<1x32xf32, #tpu.memory_space<vmem>>, %arg15: memref<1x32xf32, #tpu.memory_space<vmem>>, %arg16: memref<4x16x32xf32, #tpu.memory_space<vmem>>, %arg17: memref<4x4x16x16xf32, #tpu.memory_space<vmem>>) attributes {dimension_semantics = [#tpu.dimension_semantics<parallel>], iteration_bounds = array<i64: 1>, scalar_prefetch = 0 : i64, scratch_operands = 0 : i64, tpu.core_type = #tpu.core_type<tc>, window_params = [{transform_indices = @transform_0, window_bounds = array<i64: 4, 16, 32>}, {transform_indices = @transform_1, window_bounds = array<i64: 4, 16, 16>}, {pipeline_mode = #tpu.pipeline_mode<synchronous>, transform_indices = @transform_2, window_bounds = array<i64: 4, 16, 16>}, {pipeline_mode = #tpu.pipeline_mode<synchronous>, transform_indices = @transform_3, window_bounds = array<i64: 32, 96>}, {pipeline_mode = #tpu.pipeline_mode<synchronous>, transform_indices = @transform_4, window_bounds = array<i64: 1, 96>}, {pipeline_mode = #tpu.pipeline_mode<synchronous>, transform_indices = @transform_5, window_bounds = array<i64: 32, 32>}, {pipeline_mode = #tpu.pipeline_mode<synchronous>, transform_indices = @transform_6, window_bounds = array<i64: 1, 32>}, {pipeline_mode = #tpu.pipeline_mode<synchronous>, transform_indices = @transform_7, window_bounds = array<i64: 1, 32>}, {pipeline_mode = #tpu.pipeline_mode<synchronous>, transform_indices = @transform_8, window_bounds = array<i64: 1, 32>}, {pipeline_mode = #tpu.pipeline_mode<synchronous>, transform_indices = @transform_9, window_bounds = array<i64: 32, 64>}, {pipeline_mode = #tpu.pipeline_mode<synchronous>, transform_indices = @transform_10, window_bounds = array<i64: 1, 64>}, {pipeline_mode = #tpu.pipeline_mode<synchronous>, transform_indices = @transform_11, window_bounds = array<i64: 64, 32>}, {pipeline_mode = #tpu.pipeline_mode<synchronous>, transform_indices = @transform_12, window_bounds = array<i64: 1, 32>}, {pipeline_mode = #tpu.pipeline_mode<synchronous>, transform_indices = @transform_13, window_bounds = array<i64: 1, 32>}, {pipeline_mode = #tpu.pipeline_mode<synchronous>, transform_indices = @transform_14, window_bounds = array<i64: 1, 32>}, {transform_indices = @transform_15, window_bounds = array<i64: 4, 16, 32>}, {transform_indices = @transform_16, window_bounds = array<i64: 4, 4, 16, 16>}]} {
    %c0 = arith.constant 0 : index
    %c0_0 = arith.constant 0 : index
    %c0_1 = arith.constant 0 : index
    %0 = vector.load %arg1[%c0, %c0_0, %c0_1] : memref<4x16x32xf32, #tpu.memory_space<vmem>>, vector<4x16x32xf32>
    %1 = vector.shape_cast %0 : vector<4x16x32xf32> to vector<64x32xf32>
    %2 = arith.truncf %1 : vector<64x32xf32> to vector<64x32xbf16>
    %c0_2 = arith.constant 0 : index
    %c0_3 = arith.constant 0 : index
    %3 = vector.load %arg4[%c0_2, %c0_3] : memref<32x96xbf16, #tpu.memory_space<vmem>>, vector<32x96xbf16>
    %cst = arith.constant dense<0.000000e+00> : vector<64x96xf32>
    %4 = tpu.matmul %2, %3, %cst {dimension_numbers = #tpu.dot_dimension_numbers<[1], [0], [0], [1], [0, 0, 1, 1], [], []>} : vector<64x32xbf16>, vector<32x96xbf16>, vector<64x96xf32> -> vector<64x96xf32>
    %c0_4 = arith.constant 0 : index
    %c0_5 = arith.constant 0 : index
    %5 = vector.load %arg5[%c0_4, %c0_5] : memref<1x96xf32, #tpu.memory_space<vmem>>, vector<1x96xf32>
    %6 = vector.broadcast %5 : vector<1x96xf32> to vector<64x96xf32>
    %7 = arith.addf %4, %6 : vector<64x96xf32>
    %8 = vector.extract_strided_slice %7 {offsets = [0, 0], sizes = [64, 32], strides = [1, 1]} : vector<64x96xf32> to vector<64x32xf32>
    %9 = vector.shape_cast %8 : vector<64x32xf32> to vector<4x16x4x8xf32>
    %10 = tpu.transpose %9, [0, 2, 1, 3] : vector<4x16x4x8xf32> -> vector<4x4x16x8xf32>
    %11 = vector.shape_cast %10 : vector<4x4x16x8xf32> to vector<16x16x8xf32>
    %12 = arith.truncf %11 : vector<16x16x8xf32> to vector<16x16x8xbf16>
    %13 = vector.extract_strided_slice %7 {offsets = [0, 32], sizes = [64, 32], strides = [1, 1]} : vector<64x96xf32> to vector<64x32xf32>
    %14 = vector.shape_cast %13 : vector<64x32xf32> to vector<4x16x4x8xf32>
    %15 = tpu.transpose %14, [0, 2, 1, 3] : vector<4x16x4x8xf32> -> vector<4x4x16x8xf32>
    %16 = vector.shape_cast %15 : vector<4x4x16x8xf32> to vector<16x16x8xf32>
    %17 = arith.truncf %16 : vector<16x16x8xf32> to vector<16x16x8xbf16>
    %18 = vector.extract_strided_slice %7 {offsets = [0, 64], sizes = [64, 32], strides = [1, 1]} : vector<64x96xf32> to vector<64x32xf32>
    %19 = vector.shape_cast %18 : vector<64x32xf32> to vector<4x16x4x8xf32>
    %20 = tpu.transpose %19, [0, 2, 1, 3] : vector<4x16x4x8xf32> -> vector<4x4x16x8xf32>
    %21 = vector.shape_cast %20 : vector<4x4x16x8xf32> to vector<16x16x8xf32>
    %22 = arith.truncf %21 : vector<16x16x8xf32> to vector<16x16x8xbf16>
    "tpu.trace_start"() <{level = 10 : i32, message = "bqd,bkd->bqk"}> : () -> ()
    %cst_6 = arith.constant dense<0.000000e+00> : vector<16x16x16xf32>
    %23 = tpu.matmul %12, %17, %cst_6 {dimension_numbers = #tpu.dot_dimension_numbers<[2], [2], [1], [1], [0, 0, 0, 1, 1, 1], [0], [0]>} : vector<16x16x8xbf16>, vector<16x16x8xbf16>, vector<16x16x16xf32> -> vector<16x16x16xf32>
    "tpu.trace_stop"() : () -> ()
    %24 = vector.shape_cast %23 : vector<16x16x16xf32> to vector<4x4x16x16xf32>
    %c0_7 = arith.constant 0 : index
    %c0_8 = arith.constant 0 : index
    %c0_9 = arith.constant 0 : index
    %25 = vector.load %arg2[%c0_7, %c0_8, %c0_9] : memref<4x16x16xf32, #tpu.memory_space<vmem>>, vector<4x16x16xf32>
    %cst_10 = arith.constant -1.000000e+09 : f32
    %26 = vector.broadcast %cst_10 : f32 to vector<4x16x16xf32>
    %27 = arith.mulf %25, %26 : vector<4x16x16xf32>
    %c0_11 = arith.constant 0 : index
    %c0_12 = arith.constant 0 : index
    %c0_13 = arith.constant 0 : index
    %28 = vector.load %arg3[%c0_11, %c0_12, %c0_13] : memref<4x16x16xf32, #tpu.memory_space<vmem>>, vector<4x16x16xf32>
    %29 = vector.shape_cast %28 : vector<4x16x16xf32> to vector<1x4x16x16xf32>
    %30 = vector.broadcast %29 : vector<1x4x16x16xf32> to vector<4x4x16x16xf32>
    %31 = arith.addf %24, %30 : vector<4x4x16x16xf32>
    %32 = vector.shape_cast %27 : vector<4x16x16xf32> to vector<4x1x16x16xf32>
    %33 = vector.broadcast %32 : vector<4x1x16x16xf32> to vector<4x4x16x16xf32>
    %34 = arith.addf %31, %33 : vector<4x4x16x16xf32>
    %c0_14 = arith.constant 0 : index
    %c0_15 = arith.constant 0 : index
    %c0_16 = arith.constant 0 : index
    %c0_17 = arith.constant 0 : index
    %35 = vector.load %arg17[%c0_14, %c0_15, %c0_16, %c0_17] : memref<4x4x16x16xf32, #tpu.memory_space<vmem>>, vector<4x4x16x16xf32>
    tpu.vector_store %arg17[%c0_14, %c0_15, %c0_16, %c0_17], %34 {strides = array<i32>} : memref<4x4x16x16xf32, #tpu.memory_space<vmem>>, vector<4x4x16x16xf32>,
    %cst_18 = arith.constant dense<0xFF800000> : vector<4x4x16xf32>
    %36 = vector.multi_reduction <maximumf>, %34, %cst_18 [3] : vector<4x4x16x16xf32> to vector<4x4x16xf32>
    %37 = vector.shape_cast %36 : vector<4x4x16xf32> to vector<4x4x16x1xf32>
    %38 = vector.broadcast %37 : vector<4x4x16x1xf32> to vector<4x4x16x16xf32>
    %39 = arith.subf %34, %38 : vector<4x4x16x16xf32>
    %40 = math.exp %39 : vector<4x4x16x16xf32>
    %cst_19 = arith.constant dense<0.000000e+00> : vector<4x4x16xf32>
    %41 = vector.multi_reduction <add>, %40, %cst_19 [3] : vector<4x4x16x16xf32> to vector<4x4x16xf32>
    %42 = vector.shape_cast %41 : vector<4x4x16xf32> to vector<4x4x16x1xf32>
    %43 = tpu.reciprocal %42 {approx = true} : vector<4x4x16x1xf32> -> vector<4x4x16x1xf32>
    %44 = vector.broadcast %43 : vector<4x4x16x1xf32> to vector<4x4x16x16xf32>
    %45 = arith.mulf %40, %44 : vector<4x4x16x16xf32>
    %46 = vector.shape_cast %45 : vector<4x4x16x16xf32> to vector<16x16x16xf32>
    %47 = arith.truncf %46 : vector<16x16x16xf32> to vector<16x16x16xbf16>
    "tpu.trace_start"() <{level = 10 : i32, message = "bqk,bkd->bqd"}> : () -> ()
    %cst_20 = arith.constant dense<0.000000e+00> : vector<16x16x8xf32>
    %48 = tpu.matmul %47, %22, %cst_20 {dimension_numbers = #tpu.dot_dimension_numbers<[2], [1], [1], [2], [0, 0, 0, 1, 1, 2], [0], [0]>} : vector<16x16x16xbf16>, vector<16x16x8xbf16>, vector<16x16x8xf32> -> vector<16x16x8xf32>
    "tpu.trace_stop"() : () -> ()
    %49 = vector.shape_cast %48 : vector<16x16x8xf32> to vector<4x4x16x8xf32>
    %50 = tpu.transpose %49, [0, 2, 1, 3] : vector<4x4x16x8xf32> -> vector<4x16x4x8xf32>
    %51 = vector.shape_cast %50 : vector<4x16x4x8xf32> to vector<64x32xf32>
    %52 = arith.truncf %51 : vector<64x32xf32> to vector<64x32xbf16>
    %c0_21 = arith.constant 0 : index
    %c0_22 = arith.constant 0 : index
    %53 = vector.load %arg6[%c0_21, %c0_22] : memref<32x32xbf16, #tpu.memory_space<vmem>>, vector<32x32xbf16>
    %cst_23 = arith.constant dense<0.000000e+00> : vector<64x32xf32>
    %54 = tpu.matmul %52, %53, %cst_23 {dimension_numbers = #tpu.dot_dimension_numbers<[1], [0], [0], [1], [0, 0, 1, 1], [], []>} : vector<64x32xbf16>, vector<32x32xbf16>, vector<64x32xf32> -> vector<64x32xf32>
    %c0_24 = arith.constant 0 : index
    %c0_25 = arith.constant 0 : index
    %55 = vector.load %arg7[%c0_24, %c0_25] : memref<1x32xf32, #tpu.memory_space<vmem>>, vector<1x32xf32>
    %56 = vector.broadcast %55 : vector<1x32xf32> to vector<64x32xf32>
    %57 = arith.addf %54, %56 : vector<64x32xf32>
    %58 = arith.addf %1, %57 : vector<64x32xf32>
    %cst_26 = arith.constant dense<0.000000e+00> : vector<64xf32>
    %59 = vector.multi_reduction <add>, %58, %cst_26 [1] : vector<64x32xf32> to vector<64xf32>
    %60 = vector.shape_cast %59 : vector<64xf32> to vector<64x1xf32>
    %cst_27 = arith.constant 3.200000e+01 : f32
    %61 = vector.broadcast %cst_27 : f32 to vector<64x1xf32>
    %62 = arith.divf %60, %61 : vector<64x1xf32>
    %63 = vector.broadcast %62 : vector<64x1xf32> to vector<64x32xf32>
    %64 = arith.subf %58, %63 : vector<64x32xf32>
    %65 = arith.mulf %64, %64 : vector<64x32xf32>
    %cst_28 = arith.constant dense<0.000000e+00> : vector<64xf32>
    %66 = vector.multi_reduction <add>, %65, %cst_28 [1] : vector<64x32xf32> to vector<64xf32>
    %67 = vector.shape_cast %66 : vector<64xf32> to vector<64x1xf32>
    %cst_29 = arith.constant 3.200000e+01 : f32
    %68 = vector.broadcast %cst_29 : f32 to vector<64x1xf32>
    %69 = arith.divf %67, %68 : vector<64x1xf32>
    %70 = vector.broadcast %62 : vector<64x1xf32> to vector<64x32xf32>
    %71 = arith.subf %58, %70 : vector<64x32xf32>
    %cst_30 = arith.constant 9.99999997E-7 : f32
    %72 = vector.broadcast %cst_30 : f32 to vector<64x1xf32>
    %73 = arith.addf %69, %72 : vector<64x1xf32>
    %74 = math.rsqrt %73 : vector<64x1xf32>
    %75 = vector.broadcast %74 : vector<64x1xf32> to vector<64x32xf32>
    %76 = arith.mulf %71, %75 : vector<64x32xf32>
    %c0_31 = arith.constant 0 : index
    %c0_32 = arith.constant 0 : index
    %77 = vector.load %arg8[%c0_31, %c0_32] : memref<1x32xf32, #tpu.memory_space<vmem>>, vector<1x32xf32>
    %78 = vector.broadcast %77 : vector<1x32xf32> to vector<64x32xf32>
    %79 = arith.mulf %76, %78 : vector<64x32xf32>
    %c0_33 = arith.constant 0 : index
    %c0_34 = arith.constant 0 : index
    %80 = vector.load %arg9[%c0_33, %c0_34] : memref<1x32xf32, #tpu.memory_space<vmem>>, vector<1x32xf32>
    %81 = vector.broadcast %80 : vector<1x32xf32> to vector<64x32xf32>
    %82 = arith.addf %79, %81 : vector<64x32xf32>
    %83 = arith.truncf %82 : vector<64x32xf32> to vector<64x32xbf16>
    %c0_35 = arith.constant 0 : index
    %c0_36 = arith.constant 0 : index
    %84 = vector.load %arg10[%c0_35, %c0_36] : memref<32x64xbf16, #tpu.memory_space<vmem>>, vector<32x64xbf16>
    %cst_37 = arith.constant dense<0.000000e+00> : vector<64x64xf32>
    %85 = tpu.matmul %83, %84, %cst_37 {dimension_numbers = #tpu.dot_dimension_numbers<[1], [0], [0], [1], [0, 0, 1, 1], [], []>} : vector<64x32xbf16>, vector<32x64xbf16>, vector<64x64xf32> -> vector<64x64xf32>
    %c0_38 = arith.constant 0 : index
    %c0_39 = arith.constant 0 : index
    %86 = vector.load %arg11[%c0_38, %c0_39] : memref<1x64xf32, #tpu.memory_space<vmem>>, vector<1x64xf32>
    %87 = vector.broadcast %86 : vector<1x64xf32> to vector<64x64xf32>
    %88 = arith.addf %85, %87 : vector<64x64xf32>
    %cst_40 = arith.constant 0.000000e+00 : f32
    %89 = vector.broadcast %cst_40 : f32 to vector<64x64xf32>
    %90 = arith.maximumf %88, %89 : vector<64x64xf32>
    %91 = arith.truncf %90 : vector<64x64xf32> to vector<64x64xbf16>
    %c0_41 = arith.constant 0 : index
    %c0_42 = arith.constant 0 : index
    %92 = vector.load %arg12[%c0_41, %c0_42] : memref<64x32xbf16, #tpu.memory_space<vmem>>, vector<64x32xbf16>
    %cst_43 = arith.constant dense<0.000000e+00> : vector<64x32xf32>
    %93 = tpu.matmul %91, %92, %cst_43 {dimension_numbers = #tpu.dot_dimension_numbers<[1], [0], [0], [1], [0, 0, 1, 1], [], []>} : vector<64x64xbf16>, vector<64x32xbf16>, vector<64x32xf32> -> vector<64x32xf32>
    %c0_44 = arith.constant 0 : index
    %c0_45 = arith.constant 0 : index
    %94 = vector.load %arg13[%c0_44, %c0_45] : memref<1x32xf32, #tpu.memory_space<vmem>>, vector<1x32xf32>
    %95 = vector.broadcast %94 : vector<1x32xf32> to vector<64x32xf32>
    %96 = arith.addf %93, %95 : vector<64x32xf32>
    %97 = arith.addf %96, %82 : vector<64x32xf32>
    %cst_46 = arith.constant dense<0.000000e+00> : vector<64xf32>
    %98 = vector.multi_reduction <add>, %97, %cst_46 [1] : vector<64x32xf32> to vector<64xf32>
    %99 = vector.shape_cast %98 : vector<64xf32> to vector<64x1xf32>
    %cst_47 = arith.constant 3.200000e+01 : f32
    %100 = vector.broadcast %cst_47 : f32 to vector<64x1xf32>
    %101 = arith.divf %99, %100 : vector<64x1xf32>
    %102 = vector.broadcast %101 : vector<64x1xf32> to vector<64x32xf32>
    %103 = arith.subf %97, %102 : vector<64x32xf32>
    %104 = arith.mulf %103, %103 : vector<64x32xf32>
    %cst_48 = arith.constant dense<0.000000e+00> : vector<64xf32>
    %105 = vector.multi_reduction <add>, %104, %cst_48 [1] : vector<64x32xf32> to vector<64xf32>
    %106 = vector.shape_cast %105 : vector<64xf32> to vector<64x1xf32>
    %cst_49 = arith.constant 3.200000e+01 : f32
    %107 = vector.broadcast %cst_49 : f32 to vector<64x1xf32>
    %108 = arith.divf %106, %107 : vector<64x1xf32>
    %109 = vector.broadcast %101 : vector<64x1xf32> to vector<64x32xf32>
    %110 = arith.subf %97, %109 : vector<64x32xf32>
    %cst_50 = arith.constant 9.99999997E-7 : f32
    %111 = vector.broadcast %cst_50 : f32 to vector<64x1xf32>
    %112 = arith.addf %108, %111 : vector<64x1xf32>
    %113 = math.rsqrt %112 : vector<64x1xf32>
    %114 = vector.broadcast %113 : vector<64x1xf32> to vector<64x32xf32>
    %115 = arith.mulf %110, %114 : vector<64x32xf32>
    %c0_51 = arith.constant 0 : index
    %c0_52 = arith.constant 0 : index
    %116 = vector.load %arg14[%c0_51, %c0_52] : memref<1x32xf32, #tpu.memory_space<vmem>>, vector<1x32xf32>
    %117 = vector.broadcast %116 : vector<1x32xf32> to vector<64x32xf32>
    %118 = arith.mulf %115, %117 : vector<64x32xf32>
    %c0_53 = arith.constant 0 : index
    %c0_54 = arith.constant 0 : index
    %119 = vector.load %arg15[%c0_53, %c0_54] : memref<1x32xf32, #tpu.memory_space<vmem>>, vector<1x32xf32>
    %120 = vector.broadcast %119 : vector<1x32xf32> to vector<64x32xf32>
    %121 = arith.addf %118, %120 : vector<64x32xf32>
    %122 = vector.shape_cast %121 : vector<64x32xf32> to vector<4x16x32xf32>
    %c0_55 = arith.constant 0 : index
    %c0_56 = arith.constant 0 : index
    %c0_57 = arith.constant 0 : index
    %123 = vector.load %arg16[%c0_55, %c0_56, %c0_57] : memref<4x16x32xf32, #tpu.memory_space<vmem>>, vector<4x16x32xf32>
    tpu.vector_store %arg16[%c0_55, %c0_56, %c0_57], %122 {strides = array<i32>} : memref<4x16x32xf32, #tpu.memory_space<vmem>>, vector<4x16x32xf32>,
    return
  }
  func.func @transform_0(%arg0: i32) -> (i32, i32, i32) {
    %c0_i32 = arith.constant 0 : i32
    %c0_i32_0 = arith.constant 0 : i32
    %c0_i32_1 = arith.constant 0 : i32
    return %arg0, %c0_i32, %c0_i32_0 : i32, i32, i32
  }
  func.func @transform_1(%arg0: i32) -> (i32, i32, i32) {
    %c0_i32 = arith.constant 0 : i32
    %c0_i32_0 = arith.constant 0 : i32
    %c0_i32_1 = arith.constant 0 : i32
    return %arg0, %c0_i32, %c0_i32_0 : i32, i32, i32
  }
  func.func @transform_2(%arg0: i32) -> (i32, i32, i32) {
    %c0_i32 = arith.constant 0 : i32
    %c0_i32_0 = arith.constant 0 : i32
    %c0_i32_1 = arith.constant 0 : i32
    %c0_i32_2 = arith.constant 0 : i32
    return %c0_i32, %c0_i32_0, %c0_i32_1 : i32, i32, i32
  }
  func.func @transform_3(%arg0: i32) -> (i32, i32) {
    %c0_i32 = arith.constant 0 : i32
    %c0_i32_0 = arith.constant 0 : i32
    %c0_i32_1 = arith.constant 0 : i32
    return %c0_i32, %c0_i32_0 : i32, i32
  }
  func.func @transform_4(%arg0: i32) -> (i32, i32) {
    %c0_i32 = arith.constant 0 : i32
    %c0_i32_0 = arith.constant 0 : i32
    %c0_i32_1 = arith.constant 0 : i32
    return %c0_i32, %c0_i32_0 : i32, i32
  }
  func.func @transform_5(%arg0: i32) -> (i32, i32) {
    %c0_i32 = arith.constant 0 : i32
    %c0_i32_0 = arith.constant 0 : i32
    %c0_i32_1 = arith.constant 0 : i32
    return %c0_i32, %c0_i32_0 : i32, i32
  }
  func.func @transform_6(%arg0: i32) -> (i32, i32) {
    %c0_i32 = arith.constant 0 : i32
    %c0_i32_0 = arith.constant 0 : i32
    %c0_i32_1 = arith.constant 0 : i32
    return %c0_i32, %c0_i32_0 : i32, i32
  }
  func.func @transform_7(%arg0: i32) -> (i32, i32) {
    %c0_i32 = arith.constant 0 : i32
    %c0_i32_0 = arith.constant 0 : i32
    %c0_i32_1 = arith.constant 0 : i32
    return %c0_i32, %c0_i32_0 : i32, i32
  }
  func.func @transform_8(%arg0: i32) -> (i32, i32) {
    %c0_i32 = arith.constant 0 : i32
    %c0_i32_0 = arith.constant 0 : i32
    %c0_i32_1 = arith.constant 0 : i32
    return %c0_i32, %c0_i32_0 : i32, i32
  }
  func.func @transform_9(%arg0: i32) -> (i32, i32) {
    %c0_i32 = arith.constant 0 : i32
    %c0_i32_0 = arith.constant 0 : i32
    %c0_i32_1 = arith.constant 0 : i32
    return %c0_i32, %c0_i32_0 : i32, i32
  }
  func.func @transform_10(%arg0: i32) -> (i32, i32) {
    %c0_i32 = arith.constant 0 : i32
    %c0_i32_0 = arith.constant 0 : i32
    %c0_i32_1 = arith.constant 0 : i32
    return %c0_i32, %c0_i32_0 : i32, i32
  }
  func.func @transform_11(%arg0: i32) -> (i32, i32) {
    %c0_i32 = arith.constant 0 : i32
    %c0_i32_0 = arith.constant 0 : i32
    %c0_i32_1 = arith.constant 0 : i32
    return %c0_i32, %c0_i32_0 : i32, i32
  }
  func.func @transform_12(%arg0: i32) -> (i32, i32) {
    %c0_i32 = arith.constant 0 : i32
    %c0_i32_0 = arith.constant 0 : i32
    %c0_i32_1 = arith.constant 0 : i32
    return %c0_i32, %c0_i32_0 : i32, i32
  }
  func.func @transform_13(%arg0: i32) -> (i32, i32) {
    %c0_i32 = arith.constant 0 : i32
    %c0_i32_0 = arith.constant 0 : i32
    %c0_i32_1 = arith.constant 0 : i32
    return %c0_i32, %c0_i32_0 : i32, i32
  }
  func.func @transform_14(%arg0: i32) -> (i32, i32) {
    %c0_i32 = arith.constant 0 : i32
    %c0_i32_0 = arith.constant 0 : i32
    %c0_i32_1 = arith.constant 0 : i32
    return %c0_i32, %c0_i32_0 : i32, i32
  }
  func.func @transform_15(%arg0: i32) -> (i32, i32, i32) {
    %c0_i32 = arith.constant 0 : i32
    %c0_i32_0 = arith.constant 0 : i32
    %c0_i32_1 = arith.constant 0 : i32
    return %arg0, %c0_i32, %c0_i32_0 : i32, i32, i32
  }
  func.func @transform_16(%arg0: i32) -> (i32, i32, i32, i32) {
    %c0_i32 = arith.constant 0 : i32
    %c0_i32_0 = arith.constant 0 : i32
    %c0_i32_1 = arith.constant 0 : i32
    %c0_i32_2 = arith.constant 0 : i32
    return %arg0, %c0_i32, %c0_i32_0, %c0_i32_1 : i32, i32, i32, i32
  }
}

</mosaic_0001>

<llo_original>
// kernel: tpu_custom_call.1
$region0: #{tpu_custom_call.1}
  #allocation0 [shape = 'u32[]', space=smem, size = 0x4, offset = 0x4, fixed_abs, tag = 'smem constant byte address 0x4 - core index']
  #allocation1 [shape = 'u32[144,128]{1,0:T(1,128)}', space=vmem, size = 0x12000, scoped, tag = 'internal scratch']
  %s0 = inlined_call_operand.hbm [shape: f32[4,16,32], index: 0, kind: input, shape index: {}]
  %s1 = inlined_call_operand.hbm [shape: f32[4,16,16], index: 1, kind: input, shape index: {}]
  %s2 = inlined_call_operand.hbm [shape: f32[4,16,16], index: 2, kind: input, shape index: {}]
  %s3 = inlined_call_operand.vmem [shape: bf16[32,96], index: 3, kind: input, shape index: {}]
  %s4 = inlined_call_operand.vmem [shape: f32[1,96], index: 4, kind: input, shape index: {}]
  %s5 = inlined_call_operand.vmem [shape: bf16[32,32], index: 5, kind: input, shape index: {}]
  %s6 = inlined_call_operand.vmem [shape: f32[1,32], index: 6, kind: input, shape index: {}]
  %s7 = inlined_call_operand.vmem [shape: f32[1,32], index: 7, kind: input, shape index: {}]
  %s8 = inlined_call_operand.vmem [shape: f32[1,32], index: 8, kind: input, shape index: {}]
  %s9 = inlined_call_operand.vmem [shape: bf16[32,64], index: 9, kind: input, shape index: {}]
  %s10 = inlined_call_operand.vmem [shape: f32[1,64], index: 10, kind: input, shape index: {}]
  %s11 = inlined_call_operand.vmem [shape: bf16[64,32], index: 11, kind: input, shape index: {}]
  %s12 = inlined_call_operand.vmem [shape: f32[1,32], index: 12, kind: input, shape index: {}]
  %s13 = inlined_call_operand.vmem [shape: f32[1,32], index: 13, kind: input, shape index: {}]
  %s14 = inlined_call_operand.vmem [shape: f32[1,32], index: 14, kind: input, shape index: {}]
  %s15 = inlined_call_operand.hbm [shape: f32[4,16,32], index: 15, kind: output, shape index: {0}]
  %s16 = inlined_call_operand.hbm [shape: f32[4,4,16,16], index: 16, kind: output, shape index: {1}]
  %17 = xla_tuple %s15, %s16
  %s18 = sld [smem:[#allocation0]]
  $region90: #{tpu_custom_call.1} parent=0
    _
  %s20 = ssub.s32 1, %s18
  %s21 = scalar_select 0, %s20, %s18
  $region1: #{tpu_custom_call.1} parent=0
    #allocation2 [shape = 'u8[32768]{0}', space=vmem, size = 0x8000, scoped, tag = 'input window, operand 0, single buffered']
    #allocation3 [shape = 's32[1]{0}', space=sflag, size = 0x4, scoped, tag = 'scoped memory for tpu_custom_call.1']
    #allocation4 [shape = 's32[1]{0}', space=sflag, size = 0x4, scoped, tag = 'scoped memory for tpu_custom_call.1']
    #allocation5 [shape = 'u8[32768]{0}', space=vmem, size = 0x8000, scoped, tag = 'input window, operand 1, single buffered']
    #allocation6 [shape = 's32[1]{0}', space=sflag, size = 0x4, scoped, tag = 'scoped memory for tpu_custom_call.1']
    #allocation7 [shape = 'u8[32768]{0}', space=vmem, size = 0x8000, scoped, tag = 'input window, operand 2, single buffered']
    #allocation8 [shape = 'u8[32768]{0}', space=vmem, size = 0x8000, scoped, tag = 'output window, operand 0, single buffered']
    #allocation9 [shape = 'u8[131072]{0}', space=vmem, size = 0x20000, scoped, tag = 'output window, operand 1, single buffered']
    #allocation10 [shape = 's32[1]{0}', space=sflag, size = 0x4, scoped, tag = 'scoped memory for tpu_custom_call.1']
    %22 = vsyncpa [#allocation3], 0
    %23 = vsyncpa [#allocation6], 0
    %24 = vsyncpa [#allocation4], 0
    %25 = vsyncpa [#allocation10], 0
    // Predicated region
    $region2: #{tpu_custom_call.1} parent=1 // pred_check
      _
    $region3: #{tpu_custom_call.1} parent=1 // pred_check_branch
      %27 = sbr.rel (0) target = $region5
    $region4: #{tpu_custom_call.1} parent=1 // pred_region
      %s29 = ssub.s32 1024, 1024
      %30 = vsyncadd [#allocation3], %s29
      %s31 = sshll.u32 [#allocation2], 4
      %s32 = int_to_ptr.vmem [resolvable:$true] %s31
      %37 = dma.hbm_to_vmem [thread:$0]  %s0, 1024, %s32, [#allocation3], 128, 128, 8
    $region5: #{tpu_custom_call.1} parent=1 // pred_fallthru
      _
    // Predicated region
    $region6: #{tpu_custom_call.1} parent=1 // pred_check
      _
    $region7: #{tpu_custom_call.1} parent=1 // pred_check_branch
      %39 = sbr.rel (0) target = $region9
    $region8: #{tpu_custom_call.1} parent=1 // pred_region
      %s41 = ssub.s32 1024, 1024
      %42 = vsyncadd [#allocation6], %s41
      %s43 = sshll.u32 [#allocation5], 4
      %s44 = int_to_ptr.vmem [resolvable:$true] %s43
      %49 = dma.hbm_to_vmem [thread:$0]  %s1, 1024, %s44, [#allocation6], 128, 128, 8
    $region9: #{tpu_custom_call.1} parent=1 // pred_fallthru
      _
    // Predicated region
    $region10: #{tpu_custom_call.1} parent=1 // pred_check
      _
    $region11: #{tpu_custom_call.1} parent=1 // pred_check_branch
      %51 = sbr.rel (0) target = $region13
    $region12: #{tpu_custom_call.1} parent=1 // pred_region
      %s53 = ssub.s32 1024, 1024
      %54 = vsyncadd [#allocation6], %s53
      %s55 = sshll.u32 [#allocation7], 4
      %s56 = int_to_ptr.vmem [resolvable:$true] %s55
      %61 = dma.hbm_to_vmem [thread:$0]  %s2, 1024, %s56, [#allocation6], 128, 128, 8
    $region13: #{tpu_custom_call.1} parent=1 // pred_fallthru
      _
    // Predicated region
    $region14: #{tpu_custom_call.1} parent=1 // pred_check
      _
    $region15: #{tpu_custom_call.1} parent=1 // pred_check_branch
      %63 = sbr.rel (0) target = $region17
    $region16: #{tpu_custom_call.1} parent=1 // pred_region
      _
    $region17: #{tpu_custom_call.1} parent=1 // pred_fallthru
      _
    // Predicated region
    $region18: #{tpu_custom_call.1} parent=1 // pred_check
      _
    $region19: #{tpu_custom_call.1} parent=1 // pred_check_branch
      %65 = sbr.rel (0) target = $region21
    $region20: #{tpu_custom_call.1} parent=1 // pred_region
      _
    $region21: #{tpu_custom_call.1} parent=1 // pred_fallthru
      _
    // Predicated region
    $region22: #{tpu_custom_call.1} parent=1 // pred_check
      _
    $region23: #{tpu_custom_call.1} parent=1 // pred_check_branch
      %67 = sbr.rel (0) target = $region25
    $region24: #{tpu_custom_call.1} parent=1 // pred_region
      _
    $region25: #{tpu_custom_call.1} parent=1 // pred_fallthru
      _
    // Predicated region
    $region26: #{tpu_custom_call.1} parent=1 // pred_check
      _
    $region27: #{tpu_custom_call.1} parent=1 // pred_check_branch
      %69 = sbr.rel (0) target = $region29
    $region28: #{tpu_custom_call.1} parent=1 // pred_region
      _
    $region29: #{tpu_custom_call.1} parent=1 // pred_fallthru
      _
    // Predicated region
    $region30: #{tpu_custom_call.1} parent=1 // pred_check
      _
    $region31: #{tpu_custom_call.1} parent=1 // pred_check_branch
      %71 = sbr.rel (0) target = $region33
    $region32: #{tpu_custom_call.1} parent=1 // pred_region
      _
    $region33: #{tpu_custom_call.1} parent=1 // pred_fallthru
      _
    // Predicated region
    $region34: #{tpu_custom_call.1} parent=1 // pred_check
      _
    $region35: #{tpu_custom_call.1} parent=1 // pred_check_branch
      %73 = sbr.rel (0) target = $region37
    $region36: #{tpu_custom_call.1} parent=1 // pred_region
      _
    $region37: #{tpu_custom_call.1} parent=1 // pred_fallthru
      _
    // Predicated region
    $region38: #{tpu_custom_call.1} parent=1 // pred_check
      _
    $region39: #{tpu_custom_call.1} parent=1 // pred_check_branch
      %75 = sbr.rel (0) target = $region41
    $region40: #{tpu_custom_call.1} parent=1 // pred_region
      _
    $region41: #{tpu_custom_call.1} parent=1 // pred_fallthru
      _
    // Predicated region
    $region42: #{tpu_custom_call.1} parent=1 // pred_check
      _
    $region43: #{tpu_custom_call.1} parent=1 // pred_check_branch
      %77 = sbr.rel (0) target = $region45
    $region44: #{tpu_custom_call.1} parent=1 // pred_region
      _
    $region45: #{tpu_custom_call.1} parent=1 // pred_fallthru
      _
    // Predicated region
    $region46: #{tpu_custom_call.1} parent=1 // pred_check
      _
    $region47: #{tpu_custom_call.1} parent=1 // pred_check_branch
      %79 = sbr.rel (0) target = $region49
    $region48: #{tpu_custom_call.1} parent=1 // pred_region
      _
    $region49: #{tpu_custom_call.1} parent=1 // pred_fallthru
      _
    // Predicated region
    $region50: #{tpu_custom_call.1} parent=1 // pred_check
      _
    $region51: #{tpu_custom_call.1} parent=1 // pred_check_branch
      %81 = sbr.rel (0) target = $region53
    $region52: #{tpu_custom_call.1} parent=1 // pred_region
      _
    $region53: #{tpu_custom_call.1} parent=1 // pred_fallthru
      _
    // Predicated region
    $region54: #{tpu_custom_call.1} parent=1 // pred_check
      _
    $region55: #{tpu_custom_call.1} parent=1 // pred_check_branch
      %83 = sbr.rel (0) target = $region57
    $region56: #{tpu_custom_call.1} parent=1 // pred_region
      _
    $region57: #{tpu_custom_call.1} parent=1 // pred_fallthru
      _
    // Predicated region
    $region58: #{tpu_custom_call.1} parent=1 // pred_check
      _
    $region59: #{tpu_custom_call.1} parent=1 // pred_check_branch
      %85 = sbr.rel (0) target = $region61
    $region60: #{tpu_custom_call.1} parent=1 // pred_region
      _
    $region61: #{tpu_custom_call.1} parent=1 // pred_fallthru
      _
    // Predicated region
    $region62: #{tpu_custom_call.1} parent=1 // pred_check
      _
    $region63: #{tpu_custom_call.1} parent=1 // pred_check_branch
      %87 = sbr.rel (0) target = $region65
    $region64: #{tpu_custom_call.1} parent=1 // pred_region
      %88 = dma.done [#allocation3], 1024
    $region65: #{tpu_custom_call.1} parent=1 // pred_fallthru
      _
    // Predicated region
    $region66: #{tpu_custom_call.1} parent=1 // pred_check
      _
    $region67: #{tpu_custom_call.1} parent=1 // pred_check_branch
      %90 = sbr.rel (0) target = $region69
    $region68: #{tpu_custom_call.1} parent=1 // pred_region
      %91 = dma.done [#allocation6], 1024
    $region69: #{tpu_custom_call.1} parent=1 // pred_fallthru
      _
    // Predicated region
    $region70: #{tpu_custom_call.1} parent=1 // pred_check
      _
    $region71: #{tpu_custom_call.1} parent=1 // pred_check_branch
      %93 = sbr.rel (0) target = $region73
    $region72: #{tpu_custom_call.1} parent=1 // pred_region
      %94 = dma.done [#allocation6], 1024
    $region73: #{tpu_custom_call.1} parent=1 // pred_fallthru
      _
    %v96 = vld [vmem:[#allocation2] sm:$0xff]
    %v97 = vld [vmem:[#allocation2 + $0x8] sm:$0xff]
    %v98 = vld [vmem:[#allocation2 + $0x10] sm:$0xff]
    %v99 = vld [vmem:[#allocation2 + $0x18] sm:$0xff]
    %v100 = vld [vmem:[#allocation2 + $0x20] sm:$0xff]
    %v101 = vld [vmem:[#allocation2 + $0x28] sm:$0xff]
    %v102 = vld [vmem:[#allocation2 + $0x30] sm:$0xff]
    %v103 = vld [vmem:[#allocation2 + $0x38] sm:$0xff]
    %v104 = vpack.c.bf16 %v97, %v96
    %v105 = vpack.c.bf16 %v99, %v98
    %v106 = vpack.c.bf16 %v101, %v100
    %v107 = vpack.c.bf16 %v103, %v102
    %v108 = vld [vmem:[%s3] sm:$0xf]
    %v109 = vld [vmem:[%s3 + $0x4] sm:$0xf]
    %v110 = vld [vmem:[%s3 + $0x8] sm:$0xf]
    %v111 = vld [vmem:[%s3 + $0xc] sm:$0xf]
    %v112 = vld [vmem:[%s4] sm:$0x1]
    %v114 = vlaneseq
    %v115 = vshrl.u32 %v114, 7
    %v116 = vsub.s32 0, %v115
    %v117 = vrot.slane %v112, %v116
    %v123 = vunpack.c.l.b16 %v108
    %v124 = vunpack.c.l.b16 %v109
    %v125 = vunpack.c.l.b16 %v110
    %v126 = vunpack.c.l.b16 %v111
    %v127 = vpack.c.b16 %v124, %v123
    %v128 = vpack.c.b16 %v126, %v125
    %vm131 = vcmask 261120
    %v133 = vsel %vm131, %v104, 0
    %v136 = vsel %vm131, %v105, 0
    %v139 = vsel %vm131, %v106, 0
    %v142 = vsel %vm131, %v107, 0
    %144 = vmatprep.subr.bf16.mxu0 0
    %145 = vmatpush1.bf16.msra.mxu0 %v127
    %146 = vmatprep.subr.bf16.mxu0 0
    %147 = vmatpush1.bf16.msra.mxu0 %v128
    %148 = vmatprep.subr.bf16.mxu0 0
    %149 = vmatpush1.bf16.msra.mxu0 0
    %150 = vmatprep.subr.bf16.mxu0 0
    %151 = vmatpush1.bf16.msra.mxu0 0
    %152 = vmatprep.subr.bf16.mxu0 0
    %153 = vmatpush1.bf16.msra.mxu0 0
    %154 = vmatprep.subr.bf16.mxu0 0
    %155 = vmatpush1.bf16.msra.mxu0 0
    %156 = vmatprep.subr.bf16.mxu0 0
    %157 = vmatpush1.bf16.msra.mxu0 0
    %158 = vmatprep.subr.bf16.mxu0 0
    %159 = vmatpush1.bf16.msra.mxu0 0
    %160 = vmatprep.subr.bf16.mxu0 0
    %161 = vmatpush1.bf16.msra.mxu0 0
    %162 = vmatprep.subr.bf16.mxu0 0
    %163 = vmatpush1.bf16.msra.mxu0 0
    %164 = vmatprep.subr.bf16.mxu0 0
    %165 = vmatpush1.bf16.msra.mxu0 0
    %166 = vmatprep.subr.bf16.mxu0 0
    %167 = vmatpush1.bf16.msra.mxu0 0
    %168 = vmatprep.subr.bf16.mxu0 0
    %169 = vmatpush1.bf16.msra.mxu0 0
    %170 = vmatprep.subr.bf16.mxu0 0
    %171 = vmatpush1.bf16.msra.mxu0 0
    %172 = vmatprep.subr.bf16.mxu0 0
    %173 = vmatpush1.bf16.msra.mxu0 0
    %174 = vmatprep.subr.bf16.mxu0 0
    %175 = vmatpush1.bf16.msra.mxu0 0
    %176 = vmatprep.mubr.bf16.mxu0 0
    %177 = vmatmul.mubr.bf16.gmra.mrb[0].mxu0 %v133
    %v178 = vpop.f32.mrb[0].mxu0
    %v179 = vadd.f32 %v117, %v178
    %v180 = vpop.f32.mrb[0].mxu0
    %v181 = vpop.f32.mrb[0].mxu0
    %v182 = vadd.f32 %v117, %v181
    %v183 = vpop.f32.mrb[0].mxu0
    %184 = vmatprep.mubr.bf16.mxu0 0
    %185 = vmatmul.mubr.bf16.gmra.mrb[0].mxu0 %v136
    %v186 = vpop.f32.mrb[0].mxu0
    %v187 = vadd.f32 %v117, %v186
    %v188 = vpop.f32.mrb[0].mxu0
    %v189 = vpop.f32.mrb[0].mxu0
    %v190 = vadd.f32 %v117, %v189
    %v191 = vpop.f32.mrb[0].mxu0
    %192 = vmatprep.mubr.bf16.mxu0 0
    %193 = vmatmul.mubr.bf16.gmra.mrb[0].mxu0 %v139
    %v194 = vpop.f32.mrb[0].mxu0
    %v195 = vadd.f32 %v117, %v194
    %v196 = vpop.f32.mrb[0].mxu0
    %v197 = vpop.f32.mrb[0].mxu0
    %v198 = vadd.f32 %v117, %v197
    %v199 = vpop.f32.mrb[0].mxu0
    %200 = vmatprep.mubr.bf16.mxu0 0
    %201 = vmatmul.mubr.bf16.gmra.mrb[0].mxu0 %v142
    %v202 = vpop.f32.mrb[0].mxu0
    %v203 = vadd.f32 %v117, %v202
    %v204 = vpop.f32.mrb[0].mxu0
    %v205 = vpop.f32.mrb[0].mxu0
    %v206 = vadd.f32 %v117, %v205
    %v207 = vpop.f32.mrb[0].mxu0
    %208 = vdwg.mxu0
    %217 = vrot.lane.b32.xlu0 %v179, 120
    %v218 = vpop.permute.xlu0 %217
    %219 = vrot.lane.b32.xlu0 %v182, 120
    %v220 = vpop.permute.xlu0 %219
    %221 = vrot.lane.b32.xlu0 %v187, 120
    %v222 = vpop.permute.xlu0 %221
    %223 = vrot.lane.b32.xlu0 %v190, 120
    %v224 = vpop.permute.xlu0 %223
    %225 = vrot.lane.b32.xlu0 %v195, 120
    %v226 = vpop.permute.xlu0 %225
    %227 = vrot.lane.b32.xlu0 %v198, 120
    %v228 = vpop.permute.xlu0 %227
    %229 = vrot.lane.b32.xlu0 %v203, 120
    %v230 = vpop.permute.xlu0 %229
    %231 = vrot.lane.b32.xlu0 %v206, 120
    %v232 = vpop.permute.xlu0 %231
    %241 = vrot.lane.b32.xlu0 %v179, 112
    %v242 = vpop.permute.xlu0 %241
    %243 = vrot.lane.b32.xlu0 %v182, 112
    %v244 = vpop.permute.xlu0 %243
    %245 = vrot.lane.b32.xlu0 %v187, 112
    %v246 = vpop.permute.xlu0 %245
    %247 = vrot.lane.b32.xlu0 %v190, 112
    %v248 = vpop.permute.xlu0 %247
    %249 = vrot.lane.b32.xlu0 %v195, 112
    %v250 = vpop.permute.xlu0 %249
    %251 = vrot.lane.b32.xlu0 %v198, 112
    %v252 = vpop.permute.xlu0 %251
    %253 = vrot.lane.b32.xlu0 %v203, 112
    %v254 = vpop.permute.xlu0 %253
    %255 = vrot.lane.b32.xlu0 %v206, 112
    %v256 = vpop.permute.xlu0 %255
    %265 = vrot.lane.b32.xlu0 %v179, 104
    %v266 = vpop.permute.xlu0 %265
    %267 = vrot.lane.b32.xlu0 %v182, 104
    %v268 = vpop.permute.xlu0 %267
    %269 = vrot.lane.b32.xlu0 %v187, 104
    %v270 = vpop.permute.xlu0 %269
    %271 = vrot.lane.b32.xlu0 %v190, 104
    %v272 = vpop.permute.xlu0 %271
    %273 = vrot.lane.b32.xlu0 %v195, 104
    %v274 = vpop.permute.xlu0 %273
    %275 = vrot.lane.b32.xlu0 %v198, 104
    %v276 = vpop.permute.xlu0 %275
    %277 = vrot.lane.b32.xlu0 %v203, 104
    %v278 = vpop.permute.xlu0 %277
    %279 = vrot.lane.b32.xlu0 %v206, 104
    %v280 = vpop.permute.xlu0 %279
    %v289 = vcombine.low %v179, %v242
    %v290 = vcombine.high %v179, %v242
    %v292 = vunpack.c.l.s4 1983009808
    %v293 = vunpack.c.0.s8 %v292
    %v294 = vlaneseq
    %v295 = vshrl.u32 %v294, 7
    %v296 = vsub.s32 %v293, %v295
    %v297 = vrot.slane %v289, %v296
    %v299 = vunpack.c.l.s4 1983009808
    %v300 = vunpack.c.0.s8 %v299
    %v301 = vlaneseq
    %v302 = vshrl.u32 %v301, 7
    %v303 = vsub.s32 %v300, %v302
    %v304 = vrot.slane %v290, %v303
    %v305 = vcombine.low %v218, %v266
    %v306 = vcombine.high %v218, %v266
    %v308 = vunpack.c.l.s4 1983009808
    %v309 = vunpack.c.0.s8 %v308
    %v310 = vlaneseq
    %v311 = vshrl.u32 %v310, 7
    %v312 = vsub.s32 %v309, %v311
    %v313 = vrot.slane %v305, %v312
    %v315 = vunpack.c.l.s4 1983009808
    %v316 = vunpack.c.0.s8 %v315
    %v317 = vlaneseq
    %v318 = vshrl.u32 %v317, 7
    %v319 = vsub.s32 %v316, %v318
    %v320 = vrot.slane %v306, %v319
    %v321 = vcombine.low %v297, %v313
    %v322 = vcombine.high %v297, %v313
    %v324 = vunpack.c.l.s4 1934713408
    %v325 = vunpack.c.0.s8 %v324
    %v326 = vlaneseq
    %v327 = vshrl.u32 %v326, 7
    %v328 = vsub.s32 %v325, %v327
    %v329 = vrot.slane %v321, %v328
    %v331 = vunpack.c.l.s4 1934713408
    %v332 = vunpack.c.0.s8 %v331
    %v333 = vlaneseq
    %v334 = vshrl.u32 %v333, 7
    %v335 = vsub.s32 %v332, %v334
    %v336 = vrot.slane %v322, %v335
    %v337 = vcombine.low %v304, %v320
    %v338 = vcombine.high %v304, %v320
    %v340 = vunpack.c.l.s4 1934713408
    %v341 = vunpack.c.0.s8 %v340
    %v342 = vlaneseq
    %v343 = vshrl.u32 %v342, 7
    %v344 = vsub.s32 %v341, %v343
    %v345 = vrot.slane %v337, %v344
    %v347 = vunpack.c.l.s4 1934713408
    %v348 = vunpack.c.0.s8 %v347
    %v349 = vlaneseq
    %v350 = vshrl.u32 %v349, 7
    %v351 = vsub.s32 %v348, %v350
    %v352 = vrot.slane %v338, %v351
    %v353 = vcombine.high %v329, 0.0
    %v354 = vcombine.high %v336, 0.0
    %v355 = vcombine.high %v345, 0.0
    %v356 = vcombine.high %v352, 0.0
    %v357 = vcombine.low %v182, %v244
    %v358 = vcombine.high %v182, %v244
    %v360 = vunpack.c.l.s4 1983009808
    %v361 = vunpack.c.0.s8 %v360
    %v362 = vlaneseq
    %v363 = vshrl.u32 %v362, 7
    %v364 = vsub.s32 %v361, %v363
    %v365 = vrot.slane %v357, %v364
    %v367 = vunpack.c.l.s4 1983009808
    %v368 = vunpack.c.0.s8 %v367
    %v369 = vlaneseq
    %v370 = vshrl.u32 %v369, 7
    %v371 = vsub.s32 %v368, %v370
    %v372 = vrot.slane %v358, %v371
    %v373 = vcombine.low %v220, %v268
    %v374 = vcombine.high %v220, %v268
    %v376 = vunpack.c.l.s4 1983009808
    %v377 = vunpack.c.0.s8 %v376
    %v378 = vlaneseq
    %v379 = vshrl.u32 %v378, 7
    %v380 = vsub.s32 %v377, %v379
    %v381 = vrot.slane %v373, %v380
    %v383 = vunpack.c.l.s4 1983009808
    %v384 = vunpack.c.0.s8 %v383
    %v385 = vlaneseq
    %v386 = vshrl.u32 %v385, 7
    %v387 = vsub.s32 %v384, %v386
    %v388 = vrot.slane %v374, %v387
    %v389 = vcombine.low %v365, %v381
    %v390 = vcombine.high %v365, %v381
    %v392 = vunpack.c.l.s4 1934713408
    %v393 = vunpack.c.0.s8 %v392
    %v394 = vlaneseq
    %v395 = vshrl.u32 %v394, 7
    %v396 = vsub.s32 %v393, %v395
    %v397 = vrot.slane %v389, %v396
    %v399 = vunpack.c.l.s4 1934713408
    %v400 = vunpack.c.0.s8 %v399
    %v401 = vlaneseq
    %v402 = vshrl.u32 %v401, 7
    %v403 = vsub.s32 %v400, %v402
    %v404 = vrot.slane %v390, %v403
    %v405 = vcombine.low %v372, %v388
    %v406 = vcombine.high %v372, %v388
    %v408 = vunpack.c.l.s4 1934713408
    %v409 = vunpack.c.0.s8 %v408
    %v410 = vlaneseq
    %v411 = vshrl.u32 %v410, 7
    %v412 = vsub.s32 %v409, %v411
    %v413 = vrot.slane %v405, %v412
    %v415 = vunpack.c.l.s4 1934713408
    %v416 = vunpack.c.0.s8 %v415
    %v417 = vlaneseq
    %v418 = vshrl.u32 %v417, 7
    %v419 = vsub.s32 %v416, %v418
    %v420 = vrot.slane %v406, %v419
    %v421 = vcombine.high %v397, 0.0
    %v422 = vcombine.high %v404, 0.0
    %v423 = vcombine.high %v413, 0.0
    %v424 = vcombine.high %v420, 0.0
    %v425 = vcombine.low %v187, %v246
    %v426 = vcombine.high %v187, %v246
    %v428 = vunpack.c.l.s4 1983009808
    %v429 = vunpack.c.0.s8 %v428
    %v430 = vlaneseq
    %v431 = vshrl.u32 %v430, 7
    %v432 = vsub.s32 %v429, %v431
    %v433 = vrot.slane %v425, %v432
    %v435 = vunpack.c.l.s4 1983009808
    %v436 = vunpack.c.0.s8 %v435
    %v437 = vlaneseq
    %v438 = vshrl.u32 %v437, 7
    %v439 = vsub.s32 %v436, %v438
    %v440 = vrot.slane %v426, %v439
    %v441 = vcombine.low %v222, %v270
    %v442 = vcombine.high %v222, %v270
    %v444 = vunpack.c.l.s4 1983009808
    %v445 = vunpack.c.0.s8 %v444
    %v446 = vlaneseq
    %v447 = vshrl.u32 %v446, 7
    %v448 = vsub.s32 %v445, %v447
    %v449 = vrot.slane %v441, %v448
    %v451 = vunpack.c.l.s4 1983009808
    %v452 = vunpack.c.0.s8 %v451
    %v453 = vlaneseq
    %v454 = vshrl.u32 %v453, 7
    %v455 = vsub.s32 %v452, %v454
    %v456 = vrot.slane %v442, %v455
    %v457 = vcombine.low %v433, %v449
    %v458 = vcombine.high %v433, %v449
    %v460 = vunpack.c.l.s4 1934713408
    %v461 = vunpack.c.0.s8 %v460
    %v462 = vlaneseq
    %v463 = vshrl.u32 %v462, 7
    %v464 = vsub.s32 %v461, %v463
    %v465 = vrot.slane %v457, %v464
    %v467 = vunpack.c.l.s4 1934713408
    %v468 = vunpack.c.0.s8 %v467
    %v469 = vlaneseq
    %v470 = vshrl.u32 %v469, 7
    %v471 = vsub.s32 %v468, %v470
    %v472 = vrot.slane %v458, %v471
    %v473 = vcombine.low %v440, %v456
    %v474 = vcombine.high %v440, %v456
    %v476 = vunpack.c.l.s4 1934713408
    %v477 = vunpack.c.0.s8 %v476
    %v478 = vlaneseq
    %v479 = vshrl.u32 %v478, 7
    %v480 = vsub.s32 %v477, %v479
    %v481 = vrot.slane %v473, %v480
    %v483 = vunpack.c.l.s4 1934713408
    %v484 = vunpack.c.0.s8 %v483
    %v485 = vlaneseq
    %v486 = vshrl.u32 %v485, 7
    %v487 = vsub.s32 %v484, %v486
    %v488 = vrot.slane %v474, %v487
    %v489 = vcombine.high %v465, 0.0
    %v490 = vcombine.high %v472, 0.0
    %v491 = vcombine.high %v481, 0.0
    %v492 = vcombine.high %v488, 0.0
    %v493 = vcombine.low %v190, %v248
    %v494 = vcombine.high %v190, %v248
    %v496 = vunpack.c.l.s4 1983009808
    %v497 = vunpack.c.0.s8 %v496
    %v498 = vlaneseq
    %v499 = vshrl.u32 %v498, 7
    %v500 = vsub.s32 %v497, %v499
    %v501 = vrot.slane %v493, %v500
    %v503 = vunpack.c.l.s4 1983009808
    %v504 = vunpack.c.0.s8 %v503
    %v505 = vlaneseq
    %v506 = vshrl.u32 %v505, 7
    %v507 = vsub.s32 %v504, %v506
    %v508 = vrot.slane %v494, %v507
    %v509 = vcombine.low %v224, %v272
    %v510 = vcombine.high %v224, %v272
    %v512 = vunpack.c.l.s4 1983009808
    %v513 = vunpack.c.0.s8 %v512
    %v514 = vlaneseq
    %v515 = vshrl.u32 %v514, 7
    %v516 = vsub.s32 %v513, %v515
    %v517 = vrot.slane %v509, %v516
    %v519 = vunpack.c.l.s4 1983009808
    %v520 = vunpack.c.0.s8 %v519
    %v521 = vlaneseq
    %v522 = vshrl.u32 %v521, 7
    %v523 = vsub.s32 %v520, %v522
    %v524 = vrot.slane %v510, %v523
    %v525 = vcombine.low %v501, %v517
    %v526 = vcombine.high %v501, %v517
    %v528 = vunpack.c.l.s4 1934713408
    %v529 = vunpack.c.0.s8 %v528
    %v530 = vlaneseq
    %v531 = vshrl.u32 %v530, 7
    %v532 = vsub.s32 %v529, %v531
    %v533 = vrot.slane %v525, %v532
    %v535 = vunpack.c.l.s4 1934713408
    %v536 = vunpack.c.0.s8 %v535
    %v537 = vlaneseq
    %v538 = vshrl.u32 %v537, 7
    %v539 = vsub.s32 %v536, %v538
    %v540 = vrot.slane %v526, %v539
    %v541 = vcombine.low %v508, %v524
    %v542 = vcombine.high %v508, %v524
    %v544 = vunpack.c.l.s4 1934713408
    %v545 = vunpack.c.0.s8 %v544
    %v546 = vlaneseq
    %v547 = vshrl.u32 %v546, 7
    %v548 = vsub.s32 %v545, %v547
    %v549 = vrot.slane %v541, %v548
    %v551 = vunpack.c.l.s4 1934713408
    %v552 = vunpack.c.0.s8 %v551
    %v553 = vlaneseq
    %v554 = vshrl.u32 %v553, 7
    %v555 = vsub.s32 %v552, %v554
    %v556 = vrot.slane %v542, %v555
    %v557 = vcombine.high %v533, 0.0
    %v558 = vcombine.high %v540, 0.0
    %v559 = vcombine.high %v549, 0.0
    %v560 = vcombine.high %v556, 0.0
    %v561 = vcombine.low %v195, %v250
    %v562 = vcombine.high %v195, %v250
    %v564 = vunpack.c.l.s4 1983009808
    %v565 = vunpack.c.0.s8 %v564
    %v566 = vlaneseq
    %v567 = vshrl.u32 %v566, 7
    %v568 = vsub.s32 %v565, %v567
    %v569 = vrot.slane %v561, %v568
    %v571 = vunpack.c.l.s4 1983009808
    %v572 = vunpack.c.0.s8 %v571
    %v573 = vlaneseq
    %v574 = vshrl.u32 %v573, 7
    %v575 = vsub.s32 %v572, %v574
    %v576 = vrot.slane %v562, %v575
    %v577 = vcombine.low %v226, %v274
    %v578 = vcombine.high %v226, %v274
    %v580 = vunpack.c.l.s4 1983009808
    %v581 = vunpack.c.0.s8 %v580
    %v582 = vlaneseq
    %v583 = vshrl.u32 %v582, 7
    %v584 = vsub.s32 %v581, %v583
    %v585 = vrot.slane %v577, %v584
    %v587 = vunpack.c.l.s4 1983009808
    %v588 = vunpack.c.0.s8 %v587
    %v589 = vlaneseq
    %v590 = vshrl.u32 %v589, 7
    %v591 = vsub.s32 %v588, %v590
    %v592 = vrot.slane %v578, %v591
    %v593 = vcombine.low %v569, %v585
    %v594 = vcombine.high %v569, %v585
    %v596 = vunpack.c.l.s4 1934713408
    %v597 = vunpack.c.0.s8 %v596
    %v598 = vlaneseq
    %v599 = vshrl.u32 %v598, 7
    %v600 = vsub.s32 %v597, %v599
    %v601 = vrot.slane %v593, %v600
    %v603 = vunpack.c.l.s4 1934713408
    %v604 = vunpack.c.0.s8 %v603
    %v605 = vlaneseq
    %v606 = vshrl.u32 %v605, 7
    %v607 = vsub.s32 %v604, %v606
    %v608 = vrot.slane %v594, %v607
    %v609 = vcombine.low %v576, %v592
    %v610 = vcombine.high %v576, %v592
    %v612 = vunpack.c.l.s4 1934713408
    %v613 = vunpack.c.0.s8 %v612
    %v614 = vlaneseq
    %v615 = vshrl.u32 %v614, 7
    %v616 = vsub.s32 %v613, %v615
    %v617 = vrot.slane %v609, %v616
    %v619 = vunpack.c.l.s4 1934713408
    %v620 = vunpack.c.0.s8 %v619
    %v621 = vlaneseq
    %v622 = vshrl.u32 %v621, 7
    %v623 = vsub.s32 %v620, %v622
    %v624 = vrot.slane %v610, %v623
    %v625 = vcombine.high %v601, 0.0
    %v626 = vcombine.high %v608, 0.0
    %v627 = vcombine.high %v617, 0.0
    %v628 = vcombine.high %v624, 0.0
    %v629 = vcombine.low %v198, %v252
    %v630 = vcombine.high %v198, %v252
    %v632 = vunpack.c.l.s4 1983009808
    %v633 = vunpack.c.0.s8 %v632
    %v634 = vlaneseq
    %v635 = vshrl.u32 %v634, 7
    %v636 = vsub.s32 %v633, %v635
    %v637 = vrot.slane %v629, %v636
    %v639 = vunpack.c.l.s4 1983009808
    %v640 = vunpack.c.0.s8 %v639
    %v641 = vlaneseq
    %v642 = vshrl.u32 %v641, 7
    %v643 = vsub.s32 %v640, %v642
    %v644 = vrot.slane %v630, %v643
    %v645 = vcombine.low %v228, %v276
    %v646 = vcombine.high %v228, %v276
    %v648 = vunpack.c.l.s4 1983009808
    %v649 = vunpack.c.0.s8 %v648
    %v650 = vlaneseq
    %v651 = vshrl.u32 %v650, 7
    %v652 = vsub.s32 %v649, %v651
    %v653 = vrot.slane %v645, %v652
    %v655 = vunpack.c.l.s4 1983009808
    %v656 = vunpack.c.0.s8 %v655
    %v657 = vlaneseq
    %v658 = vshrl.u32 %v657, 7
    %v659 = vsub.s32 %v656, %v658
    %v660 = vrot.slane %v646, %v659
    %v661 = vcombine.low %v637, %v653
    %v662 = vcombine.high %v637, %v653
    %v664 = vunpack.c.l.s4 1934713408
    %v665 = vunpack.c.0.s8 %v664
    %v666 = vlaneseq
    %v667 = vshrl.u32 %v666, 7
    %v668 = vsub.s32 %v665, %v667
    %v669 = vrot.slane %v661, %v668
    %v671 = vunpack.c.l.s4 1934713408
    %v672 = vunpack.c.0.s8 %v671
    %v673 = vlaneseq
    %v674 = vshrl.u32 %v673, 7
    %v675 = vsub.s32 %v672, %v674
    %v676 = vrot.slane %v662, %v675
    %v677 = vcombine.low %v644, %v660
    %v678 = vcombine.high %v644, %v660
    %v680 = vunpack.c.l.s4 1934713408
    %v681 = vunpack.c.0.s8 %v680
    %v682 = vlaneseq
    %v683 = vshrl.u32 %v682, 7
    %v684 = vsub.s32 %v681, %v683
    %v685 = vrot.slane %v677, %v684
    %v687 = vunpack.c.l.s4 1934713408
    %v688 = vunpack.c.0.s8 %v687
    %v689 = vlaneseq
    %v690 = vshrl.u32 %v689, 7
    %v691 = vsub.s32 %v688, %v690
    %v692 = vrot.slane %v678, %v691
    %v693 = vcombine.high %v669, 0.0
    %v694 = vcombine.high %v676, 0.0
    %v695 = vcombine.high %v685, 0.0
    %v696 = vcombine.high %v692, 0.0
    %v697 = vcombine.low %v203, %v254
    %v698 = vcombine.high %v203, %v254
    %v700 = vunpack.c.l.s4 1983009808
    %v701 = vunpack.c.0.s8 %v700
    %v702 = vlaneseq
    %v703 = vshrl.u32 %v702, 7
    %v704 = vsub.s32 %v701, %v703
    %v705 = vrot.slane %v697, %v704
    %v707 = vunpack.c.l.s4 1983009808
    %v708 = vunpack.c.0.s8 %v707
    %v709 = vlaneseq
    %v710 = vshrl.u32 %v709, 7
    %v711 = vsub.s32 %v708, %v710
    %v712 = vrot.slane %v698, %v711
    %v713 = vcombine.low %v230, %v278
    %v714 = vcombine.high %v230, %v278
    %v716 = vunpack.c.l.s4 1983009808
    %v717 = vunpack.c.0.s8 %v716
    %v718 = vlaneseq
    %v719 = vshrl.u32 %v718, 7
    %v720 = vsub.s32 %v717, %v719
    %v721 = vrot.slane %v713, %v720
    %v723 = vunpack.c.l.s4 1983009808
    %v724 = vunpack.c.0.s8 %v723
    %v725 = vlaneseq
    %v726 = vshrl.u32 %v725, 7
    %v727 = vsub.s32 %v724, %v726
    %v728 = vrot.slane %v714, %v727
    %v729 = vcombine.low %v705, %v721
    %v730 = vcombine.high %v705, %v721
    %v732 = vunpack.c.l.s4 1934713408
    %v733 = vunpack.c.0.s8 %v732
    %v734 = vlaneseq
    %v735 = vshrl.u32 %v734, 7
    %v736 = vsub.s32 %v733, %v735
    %v737 = vrot.slane %v729, %v736
    %v739 = vunpack.c.l.s4 1934713408
    %v740 = vunpack.c.0.s8 %v739
    %v741 = vlaneseq
    %v742 = vshrl.u32 %v741, 7
    %v743 = vsub.s32 %v740, %v742
    %v744 = vrot.slane %v730, %v743
    %v745 = vcombine.low %v712, %v728
    %v746 = vcombine.high %v712, %v728
    %v748 = vunpack.c.l.s4 1934713408
    %v749 = vunpack.c.0.s8 %v748
    %v750 = vlaneseq
    %v751 = vshrl.u32 %v750, 7
    %v752 = vsub.s32 %v749, %v751
    %v753 = vrot.slane %v745, %v752
    %v755 = vunpack.c.l.s4 1934713408
    %v756 = vunpack.c.0.s8 %v755
    %v757 = vlaneseq
    %v758 = vshrl.u32 %v757, 7
    %v759 = vsub.s32 %v756, %v758
    %v760 = vrot.slane %v746, %v759
    %v761 = vcombine.high %v737, 0.0
    %v762 = vcombine.high %v744, 0.0
    %v763 = vcombine.high %v753, 0.0
    %v764 = vcombine.high %v760, 0.0
    %v765 = vcombine.low %v206, %v256
    %v766 = vcombine.high %v206, %v256
    %v768 = vunpack.c.l.s4 1983009808
    %v769 = vunpack.c.0.s8 %v768
    %v770 = vlaneseq
    %v771 = vshrl.u32 %v770, 7
    %v772 = vsub.s32 %v769, %v771
    %v773 = vrot.slane %v765, %v772
    %v775 = vunpack.c.l.s4 1983009808
    %v776 = vunpack.c.0.s8 %v775
    %v777 = vlaneseq
    %v778 = vshrl.u32 %v777, 7
    %v779 = vsub.s32 %v776, %v778
    %v780 = vrot.slane %v766, %v779
    %v781 = vcombine.low %v232, %v280
    %v782 = vcombine.high %v232, %v280
    %v784 = vunpack.c.l.s4 1983009808
    %v785 = vunpack.c.0.s8 %v784
    %v786 = vlaneseq
    %v787 = vshrl.u32 %v786, 7
    %v788 = vsub.s32 %v785, %v787
    %v789 = vrot.slane %v781, %v788
    %v791 = vunpack.c.l.s4 1983009808
    %v792 = vunpack.c.0.s8 %v791
    %v793 = vlaneseq
    %v794 = vshrl.u32 %v793, 7
    %v795 = vsub.s32 %v792, %v794
    %v796 = vrot.slane %v782, %v795
    %v797 = vcombine.low %v773, %v789
    %v798 = vcombine.high %v773, %v789
    %v800 = vunpack.c.l.s4 1934713408
    %v801 = vunpack.c.0.s8 %v800
    %v802 = vlaneseq
    %v803 = vshrl.u32 %v802, 7
    %v804 = vsub.s32 %v801, %v803
    %v805 = vrot.slane %v797, %v804
    %v807 = vunpack.c.l.s4 1934713408
    %v808 = vunpack.c.0.s8 %v807
    %v809 = vlaneseq
    %v810 = vshrl.u32 %v809, 7
    %v811 = vsub.s32 %v808, %v810
    %v812 = vrot.slane %v798, %v811
    %v813 = vcombine.low %v780, %v796
    %v814 = vcombine.high %v780, %v796
    %v816 = vunpack.c.l.s4 1934713408
    %v817 = vunpack.c.0.s8 %v816
    %v818 = vlaneseq
    %v819 = vshrl.u32 %v818, 7
    %v820 = vsub.s32 %v817, %v819
    %v821 = vrot.slane %v813, %v820
    %v823 = vunpack.c.l.s4 1934713408
    %v824 = vunpack.c.0.s8 %v823
    %v825 = vlaneseq
    %v826 = vshrl.u32 %v825, 7
    %v827 = vsub.s32 %v824, %v826
    %v828 = vrot.slane %v814, %v827
    %v829 = vcombine.high %v805, 0.0
    %v830 = vcombine.high %v812, 0.0
    %v831 = vcombine.high %v821, 0.0
    %v832 = vcombine.high %v828, 0.0
    %v833 = vcombine.low %v329, %v336
    %v835 = vunpack.c.l.s4 1983009808
    %v836 = vunpack.c.0.s8 %v835
    %v837 = vlaneseq
    %v838 = vshrl.u32 %v837, 7
    %v839 = vsub.s32 %v836, %v838
    %v840 = vrot.slane %v833, %v839
    %v841 = vcombine.low %v353, %v354
    %v843 = vunpack.c.l.s4 1983009808
    %v844 = vunpack.c.0.s8 %v843
    %v845 = vlaneseq
    %v846 = vshrl.u32 %v845, 7
    %v847 = vsub.s32 %v844, %v846
    %v848 = vrot.slane %v841, %v847
    %v849 = vcombine.low %v345, %v352
    %v851 = vunpack.c.l.s4 1983009808
    %v852 = vunpack.c.0.s8 %v851
    %v853 = vlaneseq
    %v854 = vshrl.u32 %v853, 7
    %v855 = vsub.s32 %v852, %v854
    %v856 = vrot.slane %v849, %v855
    %v857 = vcombine.low %v355, %v356
    %v859 = vunpack.c.l.s4 1983009808
    %v860 = vunpack.c.0.s8 %v859
    %v861 = vlaneseq
    %v862 = vshrl.u32 %v861, 7
    %v863 = vsub.s32 %v860, %v862
    %v864 = vrot.slane %v857, %v863
    %v865 = vcombine.low %v840, %v848
    %v866 = vcombine.high %v840, %v848
    %v868 = vunpack.c.l.s4 1934713408
    %v869 = vunpack.c.0.s8 %v868
    %v870 = vlaneseq
    %v871 = vshrl.u32 %v870, 7
    %v872 = vsub.s32 %v869, %v871
    %v873 = vrot.slane %v865, %v872
    %v875 = vunpack.c.l.s4 1934713408
    %v876 = vunpack.c.0.s8 %v875
    %v877 = vlaneseq
    %v878 = vshrl.u32 %v877, 7
    %v879 = vsub.s32 %v876, %v878
    %v880 = vrot.slane %v866, %v879
    %v881 = vcombine.low %v856, %v864
    %v882 = vcombine.high %v856, %v864
    %v884 = vunpack.c.l.s4 1934713408
    %v885 = vunpack.c.0.s8 %v884
    %v886 = vlaneseq
    %v887 = vshrl.u32 %v886, 7
    %v888 = vsub.s32 %v885, %v887
    %v889 = vrot.slane %v881, %v888
    %v891 = vunpack.c.l.s4 1934713408
    %v892 = vunpack.c.0.s8 %v891
    %v893 = vlaneseq
    %v894 = vshrl.u32 %v893, 7
    %v895 = vsub.s32 %v892, %v894
    %v896 = vrot.slane %v882, %v895
    %v897 = vcombine.low %v873, %v889
    %v898 = vcombine.high %v873, %v889
    %v899 = vcombine.low %v880, %v896
    %v900 = vcombine.high %v880, %v896
    %v901 = vcombine.low %v397, %v404
    %v903 = vunpack.c.l.s4 1983009808
    %v904 = vunpack.c.0.s8 %v903
    %v905 = vlaneseq
    %v906 = vshrl.u32 %v905, 7
    %v907 = vsub.s32 %v904, %v906
    %v908 = vrot.slane %v901, %v907
    %v909 = vcombine.low %v421, %v422
    %v911 = vunpack.c.l.s4 1983009808
    %v912 = vunpack.c.0.s8 %v911
    %v913 = vlaneseq
    %v914 = vshrl.u32 %v913, 7
    %v915 = vsub.s32 %v912, %v914
    %v916 = vrot.slane %v909, %v915
    %v917 = vcombine.low %v413, %v420
    %v919 = vunpack.c.l.s4 1983009808
    %v920 = vunpack.c.0.s8 %v919
    %v921 = vlaneseq
    %v922 = vshrl.u32 %v921, 7
    %v923 = vsub.s32 %v920, %v922
    %v924 = vrot.slane %v917, %v923
    %v925 = vcombine.low %v423, %v424
    %v927 = vunpack.c.l.s4 1983009808
    %v928 = vunpack.c.0.s8 %v927
    %v929 = vlaneseq
    %v930 = vshrl.u32 %v929, 7
    %v931 = vsub.s32 %v928, %v930
    %v932 = vrot.slane %v925, %v931
    %v933 = vcombine.low %v908, %v916
    %v934 = vcombine.high %v908, %v916
    %v936 = vunpack.c.l.s4 1934713408
    %v937 = vunpack.c.0.s8 %v936
    %v938 = vlaneseq
    %v939 = vshrl.u32 %v938, 7
    %v940 = vsub.s32 %v937, %v939
    %v941 = vrot.slane %v933, %v940
    %v943 = vunpack.c.l.s4 1934713408
    %v944 = vunpack.c.0.s8 %v943
    %v945 = vlaneseq
    %v946 = vshrl.u32 %v945, 7
    %v947 = vsub.s32 %v944, %v946
    %v948 = vrot.slane %v934, %v947
    %v949 = vcombine.low %v924, %v932
    %v950 = vcombine.high %v924, %v932
    %v952 = vunpack.c.l.s4 1934713408
    %v953 = vunpack.c.0.s8 %v952
    %v954 = vlaneseq
    %v955 = vshrl.u32 %v954, 7
    %v956 = vsub.s32 %v953, %v955
    %v957 = vrot.slane %v949, %v956
    %v959 = vunpack.c.l.s4 1934713408
    %v960 = vunpack.c.0.s8 %v959
    %v961 = vlaneseq
    %v962 = vshrl.u32 %v961, 7
    %v963 = vsub.s32 %v960, %v962
    %v964 = vrot.slane %v950, %v963
    %v965 = vcombine.low %v941, %v957
    %v966 = vcombine.high %v941, %v957
    %v967 = vcombine.low %v948, %v964
    %v968 = vcombine.high %v948, %v964
    %v969 = vcombine.low %v465, %v472
    %v971 = vunpack.c.l.s4 1983009808
    %v972 = vunpack.c.0.s8 %v971
    %v973 = vlaneseq
    %v974 = vshrl.u32 %v973, 7
    %v975 = vsub.s32 %v972, %v974
    %v976 = vrot.slane %v969, %v975
    %v977 = vcombine.low %v489, %v490
    %v979 = vunpack.c.l.s4 1983009808
    %v980 = vunpack.c.0.s8 %v979
    %v981 = vlaneseq
    %v982 = vshrl.u32 %v981, 7
    %v983 = vsub.s32 %v980, %v982
    %v984 = vrot.slane %v977, %v983
    %v985 = vcombine.low %v481, %v488
    %v987 = vunpack.c.l.s4 1983009808
    %v988 = vunpack.c.0.s8 %v987
    %v989 = vlaneseq
    %v990 = vshrl.u32 %v989, 7
    %v991 = vsub.s32 %v988, %v990
    %v992 = vrot.slane %v985, %v991
    %v993 = vcombine.low %v491, %v492
    %v995 = vunpack.c.l.s4 1983009808
    %v996 = vunpack.c.0.s8 %v995
    %v997 = vlaneseq
    %v998 = vshrl.u32 %v997, 7
    %v999 = vsub.s32 %v996, %v998
    %v1000 = vrot.slane %v993, %v999
    %v1001 = vcombine.low %v976, %v984
    %v1002 = vcombine.high %v976, %v984
    %v1004 = vunpack.c.l.s4 1934713408
    %v1005 = vunpack.c.0.s8 %v1004
    %v1006 = vlaneseq
    %v1007 = vshrl.u32 %v1006, 7
    %v1008 = vsub.s32 %v1005, %v1007
    %v1009 = vrot.slane %v1001, %v1008
    %v1011 = vunpack.c.l.s4 1934713408
    %v1012 = vunpack.c.0.s8 %v1011
    %v1013 = vlaneseq
    %v1014 = vshrl.u32 %v1013, 7
    %v1015 = vsub.s32 %v1012, %v1014
    %v1016 = vrot.slane %v1002, %v1015
    %v1017 = vcombine.low %v992, %v1000
    %v1018 = vcombine.high %v992, %v1000
    %v1020 = vunpack.c.l.s4 1934713408
    %v1021 = vunpack.c.0.s8 %v1020
    %v1022 = vlaneseq
    %v1023 = vshrl.u32 %v1022, 7
    %v1024 = vsub.s32 %v1021, %v1023
    %v1025 = vrot.slane %v1017, %v1024
    %v1027 = vunpack.c.l.s4 1934713408
    %v1028 = vunpack.c.0.s8 %v1027
    %v1029 = vlaneseq
    %v1030 = vshrl.u32 %v1029, 7
    %v1031 = vsub.s32 %v1028, %v1030
    %v1032 = vrot.slane %v1018, %v1031
    %v1033 = vcombine.low %v1009, %v1025
    %v1034 = vcombine.high %v1009, %v1025
    %v1035 = vcombine.low %v1016, %v1032
    %v1036 = vcombine.high %v1016, %v1032
    %v1037 = vcombine.low %v533, %v540
    %v1039 = vunpack.c.l.s4 1983009808
    %v1040 = vunpack.c.0.s8 %v1039
    %v1041 = vlaneseq
    %v1042 = vshrl.u32 %v1041, 7
    %v1043 = vsub.s32 %v1040, %v1042
    %v1044 = vrot.slane %v1037, %v1043
    %v1045 = vcombine.low %v557, %v558
    %v1047 = vunpack.c.l.s4 1983009808
    %v1048 = vunpack.c.0.s8 %v1047
    %v1049 = vlaneseq
    %v1050 = vshrl.u32 %v1049, 7
    %v1051 = vsub.s32 %v1048, %v1050
    %v1052 = vrot.slane %v1045, %v1051
    %v1053 = vcombine.low %v549, %v556
    %v1055 = vunpack.c.l.s4 1983009808
    %v1056 = vunpack.c.0.s8 %v1055
    %v1057 = vlaneseq
    %v1058 = vshrl.u32 %v1057, 7
    %v1059 = vsub.s32 %v1056, %v1058
    %v1060 = vrot.slane %v1053, %v1059
    %v1061 = vcombine.low %v559, %v560
    %v1063 = vunpack.c.l.s4 1983009808
    %v1064 = vunpack.c.0.s8 %v1063
    %v1065 = vlaneseq
    %v1066 = vshrl.u32 %v1065, 7
    %v1067 = vsub.s32 %v1064, %v1066
    %v1068 = vrot.slane %v1061, %v1067
    %v1069 = vcombine.low %v1044, %v1052
    %v1070 = vcombine.high %v1044, %v1052
    %v1072 = vunpack.c.l.s4 1934713408
    %v1073 = vunpack.c.0.s8 %v1072
    %v1074 = vlaneseq
    %v1075 = vshrl.u32 %v1074, 7
    %v1076 = vsub.s32 %v1073, %v1075
    %v1077 = vrot.slane %v1069, %v1076
    %v1079 = vunpack.c.l.s4 1934713408
    %v1080 = vunpack.c.0.s8 %v1079
    %v1081 = vlaneseq
    %v1082 = vshrl.u32 %v1081, 7
    %v1083 = vsub.s32 %v1080, %v1082
    %v1084 = vrot.slane %v1070, %v1083
    %v1085 = vcombine.low %v1060, %v1068
    %v1086 = vcombine.high %v1060, %v1068
    %v1088 = vunpack.c.l.s4 1934713408
    %v1089 = vunpack.c.0.s8 %v1088
    %v1090 = vlaneseq
    %v1091 = vshrl.u32 %v1090, 7
    %v1092 = vsub.s32 %v1089, %v1091
    %v1093 = vrot.slane %v1085, %v1092
    %v1095 = vunpack.c.l.s4 1934713408
    %v1096 = vunpack.c.0.s8 %v1095
    %v1097 = vlaneseq
    %v1098 = vshrl.u32 %v1097, 7
    %v1099 = vsub.s32 %v1096, %v1098
    %v1100 = vrot.slane %v1086, %v1099
    %v1101 = vcombine.low %v1077, %v1093
    %v1102 = vcombine.high %v1077, %v1093
    %v1103 = vcombine.low %v1084, %v1100
    %v1104 = vcombine.high %v1084, %v1100
    %v1105 = vcombine.low %v601, %v608
    %v1107 = vunpack.c.l.s4 1983009808
    %v1108 = vunpack.c.0.s8 %v1107
    %v1109 = vlaneseq
    %v1110 = vshrl.u32 %v1109, 7
    %v1111 = vsub.s32 %v1108, %v1110
    %v1112 = vrot.slane %v1105, %v1111
    %v1113 = vcombine.low %v625, %v626
    %v1115 = vunpack.c.l.s4 1983009808
    %v1116 = vunpack.c.0.s8 %v1115
    %v1117 = vlaneseq
    %v1118 = vshrl.u32 %v1117, 7
    %v1119 = vsub.s32 %v1116, %v1118
    %v1120 = vrot.slane %v1113, %v1119
    %v1121 = vcombine.low %v617, %v624
    %v1123 = vunpack.c.l.s4 1983009808
    %v1124 = vunpack.c.0.s8 %v1123
    %v1125 = vlaneseq
    %v1126 = vshrl.u32 %v1125, 7
    %v1127 = vsub.s32 %v1124, %v1126
    %v1128 = vrot.slane %v1121, %v1127
    %v1129 = vcombine.low %v627, %v628
    %v1131 = vunpack.c.l.s4 1983009808
    %v1132 = vunpack.c.0.s8 %v1131
    %v1133 = vlaneseq
    %v1134 = vshrl.u32 %v1133, 7
    %v1135 = vsub.s32 %v1132, %v1134
    %v1136 = vrot.slane %v1129, %v1135
    %v1137 = vcombine.low %v1112, %v1120
    %v1138 = vcombine.high %v1112, %v1120
    %v1140 = vunpack.c.l.s4 1934713408
    %v1141 = vunpack.c.0.s8 %v1140
    %v1142 = vlaneseq
    %v1143 = vshrl.u32 %v1142, 7
    %v1144 = vsub.s32 %v1141, %v1143
    %v1145 = vrot.slane %v1137, %v1144
    %v1147 = vunpack.c.l.s4 1934713408
    %v1148 = vunpack.c.0.s8 %v1147
    %v1149 = vlaneseq
    %v1150 = vshrl.u32 %v1149, 7
    %v1151 = vsub.s32 %v1148, %v1150
    %v1152 = vrot.slane %v1138, %v1151
    %v1153 = vcombine.low %v1128, %v1136
    %v1154 = vcombine.high %v1128, %v1136
    %v1156 = vunpack.c.l.s4 1934713408
    %v1157 = vunpack.c.0.s8 %v1156
    %v1158 = vlaneseq
    %v1159 = vshrl.u32 %v1158, 7
    %v1160 = vsub.s32 %v1157, %v1159
    %v1161 = vrot.slane %v1153, %v1160
    %v1163 = vunpack.c.l.s4 1934713408
    %v1164 = vunpack.c.0.s8 %v1163
    %v1165 = vlaneseq
    %v1166 = vshrl.u32 %v1165, 7
    %v1167 = vsub.s32 %v1164, %v1166
    %v1168 = vrot.slane %v1154, %v1167
    %v1169 = vcombine.low %v1145, %v1161
    %v1170 = vcombine.high %v1145, %v1161
    %v1171 = vcombine.low %v1152, %v1168
    %v1172 = vcombine.high %v1152, %v1168
    %v1173 = vcombine.low %v669, %v676
    %v1175 = vunpack.c.l.s4 1983009808
    %v1176 = vunpack.c.0.s8 %v1175
    %v1177 = vlaneseq
    %v1178 = vshrl.u32 %v1177, 7
    %v1179 = vsub.s32 %v1176, %v1178
    %v1180 = vrot.slane %v1173, %v1179
    %v1181 = vcombine.low %v693, %v694
    %v1183 = vunpack.c.l.s4 1983009808
    %v1184 = vunpack.c.0.s8 %v1183
    %v1185 = vlaneseq
    %v1186 = vshrl.u32 %v1185, 7
    %v1187 = vsub.s32 %v1184, %v1186
    %v1188 = vrot.slane %v1181, %v1187
    %v1189 = vcombine.low %v685, %v692
    %v1191 = vunpack.c.l.s4 1983009808
    %v1192 = vunpack.c.0.s8 %v1191
    %v1193 = vlaneseq
    %v1194 = vshrl.u32 %v1193, 7
    %v1195 = vsub.s32 %v1192, %v1194
    %v1196 = vrot.slane %v1189, %v1195
    %v1197 = vcombine.low %v695, %v696
    %v1199 = vunpack.c.l.s4 1983009808
    %v1200 = vunpack.c.0.s8 %v1199
    %v1201 = vlaneseq
    %v1202 = vshrl.u32 %v1201, 7
    %v1203 = vsub.s32 %v1200, %v1202
    %v1204 = vrot.slane %v1197, %v1203
    %v1205 = vcombine.low %v1180, %v1188
    %v1206 = vcombine.high %v1180, %v1188
    %v1208 = vunpack.c.l.s4 1934713408
    %v1209 = vunpack.c.0.s8 %v1208
    %v1210 = vlaneseq
    %v1211 = vshrl.u32 %v1210, 7
    %v1212 = vsub.s32 %v1209, %v1211
    %v1213 = vrot.slane %v1205, %v1212
    %v1215 = vunpack.c.l.s4 1934713408
    %v1216 = vunpack.c.0.s8 %v1215
    %v1217 = vlaneseq
    %v1218 = vshrl.u32 %v1217, 7
    %v1219 = vsub.s32 %v1216, %v1218
    %v1220 = vrot.slane %v1206, %v1219
    %v1221 = vcombine.low %v1196, %v1204
    %v1222 = vcombine.high %v1196, %v1204
    %v1224 = vunpack.c.l.s4 1934713408
    %v1225 = vunpack.c.0.s8 %v1224
    %v1226 = vlaneseq
    %v1227 = vshrl.u32 %v1226, 7
    %v1228 = vsub.s32 %v1225, %v1227
    %v1229 = vrot.slane %v1221, %v1228
    %v1231 = vunpack.c.l.s4 1934713408
    %v1232 = vunpack.c.0.s8 %v1231
    %v1233 = vlaneseq
    %v1234 = vshrl.u32 %v1233, 7
    %v1235 = vsub.s32 %v1232, %v1234
    %v1236 = vrot.slane %v1222, %v1235
    %v1237 = vcombine.low %v1213, %v1229
    %v1238 = vcombine.high %v1213, %v1229
    %v1239 = vcombine.low %v1220, %v1236
    %v1240 = vcombine.high %v1220, %v1236
    %v1241 = vcombine.low %v737, %v744
    %v1243 = vunpack.c.l.s4 1983009808
    %v1244 = vunpack.c.0.s8 %v1243
    %v1245 = vlaneseq
    %v1246 = vshrl.u32 %v1245, 7
    %v1247 = vsub.s32 %v1244, %v1246
    %v1248 = vrot.slane %v1241, %v1247
    %v1249 = vcombine.low %v761, %v762
    %v1251 = vunpack.c.l.s4 1983009808
    %v1252 = vunpack.c.0.s8 %v1251
    %v1253 = vlaneseq
    %v1254 = vshrl.u32 %v1253, 7
    %v1255 = vsub.s32 %v1252, %v1254
    %v1256 = vrot.slane %v1249, %v1255
    %v1257 = vcombine.low %v753, %v760
    %v1259 = vunpack.c.l.s4 1983009808
    %v1260 = vunpack.c.0.s8 %v1259
    %v1261 = vlaneseq
    %v1262 = vshrl.u32 %v1261, 7
    %v1263 = vsub.s32 %v1260, %v1262
    %v1264 = vrot.slane %v1257, %v1263
    %v1265 = vcombine.low %v763, %v764
    %v1267 = vunpack.c.l.s4 1983009808
    %v1268 = vunpack.c.0.s8 %v1267
    %v1269 = vlaneseq
    %v1270 = vshrl.u32 %v1269, 7
    %v1271 = vsub.s32 %v1268, %v1270
    %v1272 = vrot.slane %v1265, %v1271
    %v1273 = vcombine.low %v1248, %v1256
    %v1274 = vcombine.high %v1248, %v1256
    %v1276 = vunpack.c.l.s4 1934713408
    %v1277 = vunpack.c.0.s8 %v1276
    %v1278 = vlaneseq
    %v1279 = vshrl.u32 %v1278, 7
    %v1280 = vsub.s32 %v1277, %v1279
    %v1281 = vrot.slane %v1273, %v1280
    %v1283 = vunpack.c.l.s4 1934713408
    %v1284 = vunpack.c.0.s8 %v1283
    %v1285 = vlaneseq
    %v1286 = vshrl.u32 %v1285, 7
    %v1287 = vsub.s32 %v1284, %v1286
    %v1288 = vrot.slane %v1274, %v1287
    %v1289 = vcombine.low %v1264, %v1272
    %v1290 = vcombine.high %v1264, %v1272
    %v1292 = vunpack.c.l.s4 1934713408
    %v1293 = vunpack.c.0.s8 %v1292
    %v1294 = vlaneseq
    %v1295 = vshrl.u32 %v1294, 7
    %v1296 = vsub.s32 %v1293, %v1295
    %v1297 = vrot.slane %v1289, %v1296
    %v1299 = vunpack.c.l.s4 1934713408
    %v1300 = vunpack.c.0.s8 %v1299
    %v1301 = vlaneseq
    %v1302 = vshrl.u32 %v1301, 7
    %v1303 = vsub.s32 %v1300, %v1302
    %v1304 = vrot.slane %v1290, %v1303
    %v1305 = vcombine.low %v1281, %v1297
    %v1306 = vcombine.high %v1281, %v1297
    %v1307 = vcombine.low %v1288, %v1304
    %v1308 = vcombine.high %v1288, %v1304
    %v1309 = vcombine.low %v805, %v812
    %v1311 = vunpack.c.l.s4 1983009808
    %v1312 = vunpack.c.0.s8 %v1311
    %v1313 = vlaneseq
    %v1314 = vshrl.u32 %v1313, 7
    %v1315 = vsub.s32 %v1312, %v1314
    %v1316 = vrot.slane %v1309, %v1315
    %v1317 = vcombine.low %v829, %v830
    %v1319 = vunpack.c.l.s4 1983009808
    %v1320 = vunpack.c.0.s8 %v1319
    %v1321 = vlaneseq
    %v1322 = vshrl.u32 %v1321, 7
    %v1323 = vsub.s32 %v1320, %v1322
    %v1324 = vrot.slane %v1317, %v1323
    %v1325 = vcombine.low %v821, %v828
    %v1327 = vunpack.c.l.s4 1983009808
    %v1328 = vunpack.c.0.s8 %v1327
    %v1329 = vlaneseq
    %v1330 = vshrl.u32 %v1329, 7
    %v1331 = vsub.s32 %v1328, %v1330
    %v1332 = vrot.slane %v1325, %v1331
    %v1333 = vcombine.low %v831, %v832
    %v1335 = vunpack.c.l.s4 1983009808
    %v1336 = vunpack.c.0.s8 %v1335
    %v1337 = vlaneseq
    %v1338 = vshrl.u32 %v1337, 7
    %v1339 = vsub.s32 %v1336, %v1338
    %v1340 = vrot.slane %v1333, %v1339
    %v1341 = vcombine.low %v1316, %v1324
    %v1342 = vcombine.high %v1316, %v1324
    %v1344 = vunpack.c.l.s4 1934713408
    %v1345 = vunpack.c.0.s8 %v1344
    %v1346 = vlaneseq
    %v1347 = vshrl.u32 %v1346, 7
    %v1348 = vsub.s32 %v1345, %v1347
    %v1349 = vrot.slane %v1341, %v1348
    %v1351 = vunpack.c.l.s4 1934713408
    %v1352 = vunpack.c.0.s8 %v1351
    %v1353 = vlaneseq
    %v1354 = vshrl.u32 %v1353, 7
    %v1355 = vsub.s32 %v1352, %v1354
    %v1356 = vrot.slane %v1342, %v1355
    %v1357 = vcombine.low %v1332, %v1340
    %v1358 = vcombine.high %v1332, %v1340
    %v1360 = vunpack.c.l.s4 1934713408
    %v1361 = vunpack.c.0.s8 %v1360
    %v1362 = vlaneseq
    %v1363 = vshrl.u32 %v1362, 7
    %v1364 = vsub.s32 %v1361, %v1363
    %v1365 = vrot.slane %v1357, %v1364
    %v1367 = vunpack.c.l.s4 1934713408
    %v1368 = vunpack.c.0.s8 %v1367
    %v1369 = vlaneseq
    %v1370 = vshrl.u32 %v1369, 7
    %v1371 = vsub.s32 %v1368, %v1370
    %v1372 = vrot.slane %v1358, %v1371
    %v1373 = vcombine.low %v1349, %v1365
    %v1374 = vcombine.high %v1349, %v1365
    %v1375 = vcombine.low %v1356, %v1372
    %v1376 = vcombine.high %v1356, %v1372
    %v1377 = vpack.c.bf16 %v965, %v897
    %v1378 = vpack.c.bf16 %v966, %v898
    %v1379 = vpack.c.bf16 %v967, %v899
    %v1380 = vpack.c.bf16 %v968, %v900
    %v1381 = vpack.c.bf16 %v1101, %v1033
    %v1382 = vpack.c.bf16 %v1102, %v1034
    %v1383 = vpack.c.bf16 %v1103, %v1035
    %v1384 = vpack.c.bf16 %v1104, %v1036
    %v1385 = vpack.c.bf16 %v1237, %v1169
    %v1386 = vpack.c.bf16 %v1238, %v1170
    %v1387 = vpack.c.bf16 %v1239, %v1171
    %v1388 = vpack.c.bf16 %v1240, %v1172
    %v1389 = vpack.c.bf16 %v1373, %v1305
    %v1390 = vpack.c.bf16 %v1374, %v1306
    %v1391 = vpack.c.bf16 %v1375, %v1307
    %v1392 = vpack.c.bf16 %v1376, %v1308
    %1393 = vrot.lane.b32.xlu0 %v179, 96
    %v1394 = vpop.permute.xlu0 %1393
    %1395 = vrot.lane.b32.xlu0 %v182, 96
    %v1396 = vpop.permute.xlu0 %1395
    %1397 = vrot.lane.b32.xlu0 %v187, 96
    %v1398 = vpop.permute.xlu0 %1397
    %1399 = vrot.lane.b32.xlu0 %v190, 96
    %v1400 = vpop.permute.xlu0 %1399
    %1401 = vrot.lane.b32.xlu0 %v195, 96
    %v1402 = vpop.permute.xlu0 %1401
    %1403 = vrot.lane.b32.xlu0 %v198, 96
    %v1404 = vpop.permute.xlu0 %1403
    %1405 = vrot.lane.b32.xlu0 %v203, 96
    %v1406 = vpop.permute.xlu0 %1405
    %1407 = vrot.lane.b32.xlu0 %v206, 96
    %v1408 = vpop.permute.xlu0 %1407
    %1409 = vrot.lane.b32.xlu0 %v218, 96
    %v1410 = vpop.permute.xlu0 %1409
    %1411 = vrot.lane.b32.xlu0 %v220, 96
    %v1412 = vpop.permute.xlu0 %1411
    %1413 = vrot.lane.b32.xlu0 %v222, 96
    %v1414 = vpop.permute.xlu0 %1413
    %1415 = vrot.lane.b32.xlu0 %v224, 96
    %v1416 = vpop.permute.xlu0 %1415
    %1417 = vrot.lane.b32.xlu0 %v226, 96
    %v1418 = vpop.permute.xlu0 %1417
    %1419 = vrot.lane.b32.xlu0 %v228, 96
    %v1420 = vpop.permute.xlu0 %1419
    %1421 = vrot.lane.b32.xlu0 %v230, 96
    %v1422 = vpop.permute.xlu0 %1421
    %1423 = vrot.lane.b32.xlu0 %v232, 96
    %v1424 = vpop.permute.xlu0 %1423
    %1425 = vrot.lane.b32.xlu0 %v242, 96
    %v1426 = vpop.permute.xlu0 %1425
    %1427 = vrot.lane.b32.xlu0 %v244, 96
    %v1428 = vpop.permute.xlu0 %1427
    %1429 = vrot.lane.b32.xlu0 %v246, 96
    %v1430 = vpop.permute.xlu0 %1429
    %1431 = vrot.lane.b32.xlu0 %v248, 96
    %v1432 = vpop.permute.xlu0 %1431
    %1433 = vrot.lane.b32.xlu0 %v250, 96
    %v1434 = vpop.permute.xlu0 %1433
    %1435 = vrot.lane.b32.xlu0 %v252, 96
    %v1436 = vpop.permute.xlu0 %1435
    %1437 = vrot.lane.b32.xlu0 %v254, 96
    %v1438 = vpop.permute.xlu0 %1437
    %1439 = vrot.lane.b32.xlu0 %v256, 96
    %v1440 = vpop.permute.xlu0 %1439
    %1441 = vrot.lane.b32.xlu0 %v266, 96
    %v1442 = vpop.permute.xlu0 %1441
    %1443 = vrot.lane.b32.xlu0 %v268, 96
    %v1444 = vpop.permute.xlu0 %1443
    %1445 = vrot.lane.b32.xlu0 %v270, 96
    %v1446 = vpop.permute.xlu0 %1445
    %1447 = vrot.lane.b32.xlu0 %v272, 96
    %v1448 = vpop.permute.xlu0 %1447
    %1449 = vrot.lane.b32.xlu0 %v274, 96
    %v1450 = vpop.permute.xlu0 %1449
    %1451 = vrot.lane.b32.xlu0 %v276, 96
    %v1452 = vpop.permute.xlu0 %1451
    %1453 = vrot.lane.b32.xlu0 %v278, 96
    %v1454 = vpop.permute.xlu0 %1453
    %1455 = vrot.lane.b32.xlu0 %v280, 96
    %v1456 = vpop.permute.xlu0 %1455
    %v1489 = vcombine.low %v1394, %v1426
    %v1490 = vcombine.high %v1394, %v1426
    %v1492 = vunpack.c.l.s4 1983009808
    %v1493 = vunpack.c.0.s8 %v1492
    %v1494 = vlaneseq
    %v1495 = vshrl.u32 %v1494, 7
    %v1496 = vsub.s32 %v1493, %v1495
    %v1497 = vrot.slane %v1489, %v1496
    %v1499 = vunpack.c.l.s4 1983009808
    %v1500 = vunpack.c.0.s8 %v1499
    %v1501 = vlaneseq
    %v1502 = vshrl.u32 %v1501, 7
    %v1503 = vsub.s32 %v1500, %v1502
    %v1504 = vrot.slane %v1490, %v1503
    %v1505 = vcombine.low %v1410, %v1442
    %v1506 = vcombine.high %v1410, %v1442
    %v1508 = vunpack.c.l.s4 1983009808
    %v1509 = vunpack.c.0.s8 %v1508
    %v1510 = vlaneseq
    %v1511 = vshrl.u32 %v1510, 7
    %v1512 = vsub.s32 %v1509, %v1511
    %v1513 = vrot.slane %v1505, %v1512
    %v1515 = vunpack.c.l.s4 1983009808
    %v1516 = vunpack.c.0.s8 %v1515
    %v1517 = vlaneseq
    %v1518 = vshrl.u32 %v1517, 7
    %v1519 = vsub.s32 %v1516, %v1518
    %v1520 = vrot.slane %v1506, %v1519
    %v1521 = vcombine.low %v1497, %v1513
    %v1522 = vcombine.high %v1497, %v1513
    %v1524 = vunpack.c.l.s4 1934713408
    %v1525 = vunpack.c.0.s8 %v1524
    %v1526 = vlaneseq
    %v1527 = vshrl.u32 %v1526, 7
    %v1528 = vsub.s32 %v1525, %v1527
    %v1529 = vrot.slane %v1521, %v1528
    %v1531 = vunpack.c.l.s4 1934713408
    %v1532 = vunpack.c.0.s8 %v1531
    %v1533 = vlaneseq
    %v1534 = vshrl.u32 %v1533, 7
    %v1535 = vsub.s32 %v1532, %v1534
    %v1536 = vrot.slane %v1522, %v1535
    %v1537 = vcombine.low %v1504, %v1520
    %v1538 = vcombine.high %v1504, %v1520
    %v1540 = vunpack.c.l.s4 1934713408
    %v1541 = vunpack.c.0.s8 %v1540
    %v1542 = vlaneseq
    %v1543 = vshrl.u32 %v1542, 7
    %v1544 = vsub.s32 %v1541, %v1543
    %v1545 = vrot.slane %v1537, %v1544
    %v1547 = vunpack.c.l.s4 1934713408
    %v1548 = vunpack.c.0.s8 %v1547
    %v1549 = vlaneseq
    %v1550 = vshrl.u32 %v1549, 7
    %v1551 = vsub.s32 %v1548, %v1550
    %v1552 = vrot.slane %v1538, %v1551
    %v1553 = vcombine.high %v1529, 0.0
    %v1554 = vcombine.high %v1536, 0.0
    %v1555 = vcombine.high %v1545, 0.0
    %v1556 = vcombine.high %v1552, 0.0
    %v1557 = vcombine.low %v1396, %v1428
    %v1558 = vcombine.high %v1396, %v1428
    %v1560 = vunpack.c.l.s4 1983009808
    %v1561 = vunpack.c.0.s8 %v1560
    %v1562 = vlaneseq
    %v1563 = vshrl.u32 %v1562, 7
    %v1564 = vsub.s32 %v1561, %v1563
    %v1565 = vrot.slane %v1557, %v1564
    %v1567 = vunpack.c.l.s4 1983009808
    %v1568 = vunpack.c.0.s8 %v1567
    %v1569 = vlaneseq
    %v1570 = vshrl.u32 %v1569, 7
    %v1571 = vsub.s32 %v1568, %v1570
    %v1572 = vrot.slane %v1558, %v1571
    %v1573 = vcombine.low %v1412, %v1444
    %v1574 = vcombine.high %v1412, %v1444
    %v1576 = vunpack.c.l.s4 1983009808
    %v1577 = vunpack.c.0.s8 %v1576
    %v1578 = vlaneseq
    %v1579 = vshrl.u32 %v1578, 7
    %v1580 = vsub.s32 %v1577, %v1579
    %v1581 = vrot.slane %v1573, %v1580
    %v1583 = vunpack.c.l.s4 1983009808
    %v1584 = vunpack.c.0.s8 %v1583
    %v1585 = vlaneseq
    %v1586 = vshrl.u32 %v1585, 7
    %v1587 = vsub.s32 %v1584, %v1586
    %v1588 = vrot.slane %v1574, %v1587
    %v1589 = vcombine.low %v1565, %v1581
    %v1590 = vcombine.high %v1565, %v1581
    %v1592 = vunpack.c.l.s4 1934713408
    %v1593 = vunpack.c.0.s8 %v1592
    %v1594 = vlaneseq
    %v1595 = vshrl.u32 %v1594, 7
    %v1596 = vsub.s32 %v1593, %v1595
    %v1597 = vrot.slane %v1589, %v1596
    %v1599 = vunpack.c.l.s4 1934713408
    %v1600 = vunpack.c.0.s8 %v1599
    %v1601 = vlaneseq
    %v1602 = vshrl.u32 %v1601, 7
    %v1603 = vsub.s32 %v1600, %v1602
    %v1604 = vrot.slane %v1590, %v1603
    %v1605 = vcombine.low %v1572, %v1588
    %v1606 = vcombine.high %v1572, %v1588
    %v1608 = vunpack.c.l.s4 1934713408
    %v1609 = vunpack.c.0.s8 %v1608
    %v1610 = vlaneseq
    %v1611 = vshrl.u32 %v1610, 7
    %v1612 = vsub.s32 %v1609, %v1611
    %v1613 = vrot.slane %v1605, %v1612
    %v1615 = vunpack.c.l.s4 1934713408
    %v1616 = vunpack.c.0.s8 %v1615
    %v1617 = vlaneseq
    %v1618 = vshrl.u32 %v1617, 7
    %v1619 = vsub.s32 %v1616, %v1618
    %v1620 = vrot.slane %v1606, %v1619
    %v1621 = vcombine.high %v1597, 0.0
    %v1622 = vcombine.high %v1604, 0.0
    %v1623 = vcombine.high %v1613, 0.0
    %v1624 = vcombine.high %v1620, 0.0
    %v1625 = vcombine.low %v1398, %v1430
    %v1626 = vcombine.high %v1398, %v1430
    %v1628 = vunpack.c.l.s4 1983009808
    %v1629 = vunpack.c.0.s8 %v1628
    %v1630 = vlaneseq
    %v1631 = vshrl.u32 %v1630, 7
    %v1632 = vsub.s32 %v1629, %v1631
    %v1633 = vrot.slane %v1625, %v1632
    %v1635 = vunpack.c.l.s4 1983009808
    %v1636 = vunpack.c.0.s8 %v1635
    %v1637 = vlaneseq
    %v1638 = vshrl.u32 %v1637, 7
    %v1639 = vsub.s32 %v1636, %v1638
    %v1640 = vrot.slane %v1626, %v1639
    %v1641 = vcombine.low %v1414, %v1446
    %v1642 = vcombine.high %v1414, %v1446
    %v1644 = vunpack.c.l.s4 1983009808
    %v1645 = vunpack.c.0.s8 %v1644
    %v1646 = vlaneseq
    %v1647 = vshrl.u32 %v1646, 7
    %v1648 = vsub.s32 %v1645, %v1647
    %v1649 = vrot.slane %v1641, %v1648
    %v1651 = vunpack.c.l.s4 1983009808
    %v1652 = vunpack.c.0.s8 %v1651
    %v1653 = vlaneseq
    %v1654 = vshrl.u32 %v1653, 7
    %v1655 = vsub.s32 %v1652, %v1654
    %v1656 = vrot.slane %v1642, %v1655
    %v1657 = vcombine.low %v1633, %v1649
    %v1658 = vcombine.high %v1633, %v1649
    %v1660 = vunpack.c.l.s4 1934713408
    %v1661 = vunpack.c.0.s8 %v1660
    %v1662 = vlaneseq
    %v1663 = vshrl.u32 %v1662, 7
    %v1664 = vsub.s32 %v1661, %v1663
    %v1665 = vrot.slane %v1657, %v1664
    %v1667 = vunpack.c.l.s4 1934713408
    %v1668 = vunpack.c.0.s8 %v1667
    %v1669 = vlaneseq
    %v1670 = vshrl.u32 %v1669, 7
    %v1671 = vsub.s32 %v1668, %v1670
    %v1672 = vrot.slane %v1658, %v1671
    %v1673 = vcombine.low %v1640, %v1656
    %v1674 = vcombine.high %v1640, %v1656
    %v1676 = vunpack.c.l.s4 1934713408
    %v1677 = vunpack.c.0.s8 %v1676
    %v1678 = vlaneseq
    %v1679 = vshrl.u32 %v1678, 7
    %v1680 = vsub.s32 %v1677, %v1679
    %v1681 = vrot.slane %v1673, %v1680
    %v1683 = vunpack.c.l.s4 1934713408
    %v1684 = vunpack.c.0.s8 %v1683
    %v1685 = vlaneseq
    %v1686 = vshrl.u32 %v1685, 7
    %v1687 = vsub.s32 %v1684, %v1686
    %v1688 = vrot.slane %v1674, %v1687
    %v1689 = vcombine.high %v1665, 0.0
    %v1690 = vcombine.high %v1672, 0.0
    %v1691 = vcombine.high %v1681, 0.0
    %v1692 = vcombine.high %v1688, 0.0
    %v1693 = vcombine.low %v1400, %v1432
    %v1694 = vcombine.high %v1400, %v1432
    %v1696 = vunpack.c.l.s4 1983009808
    %v1697 = vunpack.c.0.s8 %v1696
    %v1698 = vlaneseq
    %v1699 = vshrl.u32 %v1698, 7
    %v1700 = vsub.s32 %v1697, %v1699
    %v1701 = vrot.slane %v1693, %v1700
    %v1703 = vunpack.c.l.s4 1983009808
    %v1704 = vunpack.c.0.s8 %v1703
    %v1705 = vlaneseq
    %v1706 = vshrl.u32 %v1705, 7
    %v1707 = vsub.s32 %v1704, %v1706
    %v1708 = vrot.slane %v1694, %v1707
    %v1709 = vcombine.low %v1416, %v1448
    %v1710 = vcombine.high %v1416, %v1448
    %v1712 = vunpack.c.l.s4 1983009808
    %v1713 = vunpack.c.0.s8 %v1712
    %v1714 = vlaneseq
    %v1715 = vshrl.u32 %v1714, 7
    %v1716 = vsub.s32 %v1713, %v1715
    %v1717 = vrot.slane %v1709, %v1716
    %v1719 = vunpack.c.l.s4 1983009808
    %v1720 = vunpack.c.0.s8 %v1719
    %v1721 = vlaneseq
    %v1722 = vshrl.u32 %v1721, 7
    %v1723 = vsub.s32 %v1720, %v1722
    %v1724 = vrot.slane %v1710, %v1723
    %v1725 = vcombine.low %v1701, %v1717
    %v1726 = vcombine.high %v1701, %v1717
    %v1728 = vunpack.c.l.s4 1934713408
    %v1729 = vunpack.c.0.s8 %v1728
    %v1730 = vlaneseq
    %v1731 = vshrl.u32 %v1730, 7
    %v1732 = vsub.s32 %v1729, %v1731
    %v1733 = vrot.slane %v1725, %v1732
    %v1735 = vunpack.c.l.s4 1934713408
    %v1736 = vunpack.c.0.s8 %v1735
    %v1737 = vlaneseq
    %v1738 = vshrl.u32 %v1737, 7
    %v1739 = vsub.s32 %v1736, %v1738
    %v1740 = vrot.slane %v1726, %v1739
    %v1741 = vcombine.low %v1708, %v1724
    %v1742 = vcombine.high %v1708, %v1724
    %v1744 = vunpack.c.l.s4 1934713408
    %v1745 = vunpack.c.0.s8 %v1744
    %v1746 = vlaneseq
    %v1747 = vshrl.u32 %v1746, 7
    %v1748 = vsub.s32 %v1745, %v1747
    %v1749 = vrot.slane %v1741, %v1748
    %v1751 = vunpack.c.l.s4 1934713408
    %v1752 = vunpack.c.0.s8 %v1751
    %v1753 = vlaneseq
    %v1754 = vshrl.u32 %v1753, 7
    %v1755 = vsub.s32 %v1752, %v1754
    %v1756 = vrot.slane %v1742, %v1755
    %v1757 = vcombine.high %v1733, 0.0
    %v1758 = vcombine.high %v1740, 0.0
    %v1759 = vcombine.high %v1749, 0.0
    %v1760 = vcombine.high %v1756, 0.0
    %v1761 = vcombine.low %v1402, %v1434
    %v1762 = vcombine.high %v1402, %v1434
    %v1764 = vunpack.c.l.s4 1983009808
    %v1765 = vunpack.c.0.s8 %v1764
    %v1766 = vlaneseq
    %v1767 = vshrl.u32 %v1766, 7
    %v1768 = vsub.s32 %v1765, %v1767
    %v1769 = vrot.slane %v1761, %v1768
    %v1771 = vunpack.c.l.s4 1983009808
    %v1772 = vunpack.c.0.s8 %v1771
    %v1773 = vlaneseq
    %v1774 = vshrl.u32 %v1773, 7
    %v1775 = vsub.s32 %v1772, %v1774
    %v1776 = vrot.slane %v1762, %v1775
    %v1777 = vcombine.low %v1418, %v1450
    %v1778 = vcombine.high %v1418, %v1450
    %v1780 = vunpack.c.l.s4 1983009808
    %v1781 = vunpack.c.0.s8 %v1780
    %v1782 = vlaneseq
    %v1783 = vshrl.u32 %v1782, 7
    %v1784 = vsub.s32 %v1781, %v1783
    %v1785 = vrot.slane %v1777, %v1784
    %v1787 = vunpack.c.l.s4 1983009808
    %v1788 = vunpack.c.0.s8 %v1787
    %v1789 = vlaneseq
    %v1790 = vshrl.u32 %v1789, 7
    %v1791 = vsub.s32 %v1788, %v1790
    %v1792 = vrot.slane %v1778, %v1791
    %v1793 = vcombine.low %v1769, %v1785
    %v1794 = vcombine.high %v1769, %v1785
    %v1796 = vunpack.c.l.s4 1934713408
    %v1797 = vunpack.c.0.s8 %v1796
    %v1798 = vlaneseq
    %v1799 = vshrl.u32 %v1798, 7
    %v1800 = vsub.s32 %v1797, %v1799
    %v1801 = vrot.slane %v1793, %v1800
    %v1803 = vunpack.c.l.s4 1934713408
    %v1804 = vunpack.c.0.s8 %v1803
    %v1805 = vlaneseq
    %v1806 = vshrl.u32 %v1805, 7
    %v1807 = vsub.s32 %v1804, %v1806
    %v1808 = vrot.slane %v1794, %v1807
    %v1809 = vcombine.low %v1776, %v1792
    %v1810 = vcombine.high %v1776, %v1792
    %v1812 = vunpack.c.l.s4 1934713408
    %v1813 = vunpack.c.0.s8 %v1812
    %v1814 = vlaneseq
    %v1815 = vshrl.u32 %v1814, 7
    %v1816 = vsub.s32 %v1813, %v1815
    %v1817 = vrot.slane %v1809, %v1816
    %v1819 = vunpack.c.l.s4 1934713408
    %v1820 = vunpack.c.0.s8 %v1819
    %v1821 = vlaneseq
    %v1822 = vshrl.u32 %v1821, 7
    %v1823 = vsub.s32 %v1820, %v1822
    %v1824 = vrot.slane %v1810, %v1823
    %v1825 = vcombine.high %v1801, 0.0
    %v1826 = vcombine.high %v1808, 0.0
    %v1827 = vcombine.high %v1817, 0.0
    %v1828 = vcombine.high %v1824, 0.0
    %v1829 = vcombine.low %v1404, %v1436
    %v1830 = vcombine.high %v1404, %v1436
    %v1832 = vunpack.c.l.s4 1983009808
    %v1833 = vunpack.c.0.s8 %v1832
    %v1834 = vlaneseq
    %v1835 = vshrl.u32 %v1834, 7
    %v1836 = vsub.s32 %v1833, %v1835
    %v1837 = vrot.slane %v1829, %v1836
    %v1839 = vunpack.c.l.s4 1983009808
    %v1840 = vunpack.c.0.s8 %v1839
    %v1841 = vlaneseq
    %v1842 = vshrl.u32 %v1841, 7
    %v1843 = vsub.s32 %v1840, %v1842
    %v1844 = vrot.slane %v1830, %v1843
    %v1845 = vcombine.low %v1420, %v1452
    %v1846 = vcombine.high %v1420, %v1452
    %v1848 = vunpack.c.l.s4 1983009808
    %v1849 = vunpack.c.0.s8 %v1848
    %v1850 = vlaneseq
    %v1851 = vshrl.u32 %v1850, 7
    %v1852 = vsub.s32 %v1849, %v1851
    %v1853 = vrot.slane %v1845, %v1852
    %v1855 = vunpack.c.l.s4 1983009808
    %v1856 = vunpack.c.0.s8 %v1855
    %v1857 = vlaneseq
    %v1858 = vshrl.u32 %v1857, 7
    %v1859 = vsub.s32 %v1856, %v1858
    %v1860 = vrot.slane %v1846, %v1859
    %v1861 = vcombine.low %v1837, %v1853
    %v1862 = vcombine.high %v1837, %v1853
    %v1864 = vunpack.c.l.s4 1934713408
    %v1865 = vunpack.c.0.s8 %v1864
    %v1866 = vlaneseq
    %v1867 = vshrl.u32 %v1866, 7
    %v1868 = vsub.s32 %v1865, %v1867
    %v1869 = vrot.slane %v1861, %v1868
    %v1871 = vunpack.c.l.s4 1934713408
    %v1872 = vunpack.c.0.s8 %v1871
    %v1873 = vlaneseq
    %v1874 = vshrl.u32 %v1873, 7
    %v1875 = vsub.s32 %v1872, %v1874
    %v1876 = vrot.slane %v1862, %v1875
    %v1877 = vcombine.low %v1844, %v1860
    %v1878 = vcombine.high %v1844, %v1860
    %v1880 = vunpack.c.l.s4 1934713408
    %v1881 = vunpack.c.0.s8 %v1880
    %v1882 = vlaneseq
    %v1883 = vshrl.u32 %v1882, 7
    %v1884 = vsub.s32 %v1881, %v1883
    %v1885 = vrot.slane %v1877, %v1884
    %v1887 = vunpack.c.l.s4 1934713408
    %v1888 = vunpack.c.0.s8 %v1887
    %v1889 = vlaneseq
    %v1890 = vshrl.u32 %v1889, 7
    %v1891 = vsub.s32 %v1888, %v1890
    %v1892 = vrot.slane %v1878, %v1891
    %v1893 = vcombine.high %v1869, 0.0
    %v1894 = vcombine.high %v1876, 0.0
    %v1895 = vcombine.high %v1885, 0.0
    %v1896 = vcombine.high %v1892, 0.0
    %v1897 = vcombine.low %v1406, %v1438
    %v1898 = vcombine.high %v1406, %v1438
    %v1900 = vunpack.c.l.s4 1983009808
    %v1901 = vunpack.c.0.s8 %v1900
    %v1902 = vlaneseq
    %v1903 = vshrl.u32 %v1902, 7
    %v1904 = vsub.s32 %v1901, %v1903
    %v1905 = vrot.slane %v1897, %v1904
    %v1907 = vunpack.c.l.s4 1983009808
    %v1908 = vunpack.c.0.s8 %v1907
    %v1909 = vlaneseq
    %v1910 = vshrl.u32 %v1909, 7
    %v1911 = vsub.s32 %v1908, %v1910
    %v1912 = vrot.slane %v1898, %v1911
    %v1913 = vcombine.low %v1422, %v1454
    %v1914 = vcombine.high %v1422, %v1454
    %v1916 = vunpack.c.l.s4 1983009808
    %v1917 = vunpack.c.0.s8 %v1916
    %v1918 = vlaneseq
    %v1919 = vshrl.u32 %v1918, 7
    %v1920 = vsub.s32 %v1917, %v1919
    %v1921 = vrot.slane %v1913, %v1920
    %v1923 = vunpack.c.l.s4 1983009808
    %v1924 = vunpack.c.0.s8 %v1923
    %v1925 = vlaneseq
    %v1926 = vshrl.u32 %v1925, 7
    %v1927 = vsub.s32 %v1924, %v1926
    %v1928 = vrot.slane %v1914, %v1927
    %v1929 = vcombine.low %v1905, %v1921
    %v1930 = vcombine.high %v1905, %v1921
    %v1932 = vunpack.c.l.s4 1934713408
    %v1933 = vunpack.c.0.s8 %v1932
    %v1934 = vlaneseq
    %v1935 = vshrl.u32 %v1934, 7
    %v1936 = vsub.s32 %v1933, %v1935
    %v1937 = vrot.slane %v1929, %v1936
    %v1939 = vunpack.c.l.s4 1934713408
    %v1940 = vunpack.c.0.s8 %v1939
    %v1941 = vlaneseq
    %v1942 = vshrl.u32 %v1941, 7
    %v1943 = vsub.s32 %v1940, %v1942
    %v1944 = vrot.slane %v1930, %v1943
    %v1945 = vcombine.low %v1912, %v1928
    %v1946 = vcombine.high %v1912, %v1928
    %v1948 = vunpack.c.l.s4 1934713408
    %v1949 = vunpack.c.0.s8 %v1948
    %v1950 = vlaneseq
    %v1951 = vshrl.u32 %v1950, 7
    %v1952 = vsub.s32 %v1949, %v1951
    %v1953 = vrot.slane %v1945, %v1952
    %v1955 = vunpack.c.l.s4 1934713408
    %v1956 = vunpack.c.0.s8 %v1955
    %v1957 = vlaneseq
    %v1958 = vshrl.u32 %v1957, 7
    %v1959 = vsub.s32 %v1956, %v1958
    %v1960 = vrot.slane %v1946, %v1959
    %v1961 = vcombine.high %v1937, 0.0
    %v1962 = vcombine.high %v1944, 0.0
    %v1963 = vcombine.high %v1953, 0.0
    %v1964 = vcombine.high %v1960, 0.0
    %v1965 = vcombine.low %v1408, %v1440
    %v1966 = vcombine.high %v1408, %v1440
    %v1968 = vunpack.c.l.s4 1983009808
    %v1969 = vunpack.c.0.s8 %v1968
    %v1970 = vlaneseq
    %v1971 = vshrl.u32 %v1970, 7
    %v1972 = vsub.s32 %v1969, %v1971
    %v1973 = vrot.slane %v1965, %v1972
    %v1975 = vunpack.c.l.s4 1983009808
    %v1976 = vunpack.c.0.s8 %v1975
    %v1977 = vlaneseq
    %v1978 = vshrl.u32 %v1977, 7
    %v1979 = vsub.s32 %v1976, %v1978
    %v1980 = vrot.slane %v1966, %v1979
    %v1981 = vcombine.low %v1424, %v1456
    %v1982 = vcombine.high %v1424, %v1456
    %v1984 = vunpack.c.l.s4 1983009808
    %v1985 = vunpack.c.0.s8 %v1984
    %v1986 = vlaneseq
    %v1987 = vshrl.u32 %v1986, 7
    %v1988 = vsub.s32 %v1985, %v1987
    %v1989 = vrot.slane %v1981, %v1988
    %v1991 = vunpack.c.l.s4 1983009808
    %v1992 = vunpack.c.0.s8 %v1991
    %v1993 = vlaneseq
    %v1994 = vshrl.u32 %v1993, 7
    %v1995 = vsub.s32 %v1992, %v1994
    %v1996 = vrot.slane %v1982, %v1995
    %v1997 = vcombine.low %v1973, %v1989
    %v1998 = vcombine.high %v1973, %v1989
    %v2000 = vunpack.c.l.s4 1934713408
    %v2001 = vunpack.c.0.s8 %v2000
    %v2002 = vlaneseq
    %v2003 = vshrl.u32 %v2002, 7
    %v2004 = vsub.s32 %v2001, %v2003
    %v2005 = vrot.slane %v1997, %v2004
    %v2007 = vunpack.c.l.s4 1934713408
    %v2008 = vunpack.c.0.s8 %v2007
    %v2009 = vlaneseq
    %v2010 = vshrl.u32 %v2009, 7
    %v2011 = vsub.s32 %v2008, %v2010
    %v2012 = vrot.slane %v1998, %v2011
    %v2013 = vcombine.low %v1980, %v1996
    %v2014 = vcombine.high %v1980, %v1996
    %v2016 = vunpack.c.l.s4 1934713408
    %v2017 = vunpack.c.0.s8 %v2016
    %v2018 = vlaneseq
    %v2019 = vshrl.u32 %v2018, 7
    %v2020 = vsub.s32 %v2017, %v2019
    %v2021 = vrot.slane %v2013, %v2020
    %v2023 = vunpack.c.l.s4 1934713408
    %v2024 = vunpack.c.0.s8 %v2023
    %v2025 = vlaneseq
    %v2026 = vshrl.u32 %v2025, 7
    %v2027 = vsub.s32 %v2024, %v2026
    %v2028 = vrot.slane %v2014, %v2027
    %v2029 = vcombine.high %v2005, 0.0
    %v2030 = vcombine.high %v2012, 0.0
    %v2031 = vcombine.high %v2021, 0.0
    %v2032 = vcombine.high %v2028, 0.0
    %v2033 = vcombine.low %v1529, %v1536
    %v2035 = vunpack.c.l.s4 1983009808
    %v2036 = vunpack.c.0.s8 %v2035
    %v2037 = vlaneseq
    %v2038 = vshrl.u32 %v2037, 7
    %v2039 = vsub.s32 %v2036, %v2038
    %v2040 = vrot.slane %v2033, %v2039
    %v2041 = vcombine.low %v1553, %v1554
    %v2043 = vunpack.c.l.s4 1983009808
    %v2044 = vunpack.c.0.s8 %v2043
    %v2045 = vlaneseq
    %v2046 = vshrl.u32 %v2045, 7
    %v2047 = vsub.s32 %v2044, %v2046
    %v2048 = vrot.slane %v2041, %v2047
    %v2049 = vcombine.low %v1545, %v1552
    %v2051 = vunpack.c.l.s4 1983009808
    %v2052 = vunpack.c.0.s8 %v2051
    %v2053 = vlaneseq
    %v2054 = vshrl.u32 %v2053, 7
    %v2055 = vsub.s32 %v2052, %v2054
    %v2056 = vrot.slane %v2049, %v2055
    %v2057 = vcombine.low %v1555, %v1556
    %v2059 = vunpack.c.l.s4 1983009808
    %v2060 = vunpack.c.0.s8 %v2059
    %v2061 = vlaneseq
    %v2062 = vshrl.u32 %v2061, 7
    %v2063 = vsub.s32 %v2060, %v2062
    %v2064 = vrot.slane %v2057, %v2063
    %v2065 = vcombine.low %v2040, %v2048
    %v2066 = vcombine.high %v2040, %v2048
    %v2068 = vunpack.c.l.s4 1934713408
    %v2069 = vunpack.c.0.s8 %v2068
    %v2070 = vlaneseq
    %v2071 = vshrl.u32 %v2070, 7
    %v2072 = vsub.s32 %v2069, %v2071
    %v2073 = vrot.slane %v2065, %v2072
    %v2075 = vunpack.c.l.s4 1934713408
    %v2076 = vunpack.c.0.s8 %v2075
    %v2077 = vlaneseq
    %v2078 = vshrl.u32 %v2077, 7
    %v2079 = vsub.s32 %v2076, %v2078
    %v2080 = vrot.slane %v2066, %v2079
    %v2081 = vcombine.low %v2056, %v2064
    %v2082 = vcombine.high %v2056, %v2064
    %v2084 = vunpack.c.l.s4 1934713408
    %v2085 = vunpack.c.0.s8 %v2084
    %v2086 = vlaneseq
    %v2087 = vshrl.u32 %v2086, 7
    %v2088 = vsub.s32 %v2085, %v2087
    %v2089 = vrot.slane %v2081, %v2088
    %v2091 = vunpack.c.l.s4 1934713408
    %v2092 = vunpack.c.0.s8 %v2091
    %v2093 = vlaneseq
    %v2094 = vshrl.u32 %v2093, 7
    %v2095 = vsub.s32 %v2092, %v2094
    %v2096 = vrot.slane %v2082, %v2095
    %v2097 = vcombine.low %v2073, %v2089
    %v2098 = vcombine.high %v2073, %v2089
    %v2099 = vcombine.low %v2080, %v2096
    %v2100 = vcombine.high %v2080, %v2096
    %v2101 = vcombine.low %v1597, %v1604
    %v2103 = vunpack.c.l.s4 1983009808
    %v2104 = vunpack.c.0.s8 %v2103
    %v2105 = vlaneseq
    %v2106 = vshrl.u32 %v2105, 7
    %v2107 = vsub.s32 %v2104, %v2106
    %v2108 = vrot.slane %v2101, %v2107
    %v2109 = vcombine.low %v1621, %v1622
    %v2111 = vunpack.c.l.s4 1983009808
    %v2112 = vunpack.c.0.s8 %v2111
    %v2113 = vlaneseq
    %v2114 = vshrl.u32 %v2113, 7
    %v2115 = vsub.s32 %v2112, %v2114
    %v2116 = vrot.slane %v2109, %v2115
    %v2117 = vcombine.low %v1613, %v1620
    %v2119 = vunpack.c.l.s4 1983009808
    %v2120 = vunpack.c.0.s8 %v2119
    %v2121 = vlaneseq
    %v2122 = vshrl.u32 %v2121, 7
    %v2123 = vsub.s32 %v2120, %v2122
    %v2124 = vrot.slane %v2117, %v2123
    %v2125 = vcombine.low %v1623, %v1624
    %v2127 = vunpack.c.l.s4 1983009808
    %v2128 = vunpack.c.0.s8 %v2127
    %v2129 = vlaneseq
    %v2130 = vshrl.u32 %v2129, 7
    %v2131 = vsub.s32 %v2128, %v2130
    %v2132 = vrot.slane %v2125, %v2131
    %v2133 = vcombine.low %v2108, %v2116
    %v2134 = vcombine.high %v2108, %v2116
    %v2136 = vunpack.c.l.s4 1934713408
    %v2137 = vunpack.c.0.s8 %v2136
    %v2138 = vlaneseq
    %v2139 = vshrl.u32 %v2138, 7
    %v2140 = vsub.s32 %v2137, %v2139
    %v2141 = vrot.slane %v2133, %v2140
    %v2143 = vunpack.c.l.s4 1934713408
    %v2144 = vunpack.c.0.s8 %v2143
    %v2145 = vlaneseq
    %v2146 = vshrl.u32 %v2145, 7
    %v2147 = vsub.s32 %v2144, %v2146
    %v2148 = vrot.slane %v2134, %v2147
    %v2149 = vcombine.low %v2124, %v2132
    %v2150 = vcombine.high %v2124, %v2132
    %v2152 = vunpack.c.l.s4 1934713408
    %v2153 = vunpack.c.0.s8 %v2152
    %v2154 = vlaneseq
    %v2155 = vshrl.u32 %v2154, 7
    %v2156 = vsub.s32 %v2153, %v2155
    %v2157 = vrot.slane %v2149, %v2156
    %v2159 = vunpack.c.l.s4 1934713408
    %v2160 = vunpack.c.0.s8 %v2159
    %v2161 = vlaneseq
    %v2162 = vshrl.u32 %v2161, 7
    %v2163 = vsub.s32 %v2160, %v2162
    %v2164 = vrot.slane %v2150, %v2163
    %v2165 = vcombine.low %v2141, %v2157
    %v2166 = vcombine.high %v2141, %v2157
    %v2167 = vcombine.low %v2148, %v2164
    %v2168 = vcombine.high %v2148, %v2164
    %v2169 = vcombine.low %v1665, %v1672
    %v2171 = vunpack.c.l.s4 1983009808
    %v2172 = vunpack.c.0.s8 %v2171
    %v2173 = vlaneseq
    %v2174 = vshrl.u32 %v2173, 7
    %v2175 = vsub.s32 %v2172, %v2174
    %v2176 = vrot.slane %v2169, %v2175
    %v2177 = vcombine.low %v1689, %v1690
    %v2179 = vunpack.c.l.s4 1983009808
    %v2180 = vunpack.c.0.s8 %v2179
    %v2181 = vlaneseq
    %v2182 = vshrl.u32 %v2181, 7
    %v2183 = vsub.s32 %v2180, %v2182
    %v2184 = vrot.slane %v2177, %v2183
    %v2185 = vcombine.low %v1681, %v1688
    %v2187 = vunpack.c.l.s4 1983009808
    %v2188 = vunpack.c.0.s8 %v2187
    %v2189 = vlaneseq
    %v2190 = vshrl.u32 %v2189, 7
    %v2191 = vsub.s32 %v2188, %v2190
    %v2192 = vrot.slane %v2185, %v2191
    %v2193 = vcombine.low %v1691, %v1692
    %v2195 = vunpack.c.l.s4 1983009808
    %v2196 = vunpack.c.0.s8 %v2195
    %v2197 = vlaneseq
    %v2198 = vshrl.u32 %v2197, 7
    %v2199 = vsub.s32 %v2196, %v2198
    %v2200 = vrot.slane %v2193, %v2199
    %v2201 = vcombine.low %v2176, %v2184
    %v2202 = vcombine.high %v2176, %v2184
    %v2204 = vunpack.c.l.s4 1934713408
    %v2205 = vunpack.c.0.s8 %v2204
    %v2206 = vlaneseq
    %v2207 = vshrl.u32 %v2206, 7
    %v2208 = vsub.s32 %v2205, %v2207
    %v2209 = vrot.slane %v2201, %v2208
    %v2211 = vunpack.c.l.s4 1934713408
    %v2212 = vunpack.c.0.s8 %v2211
    %v2213 = vlaneseq
    %v2214 = vshrl.u32 %v2213, 7
    %v2215 = vsub.s32 %v2212, %v2214
    %v2216 = vrot.slane %v2202, %v2215
    %v2217 = vcombine.low %v2192, %v2200
    %v2218 = vcombine.high %v2192, %v2200
    %v2220 = vunpack.c.l.s4 1934713408
    %v2221 = vunpack.c.0.s8 %v2220
    %v2222 = vlaneseq
    %v2223 = vshrl.u32 %v2222, 7
    %v2224 = vsub.s32 %v2221, %v2223
    %v2225 = vrot.slane %v2217, %v2224
    %v2227 = vunpack.c.l.s4 1934713408
    %v2228 = vunpack.c.0.s8 %v2227
    %v2229 = vlaneseq
    %v2230 = vshrl.u32 %v2229, 7
    %v2231 = vsub.s32 %v2228, %v2230
    %v2232 = vrot.slane %v2218, %v2231
    %v2233 = vcombine.low %v2209, %v2225
    %v2234 = vcombine.high %v2209, %v2225
    %v2235 = vcombine.low %v2216, %v2232
    %v2236 = vcombine.high %v2216, %v2232
    %v2237 = vcombine.low %v1733, %v1740
    %v2239 = vunpack.c.l.s4 1983009808
    %v2240 = vunpack.c.0.s8 %v2239
    %v2241 = vlaneseq
    %v2242 = vshrl.u32 %v2241, 7
    %v2243 = vsub.s32 %v2240, %v2242
    %v2244 = vrot.slane %v2237, %v2243
    %v2245 = vcombine.low %v1757, %v1758
    %v2247 = vunpack.c.l.s4 1983009808
    %v2248 = vunpack.c.0.s8 %v2247
    %v2249 = vlaneseq
    %v2250 = vshrl.u32 %v2249, 7
    %v2251 = vsub.s32 %v2248, %v2250
    %v2252 = vrot.slane %v2245, %v2251
    %v2253 = vcombine.low %v1749, %v1756
    %v2255 = vunpack.c.l.s4 1983009808
    %v2256 = vunpack.c.0.s8 %v2255
    %v2257 = vlaneseq
    %v2258 = vshrl.u32 %v2257, 7
    %v2259 = vsub.s32 %v2256, %v2258
    %v2260 = vrot.slane %v2253, %v2259
    %v2261 = vcombine.low %v1759, %v1760
    %v2263 = vunpack.c.l.s4 1983009808
    %v2264 = vunpack.c.0.s8 %v2263
    %v2265 = vlaneseq
    %v2266 = vshrl.u32 %v2265, 7
    %v2267 = vsub.s32 %v2264, %v2266
    %v2268 = vrot.slane %v2261, %v2267
    %v2269 = vcombine.low %v2244, %v2252
    %v2270 = vcombine.high %v2244, %v2252
    %v2272 = vunpack.c.l.s4 1934713408
    %v2273 = vunpack.c.0.s8 %v2272
    %v2274 = vlaneseq
    %v2275 = vshrl.u32 %v2274, 7
    %v2276 = vsub.s32 %v2273, %v2275
    %v2277 = vrot.slane %v2269, %v2276
    %v2279 = vunpack.c.l.s4 1934713408
    %v2280 = vunpack.c.0.s8 %v2279
    %v2281 = vlaneseq
    %v2282 = vshrl.u32 %v2281, 7
    %v2283 = vsub.s32 %v2280, %v2282
    %v2284 = vrot.slane %v2270, %v2283
    %v2285 = vcombine.low %v2260, %v2268
    %v2286 = vcombine.high %v2260, %v2268
    %v2288 = vunpack.c.l.s4 1934713408
    %v2289 = vunpack.c.0.s8 %v2288
    %v2290 = vlaneseq
    %v2291 = vshrl.u32 %v2290, 7
    %v2292 = vsub.s32 %v2289, %v2291
    %v2293 = vrot.slane %v2285, %v2292
    %v2295 = vunpack.c.l.s4 1934713408
    %v2296 = vunpack.c.0.s8 %v2295
    %v2297 = vlaneseq
    %v2298 = vshrl.u32 %v2297, 7
    %v2299 = vsub.s32 %v2296, %v2298
    %v2300 = vrot.slane %v2286, %v2299
    %v2301 = vcombine.low %v2277, %v2293
    %v2302 = vcombine.high %v2277, %v2293
    %v2303 = vcombine.low %v2284, %v2300
    %v2304 = vcombine.high %v2284, %v2300
    %v2305 = vcombine.low %v1801, %v1808
    %v2307 = vunpack.c.l.s4 1983009808
    %v2308 = vunpack.c.0.s8 %v2307
    %v2309 = vlaneseq
    %v2310 = vshrl.u32 %v2309, 7
    %v2311 = vsub.s32 %v2308, %v2310
    %v2312 = vrot.slane %v2305, %v2311
    %v2313 = vcombine.low %v1825, %v1826
    %v2315 = vunpack.c.l.s4 1983009808
    %v2316 = vunpack.c.0.s8 %v2315
    %v2317 = vlaneseq
    %v2318 = vshrl.u32 %v2317, 7
    %v2319 = vsub.s32 %v2316, %v2318
    %v2320 = vrot.slane %v2313, %v2319
    %v2321 = vcombine.low %v1817, %v1824
    %v2323 = vunpack.c.l.s4 1983009808
    %v2324 = vunpack.c.0.s8 %v2323
    %v2325 = vlaneseq
    %v2326 = vshrl.u32 %v2325, 7
    %v2327 = vsub.s32 %v2324, %v2326
    %v2328 = vrot.slane %v2321, %v2327
    %v2329 = vcombine.low %v1827, %v1828
    %v2331 = vunpack.c.l.s4 1983009808
    %v2332 = vunpack.c.0.s8 %v2331
    %v2333 = vlaneseq
    %v2334 = vshrl.u32 %v2333, 7
    %v2335 = vsub.s32 %v2332, %v2334
    %v2336 = vrot.slane %v2329, %v2335
    %v2337 = vcombine.low %v2312, %v2320
    %v2338 = vcombine.high %v2312, %v2320
    %v2340 = vunpack.c.l.s4 1934713408
    %v2341 = vunpack.c.0.s8 %v2340
    %v2342 = vlaneseq
    %v2343 = vshrl.u32 %v2342, 7
    %v2344 = vsub.s32 %v2341, %v2343
    %v2345 = vrot.slane %v2337, %v2344
    %v2347 = vunpack.c.l.s4 1934713408
    %v2348 = vunpack.c.0.s8 %v2347
    %v2349 = vlaneseq
    %v2350 = vshrl.u32 %v2349, 7
    %v2351 = vsub.s32 %v2348, %v2350
    %v2352 = vrot.slane %v2338, %v2351
    %v2353 = vcombine.low %v2328, %v2336
    %v2354 = vcombine.high %v2328, %v2336
    %v2356 = vunpack.c.l.s4 1934713408
    %v2357 = vunpack.c.0.s8 %v2356
    %v2358 = vlaneseq
    %v2359 = vshrl.u32 %v2358, 7
    %v2360 = vsub.s32 %v2357, %v2359
    %v2361 = vrot.slane %v2353, %v2360
    %v2363 = vunpack.c.l.s4 1934713408
    %v2364 = vunpack.c.0.s8 %v2363
    %v2365 = vlaneseq
    %v2366 = vshrl.u32 %v2365, 7
    %v2367 = vsub.s32 %v2364, %v2366
    %v2368 = vrot.slane %v2354, %v2367
    %v2369 = vcombine.low %v2345, %v2361
    %v2370 = vcombine.high %v2345, %v2361
    %v2371 = vcombine.low %v2352, %v2368
    %v2372 = vcombine.high %v2352, %v2368
    %v2373 = vcombine.low %v1869, %v1876
    %v2375 = vunpack.c.l.s4 1983009808
    %v2376 = vunpack.c.0.s8 %v2375
    %v2377 = vlaneseq
    %v2378 = vshrl.u32 %v2377, 7
    %v2379 = vsub.s32 %v2376, %v2378
    %v2380 = vrot.slane %v2373, %v2379
    %v2381 = vcombine.low %v1893, %v1894
    %v2383 = vunpack.c.l.s4 1983009808
    %v2384 = vunpack.c.0.s8 %v2383
    %v2385 = vlaneseq
    %v2386 = vshrl.u32 %v2385, 7
    %v2387 = vsub.s32 %v2384, %v2386
    %v2388 = vrot.slane %v2381, %v2387
    %v2389 = vcombine.low %v1885, %v1892
    %v2391 = vunpack.c.l.s4 1983009808
    %v2392 = vunpack.c.0.s8 %v2391
    %v2393 = vlaneseq
    %v2394 = vshrl.u32 %v2393, 7
    %v2395 = vsub.s32 %v2392, %v2394
    %v2396 = vrot.slane %v2389, %v2395
    %v2397 = vcombine.low %v1895, %v1896
    %v2399 = vunpack.c.l.s4 1983009808
    %v2400 = vunpack.c.0.s8 %v2399
    %v2401 = vlaneseq
    %v2402 = vshrl.u32 %v2401, 7
    %v2403 = vsub.s32 %v2400, %v2402
    %v2404 = vrot.slane %v2397, %v2403
    %v2405 = vcombine.low %v2380, %v2388
    %v2406 = vcombine.high %v2380, %v2388
    %v2408 = vunpack.c.l.s4 1934713408
    %v2409 = vunpack.c.0.s8 %v2408
    %v2410 = vlaneseq
    %v2411 = vshrl.u32 %v2410, 7
    %v2412 = vsub.s32 %v2409, %v2411
    %v2413 = vrot.slane %v2405, %v2412
    %v2415 = vunpack.c.l.s4 1934713408
    %v2416 = vunpack.c.0.s8 %v2415
    %v2417 = vlaneseq
    %v2418 = vshrl.u32 %v2417, 7
    %v2419 = vsub.s32 %v2416, %v2418
    %v2420 = vrot.slane %v2406, %v2419
    %v2421 = vcombine.low %v2396, %v2404
    %v2422 = vcombine.high %v2396, %v2404
    %v2424 = vunpack.c.l.s4 1934713408
    %v2425 = vunpack.c.0.s8 %v2424
    %v2426 = vlaneseq
    %v2427 = vshrl.u32 %v2426, 7
    %v2428 = vsub.s32 %v2425, %v2427
    %v2429 = vrot.slane %v2421, %v2428
    %v2431 = vunpack.c.l.s4 1934713408
    %v2432 = vunpack.c.0.s8 %v2431
    %v2433 = vlaneseq
    %v2434 = vshrl.u32 %v2433, 7
    %v2435 = vsub.s32 %v2432, %v2434
    %v2436 = vrot.slane %v2422, %v2435
    %v2437 = vcombine.low %v2413, %v2429
    %v2438 = vcombine.high %v2413, %v2429
    %v2439 = vcombine.low %v2420, %v2436
    %v2440 = vcombine.high %v2420, %v2436
    %v2441 = vcombine.low %v1937, %v1944
    %v2443 = vunpack.c.l.s4 1983009808
    %v2444 = vunpack.c.0.s8 %v2443
    %v2445 = vlaneseq
    %v2446 = vshrl.u32 %v2445, 7
    %v2447 = vsub.s32 %v2444, %v2446
    %v2448 = vrot.slane %v2441, %v2447
    %v2449 = vcombine.low %v1961, %v1962
    %v2451 = vunpack.c.l.s4 1983009808
    %v2452 = vunpack.c.0.s8 %v2451
    %v2453 = vlaneseq
    %v2454 = vshrl.u32 %v2453, 7
    %v2455 = vsub.s32 %v2452, %v2454
    %v2456 = vrot.slane %v2449, %v2455
    %v2457 = vcombine.low %v1953, %v1960
    %v2459 = vunpack.c.l.s4 1983009808
    %v2460 = vunpack.c.0.s8 %v2459
    %v2461 = vlaneseq
    %v2462 = vshrl.u32 %v2461, 7
    %v2463 = vsub.s32 %v2460, %v2462
    %v2464 = vrot.slane %v2457, %v2463
    %v2465 = vcombine.low %v1963, %v1964
    %v2467 = vunpack.c.l.s4 1983009808
    %v2468 = vunpack.c.0.s8 %v2467
    %v2469 = vlaneseq
    %v2470 = vshrl.u32 %v2469, 7
    %v2471 = vsub.s32 %v2468, %v2470
    %v2472 = vrot.slane %v2465, %v2471
    %v2473 = vcombine.low %v2448, %v2456
    %v2474 = vcombine.high %v2448, %v2456
    %v2476 = vunpack.c.l.s4 1934713408
    %v2477 = vunpack.c.0.s8 %v2476
    %v2478 = vlaneseq
    %v2479 = vshrl.u32 %v2478, 7
    %v2480 = vsub.s32 %v2477, %v2479
    %v2481 = vrot.slane %v2473, %v2480
    %v2483 = vunpack.c.l.s4 1934713408
    %v2484 = vunpack.c.0.s8 %v2483
    %v2485 = vlaneseq
    %v2486 = vshrl.u32 %v2485, 7
    %v2487 = vsub.s32 %v2484, %v2486
    %v2488 = vrot.slane %v2474, %v2487
    %v2489 = vcombine.low %v2464, %v2472
    %v2490 = vcombine.high %v2464, %v2472
    %v2492 = vunpack.c.l.s4 1934713408
    %v2493 = vunpack.c.0.s8 %v2492
    %v2494 = vlaneseq
    %v2495 = vshrl.u32 %v2494, 7
    %v2496 = vsub.s32 %v2493, %v2495
    %v2497 = vrot.slane %v2489, %v2496
    %v2499 = vunpack.c.l.s4 1934713408
    %v2500 = vunpack.c.0.s8 %v2499
    %v2501 = vlaneseq
    %v2502 = vshrl.u32 %v2501, 7
    %v2503 = vsub.s32 %v2500, %v2502
    %v2504 = vrot.slane %v2490, %v2503
    %v2505 = vcombine.low %v2481, %v2497
    %v2506 = vcombine.high %v2481, %v2497
    %v2507 = vcombine.low %v2488, %v2504
    %v2508 = vcombine.high %v2488, %v2504
    %v2509 = vcombine.low %v2005, %v2012
    %v2511 = vunpack.c.l.s4 1983009808
    %v2512 = vunpack.c.0.s8 %v2511
    %v2513 = vlaneseq
    %v2514 = vshrl.u32 %v2513, 7
    %v2515 = vsub.s32 %v2512, %v2514
    %v2516 = vrot.slane %v2509, %v2515
    %v2517 = vcombine.low %v2029, %v2030
    %v2519 = vunpack.c.l.s4 1983009808
    %v2520 = vunpack.c.0.s8 %v2519
    %v2521 = vlaneseq
    %v2522 = vshrl.u32 %v2521, 7
    %v2523 = vsub.s32 %v2520, %v2522
    %v2524 = vrot.slane %v2517, %v2523
    %v2525 = vcombine.low %v2021, %v2028
    %v2527 = vunpack.c.l.s4 1983009808
    %v2528 = vunpack.c.0.s8 %v2527
    %v2529 = vlaneseq
    %v2530 = vshrl.u32 %v2529, 7
    %v2531 = vsub.s32 %v2528, %v2530
    %v2532 = vrot.slane %v2525, %v2531
    %v2533 = vcombine.low %v2031, %v2032
    %v2535 = vunpack.c.l.s4 1983009808
    %v2536 = vunpack.c.0.s8 %v2535
    %v2537 = vlaneseq
    %v2538 = vshrl.u32 %v2537, 7
    %v2539 = vsub.s32 %v2536, %v2538
    %v2540 = vrot.slane %v2533, %v2539
    %v2541 = vcombine.low %v2516, %v2524
    %v2542 = vcombine.high %v2516, %v2524
    %v2544 = vunpack.c.l.s4 1934713408
    %v2545 = vunpack.c.0.s8 %v2544
    %v2546 = vlaneseq
    %v2547 = vshrl.u32 %v2546, 7
    %v2548 = vsub.s32 %v2545, %v2547
    %v2549 = vrot.slane %v2541, %v2548
    %v2551 = vunpack.c.l.s4 1934713408
    %v2552 = vunpack.c.0.s8 %v2551
    %v2553 = vlaneseq
    %v2554 = vshrl.u32 %v2553, 7
    %v2555 = vsub.s32 %v2552, %v2554
    %v2556 = vrot.slane %v2542, %v2555
    %v2557 = vcombine.low %v2532, %v2540
    %v2558 = vcombine.high %v2532, %v2540
    %v2560 = vunpack.c.l.s4 1934713408
    %v2561 = vunpack.c.0.s8 %v2560
    %v2562 = vlaneseq
    %v2563 = vshrl.u32 %v2562, 7
    %v2564 = vsub.s32 %v2561, %v2563
    %v2565 = vrot.slane %v2557, %v2564
    %v2567 = vunpack.c.l.s4 1934713408
    %v2568 = vunpack.c.0.s8 %v2567
    %v2569 = vlaneseq
    %v2570 = vshrl.u32 %v2569, 7
    %v2571 = vsub.s32 %v2568, %v2570
    %v2572 = vrot.slane %v2558, %v2571
    %v2573 = vcombine.low %v2549, %v2565
    %v2574 = vcombine.high %v2549, %v2565
    %v2575 = vcombine.low %v2556, %v2572
    %v2576 = vcombine.high %v2556, %v2572
    %v2577 = vpack.c.bf16 %v2165, %v2097
    %v2578 = vpack.c.bf16 %v2166, %v2098
    %v2579 = vpack.c.bf16 %v2167, %v2099
    %v2580 = vpack.c.bf16 %v2168, %v2100
    %v2581 = vpack.c.bf16 %v2301, %v2233
    %v2582 = vpack.c.bf16 %v2302, %v2234
    %v2583 = vpack.c.bf16 %v2303, %v2235
    %v2584 = vpack.c.bf16 %v2304, %v2236
    %v2585 = vpack.c.bf16 %v2437, %v2369
    %v2586 = vpack.c.bf16 %v2438, %v2370
    %v2587 = vpack.c.bf16 %v2439, %v2371
    %v2588 = vpack.c.bf16 %v2440, %v2372
    %v2589 = vpack.c.bf16 %v2573, %v2505
    %v2590 = vpack.c.bf16 %v2574, %v2506
    %v2591 = vpack.c.bf16 %v2575, %v2507
    %v2592 = vpack.c.bf16 %v2576, %v2508
    %2593 = vrot.lane.b32.xlu0 %v179, 64
    %v2594 = vpop.permute.xlu0 %2593
    %2595 = vrot.lane.b32.xlu0 %v182, 64
    %v2596 = vpop.permute.xlu0 %2595
    %2597 = vrot.lane.b32.xlu0 %v187, 64
    %v2598 = vpop.permute.xlu0 %2597
    %2599 = vrot.lane.b32.xlu0 %v190, 64
    %v2600 = vpop.permute.xlu0 %2599
    %2601 = vrot.lane.b32.xlu0 %v195, 64
    %v2602 = vpop.permute.xlu0 %2601
    %2603 = vrot.lane.b32.xlu0 %v198, 64
    %v2604 = vpop.permute.xlu0 %2603
    %2605 = vrot.lane.b32.xlu0 %v203, 64
    %v2606 = vpop.permute.xlu0 %2605
    %2607 = vrot.lane.b32.xlu0 %v206, 64
    %v2608 = vpop.permute.xlu0 %2607
    %2609 = vrot.lane.b32.xlu0 %v218, 64
    %v2610 = vpop.permute.xlu0 %2609
    %2611 = vrot.lane.b32.xlu0 %v220, 64
    %v2612 = vpop.permute.xlu0 %2611
    %2613 = vrot.lane.b32.xlu0 %v222, 64
    %v2614 = vpop.permute.xlu0 %2613
    %2615 = vrot.lane.b32.xlu0 %v224, 64
    %v2616 = vpop.permute.xlu0 %2615
    %2617 = vrot.lane.b32.xlu0 %v226, 64
    %v2618 = vpop.permute.xlu0 %2617
    %2619 = vrot.lane.b32.xlu0 %v228, 64
    %v2620 = vpop.permute.xlu0 %2619
    %2621 = vrot.lane.b32.xlu0 %v230, 64
    %v2622 = vpop.permute.xlu0 %2621
    %2623 = vrot.lane.b32.xlu0 %v232, 64
    %v2624 = vpop.permute.xlu0 %2623
    %2625 = vrot.lane.b32.xlu0 %v242, 64
    %v2626 = vpop.permute.xlu0 %2625
    %2627 = vrot.lane.b32.xlu0 %v244, 64
    %v2628 = vpop.permute.xlu0 %2627
    %2629 = vrot.lane.b32.xlu0 %v246, 64
    %v2630 = vpop.permute.xlu0 %2629
    %2631 = vrot.lane.b32.xlu0 %v248, 64
    %v2632 = vpop.permute.xlu0 %2631
    %2633 = vrot.lane.b32.xlu0 %v250, 64
    %v2634 = vpop.permute.xlu0 %2633
    %2635 = vrot.lane.b32.xlu0 %v252, 64
    %v2636 = vpop.permute.xlu0 %2635
    %2637 = vrot.lane.b32.xlu0 %v254, 64
    %v2638 = vpop.permute.xlu0 %2637
    %2639 = vrot.lane.b32.xlu0 %v256, 64
    %v2640 = vpop.permute.xlu0 %2639
    %2641 = vrot.lane.b32.xlu0 %v266, 64
    %v2642 = vpop.permute.xlu0 %2641
    %2643 = vrot.lane.b32.xlu0 %v268, 64
    %v2644 = vpop.permute.xlu0 %2643
    %2645 = vrot.lane.b32.xlu0 %v270, 64
    %v2646 = vpop.permute.xlu0 %2645
    %2647 = vrot.lane.b32.xlu0 %v272, 64
    %v2648 = vpop.permute.xlu0 %2647
    %2649 = vrot.lane.b32.xlu0 %v274, 64
    %v2650 = vpop.permute.xlu0 %2649
    %2651 = vrot.lane.b32.xlu0 %v276, 64
    %v2652 = vpop.permute.xlu0 %2651
    %2653 = vrot.lane.b32.xlu0 %v278, 64
    %v2654 = vpop.permute.xlu0 %2653
    %2655 = vrot.lane.b32.xlu0 %v280, 64
    %v2656 = vpop.permute.xlu0 %2655
    %v2689 = vcombine.low %v2594, %v2626
    %v2690 = vcombine.high %v2594, %v2626
    %v2692 = vunpack.c.l.s4 1983009808
    %v2693 = vunpack.c.0.s8 %v2692
    %v2694 = vlaneseq
    %v2695 = vshrl.u32 %v2694, 7
    %v2696 = vsub.s32 %v2693, %v2695
    %v2697 = vrot.slane %v2689, %v2696
    %v2699 = vunpack.c.l.s4 1983009808
    %v2700 = vunpack.c.0.s8 %v2699
    %v2701 = vlaneseq
    %v2702 = vshrl.u32 %v2701, 7
    %v2703 = vsub.s32 %v2700, %v2702
    %v2704 = vrot.slane %v2690, %v2703
    %v2705 = vcombine.low %v2610, %v2642
    %v2706 = vcombine.high %v2610, %v2642
    %v2708 = vunpack.c.l.s4 1983009808
    %v2709 = vunpack.c.0.s8 %v2708
    %v2710 = vlaneseq
    %v2711 = vshrl.u32 %v2710, 7
    %v2712 = vsub.s32 %v2709, %v2711
    %v2713 = vrot.slane %v2705, %v2712
    %v2715 = vunpack.c.l.s4 1983009808
    %v2716 = vunpack.c.0.s8 %v2715
    %v2717 = vlaneseq
    %v2718 = vshrl.u32 %v2717, 7
    %v2719 = vsub.s32 %v2716, %v2718
    %v2720 = vrot.slane %v2706, %v2719
    %v2721 = vcombine.low %v2697, %v2713
    %v2722 = vcombine.high %v2697, %v2713
    %v2724 = vunpack.c.l.s4 1934713408
    %v2725 = vunpack.c.0.s8 %v2724
    %v2726 = vlaneseq
    %v2727 = vshrl.u32 %v2726, 7
    %v2728 = vsub.s32 %v2725, %v2727
    %v2729 = vrot.slane %v2721, %v2728
    %v2731 = vunpack.c.l.s4 1934713408
    %v2732 = vunpack.c.0.s8 %v2731
    %v2733 = vlaneseq
    %v2734 = vshrl.u32 %v2733, 7
    %v2735 = vsub.s32 %v2732, %v2734
    %v2736 = vrot.slane %v2722, %v2735
    %v2737 = vcombine.low %v2704, %v2720
    %v2738 = vcombine.high %v2704, %v2720
    %v2740 = vunpack.c.l.s4 1934713408
    %v2741 = vunpack.c.0.s8 %v2740
    %v2742 = vlaneseq
    %v2743 = vshrl.u32 %v2742, 7
    %v2744 = vsub.s32 %v2741, %v2743
    %v2745 = vrot.slane %v2737, %v2744
    %v2747 = vunpack.c.l.s4 1934713408
    %v2748 = vunpack.c.0.s8 %v2747
    %v2749 = vlaneseq
    %v2750 = vshrl.u32 %v2749, 7
    %v2751 = vsub.s32 %v2748, %v2750
    %v2752 = vrot.slane %v2738, %v2751
    %v2753 = vcombine.high %v2729, 0.0
    %v2754 = vcombine.high %v2736, 0.0
    %v2755 = vcombine.high %v2745, 0.0
    %v2756 = vcombine.high %v2752, 0.0
    %v2757 = vcombine.low %v2596, %v2628
    %v2758 = vcombine.high %v2596, %v2628
    %v2760 = vunpack.c.l.s4 1983009808
    %v2761 = vunpack.c.0.s8 %v2760
    %v2762 = vlaneseq
    %v2763 = vshrl.u32 %v2762, 7
    %v2764 = vsub.s32 %v2761, %v2763
    %v2765 = vrot.slane %v2757, %v2764
    %v2767 = vunpack.c.l.s4 1983009808
    %v2768 = vunpack.c.0.s8 %v2767
    %v2769 = vlaneseq
    %v2770 = vshrl.u32 %v2769, 7
    %v2771 = vsub.s32 %v2768, %v2770
    %v2772 = vrot.slane %v2758, %v2771
    %v2773 = vcombine.low %v2612, %v2644
    %v2774 = vcombine.high %v2612, %v2644
    %v2776 = vunpack.c.l.s4 1983009808
    %v2777 = vunpack.c.0.s8 %v2776
    %v2778 = vlaneseq
    %v2779 = vshrl.u32 %v2778, 7
    %v2780 = vsub.s32 %v2777, %v2779
    %v2781 = vrot.slane %v2773, %v2780
    %v2783 = vunpack.c.l.s4 1983009808
    %v2784 = vunpack.c.0.s8 %v2783
    %v2785 = vlaneseq
    %v2786 = vshrl.u32 %v2785, 7
    %v2787 = vsub.s32 %v2784, %v2786
    %v2788 = vrot.slane %v2774, %v2787
    %v2789 = vcombine.low %v2765, %v2781
    %v2790 = vcombine.high %v2765, %v2781
    %v2792 = vunpack.c.l.s4 1934713408
    %v2793 = vunpack.c.0.s8 %v2792
    %v2794 = vlaneseq
    %v2795 = vshrl.u32 %v2794, 7
    %v2796 = vsub.s32 %v2793, %v2795
    %v2797 = vrot.slane %v2789, %v2796
    %v2799 = vunpack.c.l.s4 1934713408
    %v2800 = vunpack.c.0.s8 %v2799
    %v2801 = vlaneseq
    %v2802 = vshrl.u32 %v2801, 7
    %v2803 = vsub.s32 %v2800, %v2802
    %v2804 = vrot.slane %v2790, %v2803
    %v2805 = vcombine.low %v2772, %v2788
    %v2806 = vcombine.high %v2772, %v2788
    %v2808 = vunpack.c.l.s4 1934713408
    %v2809 = vunpack.c.0.s8 %v2808
    %v2810 = vlaneseq
    %v2811 = vshrl.u32 %v2810, 7
    %v2812 = vsub.s32 %v2809, %v2811
    %v2813 = vrot.slane %v2805, %v2812
    %v2815 = vunpack.c.l.s4 1934713408
    %v2816 = vunpack.c.0.s8 %v2815
    %v2817 = vlaneseq
    %v2818 = vshrl.u32 %v2817, 7
    %v2819 = vsub.s32 %v2816, %v2818
    %v2820 = vrot.slane %v2806, %v2819
    %v2821 = vcombine.high %v2797, 0.0
    %v2822 = vcombine.high %v2804, 0.0
    %v2823 = vcombine.high %v2813, 0.0
    %v2824 = vcombine.high %v2820, 0.0
    %v2825 = vcombine.low %v2598, %v2630
    %v2826 = vcombine.high %v2598, %v2630
    %v2828 = vunpack.c.l.s4 1983009808
    %v2829 = vunpack.c.0.s8 %v2828
    %v2830 = vlaneseq
    %v2831 = vshrl.u32 %v2830, 7
    %v2832 = vsub.s32 %v2829, %v2831
    %v2833 = vrot.slane %v2825, %v2832
    %v2835 = vunpack.c.l.s4 1983009808
    %v2836 = vunpack.c.0.s8 %v2835
    %v2837 = vlaneseq
    %v2838 = vshrl.u32 %v2837, 7
    %v2839 = vsub.s32 %v2836, %v2838
    %v2840 = vrot.slane %v2826, %v2839
    %v2841 = vcombine.low %v2614, %v2646
    %v2842 = vcombine.high %v2614, %v2646
    %v2844 = vunpack.c.l.s4 1983009808
    %v2845 = vunpack.c.0.s8 %v2844
    %v2846 = vlaneseq
    %v2847 = vshrl.u32 %v2846, 7
    %v2848 = vsub.s32 %v2845, %v2847
    %v2849 = vrot.slane %v2841, %v2848
    %v2851 = vunpack.c.l.s4 1983009808
    %v2852 = vunpack.c.0.s8 %v2851
    %v2853 = vlaneseq
    %v2854 = vshrl.u32 %v2853, 7
    %v2855 = vsub.s32 %v2852, %v2854
    %v2856 = vrot.slane %v2842, %v2855
    %v2857 = vcombine.low %v2833, %v2849
    %v2858 = vcombine.high %v2833, %v2849
    %v2860 = vunpack.c.l.s4 1934713408
    %v2861 = vunpack.c.0.s8 %v2860
    %v2862 = vlaneseq
    %v2863 = vshrl.u32 %v2862, 7
    %v2864 = vsub.s32 %v2861, %v2863
    %v2865 = vrot.slane %v2857, %v2864
    %v2867 = vunpack.c.l.s4 1934713408
    %v2868 = vunpack.c.0.s8 %v2867
    %v2869 = vlaneseq
    %v2870 = vshrl.u32 %v2869, 7
    %v2871 = vsub.s32 %v2868, %v2870
    %v2872 = vrot.slane %v2858, %v2871
    %v2873 = vcombine.low %v2840, %v2856
    %v2874 = vcombine.high %v2840, %v2856
    %v2876 = vunpack.c.l.s4 1934713408
    %v2877 = vunpack.c.0.s8 %v2876
    %v2878 = vlaneseq
    %v2879 = vshrl.u32 %v2878, 7
    %v2880 = vsub.s32 %v2877, %v2879
    %v2881 = vrot.slane %v2873, %v2880
    %v2883 = vunpack.c.l.s4 1934713408
    %v2884 = vunpack.c.0.s8 %v2883
    %v2885 = vlaneseq
    %v2886 = vshrl.u32 %v2885, 7
    %v2887 = vsub.s32 %v2884, %v2886
    %v2888 = vrot.slane %v2874, %v2887
    %v2889 = vcombine.high %v2865, 0.0
    %v2890 = vcombine.high %v2872, 0.0
    %v2891 = vcombine.high %v2881, 0.0
    %v2892 = vcombine.high %v2888, 0.0
    %v2893 = vcombine.low %v2600, %v2632
    %v2894 = vcombine.high %v2600, %v2632
    %v2896 = vunpack.c.l.s4 1983009808
    %v2897 = vunpack.c.0.s8 %v2896
    %v2898 = vlaneseq
    %v2899 = vshrl.u32 %v2898, 7
    %v2900 = vsub.s32 %v2897, %v2899
    %v2901 = vrot.slane %v2893, %v2900
    %v2903 = vunpack.c.l.s4 1983009808
    %v2904 = vunpack.c.0.s8 %v2903
    %v2905 = vlaneseq
    %v2906 = vshrl.u32 %v2905, 7
    %v2907 = vsub.s32 %v2904, %v2906
    %v2908 = vrot.slane %v2894, %v2907
    %v2909 = vcombine.low %v2616, %v2648
    %v2910 = vcombine.high %v2616, %v2648
    %v2912 = vunpack.c.l.s4 1983009808
    %v2913 = vunpack.c.0.s8 %v2912
    %v2914 = vlaneseq
    %v2915 = vshrl.u32 %v2914, 7
    %v2916 = vsub.s32 %v2913, %v2915
    %v2917 = vrot.slane %v2909, %v2916
    %v2919 = vunpack.c.l.s4 1983009808
    %v2920 = vunpack.c.0.s8 %v2919
    %v2921 = vlaneseq
    %v2922 = vshrl.u32 %v2921, 7
    %v2923 = vsub.s32 %v2920, %v2922
    %v2924 = vrot.slane %v2910, %v2923
    %v2925 = vcombine.low %v2901, %v2917
    %v2926 = vcombine.high %v2901, %v2917
    %v2928 = vunpack.c.l.s4 1934713408
    %v2929 = vunpack.c.0.s8 %v2928
    %v2930 = vlaneseq
    %v2931 = vshrl.u32 %v2930, 7
    %v2932 = vsub.s32 %v2929, %v2931
    %v2933 = vrot.slane %v2925, %v2932
    %v2935 = vunpack.c.l.s4 1934713408
    %v2936 = vunpack.c.0.s8 %v2935
    %v2937 = vlaneseq
    %v2938 = vshrl.u32 %v2937, 7
    %v2939 = vsub.s32 %v2936, %v2938
    %v2940 = vrot.slane %v2926, %v2939
    %v2941 = vcombine.low %v2908, %v2924
    %v2942 = vcombine.high %v2908, %v2924
    %v2944 = vunpack.c.l.s4 1934713408
    %v2945 = vunpack.c.0.s8 %v2944
    %v2946 = vlaneseq
    %v2947 = vshrl.u32 %v2946, 7
    %v2948 = vsub.s32 %v2945, %v2947
    %v2949 = vrot.slane %v2941, %v2948
    %v2951 = vunpack.c.l.s4 1934713408
    %v2952 = vunpack.c.0.s8 %v2951
    %v2953 = vlaneseq
    %v2954 = vshrl.u32 %v2953, 7
    %v2955 = vsub.s32 %v2952, %v2954
    %v2956 = vrot.slane %v2942, %v2955
    %v2957 = vcombine.high %v2933, 0.0
    %v2958 = vcombine.high %v2940, 0.0
    %v2959 = vcombine.high %v2949, 0.0
    %v2960 = vcombine.high %v2956, 0.0
    %v2961 = vcombine.low %v2602, %v2634
    %v2962 = vcombine.high %v2602, %v2634
    %v2964 = vunpack.c.l.s4 1983009808
    %v2965 = vunpack.c.0.s8 %v2964
    %v2966 = vlaneseq
    %v2967 = vshrl.u32 %v2966, 7
    %v2968 = vsub.s32 %v2965, %v2967
    %v2969 = vrot.slane %v2961, %v2968
    %v2971 = vunpack.c.l.s4 1983009808
    %v2972 = vunpack.c.0.s8 %v2971
    %v2973 = vlaneseq
    %v2974 = vshrl.u32 %v2973, 7
    %v2975 = vsub.s32 %v2972, %v2974
    %v2976 = vrot.slane %v2962, %v2975
    %v2977 = vcombine.low %v2618, %v2650
    %v2978 = vcombine.high %v2618, %v2650
    %v2980 = vunpack.c.l.s4 1983009808
    %v2981 = vunpack.c.0.s8 %v2980
    %v2982 = vlaneseq
    %v2983 = vshrl.u32 %v2982, 7
    %v2984 = vsub.s32 %v2981, %v2983
    %v2985 = vrot.slane %v2977, %v2984
    %v2987 = vunpack.c.l.s4 1983009808
    %v2988 = vunpack.c.0.s8 %v2987
    %v2989 = vlaneseq
    %v2990 = vshrl.u32 %v2989, 7
    %v2991 = vsub.s32 %v2988, %v2990
    %v2992 = vrot.slane %v2978, %v2991
    %v2993 = vcombine.low %v2969, %v2985
    %v2994 = vcombine.high %v2969, %v2985
    %v2996 = vunpack.c.l.s4 1934713408
    %v2997 = vunpack.c.0.s8 %v2996
    %v2998 = vlaneseq
    %v2999 = vshrl.u32 %v2998, 7
    %v3000 = vsub.s32 %v2997, %v2999
    %v3001 = vrot.slane %v2993, %v3000
    %v3003 = vunpack.c.l.s4 1934713408
    %v3004 = vunpack.c.0.s8 %v3003
    %v3005 = vlaneseq
    %v3006 = vshrl.u32 %v3005, 7
    %v3007 = vsub.s32 %v3004, %v3006
    %v3008 = vrot.slane %v2994, %v3007
    %v3009 = vcombine.low %v2976, %v2992
    %v3010 = vcombine.high %v2976, %v2992
    %v3012 = vunpack.c.l.s4 1934713408
    %v3013 = vunpack.c.0.s8 %v3012
    %v3014 = vlaneseq
    %v3015 = vshrl.u32 %v3014, 7
    %v3016 = vsub.s32 %v3013, %v3015
    %v3017 = vrot.slane %v3009, %v3016
    %v3019 = vunpack.c.l.s4 1934713408
    %v3020 = vunpack.c.0.s8 %v3019
    %v3021 = vlaneseq
    %v3022 = vshrl.u32 %v3021, 7
    %v3023 = vsub.s32 %v3020, %v3022
    %v3024 = vrot.slane %v3010, %v3023
    %v3025 = vcombine.high %v3001, 0.0
    %v3026 = vcombine.high %v3008, 0.0
    %v3027 = vcombine.high %v3017, 0.0
    %v3028 = vcombine.high %v3024, 0.0
    %v3029 = vcombine.low %v2604, %v2636
    %v3030 = vcombine.high %v2604, %v2636
    %v3032 = vunpack.c.l.s4 1983009808
    %v3033 = vunpack.c.0.s8 %v3032
    %v3034 = vlaneseq
    %v3035 = vshrl.u32 %v3034, 7
    %v3036 = vsub.s32 %v3033, %v3035
    %v3037 = vrot.slane %v3029, %v3036
    %v3039 = vunpack.c.l.s4 1983009808
    %v3040 = vunpack.c.0.s8 %v3039
    %v3041 = vlaneseq
    %v3042 = vshrl.u32 %v3041, 7
    %v3043 = vsub.s32 %v3040, %v3042
    %v3044 = vrot.slane %v3030, %v3043
    %v3045 = vcombine.low %v2620, %v2652
    %v3046 = vcombine.high %v2620, %v2652
    %v3048 = vunpack.c.l.s4 1983009808
    %v3049 = vunpack.c.0.s8 %v3048
    %v3050 = vlaneseq
    %v3051 = vshrl.u32 %v3050, 7
    %v3052 = vsub.s32 %v3049, %v3051
    %v3053 = vrot.slane %v3045, %v3052
    %v3055 = vunpack.c.l.s4 1983009808
    %v3056 = vunpack.c.0.s8 %v3055
    %v3057 = vlaneseq
    %v3058 = vshrl.u32 %v3057, 7
    %v3059 = vsub.s32 %v3056, %v3058
    %v3060 = vrot.slane %v3046, %v3059
    %v3061 = vcombine.low %v3037, %v3053
    %v3062 = vcombine.high %v3037, %v3053
    %v3064 = vunpack.c.l.s4 1934713408
    %v3065 = vunpack.c.0.s8 %v3064
    %v3066 = vlaneseq
    %v3067 = vshrl.u32 %v3066, 7
    %v3068 = vsub.s32 %v3065, %v3067
    %v3069 = vrot.slane %v3061, %v3068
    %v3071 = vunpack.c.l.s4 1934713408
    %v3072 = vunpack.c.0.s8 %v3071
    %v3073 = vlaneseq
    %v3074 = vshrl.u32 %v3073, 7
    %v3075 = vsub.s32 %v3072, %v3074
    %v3076 = vrot.slane %v3062, %v3075
    %v3077 = vcombine.low %v3044, %v3060
    %v3078 = vcombine.high %v3044, %v3060
    %v3080 = vunpack.c.l.s4 1934713408
    %v3081 = vunpack.c.0.s8 %v3080
    %v3082 = vlaneseq
    %v3083 = vshrl.u32 %v3082, 7
    %v3084 = vsub.s32 %v3081, %v3083
    %v3085 = vrot.slane %v3077, %v3084
    %v3087 = vunpack.c.l.s4 1934713408
    %v3088 = vunpack.c.0.s8 %v3087
    %v3089 = vlaneseq
    %v3090 = vshrl.u32 %v3089, 7
    %v3091 = vsub.s32 %v3088, %v3090
    %v3092 = vrot.slane %v3078, %v3091
    %v3093 = vcombine.high %v3069, 0.0
    %v3094 = vcombine.high %v3076, 0.0
    %v3095 = vcombine.high %v3085, 0.0
    %v3096 = vcombine.high %v3092, 0.0
    %v3097 = vcombine.low %v2606, %v2638
    %v3098 = vcombine.high %v2606, %v2638
    %v3100 = vunpack.c.l.s4 1983009808
    %v3101 = vunpack.c.0.s8 %v3100
    %v3102 = vlaneseq
    %v3103 = vshrl.u32 %v3102, 7
    %v3104 = vsub.s32 %v3101, %v3103
    %v3105 = vrot.slane %v3097, %v3104
    %v3107 = vunpack.c.l.s4 1983009808
    %v3108 = vunpack.c.0.s8 %v3107
    %v3109 = vlaneseq
    %v3110 = vshrl.u32 %v3109, 7
    %v3111 = vsub.s32 %v3108, %v3110
    %v3112 = vrot.slane %v3098, %v3111
    %v3113 = vcombine.low %v2622, %v2654
    %v3114 = vcombine.high %v2622, %v2654
    %v3116 = vunpack.c.l.s4 1983009808
    %v3117 = vunpack.c.0.s8 %v3116
    %v3118 = vlaneseq
    %v3119 = vshrl.u32 %v3118, 7
    %v3120 = vsub.s32 %v3117, %v3119
    %v3121 = vrot.slane %v3113, %v3120
    %v3123 = vunpack.c.l.s4 1983009808
    %v3124 = vunpack.c.0.s8 %v3123
    %v3125 = vlaneseq
    %v3126 = vshrl.u32 %v3125, 7
    %v3127 = vsub.s32 %v3124, %v3126
    %v3128 = vrot.slane %v3114, %v3127
    %v3129 = vcombine.low %v3105, %v3121
    %v3130 = vcombine.high %v3105, %v3121
    %v3132 = vunpack.c.l.s4 1934713408
    %v3133 = vunpack.c.0.s8 %v3132
    %v3134 = vlaneseq
    %v3135 = vshrl.u32 %v3134, 7
    %v3136 = vsub.s32 %v3133, %v3135
    %v3137 = vrot.slane %v3129, %v3136
    %v3139 = vunpack.c.l.s4 1934713408
    %v3140 = vunpack.c.0.s8 %v3139
    %v3141 = vlaneseq
    %v3142 = vshrl.u32 %v3141, 7
    %v3143 = vsub.s32 %v3140, %v3142
    %v3144 = vrot.slane %v3130, %v3143
    %v3145 = vcombine.low %v3112, %v3128
    %v3146 = vcombine.high %v3112, %v3128
    %v3148 = vunpack.c.l.s4 1934713408
    %v3149 = vunpack.c.0.s8 %v3148
    %v3150 = vlaneseq
    %v3151 = vshrl.u32 %v3150, 7
    %v3152 = vsub.s32 %v3149, %v3151
    %v3153 = vrot.slane %v3145, %v3152
    %v3155 = vunpack.c.l.s4 1934713408
    %v3156 = vunpack.c.0.s8 %v3155
    %v3157 = vlaneseq
    %v3158 = vshrl.u32 %v3157, 7
    %v3159 = vsub.s32 %v3156, %v3158
    %v3160 = vrot.slane %v3146, %v3159
    %v3161 = vcombine.high %v3137, 0.0
    %v3162 = vcombine.high %v3144, 0.0
    %v3163 = vcombine.high %v3153, 0.0
    %v3164 = vcombine.high %v3160, 0.0
    %v3165 = vcombine.low %v2608, %v2640
    %v3166 = vcombine.high %v2608, %v2640
    %v3168 = vunpack.c.l.s4 1983009808
    %v3169 = vunpack.c.0.s8 %v3168
    %v3170 = vlaneseq
    %v3171 = vshrl.u32 %v3170, 7
    %v3172 = vsub.s32 %v3169, %v3171
    %v3173 = vrot.slane %v3165, %v3172
    %v3175 = vunpack.c.l.s4 1983009808
    %v3176 = vunpack.c.0.s8 %v3175
    %v3177 = vlaneseq
    %v3178 = vshrl.u32 %v3177, 7
    %v3179 = vsub.s32 %v3176, %v3178
    %v3180 = vrot.slane %v3166, %v3179
    %v3181 = vcombine.low %v2624, %v2656
    %v3182 = vcombine.high %v2624, %v2656
    %v3184 = vunpack.c.l.s4 1983009808
    %v3185 = vunpack.c.0.s8 %v3184
    %v3186 = vlaneseq
    %v3187 = vshrl.u32 %v3186, 7
    %v3188 = vsub.s32 %v3185, %v3187
    %v3189 = vrot.slane %v3181, %v3188
    %v3191 = vunpack.c.l.s4 1983009808
    %v3192 = vunpack.c.0.s8 %v3191
    %v3193 = vlaneseq
    %v3194 = vshrl.u32 %v3193, 7
    %v3195 = vsub.s32 %v3192, %v3194
    %v3196 = vrot.slane %v3182, %v3195
    %v3197 = vcombine.low %v3173, %v3189
    %v3198 = vcombine.high %v3173, %v3189
    %v3200 = vunpack.c.l.s4 1934713408
    %v3201 = vunpack.c.0.s8 %v3200
    %v3202 = vlaneseq
    %v3203 = vshrl.u32 %v3202, 7
    %v3204 = vsub.s32 %v3201, %v3203
    %v3205 = vrot.slane %v3197, %v3204
    %v3207 = vunpack.c.l.s4 1934713408
    %v3208 = vunpack.c.0.s8 %v3207
    %v3209 = vlaneseq
    %v3210 = vshrl.u32 %v3209, 7
    %v3211 = vsub.s32 %v3208, %v3210
    %v3212 = vrot.slane %v3198, %v3211
    %v3213 = vcombine.low %v3180, %v3196
    %v3214 = vcombine.high %v3180, %v3196
    %v3216 = vunpack.c.l.s4 1934713408
    %v3217 = vunpack.c.0.s8 %v3216
    %v3218 = vlaneseq
    %v3219 = vshrl.u32 %v3218, 7
    %v3220 = vsub.s32 %v3217, %v3219
    %v3221 = vrot.slane %v3213, %v3220
    %v3223 = vunpack.c.l.s4 1934713408
    %v3224 = vunpack.c.0.s8 %v3223
    %v3225 = vlaneseq
    %v3226 = vshrl.u32 %v3225, 7
    %v3227 = vsub.s32 %v3224, %v3226
    %v3228 = vrot.slane %v3214, %v3227
    %v3229 = vcombine.high %v3205, 0.0
    %v3230 = vcombine.high %v3212, 0.0
    %v3231 = vcombine.high %v3221, 0.0
    %v3232 = vcombine.high %v3228, 0.0
    %v3233 = vcombine.low %v2729, %v2736
    %v3235 = vunpack.c.l.s4 1983009808
    %v3236 = vunpack.c.0.s8 %v3235
    %v3237 = vlaneseq
    %v3238 = vshrl.u32 %v3237, 7
    %v3239 = vsub.s32 %v3236, %v3238
    %v3240 = vrot.slane %v3233, %v3239
    %v3241 = vcombine.low %v2753, %v2754
    %v3243 = vunpack.c.l.s4 1983009808
    %v3244 = vunpack.c.0.s8 %v3243
    %v3245 = vlaneseq
    %v3246 = vshrl.u32 %v3245, 7
    %v3247 = vsub.s32 %v3244, %v3246
    %v3248 = vrot.slane %v3241, %v3247
    %v3249 = vcombine.low %v2745, %v2752
    %v3251 = vunpack.c.l.s4 1983009808
    %v3252 = vunpack.c.0.s8 %v3251
    %v3253 = vlaneseq
    %v3254 = vshrl.u32 %v3253, 7
    %v3255 = vsub.s32 %v3252, %v3254
    %v3256 = vrot.slane %v3249, %v3255
    %v3257 = vcombine.low %v2755, %v2756
    %v3259 = vunpack.c.l.s4 1983009808
    %v3260 = vunpack.c.0.s8 %v3259
    %v3261 = vlaneseq
    %v3262 = vshrl.u32 %v3261, 7
    %v3263 = vsub.s32 %v3260, %v3262
    %v3264 = vrot.slane %v3257, %v3263
    %v3265 = vcombine.low %v3240, %v3248
    %v3266 = vcombine.high %v3240, %v3248
    %v3268 = vunpack.c.l.s4 1934713408
    %v3269 = vunpack.c.0.s8 %v3268
    %v3270 = vlaneseq
    %v3271 = vshrl.u32 %v3270, 7
    %v3272 = vsub.s32 %v3269, %v3271
    %v3273 = vrot.slane %v3265, %v3272
    %v3275 = vunpack.c.l.s4 1934713408
    %v3276 = vunpack.c.0.s8 %v3275
    %v3277 = vlaneseq
    %v3278 = vshrl.u32 %v3277, 7
    %v3279 = vsub.s32 %v3276, %v3278
    %v3280 = vrot.slane %v3266, %v3279
    %v3281 = vcombine.low %v3256, %v3264
    %v3282 = vcombine.high %v3256, %v3264
    %v3284 = vunpack.c.l.s4 1934713408
    %v3285 = vunpack.c.0.s8 %v3284
    %v3286 = vlaneseq
    %v3287 = vshrl.u32 %v3286, 7
    %v3288 = vsub.s32 %v3285, %v3287
    %v3289 = vrot.slane %v3281, %v3288
    %v3291 = vunpack.c.l.s4 1934713408
    %v3292 = vunpack.c.0.s8 %v3291
    %v3293 = vlaneseq
    %v3294 = vshrl.u32 %v3293, 7
    %v3295 = vsub.s32 %v3292, %v3294
    %v3296 = vrot.slane %v3282, %v3295
    %v3297 = vcombine.low %v3273, %v3289
    %v3298 = vcombine.high %v3273, %v3289
    %v3299 = vcombine.low %v3280, %v3296
    %v3300 = vcombine.high %v3280, %v3296
    %v3301 = vcombine.low %v2797, %v2804
    %v3303 = vunpack.c.l.s4 1983009808
    %v3304 = vunpack.c.0.s8 %v3303
    %v3305 = vlaneseq
    %v3306 = vshrl.u32 %v3305, 7
    %v3307 = vsub.s32 %v3304, %v3306
    %v3308 = vrot.slane %v3301, %v3307
    %v3309 = vcombine.low %v2821, %v2822
    %v3311 = vunpack.c.l.s4 1983009808
    %v3312 = vunpack.c.0.s8 %v3311
    %v3313 = vlaneseq
    %v3314 = vshrl.u32 %v3313, 7
    %v3315 = vsub.s32 %v3312, %v3314
    %v3316 = vrot.slane %v3309, %v3315
    %v3317 = vcombine.low %v2813, %v2820
    %v3319 = vunpack.c.l.s4 1983009808
    %v3320 = vunpack.c.0.s8 %v3319
    %v3321 = vlaneseq
    %v3322 = vshrl.u32 %v3321, 7
    %v3323 = vsub.s32 %v3320, %v3322
    %v3324 = vrot.slane %v3317, %v3323
    %v3325 = vcombine.low %v2823, %v2824
    %v3327 = vunpack.c.l.s4 1983009808
    %v3328 = vunpack.c.0.s8 %v3327
    %v3329 = vlaneseq
    %v3330 = vshrl.u32 %v3329, 7
    %v3331 = vsub.s32 %v3328, %v3330
    %v3332 = vrot.slane %v3325, %v3331
    %v3333 = vcombine.low %v3308, %v3316
    %v3334 = vcombine.high %v3308, %v3316
    %v3336 = vunpack.c.l.s4 1934713408
    %v3337 = vunpack.c.0.s8 %v3336
    %v3338 = vlaneseq
    %v3339 = vshrl.u32 %v3338, 7
    %v3340 = vsub.s32 %v3337, %v3339
    %v3341 = vrot.slane %v3333, %v3340
    %v3343 = vunpack.c.l.s4 1934713408
    %v3344 = vunpack.c.0.s8 %v3343
    %v3345 = vlaneseq
    %v3346 = vshrl.u32 %v3345, 7
    %v3347 = vsub.s32 %v3344, %v3346
    %v3348 = vrot.slane %v3334, %v3347
    %v3349 = vcombine.low %v3324, %v3332
    %v3350 = vcombine.high %v3324, %v3332
    %v3352 = vunpack.c.l.s4 1934713408
    %v3353 = vunpack.c.0.s8 %v3352
    %v3354 = vlaneseq
    %v3355 = vshrl.u32 %v3354, 7
    %v3356 = vsub.s32 %v3353, %v3355
    %v3357 = vrot.slane %v3349, %v3356
    %v3359 = vunpack.c.l.s4 1934713408
    %v3360 = vunpack.c.0.s8 %v3359
    %v3361 = vlaneseq
    %v3362 = vshrl.u32 %v3361, 7
    %v3363 = vsub.s32 %v3360, %v3362
    %v3364 = vrot.slane %v3350, %v3363
    %v3365 = vcombine.low %v3341, %v3357
    %v3366 = vcombine.high %v3341, %v3357
    %v3367 = vcombine.low %v3348, %v3364
    %v3368 = vcombine.high %v3348, %v3364
    %v3369 = vcombine.low %v2865, %v2872
    %v3371 = vunpack.c.l.s4 1983009808
    %v3372 = vunpack.c.0.s8 %v3371
    %v3373 = vlaneseq
    %v3374 = vshrl.u32 %v3373, 7
    %v3375 = vsub.s32 %v3372, %v3374
    %v3376 = vrot.slane %v3369, %v3375
    %v3377 = vcombine.low %v2889, %v2890
    %v3379 = vunpack.c.l.s4 1983009808
    %v3380 = vunpack.c.0.s8 %v3379
    %v3381 = vlaneseq
    %v3382 = vshrl.u32 %v3381, 7
    %v3383 = vsub.s32 %v3380, %v3382
    %v3384 = vrot.slane %v3377, %v3383
    %v3385 = vcombine.low %v2881, %v2888
    %v3387 = vunpack.c.l.s4 1983009808
    %v3388 = vunpack.c.0.s8 %v3387
    %v3389 = vlaneseq
    %v3390 = vshrl.u32 %v3389, 7
    %v3391 = vsub.s32 %v3388, %v3390
    %v3392 = vrot.slane %v3385, %v3391
    %v3393 = vcombine.low %v2891, %v2892
    %v3395 = vunpack.c.l.s4 1983009808
    %v3396 = vunpack.c.0.s8 %v3395
    %v3397 = vlaneseq
    %v3398 = vshrl.u32 %v3397, 7
    %v3399 = vsub.s32 %v3396, %v3398
    %v3400 = vrot.slane %v3393, %v3399
    %v3401 = vcombine.low %v3376, %v3384
    %v3402 = vcombine.high %v3376, %v3384
    %v3404 = vunpack.c.l.s4 1934713408
    %v3405 = vunpack.c.0.s8 %v3404
    %v3406 = vlaneseq
    %v3407 = vshrl.u32 %v3406, 7
    %v3408 = vsub.s32 %v3405, %v3407
    %v3409 = vrot.slane %v3401, %v3408
    %v3411 = vunpack.c.l.s4 1934713408
    %v3412 = vunpack.c.0.s8 %v3411
    %v3413 = vlaneseq
    %v3414 = vshrl.u32 %v3413, 7
    %v3415 = vsub.s32 %v3412, %v3414
    %v3416 = vrot.slane %v3402, %v3415
    %v3417 = vcombine.low %v3392, %v3400
    %v3418 = vcombine.high %v3392, %v3400
    %v3420 = vunpack.c.l.s4 1934713408
    %v3421 = vunpack.c.0.s8 %v3420
    %v3422 = vlaneseq
    %v3423 = vshrl.u32 %v3422, 7
    %v3424 = vsub.s32 %v3421, %v3423
    %v3425 = vrot.slane %v3417, %v3424
    %v3427 = vunpack.c.l.s4 1934713408
    %v3428 = vunpack.c.0.s8 %v3427
    %v3429 = vlaneseq
    %v3430 = vshrl.u32 %v3429, 7
    %v3431 = vsub.s32 %v3428, %v3430
    %v3432 = vrot.slane %v3418, %v3431
    %v3433 = vcombine.low %v3409, %v3425
    %v3434 = vcombine.high %v3409, %v3425
    %v3435 = vcombine.low %v3416, %v3432
    %v3436 = vcombine.high %v3416, %v3432
    %v3437 = vcombine.low %v2933, %v2940
    %v3439 = vunpack.c.l.s4 1983009808
    %v3440 = vunpack.c.0.s8 %v3439
    %v3441 = vlaneseq
    %v3442 = vshrl.u32 %v3441, 7
    %v3443 = vsub.s32 %v3440, %v3442
    %v3444 = vrot.slane %v3437, %v3443
    %v3445 = vcombine.low %v2957, %v2958
    %v3447 = vunpack.c.l.s4 1983009808
    %v3448 = vunpack.c.0.s8 %v3447
    %v3449 = vlaneseq
    %v3450 = vshrl.u32 %v3449, 7
    %v3451 = vsub.s32 %v3448, %v3450
    %v3452 = vrot.slane %v3445, %v3451
    %v3453 = vcombine.low %v2949, %v2956
    %v3455 = vunpack.c.l.s4 1983009808
    %v3456 = vunpack.c.0.s8 %v3455
    %v3457 = vlaneseq
    %v3458 = vshrl.u32 %v3457, 7
    %v3459 = vsub.s32 %v3456, %v3458
    %v3460 = vrot.slane %v3453, %v3459
    %v3461 = vcombine.low %v2959, %v2960
    %v3463 = vunpack.c.l.s4 1983009808
    %v3464 = vunpack.c.0.s8 %v3463
    %v3465 = vlaneseq
    %v3466 = vshrl.u32 %v3465, 7
    %v3467 = vsub.s32 %v3464, %v3466
    %v3468 = vrot.slane %v3461, %v3467
    %v3469 = vcombine.low %v3444, %v3452
    %v3470 = vcombine.high %v3444, %v3452
    %v3472 = vunpack.c.l.s4 1934713408
    %v3473 = vunpack.c.0.s8 %v3472
    %v3474 = vlaneseq
    %v3475 = vshrl.u32 %v3474, 7
    %v3476 = vsub.s32 %v3473, %v3475
    %v3477 = vrot.slane %v3469, %v3476
    %v3479 = vunpack.c.l.s4 1934713408
    %v3480 = vunpack.c.0.s8 %v3479
    %v3481 = vlaneseq
    %v3482 = vshrl.u32 %v3481, 7
    %v3483 = vsub.s32 %v3480, %v3482
    %v3484 = vrot.slane %v3470, %v3483
    %v3485 = vcombine.low %v3460, %v3468
    %v3486 = vcombine.high %v3460, %v3468
    %v3488 = vunpack.c.l.s4 1934713408
    %v3489 = vunpack.c.0.s8 %v3488
    %v3490 = vlaneseq
    %v3491 = vshrl.u32 %v3490, 7
    %v3492 = vsub.s32 %v3489, %v3491
    %v3493 = vrot.slane %v3485, %v3492
    %v3495 = vunpack.c.l.s4 1934713408
    %v3496 = vunpack.c.0.s8 %v3495
    %v3497 = vlaneseq
    %v3498 = vshrl.u32 %v3497, 7
    %v3499 = vsub.s32 %v3496, %v3498
    %v3500 = vrot.slane %v3486, %v3499
    %v3501 = vcombine.low %v3477, %v3493
    %v3502 = vcombine.high %v3477, %v3493
    %v3503 = vcombine.low %v3484, %v3500
    %v3504 = vcombine.high %v3484, %v3500
    %v3505 = vcombine.low %v3001, %v3008
    %v3507 = vunpack.c.l.s4 1983009808
    %v3508 = vunpack.c.0.s8 %v3507
    %v3509 = vlaneseq
    %v3510 = vshrl.u32 %v3509, 7
    %v3511 = vsub.s32 %v3508, %v3510
    %v3512 = vrot.slane %v3505, %v3511
    %v3513 = vcombine.low %v3025, %v3026
    %v3515 = vunpack.c.l.s4 1983009808
    %v3516 = vunpack.c.0.s8 %v3515
    %v3517 = vlaneseq
    %v3518 = vshrl.u32 %v3517, 7
    %v3519 = vsub.s32 %v3516, %v3518
    %v3520 = vrot.slane %v3513, %v3519
    %v3521 = vcombine.low %v3017, %v3024
    %v3523 = vunpack.c.l.s4 1983009808
    %v3524 = vunpack.c.0.s8 %v3523
    %v3525 = vlaneseq
    %v3526 = vshrl.u32 %v3525, 7
    %v3527 = vsub.s32 %v3524, %v3526
    %v3528 = vrot.slane %v3521, %v3527
    %v3529 = vcombine.low %v3027, %v3028
    %v3531 = vunpack.c.l.s4 1983009808
    %v3532 = vunpack.c.0.s8 %v3531
    %v3533 = vlaneseq
    %v3534 = vshrl.u32 %v3533, 7
    %v3535 = vsub.s32 %v3532, %v3534
    %v3536 = vrot.slane %v3529, %v3535
    %v3537 = vcombine.low %v3512, %v3520
    %v3538 = vcombine.high %v3512, %v3520
    %v3540 = vunpack.c.l.s4 1934713408
    %v3541 = vunpack.c.0.s8 %v3540
    %v3542 = vlaneseq
    %v3543 = vshrl.u32 %v3542, 7
    %v3544 = vsub.s32 %v3541, %v3543
    %v3545 = vrot.slane %v3537, %v3544
    %v3547 = vunpack.c.l.s4 1934713408
    %v3548 = vunpack.c.0.s8 %v3547
    %v3549 = vlaneseq
    %v3550 = vshrl.u32 %v3549, 7
    %v3551 = vsub.s32 %v3548, %v3550
    %v3552 = vrot.slane %v3538, %v3551
    %v3553 = vcombine.low %v3528, %v3536
    %v3554 = vcombine.high %v3528, %v3536
    %v3556 = vunpack.c.l.s4 1934713408
    %v3557 = vunpack.c.0.s8 %v3556
    %v3558 = vlaneseq
    %v3559 = vshrl.u32 %v3558, 7
    %v3560 = vsub.s32 %v3557, %v3559
    %v3561 = vrot.slane %v3553, %v3560
    %v3563 = vunpack.c.l.s4 1934713408
    %v3564 = vunpack.c.0.s8 %v3563
    %v3565 = vlaneseq
    %v3566 = vshrl.u32 %v3565, 7
    %v3567 = vsub.s32 %v3564, %v3566
    %v3568 = vrot.slane %v3554, %v3567
    %v3569 = vcombine.low %v3545, %v3561
    %v3570 = vcombine.high %v3545, %v3561
    %v3571 = vcombine.low %v3552, %v3568
    %v3572 = vcombine.high %v3552, %v3568
    %v3573 = vcombine.low %v3069, %v3076
    %v3575 = vunpack.c.l.s4 1983009808
    %v3576 = vunpack.c.0.s8 %v3575
    %v3577 = vlaneseq
    %v3578 = vshrl.u32 %v3577, 7
    %v3579 = vsub.s32 %v3576, %v3578
    %v3580 = vrot.slane %v3573, %v3579
    %v3581 = vcombine.low %v3093, %v3094
    %v3583 = vunpack.c.l.s4 1983009808
    %v3584 = vunpack.c.0.s8 %v3583
    %v3585 = vlaneseq
    %v3586 = vshrl.u32 %v3585, 7
    %v3587 = vsub.s32 %v3584, %v3586
    %v3588 = vrot.slane %v3581, %v3587
    %v3589 = vcombine.low %v3085, %v3092
    %v3591 = vunpack.c.l.s4 1983009808
    %v3592 = vunpack.c.0.s8 %v3591
    %v3593 = vlaneseq
    %v3594 = vshrl.u32 %v3593, 7
    %v3595 = vsub.s32 %v3592, %v3594
    %v3596 = vrot.slane %v3589, %v3595
    %v3597 = vcombine.low %v3095, %v3096
    %v3599 = vunpack.c.l.s4 1983009808
    %v3600 = vunpack.c.0.s8 %v3599
    %v3601 = vlaneseq
    %v3602 = vshrl.u32 %v3601, 7
    %v3603 = vsub.s32 %v3600, %v3602
    %v3604 = vrot.slane %v3597, %v3603
    %v3605 = vcombine.low %v3580, %v3588
    %v3606 = vcombine.high %v3580, %v3588
    %v3608 = vunpack.c.l.s4 1934713408
    %v3609 = vunpack.c.0.s8 %v3608
    %v3610 = vlaneseq
    %v3611 = vshrl.u32 %v3610, 7
    %v3612 = vsub.s32 %v3609, %v3611
    %v3613 = vrot.slane %v3605, %v3612
    %v3615 = vunpack.c.l.s4 1934713408
    %v3616 = vunpack.c.0.s8 %v3615
    %v3617 = vlaneseq
    %v3618 = vshrl.u32 %v3617, 7
    %v3619 = vsub.s32 %v3616, %v3618
    %v3620 = vrot.slane %v3606, %v3619
    %v3621 = vcombine.low %v3596, %v3604
    %v3622 = vcombine.high %v3596, %v3604
    %v3624 = vunpack.c.l.s4 1934713408
    %v3625 = vunpack.c.0.s8 %v3624
    %v3626 = vlaneseq
    %v3627 = vshrl.u32 %v3626, 7
    %v3628 = vsub.s32 %v3625, %v3627
    %v3629 = vrot.slane %v3621, %v3628
    %v3631 = vunpack.c.l.s4 1934713408
    %v3632 = vunpack.c.0.s8 %v3631
    %v3633 = vlaneseq
    %v3634 = vshrl.u32 %v3633, 7
    %v3635 = vsub.s32 %v3632, %v3634
    %v3636 = vrot.slane %v3622, %v3635
    %v3637 = vcombine.low %v3613, %v3629
    %v3638 = vcombine.high %v3613, %v3629
    %v3639 = vcombine.low %v3620, %v3636
    %v3640 = vcombine.high %v3620, %v3636
    %v3641 = vcombine.low %v3137, %v3144
    %v3643 = vunpack.c.l.s4 1983009808
    %v3644 = vunpack.c.0.s8 %v3643
    %v3645 = vlaneseq
    %v3646 = vshrl.u32 %v3645, 7
    %v3647 = vsub.s32 %v3644, %v3646
    %v3648 = vrot.slane %v3641, %v3647
    %v3649 = vcombine.low %v3161, %v3162
    %v3651 = vunpack.c.l.s4 1983009808
    %v3652 = vunpack.c.0.s8 %v3651
    %v3653 = vlaneseq
    %v3654 = vshrl.u32 %v3653, 7
    %v3655 = vsub.s32 %v3652, %v3654
    %v3656 = vrot.slane %v3649, %v3655
    %v3657 = vcombine.low %v3153, %v3160
    %v3659 = vunpack.c.l.s4 1983009808
    %v3660 = vunpack.c.0.s8 %v3659
    %v3661 = vlaneseq
    %v3662 = vshrl.u32 %v3661, 7
    %v3663 = vsub.s32 %v3660, %v3662
    %v3664 = vrot.slane %v3657, %v3663
    %v3665 = vcombine.low %v3163, %v3164
    %v3667 = vunpack.c.l.s4 1983009808
    %v3668 = vunpack.c.0.s8 %v3667
    %v3669 = vlaneseq
    %v3670 = vshrl.u32 %v3669, 7
    %v3671 = vsub.s32 %v3668, %v3670
    %v3672 = vrot.slane %v3665, %v3671
    %v3673 = vcombine.low %v3648, %v3656
    %v3674 = vcombine.high %v3648, %v3656
    %v3676 = vunpack.c.l.s4 1934713408
    %v3677 = vunpack.c.0.s8 %v3676
    %v3678 = vlaneseq
    %v3679 = vshrl.u32 %v3678, 7
    %v3680 = vsub.s32 %v3677, %v3679
    %v3681 = vrot.slane %v3673, %v3680
    %v3683 = vunpack.c.l.s4 1934713408
    %v3684 = vunpack.c.0.s8 %v3683
    %v3685 = vlaneseq
    %v3686 = vshrl.u32 %v3685, 7
    %v3687 = vsub.s32 %v3684, %v3686
    %v3688 = vrot.slane %v3674, %v3687
    %v3689 = vcombine.low %v3664, %v3672
    %v3690 = vcombine.high %v3664, %v3672
    %v3692 = vunpack.c.l.s4 1934713408
    %v3693 = vunpack.c.0.s8 %v3692
    %v3694 = vlaneseq
    %v3695 = vshrl.u32 %v3694, 7
    %v3696 = vsub.s32 %v3693, %v3695
    %v3697 = vrot.slane %v3689, %v3696
    %v3699 = vunpack.c.l.s4 1934713408
    %v3700 = vunpack.c.0.s8 %v3699
    %v3701 = vlaneseq
    %v3702 = vshrl.u32 %v3701, 7
    %v3703 = vsub.s32 %v3700, %v3702
    %v3704 = vrot.slane %v3690, %v3703
    %v3705 = vcombine.low %v3681, %v3697
    %v3706 = vcombine.high %v3681, %v3697
    %v3707 = vcombine.low %v3688, %v3704
    %v3708 = vcombine.high %v3688, %v3704
    %v3709 = vcombine.low %v3205, %v3212
    %v3711 = vunpack.c.l.s4 1983009808
    %v3712 = vunpack.c.0.s8 %v3711
    %v3713 = vlaneseq
    %v3714 = vshrl.u32 %v3713, 7
    %v3715 = vsub.s32 %v3712, %v3714
    %v3716 = vrot.slane %v3709, %v3715
    %v3717 = vcombine.low %v3229, %v3230
    %v3719 = vunpack.c.l.s4 1983009808
    %v3720 = vunpack.c.0.s8 %v3719
    %v3721 = vlaneseq
    %v3722 = vshrl.u32 %v3721, 7
    %v3723 = vsub.s32 %v3720, %v3722
    %v3724 = vrot.slane %v3717, %v3723
    %v3725 = vcombine.low %v3221, %v3228
    %v3727 = vunpack.c.l.s4 1983009808
    %v3728 = vunpack.c.0.s8 %v3727
    %v3729 = vlaneseq
    %v3730 = vshrl.u32 %v3729, 7
    %v3731 = vsub.s32 %v3728, %v3730
    %v3732 = vrot.slane %v3725, %v3731
    %v3733 = vcombine.low %v3231, %v3232
    %v3735 = vunpack.c.l.s4 1983009808
    %v3736 = vunpack.c.0.s8 %v3735
    %v3737 = vlaneseq
    %v3738 = vshrl.u32 %v3737, 7
    %v3739 = vsub.s32 %v3736, %v3738
    %v3740 = vrot.slane %v3733, %v3739
    %v3741 = vcombine.low %v3716, %v3724
    %v3742 = vcombine.high %v3716, %v3724
    %v3744 = vunpack.c.l.s4 1934713408
    %v3745 = vunpack.c.0.s8 %v3744
    %v3746 = vlaneseq
    %v3747 = vshrl.u32 %v3746, 7
    %v3748 = vsub.s32 %v3745, %v3747
    %v3749 = vrot.slane %v3741, %v3748
    %v3751 = vunpack.c.l.s4 1934713408
    %v3752 = vunpack.c.0.s8 %v3751
    %v3753 = vlaneseq
    %v3754 = vshrl.u32 %v3753, 7
    %v3755 = vsub.s32 %v3752, %v3754
    %v3756 = vrot.slane %v3742, %v3755
    %v3757 = vcombine.low %v3732, %v3740
    %v3758 = vcombine.high %v3732, %v3740
    %v3760 = vunpack.c.l.s4 1934713408
    %v3761 = vunpack.c.0.s8 %v3760
    %v3762 = vlaneseq
    %v3763 = vshrl.u32 %v3762, 7
    %v3764 = vsub.s32 %v3761, %v3763
    %v3765 = vrot.slane %v3757, %v3764
    %v3767 = vunpack.c.l.s4 1934713408
    %v3768 = vunpack.c.0.s8 %v3767
    %v3769 = vlaneseq
    %v3770 = vshrl.u32 %v3769, 7
    %v3771 = vsub.s32 %v3768, %v3770
    %v3772 = vrot.slane %v3758, %v3771
    %v3773 = vcombine.low %v3749, %v3765
    %v3774 = vcombine.high %v3749, %v3765
    %v3775 = vcombine.low %v3756, %v3772
    %v3776 = vcombine.high %v3756, %v3772
    %v3777 = vpack.c.bf16 %v3365, %v3297
    %v3778 = vpack.c.bf16 %v3366, %v3298
    %v3779 = vpack.c.bf16 %v3367, %v3299
    %v3780 = vpack.c.bf16 %v3368, %v3300
    %v3781 = vpack.c.bf16 %v3501, %v3433
    %v3782 = vpack.c.bf16 %v3502, %v3434
    %v3783 = vpack.c.bf16 %v3503, %v3435
    %v3784 = vpack.c.bf16 %v3504, %v3436
    %v3785 = vpack.c.bf16 %v3637, %v3569
    %v3786 = vpack.c.bf16 %v3638, %v3570
    %v3787 = vpack.c.bf16 %v3639, %v3571
    %v3788 = vpack.c.bf16 %v3640, %v3572
    %v3789 = vpack.c.bf16 %v3773, %v3705
    %v3790 = vpack.c.bf16 %v3774, %v3706
    %v3791 = vpack.c.bf16 %v3775, %v3707
    %v3792 = vpack.c.bf16 %v3776, %v3708
    %vm3793 = vcmask 64512
    %v3795 = vsel %vm3793, %v1377, 0
    %v3798 = vsel %vm3793, %v2577, 0
    %3800 = vmatprep.subr.bf16.mxu0 0
    %3801 = vmatpush1.bf16.xpose.msra.mxu0 %v3798
    %3802 = vmatprep.subr.bf16.mxu0 0
    %3803 = vmatpush1.bf16.xpose.msra.mxu0 0
    %3804 = vmatprep.subr.bf16.mxu0 0
    %3805 = vmatpush1.bf16.xpose.msra.mxu0 0
    %3806 = vmatprep.subr.bf16.mxu0 0
    %3807 = vmatpush1.bf16.xpose.msra.mxu0 0
    %3808 = vmatprep.subr.bf16.mxu0 0
    %3809 = vmatpush1.bf16.xpose.msra.mxu0 0
    %3810 = vmatprep.subr.bf16.mxu0 0
    %3811 = vmatpush1.bf16.xpose.msra.mxu0 0
    %3812 = vmatprep.subr.bf16.mxu0 0
    %3813 = vmatpush1.bf16.xpose.msra.mxu0 0
    %3814 = vmatprep.subr.bf16.mxu0 0
    %3815 = vmatpush1.bf16.xpose.msra.mxu0 0
    %3816 = vmatprep.subr.bf16.mxu0 0
    %3817 = vmatpush1.bf16.xpose.msra.mxu0 0
    %3818 = vmatprep.subr.bf16.mxu0 0
    %3819 = vmatpush1.bf16.xpose.msra.mxu0 0
    %3820 = vmatprep.subr.bf16.mxu0 0
    %3821 = vmatpush1.bf16.xpose.msra.mxu0 0
    %3822 = vmatprep.subr.bf16.mxu0 0
    %3823 = vmatpush1.bf16.xpose.msra.mxu0 0
    %3824 = vmatprep.subr.bf16.mxu0 0
    %3825 = vmatpush1.bf16.xpose.msra.mxu0 0
    %3826 = vmatprep.subr.bf16.mxu0 0
    %3827 = vmatpush1.bf16.xpose.msra.mxu0 0
    %3828 = vmatprep.subr.bf16.mxu0 0
    %3829 = vmatpush1.bf16.xpose.msra.mxu0 0
    %3830 = vmatprep.subr.bf16.mxu0 0
    %3831 = vmatpush1.bf16.xpose.msra.mxu0 0
    %3832 = vmatprep.mubr.bf16.mxu0 0
    %3833 = vmatmul.mubr.bf16.gmra.mrb[0].mxu0 %v3795
    %v3834 = vpop.f32.mrb[0].mxu0
    %v3835 = vadd.f32 0.0, %v3834
    %v3836 = vpop.f32.mrb[0].mxu0
    %v3837 = vpop.f32.mrb[0].mxu0
    %v3838 = vadd.f32 0.0, %v3837
    %v3839 = vpop.f32.mrb[0].mxu0
    %3840 = vdwg.mxu0
    %v3842 = vsel %vm3793, %v1378, 0
    %v3845 = vsel %vm3793, %v2578, 0
    %3847 = vmatprep.subr.bf16.mxu0 0
    %3848 = vmatpush1.bf16.xpose.msra.mxu0 %v3845
    %3849 = vmatprep.subr.bf16.mxu0 0
    %3850 = vmatpush1.bf16.xpose.msra.mxu0 0
    %3851 = vmatprep.subr.bf16.mxu0 0
    %3852 = vmatpush1.bf16.xpose.msra.mxu0 0
    %3853 = vmatprep.subr.bf16.mxu0 0
    %3854 = vmatpush1.bf16.xpose.msra.mxu0 0
    %3855 = vmatprep.subr.bf16.mxu0 0
    %3856 = vmatpush1.bf16.xpose.msra.mxu0 0
    %3857 = vmatprep.subr.bf16.mxu0 0
    %3858 = vmatpush1.bf16.xpose.msra.mxu0 0
    %3859 = vmatprep.subr.bf16.mxu0 0
    %3860 = vmatpush1.bf16.xpose.msra.mxu0 0
    %3861 = vmatprep.subr.bf16.mxu0 0
    %3862 = vmatpush1.bf16.xpose.msra.mxu0 0
    %3863 = vmatprep.subr.bf16.mxu0 0
    %3864 = vmatpush1.bf16.xpose.msra.mxu0 0
    %3865 = vmatprep.subr.bf16.mxu0 0
    %3866 = vmatpush1.bf16.xpose.msra.mxu0 0
    %3867 = vmatprep.subr.bf16.mxu0 0
    %3868 = vmatpush1.bf16.xpose.msra.mxu0 0
    %3869 = vmatprep.subr.bf16.mxu0 0
    %3870 = vmatpush1.bf16.xpose.msra.mxu0 0
    %3871 = vmatprep.subr.bf16.mxu0 0
    %3872 = vmatpush1.bf16.xpose.msra.mxu0 0
    %3873 = vmatprep.subr.bf16.mxu0 0
    %3874 = vmatpush1.bf16.xpose.msra.mxu0 0
    %3875 = vmatprep.subr.bf16.mxu0 0
    %3876 = vmatpush1.bf16.xpose.msra.mxu0 0
    %3877 = vmatprep.subr.bf16.mxu0 0
    %3878 = vmatpush1.bf16.xpose.msra.mxu0 0
    %3879 = vmatprep.mubr.bf16.mxu0 0
    %3880 = vmatmul.mubr.bf16.gmra.mrb[0].mxu0 %v3842
    %v3881 = vpop.f32.mrb[0].mxu0
    %v3882 = vadd.f32 0.0, %v3881
    %v3883 = vpop.f32.mrb[0].mxu0
    %v3884 = vpop.f32.mrb[0].mxu0
    %v3885 = vadd.f32 0.0, %v3884
    %v3886 = vpop.f32.mrb[0].mxu0
    %3887 = vdwg.mxu0
    %v3889 = vsel %vm3793, %v1379, 0
    %v3892 = vsel %vm3793, %v2579, 0
    %3894 = vmatprep.subr.bf16.mxu0 0
    %3895 = vmatpush1.bf16.xpose.msra.mxu0 %v3892
    %3896 = vmatprep.subr.bf16.mxu0 0
    %3897 = vmatpush1.bf16.xpose.msra.mxu0 0
    %3898 = vmatprep.subr.bf16.mxu0 0
    %3899 = vmatpush1.bf16.xpose.msra.mxu0 0
    %3900 = vmatprep.subr.bf16.mxu0 0
    %3901 = vmatpush1.bf16.xpose.msra.mxu0 0
    %3902 = vmatprep.subr.bf16.mxu0 0
    %3903 = vmatpush1.bf16.xpose.msra.mxu0 0
    %3904 = vmatprep.subr.bf16.mxu0 0
    %3905 = vmatpush1.bf16.xpose.msra.mxu0 0
    %3906 = vmatprep.subr.bf16.mxu0 0
    %3907 = vmatpush1.bf16.xpose.msra.mxu0 0
    %3908 = vmatprep.subr.bf16.mxu0 0
    %3909 = vmatpush1.bf16.xpose.msra.mxu0 0
    %3910 = vmatprep.subr.bf16.mxu0 0
    %3911 = vmatpush1.bf16.xpose.msra.mxu0 0
    %3912 = vmatprep.subr.bf16.mxu0 0
    %3913 = vmatpush1.bf16.xpose.msra.mxu0 0
    %3914 = vmatprep.subr.bf16.mxu0 0
    %3915 = vmatpush1.bf16.xpose.msra.mxu0 0
    %3916 = vmatprep.subr.bf16.mxu0 0
    %3917 = vmatpush1.bf16.xpose.msra.mxu0 0
    %3918 = vmatprep.subr.bf16.mxu0 0
    %3919 = vmatpush1.bf16.xpose.msra.mxu0 0
    %3920 = vmatprep.subr.bf16.mxu0 0
    %3921 = vmatpush1.bf16.xpose.msra.mxu0 0
    %3922 = vmatprep.subr.bf16.mxu0 0
    %3923 = vmatpush1.bf16.xpose.msra.mxu0 0
    %3924 = vmatprep.subr.bf16.mxu0 0
    %3925 = vmatpush1.bf16.xpose.msra.mxu0 0
    %3926 = vmatprep.mubr.bf16.mxu0 0
    %3927 = vmatmul.mubr.bf16.gmra.mrb[0].mxu0 %v3889
    %v3928 = vpop.f32.mrb[0].mxu0
    %v3929 = vadd.f32 0.0, %v3928
    %v3930 = vpop.f32.mrb[0].mxu0
    %v3931 = vpop.f32.mrb[0].mxu0
    %v3932 = vadd.f32 0.0, %v3931
    %v3933 = vpop.f32.mrb[0].mxu0
    %3934 = vdwg.mxu0
    %v3936 = vsel %vm3793, %v1380, 0
    %v3939 = vsel %vm3793, %v2580, 0
    %3941 = vmatprep.subr.bf16.mxu0 0
    %3942 = vmatpush1.bf16.xpose.msra.mxu0 %v3939
    %3943 = vmatprep.subr.bf16.mxu0 0
    %3944 = vmatpush1.bf16.xpose.msra.mxu0 0
    %3945 = vmatprep.subr.bf16.mxu0 0
    %3946 = vmatpush1.bf16.xpose.msra.mxu0 0
    %3947 = vmatprep.subr.bf16.mxu0 0
    %3948 = vmatpush1.bf16.xpose.msra.mxu0 0
    %3949 = vmatprep.subr.bf16.mxu0 0
    %3950 = vmatpush1.bf16.xpose.msra.mxu0 0
    %3951 = vmatprep.subr.bf16.mxu0 0
    %3952 = vmatpush1.bf16.xpose.msra.mxu0 0
    %3953 = vmatprep.subr.bf16.mxu0 0
    %3954 = vmatpush1.bf16.xpose.msra.mxu0 0
    %3955 = vmatprep.subr.bf16.mxu0 0
    %3956 = vmatpush1.bf16.xpose.msra.mxu0 0
    %3957 = vmatprep.subr.bf16.mxu0 0
    %3958 = vmatpush1.bf16.xpose.msra.mxu0 0
    %3959 = vmatprep.subr.bf16.mxu0 0
    %3960 = vmatpush1.bf16.xpose.msra.mxu0 0
    %3961 = vmatprep.subr.bf16.mxu0 0
    %3962 = vmatpush1.bf16.xpose.msra.mxu0 0
    %3963 = vmatprep.subr.bf16.mxu0 0
    %3964 = vmatpush1.bf16.xpose.msra.mxu0 0
    %3965 = vmatprep.subr.bf16.mxu0 0
    %3966 = vmatpush1.bf16.xpose.msra.mxu0 0
    %3967 = vmatprep.subr.bf16.mxu0 0
    %3968 = vmatpush1.bf16.xpose.msra.mxu0 0
    %3969 = vmatprep.subr.bf16.mxu0 0
    %3970 = vmatpush1.bf16.xpose.msra.mxu0 0
    %3971 = vmatprep.subr.bf16.mxu0 0
    %3972 = vmatpush1.bf16.xpose.msra.mxu0 0
    %3973 = vmatprep.mubr.bf16.mxu0 0
    %3974 = vmatmul.mubr.bf16.gmra.mrb[0].mxu0 %v3936
    %v3975 = vpop.f32.mrb[0].mxu0
    %v3976 = vadd.f32 0.0, %v3975
    %v3977 = vpop.f32.mrb[0].mxu0
    %v3978 = vpop.f32.mrb[0].mxu0
    %v3979 = vadd.f32 0.0, %v3978
    %v3980 = vpop.f32.mrb[0].mxu0
    %3981 = vdwg.mxu0
    %v3983 = vsel %vm3793, %v1381, 0
    %v3986 = vsel %vm3793, %v2581, 0
    %3988 = vmatprep.subr.bf16.mxu0 0
    %3989 = vmatpush1.bf16.xpose.msra.mxu0 %v3986
    %3990 = vmatprep.subr.bf16.mxu0 0
    %3991 = vmatpush1.bf16.xpose.msra.mxu0 0
    %3992 = vmatprep.subr.bf16.mxu0 0
    %3993 = vmatpush1.bf16.xpose.msra.mxu0 0
    %3994 = vmatprep.subr.bf16.mxu0 0
    %3995 = vmatpush1.bf16.xpose.msra.mxu0 0
    %3996 = vmatprep.subr.bf16.mxu0 0
    %3997 = vmatpush1.bf16.xpose.msra.mxu0 0
    %3998 = vmatprep.subr.bf16.mxu0 0
    %3999 = vmatpush1.bf16.xpose.msra.mxu0 0
    %4000 = vmatprep.subr.bf16.mxu0 0
    %4001 = vmatpush1.bf16.xpose.msra.mxu0 0
    %4002 = vmatprep.subr.bf16.mxu0 0
    %4003 = vmatpush1.bf16.xpose.msra.mxu0 0
    %4004 = vmatprep.subr.bf16.mxu0 0
    %4005 = vmatpush1.bf16.xpose.msra.mxu0 0
    %4006 = vmatprep.subr.bf16.mxu0 0
    %4007 = vmatpush1.bf16.xpose.msra.mxu0 0
    %4008 = vmatprep.subr.bf16.mxu0 0
    %4009 = vmatpush1.bf16.xpose.msra.mxu0 0
    %4010 = vmatprep.subr.bf16.mxu0 0
    %4011 = vmatpush1.bf16.xpose.msra.mxu0 0
    %4012 = vmatprep.subr.bf16.mxu0 0
    %4013 = vmatpush1.bf16.xpose.msra.mxu0 0
    %4014 = vmatprep.subr.bf16.mxu0 0
    %4015 = vmatpush1.bf16.xpose.msra.mxu0 0
    %4016 = vmatprep.subr.bf16.mxu0 0
    %4017 = vmatpush1.bf16.xpose.msra.mxu0 0
    %4018 = vmatprep.subr.bf16.mxu0 0
    %4019 = vmatpush1.bf16.xpose.msra.mxu0 0
    %4020 = vmatprep.mubr.bf16.mxu0 0
    %4021 = vmatmul.mubr.bf16.gmra.mrb[0].mxu0 %v3983
    %v4022 = vpop.f32.mrb[0].mxu0
    %v4023 = vadd.f32 0.0, %v4022
    %v4024 = vpop.f32.mrb[0].mxu0
    %v4025 = vpop.f32.mrb[0].mxu0
    %v4026 = vadd.f32 0.0, %v4025
    %v4027 = vpop.f32.mrb[0].mxu0
    %4028 = vdwg.mxu0
    %v4030 = vsel %vm3793, %v1382, 0
    %v4033 = vsel %vm3793, %v2582, 0
    %4035 = vmatprep.subr.bf16.mxu0 0
    %4036 = vmatpush1.bf16.xpose.msra.mxu0 %v4033
    %4037 = vmatprep.subr.bf16.mxu0 0
    %4038 = vmatpush1.bf16.xpose.msra.mxu0 0
    %4039 = vmatprep.subr.bf16.mxu0 0
    %4040 = vmatpush1.bf16.xpose.msra.mxu0 0
    %4041 = vmatprep.subr.bf16.mxu0 0
    %4042 = vmatpush1.bf16.xpose.msra.mxu0 0
    %4043 = vmatprep.subr.bf16.mxu0 0
    %4044 = vmatpush1.bf16.xpose.msra.mxu0 0
    %4045 = vmatprep.subr.bf16.mxu0 0
    %4046 = vmatpush1.bf16.xpose.msra.mxu0 0
    %4047 = vmatprep.subr.bf16.mxu0 0
    %4048 = vmatpush1.bf16.xpose.msra.mxu0 0
    %4049 = vmatprep.subr.bf16.mxu0 0
    %4050 = vmatpush1.bf16.xpose.msra.mxu0 0
    %4051 = vmatprep.subr.bf16.mxu0 0
    %4052 = vmatpush1.bf16.xpose.msra.mxu0 0
    %4053 = vmatprep.subr.bf16.mxu0 0
    %4054 = vmatpush1.bf16.xpose.msra.mxu0 0
    %4055 = vmatprep.subr.bf16.mxu0 0
    %4056 = vmatpush1.bf16.xpose.msra.mxu0 0
    %4057 = vmatprep.subr.bf16.mxu0 0
    %4058 = vmatpush1.bf16.xpose.msra.mxu0 0
    %4059 = vmatprep.subr.bf16.mxu0 0
    %4060 = vmatpush1.bf16.xpose.msra.mxu0 0
    %4061 = vmatprep.subr.bf16.mxu0 0
    %4062 = vmatpush1.bf16.xpose.msra.mxu0 0
    %4063 = vmatprep.subr.bf16.mxu0 0
    %4064 = vmatpush1.bf16.xpose.msra.mxu0 0
    %4065 = vmatprep.subr.bf16.mxu0 0
    %4066 = vmatpush1.bf16.xpose.msra.mxu0 0
    %4067 = vmatprep.mubr.bf16.mxu0 0
    %4068 = vmatmul.mubr.bf16.gmra.mrb[0].mxu0 %v4030
    %v4069 = vpop.f32.mrb[0].mxu0
    %v4070 = vadd.f32 0.0, %v4069
    %v4071 = vpop.f32.mrb[0].mxu0
    %v4072 = vpop.f32.mrb[0].mxu0
    %v4073 = vadd.f32 0.0, %v4072
    %v4074 = vpop.f32.mrb[0].mxu0
    %4075 = vdwg.mxu0
    %v4077 = vsel %vm3793, %v1383, 0
    %v4080 = vsel %vm3793, %v2583, 0
    %4082 = vmatprep.subr.bf16.mxu0 0
    %4083 = vmatpush1.bf16.xpose.msra.mxu0 %v4080
    %4084 = vmatprep.subr.bf16.mxu0 0
    %4085 = vmatpush1.bf16.xpose.msra.mxu0 0
    %4086 = vmatprep.subr.bf16.mxu0 0
    %4087 = vmatpush1.bf16.xpose.msra.mxu0 0
    %4088 = vmatprep.subr.bf16.mxu0 0
    %4089 = vmatpush1.bf16.xpose.msra.mxu0 0
    %4090 = vmatprep.subr.bf16.mxu0 0
    %4091 = vmatpush1.bf16.xpose.msra.mxu0 0
    %4092 = vmatprep.subr.bf16.mxu0 0
    %4093 = vmatpush1.bf16.xpose.msra.mxu0 0
    %4094 = vmatprep.subr.bf16.mxu0 0
    %4095 = vmatpush1.bf16.xpose.msra.mxu0 0
    %4096 = vmatprep.subr.bf16.mxu0 0
    %4097 = vmatpush1.bf16.xpose.msra.mxu0 0
    %4098 = vmatprep.subr.bf16.mxu0 0
    %4099 = vmatpush1.bf16.xpose.msra.mxu0 0
    %4100 = vmatprep.subr.bf16.mxu0 0
    %4101 = vmatpush1.bf16.xpose.msra.mxu0 0
    %4102 = vmatprep.subr.bf16.mxu0 0
    %4103 = vmatpush1.bf16.xpose.msra.mxu0 0
    %4104 = vmatprep.subr.bf16.mxu0 0
    %4105 = vmatpush1.bf16.xpose.msra.mxu0 0
    %4106 = vmatprep.subr.bf16.mxu0 0
    %4107 = vmatpush1.bf16.xpose.msra.mxu0 0
    %4108 = vmatprep.subr.bf16.mxu0 0
    %4109 = vmatpush1.bf16.xpose.msra.mxu0 0
    %4110 = vmatprep.subr.bf16.mxu0 0
    %4111 = vmatpush1.bf16.xpose.msra.mxu0 0
    %4112 = vmatprep.subr.bf16.mxu0 0
    %4113 = vmatpush1.bf16.xpose.msra.mxu0 0
    %4114 = vmatprep.mubr.bf16.mxu0 0
    %4115 = vmatmul.mubr.bf16.gmra.mrb[0].mxu0 %v4077
    %v4116 = vpop.f32.mrb[0].mxu0
    %v4117 = vadd.f32 0.0, %v4116
    %v4118 = vpop.f32.mrb[0].mxu0
    %v4119 = vpop.f32.mrb[0].mxu0
    %v4120 = vadd.f32 0.0, %v4119
    %v4121 = vpop.f32.mrb[0].mxu0
    %4122 = vdwg.mxu0
    %v4124 = vsel %vm3793, %v1384, 0
    %v4127 = vsel %vm3793, %v2584, 0
    %4129 = vmatprep.subr.bf16.mxu0 0
    %4130 = vmatpush1.bf16.xpose.msra.mxu0 %v4127
    %4131 = vmatprep.subr.bf16.mxu0 0
    %4132 = vmatpush1.bf16.xpose.msra.mxu0 0
    %4133 = vmatprep.subr.bf16.mxu0 0
    %4134 = vmatpush1.bf16.xpose.msra.mxu0 0
    %4135 = vmatprep.subr.bf16.mxu0 0
    %4136 = vmatpush1.bf16.xpose.msra.mxu0 0
    %4137 = vmatprep.subr.bf16.mxu0 0
    %4138 = vmatpush1.bf16.xpose.msra.mxu0 0
    %4139 = vmatprep.subr.bf16.mxu0 0
    %4140 = vmatpush1.bf16.xpose.msra.mxu0 0
    %4141 = vmatprep.subr.bf16.mxu0 0
    %4142 = vmatpush1.bf16.xpose.msra.mxu0 0
    %4143 = vmatprep.subr.bf16.mxu0 0
    %4144 = vmatpush1.bf16.xpose.msra.mxu0 0
    %4145 = vmatprep.subr.bf16.mxu0 0
    %4146 = vmatpush1.bf16.xpose.msra.mxu0 0
    %4147 = vmatprep.subr.bf16.mxu0 0
    %4148 = vmatpush1.bf16.xpose.msra.mxu0 0
    %4149 = vmatprep.subr.bf16.mxu0 0
    %4150 = vmatpush1.bf16.xpose.msra.mxu0 0
    %4151 = vmatprep.subr.bf16.mxu0 0
    %4152 = vmatpush1.bf16.xpose.msra.mxu0 0
    %4153 = vmatprep.subr.bf16.mxu0 0
    %4154 = vmatpush1.bf16.xpose.msra.mxu0 0
    %4155 = vmatprep.subr.bf16.mxu0 0
    %4156 = vmatpush1.bf16.xpose.msra.mxu0 0
    %4157 = vmatprep.subr.bf16.mxu0 0
    %4158 = vmatpush1.bf16.xpose.msra.mxu0 0
    %4159 = vmatprep.subr.bf16.mxu0 0
    %4160 = vmatpush1.bf16.xpose.msra.mxu0 0
    %4161 = vmatprep.mubr.bf16.mxu0 0
    %4162 = vmatmul.mubr.bf16.gmra.mrb[0].mxu0 %v4124
    %v4163 = vpop.f32.mrb[0].mxu0
    %v4164 = vadd.f32 0.0, %v4163
    %v4165 = vpop.f32.mrb[0].mxu0
    %v4166 = vpop.f32.mrb[0].mxu0
    %v4167 = vadd.f32 0.0, %v4166
    %v4168 = vpop.f32.mrb[0].mxu0
    %4169 = vdwg.mxu0
    %v4171 = vsel %vm3793, %v1385, 0
    %v4174 = vsel %vm3793, %v2585, 0
    %4176 = vmatprep.subr.bf16.mxu0 0
    %4177 = vmatpush1.bf16.xpose.msra.mxu0 %v4174
    %4178 = vmatprep.subr.bf16.mxu0 0
    %4179 = vmatpush1.bf16.xpose.msra.mxu0 0
    %4180 = vmatprep.subr.bf16.mxu0 0
    %4181 = vmatpush1.bf16.xpose.msra.mxu0 0
    %4182 = vmatprep.subr.bf16.mxu0 0
    %4183 = vmatpush1.bf16.xpose.msra.mxu0 0
    %4184 = vmatprep.subr.bf16.mxu0 0
    %4185 = vmatpush1.bf16.xpose.msra.mxu0 0
    %4186 = vmatprep.subr.bf16.mxu0 0
    %4187 = vmatpush1.bf16.xpose.msra.mxu0 0
    %4188 = vmatprep.subr.bf16.mxu0 0
    %4189 = vmatpush1.bf16.xpose.msra.mxu0 0
    %4190 = vmatprep.subr.bf16.mxu0 0
    %4191 = vmatpush1.bf16.xpose.msra.mxu0 0
    %4192 = vmatprep.subr.bf16.mxu0 0
    %4193 = vmatpush1.bf16.xpose.msra.mxu0 0
    %4194 = vmatprep.subr.bf16.mxu0 0
    %4195 = vmatpush1.bf16.xpose.msra.mxu0 0
    %4196 = vmatprep.subr.bf16.mxu0 0
    %4197 = vmatpush1.bf16.xpose.msra.mxu0 0
    %4198 = vmatprep.subr.bf16.mxu0 0
    %4199 = vmatpush1.bf16.xpose.msra.mxu0 0
    %4200 = vmatprep.subr.bf16.mxu0 0
    %4201 = vmatpush1.bf16.xpose.msra.mxu0 0
    %4202 = vmatprep.subr.bf16.mxu0 0
    %4203 = vmatpush1.bf16.xpose.msra.mxu0 0
    %4204 = vmatprep.subr.bf16.mxu0 0
    %4205 = vmatpush1.bf16.xpose.msra.mxu0 0
    %4206 = vmatprep.subr.bf16.mxu0 0
    %4207 = vmatpush1.bf16.xpose.msra.mxu0 0
    %4208 = vmatprep.mubr.bf16.mxu0 0
    %4209 = vmatmul.mubr.bf16.gmra.mrb[0].mxu0 %v4171
    %v4210 = vpop.f32.mrb[0].mxu0
    %v4211 = vadd.f32 0.0, %v4210
    %v4212 = vpop.f32.mrb[0].mxu0
    %v4213 = vpop.f32.mrb[0].mxu0
    %v4214 = vadd.f32 0.0, %v4213
    %v4215 = vpop.f32.mrb[0].mxu0
    %4216 = vdwg.mxu0
    %v4218 = vsel %vm3793, %v1386, 0
    %v4221 = vsel %vm3793, %v2586, 0
    %4223 = vmatprep.subr.bf16.mxu0 0
    %4224 = vmatpush1.bf16.xpose.msra.mxu0 %v4221
    %4225 = vmatprep.subr.bf16.mxu0 0
    %4226 = vmatpush1.bf16.xpose.msra.mxu0 0
    %4227 = vmatprep.subr.bf16.mxu0 0
    %4228 = vmatpush1.bf16.xpose.msra.mxu0 0
    %4229 = vmatprep.subr.bf16.mxu0 0
    %4230 = vmatpush1.bf16.xpose.msra.mxu0 0
    %4231 = vmatprep.subr.bf16.mxu0 0
    %4232 = vmatpush1.bf16.xpose.msra.mxu0 0
    %4233 = vmatprep.subr.bf16.mxu0 0
    %4234 = vmatpush1.bf16.xpose.msra.mxu0 0
    %4235 = vmatprep.subr.bf16.mxu0 0
    %4236 = vmatpush1.bf16.xpose.msra.mxu0 0
    %4237 = vmatprep.subr.bf16.mxu0 0
    %4238 = vmatpush1.bf16.xpose.msra.mxu0 0
    %4239 = vmatprep.subr.bf16.mxu0 0
    %4240 = vmatpush1.bf16.xpose.msra.mxu0 0
    %4241 = vmatprep.subr.bf16.mxu0 0
    %4242 = vmatpush1.bf16.xpose.msra.mxu0 0
    %4243 = vmatprep.subr.bf16.mxu0 0
    %4244 = vmatpush1.bf16.xpose.msra.mxu0 0
    %4245 = vmatprep.subr.bf16.mxu0 0
    %4246 = vmatpush1.bf16.xpose.msra.mxu0 0
    %4247 = vmatprep.subr.bf16.mxu0 0
    %4248 = vmatpush1.bf16.xpose.msra.mxu0 0
    %4249 = vmatprep.subr.bf16.mxu0 0
    %4250 = vmatpush1.bf16.xpose.msra.mxu0 0
    %4251 = vmatprep.subr.bf16.mxu0 0
    %4252 = vmatpush1.bf16.xpose.msra.mxu0 0
    %4253 = vmatprep.subr.bf16.mxu0 0
    %4254 = vmatpush1.bf16.xpose.msra.mxu0 0
    %4255 = vmatprep.mubr.bf16.mxu0 0
    %4256 = vmatmul.mubr.bf16.gmra.mrb[0].mxu0 %v4218
    %v4257 = vpop.f32.mrb[0].mxu0
    %v4258 = vadd.f32 0.0, %v4257
    %v4259 = vpop.f32.mrb[0].mxu0
    %v4260 = vpop.f32.mrb[0].mxu0
    %v4261 = vadd.f32 0.0, %v4260
    %v4262 = vpop.f32.mrb[0].mxu0
    %4263 = vdwg.mxu0
    %v4265 = vsel %vm3793, %v1387, 0
    %v4268 = vsel %vm3793, %v2587, 0
    %4270 = vmatprep.subr.bf16.mxu0 0
    %4271 = vmatpush1.bf16.xpose.msra.mxu0 %v4268
    %4272 = vmatprep.subr.bf16.mxu0 0
    %4273 = vmatpush1.bf16.xpose.msra.mxu0 0
    %4274 = vmatprep.subr.bf16.mxu0 0
    %4275 = vmatpush1.bf16.xpose.msra.mxu0 0
    %4276 = vmatprep.subr.bf16.mxu0 0
    %4277 = vmatpush1.bf16.xpose.msra.mxu0 0
    %4278 = vmatprep.subr.bf16.mxu0 0
    %4279 = vmatpush1.bf16.xpose.msra.mxu0 0
    %4280 = vmatprep.subr.bf16.mxu0 0
    %4281 = vmatpush1.bf16.xpose.msra.mxu0 0
    %4282 = vmatprep.subr.bf16.mxu0 0
    %4283 = vmatpush1.bf16.xpose.msra.mxu0 0
    %4284 = vmatprep.subr.bf16.mxu0 0
    %4285 = vmatpush1.bf16.xpose.msra.mxu0 0
    %4286 = vmatprep.subr.bf16.mxu0 0
    %4287 = vmatpush1.bf16.xpose.msra.mxu0 0
    %4288 = vmatprep.subr.bf16.mxu0 0
    %4289 = vmatpush1.bf16.xpose.msra.mxu0 0
    %4290 = vmatprep.subr.bf16.mxu0 0
    %4291 = vmatpush1.bf16.xpose.msra.mxu0 0
    %4292 = vmatprep.subr.bf16.mxu0 0
    %4293 = vmatpush1.bf16.xpose.msra.mxu0 0
    %4294 = vmatprep.subr.bf16.mxu0 0
    %4295 = vmatpush1.bf16.xpose.msra.mxu0 0
    %4296 = vmatprep.subr.bf16.mxu0 0
    %4297 = vmatpush1.bf16.xpose.msra.mxu0 0
    %4298 = vmatprep.subr.bf16.mxu0 0
    %4299 = vmatpush1.bf16.xpose.msra.mxu0 0
    %4300 = vmatprep.subr.bf16.mxu0 0
    %4301 = vmatpush1.bf16.xpose.msra.mxu0 0
    %4302 = vmatprep.mubr.bf16.mxu0 0
    %4303 = vmatmul.mubr.bf16.gmra.mrb[0].mxu0 %v4265
    %v4304 = vpop.f32.mrb[0].mxu0
    %v4305 = vadd.f32 0.0, %v4304
    %v4306 = vpop.f32.mrb[0].mxu0
    %v4307 = vpop.f32.mrb[0].mxu0
    %v4308 = vadd.f32 0.0, %v4307
    %v4309 = vpop.f32.mrb[0].mxu0
    %4310 = vdwg.mxu0
    %v4312 = vsel %vm3793, %v1388, 0
    %v4315 = vsel %vm3793, %v2588, 0
    %4317 = vmatprep.subr.bf16.mxu0 0
    %4318 = vmatpush1.bf16.xpose.msra.mxu0 %v4315
    %4319 = vmatprep.subr.bf16.mxu0 0
    %4320 = vmatpush1.bf16.xpose.msra.mxu0 0
    %4321 = vmatprep.subr.bf16.mxu0 0
    %4322 = vmatpush1.bf16.xpose.msra.mxu0 0
    %4323 = vmatprep.subr.bf16.mxu0 0
    %4324 = vmatpush1.bf16.xpose.msra.mxu0 0
    %4325 = vmatprep.subr.bf16.mxu0 0
    %4326 = vmatpush1.bf16.xpose.msra.mxu0 0
    %4327 = vmatprep.subr.bf16.mxu0 0
    %4328 = vmatpush1.bf16.xpose.msra.mxu0 0
    %4329 = vmatprep.subr.bf16.mxu0 0
    %4330 = vmatpush1.bf16.xpose.msra.mxu0 0
    %4331 = vmatprep.subr.bf16.mxu0 0
    %4332 = vmatpush1.bf16.xpose.msra.mxu0 0
    %4333 = vmatprep.subr.bf16.mxu0 0
    %4334 = vmatpush1.bf16.xpose.msra.mxu0 0
    %4335 = vmatprep.subr.bf16.mxu0 0
    %4336 = vmatpush1.bf16.xpose.msra.mxu0 0
    %4337 = vmatprep.subr.bf16.mxu0 0
    %4338 = vmatpush1.bf16.xpose.msra.mxu0 0
    %4339 = vmatprep.subr.bf16.mxu0 0
    %4340 = vmatpush1.bf16.xpose.msra.mxu0 0
    %4341 = vmatprep.subr.bf16.mxu0 0
    %4342 = vmatpush1.bf16.xpose.msra.mxu0 0
    %4343 = vmatprep.subr.bf16.mxu0 0
    %4344 = vmatpush1.bf16.xpose.msra.mxu0 0
    %4345 = vmatprep.subr.bf16.mxu0 0
    %4346 = vmatpush1.bf16.xpose.msra.mxu0 0
    %4347 = vmatprep.subr.bf16.mxu0 0
    %4348 = vmatpush1.bf16.xpose.msra.mxu0 0
    %4349 = vmatprep.mubr.bf16.mxu0 0
    %4350 = vmatmul.mubr.bf16.gmra.mrb[0].mxu0 %v4312
    %v4351 = vpop.f32.mrb[0].mxu0
    %v4352 = vadd.f32 0.0, %v4351
    %v4353 = vpop.f32.mrb[0].mxu0
    %v4354 = vpop.f32.mrb[0].mxu0
    %v4355 = vadd.f32 0.0, %v4354
    %v4356 = vpop.f32.mrb[0].mxu0
    %4357 = vdwg.mxu0
    %v4359 = vsel %vm3793, %v1389, 0
    %v4362 = vsel %vm3793, %v2589, 0
    %4364 = vmatprep.subr.bf16.mxu0 0
    %4365 = vmatpush1.bf16.xpose.msra.mxu0 %v4362
    %4366 = vmatprep.subr.bf16.mxu0 0
    %4367 = vmatpush1.bf16.xpose.msra.mxu0 0
    %4368 = vmatprep.subr.bf16.mxu0 0
    %4369 = vmatpush1.bf16.xpose.msra.mxu0 0
    %4370 = vmatprep.subr.bf16.mxu0 0
    %4371 = vmatpush1.bf16.xpose.msra.mxu0 0
    %4372 = vmatprep.subr.bf16.mxu0 0
    %4373 = vmatpush1.bf16.xpose.msra.mxu0 0
    %4374 = vmatprep.subr.bf16.mxu0 0
    %4375 = vmatpush1.bf16.xpose.msra.mxu0 0
    %4376 = vmatprep.subr.bf16.mxu0 0
    %4377 = vmatpush1.bf16.xpose.msra.mxu0 0
    %4378 = vmatprep.subr.bf16.mxu0 0
    %4379 = vmatpush1.bf16.xpose.msra.mxu0 0
    %4380 = vmatprep.subr.bf16.mxu0 0
    %4381 = vmatpush1.bf16.xpose.msra.mxu0 0
    %4382 = vmatprep.subr.bf16.mxu0 0
    %4383 = vmatpush1.bf16.xpose.msra.mxu0 0
    %4384 = vmatprep.subr.bf16.mxu0 0
    %4385 = vmatpush1.bf16.xpose.msra.mxu0 0
    %4386 = vmatprep.subr.bf16.mxu0 0
    %4387 = vmatpush1.bf16.xpose.msra.mxu0 0
    %4388 = vmatprep.subr.bf16.mxu0 0
    %4389 = vmatpush1.bf16.xpose.msra.mxu0 0
    %4390 = vmatprep.subr.bf16.mxu0 0
    %4391 = vmatpush1.bf16.xpose.msra.mxu0 0
    %4392 = vmatprep.subr.bf16.mxu0 0
    %4393 = vmatpush1.bf16.xpose.msra.mxu0 0
    %4394 = vmatprep.subr.bf16.mxu0 0
    %4395 = vmatpush1.bf16.xpose.msra.mxu0 0
    %4396 = vmatprep.mubr.bf16.mxu0 0
    %4397 = vmatmul.mubr.bf16.gmra.mrb[0].mxu0 %v4359
    %v4398 = vpop.f32.mrb[0].mxu0
    %v4399 = vadd.f32 0.0, %v4398
    %v4400 = vpop.f32.mrb[0].mxu0
    %v4401 = vpop.f32.mrb[0].mxu0
    %v4402 = vadd.f32 0.0, %v4401
    %v4403 = vpop.f32.mrb[0].mxu0
    %4404 = vdwg.mxu0
    %v4406 = vsel %vm3793, %v1390, 0
    %v4409 = vsel %vm3793, %v2590, 0
    %4411 = vmatprep.subr.bf16.mxu0 0
    %4412 = vmatpush1.bf16.xpose.msra.mxu0 %v4409
    %4413 = vmatprep.subr.bf16.mxu0 0
    %4414 = vmatpush1.bf16.xpose.msra.mxu0 0
    %4415 = vmatprep.subr.bf16.mxu0 0
    %4416 = vmatpush1.bf16.xpose.msra.mxu0 0
    %4417 = vmatprep.subr.bf16.mxu0 0
    %4418 = vmatpush1.bf16.xpose.msra.mxu0 0
    %4419 = vmatprep.subr.bf16.mxu0 0
    %4420 = vmatpush1.bf16.xpose.msra.mxu0 0
    %4421 = vmatprep.subr.bf16.mxu0 0
    %4422 = vmatpush1.bf16.xpose.msra.mxu0 0
    %4423 = vmatprep.subr.bf16.mxu0 0
    %4424 = vmatpush1.bf16.xpose.msra.mxu0 0
    %4425 = vmatprep.subr.bf16.mxu0 0
    %4426 = vmatpush1.bf16.xpose.msra.mxu0 0
    %4427 = vmatprep.subr.bf16.mxu0 0
    %4428 = vmatpush1.bf16.xpose.msra.mxu0 0
    %4429 = vmatprep.subr.bf16.mxu0 0
    %4430 = vmatpush1.bf16.xpose.msra.mxu0 0
    %4431 = vmatprep.subr.bf16.mxu0 0
    %4432 = vmatpush1.bf16.xpose.msra.mxu0 0
    %4433 = vmatprep.subr.bf16.mxu0 0
    %4434 = vmatpush1.bf16.xpose.msra.mxu0 0
    %4435 = vmatprep.subr.bf16.mxu0 0
    %4436 = vmatpush1.bf16.xpose.msra.mxu0 0
    %4437 = vmatprep.subr.bf16.mxu0 0
    %4438 = vmatpush1.bf16.xpose.msra.mxu0 0
    %4439 = vmatprep.subr.bf16.mxu0 0
    %4440 = vmatpush1.bf16.xpose.msra.mxu0 0
    %4441 = vmatprep.subr.bf16.mxu0 0
    %4442 = vmatpush1.bf16.xpose.msra.mxu0 0
    %4443 = vmatprep.mubr.bf16.mxu0 0
    %4444 = vmatmul.mubr.bf16.gmra.mrb[0].mxu0 %v4406
    %v4445 = vpop.f32.mrb[0].mxu0
    %v4446 = vadd.f32 0.0, %v4445
    %v4447 = vpop.f32.mrb[0].mxu0
    %v4448 = vpop.f32.mrb[0].mxu0
    %v4449 = vadd.f32 0.0, %v4448
    %v4450 = vpop.f32.mrb[0].mxu0
    %4451 = vdwg.mxu0
    %v4453 = vsel %vm3793, %v1391, 0
    %v4456 = vsel %vm3793, %v2591, 0
    %4458 = vmatprep.subr.bf16.mxu0 0
    %4459 = vmatpush1.bf16.xpose.msra.mxu0 %v4456
    %4460 = vmatprep.subr.bf16.mxu0 0
    %4461 = vmatpush1.bf16.xpose.msra.mxu0 0
    %4462 = vmatprep.subr.bf16.mxu0 0
    %4463 = vmatpush1.bf16.xpose.msra.mxu0 0
    %4464 = vmatprep.subr.bf16.mxu0 0
    %4465 = vmatpush1.bf16.xpose.msra.mxu0 0
    %4466 = vmatprep.subr.bf16.mxu0 0
    %4467 = vmatpush1.bf16.xpose.msra.mxu0 0
    %4468 = vmatprep.subr.bf16.mxu0 0
    %4469 = vmatpush1.bf16.xpose.msra.mxu0 0
    %4470 = vmatprep.subr.bf16.mxu0 0
    %4471 = vmatpush1.bf16.xpose.msra.mxu0 0
    %4472 = vmatprep.subr.bf16.mxu0 0
    %4473 = vmatpush1.bf16.xpose.msra.mxu0 0
    %4474 = vmatprep.subr.bf16.mxu0 0
    %4475 = vmatpush1.bf16.xpose.msra.mxu0 0
    %4476 = vmatprep.subr.bf16.mxu0 0
    %4477 = vmatpush1.bf16.xpose.msra.mxu0 0
    %4478 = vmatprep.subr.bf16.mxu0 0
    %4479 = vmatpush1.bf16.xpose.msra.mxu0 0
    %4480 = vmatprep.subr.bf16.mxu0 0
    %4481 = vmatpush1.bf16.xpose.msra.mxu0 0
    %4482 = vmatprep.subr.bf16.mxu0 0
    %4483 = vmatpush1.bf16.xpose.msra.mxu0 0
    %4484 = vmatprep.subr.bf16.mxu0 0
    %4485 = vmatpush1.bf16.xpose.msra.mxu0 0
    %4486 = vmatprep.subr.bf16.mxu0 0
    %4487 = vmatpush1.bf16.xpose.msra.mxu0 0
    %4488 = vmatprep.subr.bf16.mxu0 0
    %4489 = vmatpush1.bf16.xpose.msra.mxu0 0
    %4490 = vmatprep.mubr.bf16.mxu0 0
    %4491 = vmatmul.mubr.bf16.gmra.mrb[0].mxu0 %v4453
    %v4492 = vpop.f32.mrb[0].mxu0
    %v4493 = vadd.f32 0.0, %v4492
    %v4494 = vpop.f32.mrb[0].mxu0
    %v4495 = vpop.f32.mrb[0].mxu0
    %v4496 = vadd.f32 0.0, %v4495
    %v4497 = vpop.f32.mrb[0].mxu0
    %4498 = vdwg.mxu0
    %v4500 = vsel %vm3793, %v1392, 0
    %v4503 = vsel %vm3793, %v2592, 0
    %4505 = vmatprep.subr.bf16.mxu0 0
    %4506 = vmatpush1.bf16.xpose.msra.mxu0 %v4503
    %4507 = vmatprep.subr.bf16.mxu0 0
    %4508 = vmatpush1.bf16.xpose.msra.mxu0 0
    %4509 = vmatprep.subr.bf16.mxu0 0
    %4510 = vmatpush1.bf16.xpose.msra.mxu0 0
    %4511 = vmatprep.subr.bf16.mxu0 0
    %4512 = vmatpush1.bf16.xpose.msra.mxu0 0
    %4513 = vmatprep.subr.bf16.mxu0 0
    %4514 = vmatpush1.bf16.xpose.msra.mxu0 0
    %4515 = vmatprep.subr.bf16.mxu0 0
    %4516 = vmatpush1.bf16.xpose.msra.mxu0 0
    %4517 = vmatprep.subr.bf16.mxu0 0
    %4518 = vmatpush1.bf16.xpose.msra.mxu0 0
    %4519 = vmatprep.subr.bf16.mxu0 0
    %4520 = vmatpush1.bf16.xpose.msra.mxu0 0
    %4521 = vmatprep.subr.bf16.mxu0 0
    %4522 = vmatpush1.bf16.xpose.msra.mxu0 0
    %4523 = vmatprep.subr.bf16.mxu0 0
    %4524 = vmatpush1.bf16.xpose.msra.mxu0 0
    %4525 = vmatprep.subr.bf16.mxu0 0
    %4526 = vmatpush1.bf16.xpose.msra.mxu0 0
    %4527 = vmatprep.subr.bf16.mxu0 0
    %4528 = vmatpush1.bf16.xpose.msra.mxu0 0
    %4529 = vmatprep.subr.bf16.mxu0 0
    %4530 = vmatpush1.bf16.xpose.msra.mxu0 0
    %4531 = vmatprep.subr.bf16.mxu0 0
    %4532 = vmatpush1.bf16.xpose.msra.mxu0 0
    %4533 = vmatprep.subr.bf16.mxu0 0
    %4534 = vmatpush1.bf16.xpose.msra.mxu0 0
    %4535 = vmatprep.subr.bf16.mxu0 0
    %4536 = vmatpush1.bf16.xpose.msra.mxu0 0
    %4537 = vmatprep.mubr.bf16.mxu0 0
    %4538 = vmatmul.mubr.bf16.gmra.mrb[0].mxu0 %v4500
    %v4539 = vpop.f32.mrb[0].mxu0
    %v4540 = vadd.f32 0.0, %v4539
    %v4541 = vpop.f32.mrb[0].mxu0
    %v4542 = vpop.f32.mrb[0].mxu0
    %v4543 = vadd.f32 0.0, %v4542
    %v4544 = vpop.f32.mrb[0].mxu0
    %4545 = vdwg.mxu0
    %v4546 = vld [vmem:[#allocation5] sm:$0xff]
    %v4547 = vld [vmem:[#allocation5 + $0x8] sm:$0xff]
    %v4548 = vld [vmem:[#allocation5 + $0x10] sm:$0xff]
    %v4549 = vld [vmem:[#allocation5 + $0x18] sm:$0xff]
    %v4550 = vld [vmem:[#allocation5 + $0x20] sm:$0xff]
    %v4551 = vld [vmem:[#allocation5 + $0x28] sm:$0xff]
    %v4552 = vld [vmem:[#allocation5 + $0x30] sm:$0xff]
    %v4553 = vld [vmem:[#allocation5 + $0x38] sm:$0xff]
    %v4554 = vmul.f32 %v4546, -1e+09
    %v4555 = vmul.f32 %v4547, -1e+09
    %v4556 = vmul.f32 %v4548, -1e+09
    %v4557 = vmul.f32 %v4549, -1e+09
    %v4558 = vmul.f32 %v4550, -1e+09
    %v4559 = vmul.f32 %v4551, -1e+09
    %v4560 = vmul.f32 %v4552, -1e+09
    %v4561 = vmul.f32 %v4553, -1e+09
    %v4562 = vld [vmem:[#allocation7] sm:$0xff]
    %v4563 = vld [vmem:[#allocation7 + $0x8] sm:$0xff]
    %v4564 = vld [vmem:[#allocation7 + $0x10] sm:$0xff]
    %v4565 = vld [vmem:[#allocation7 + $0x18] sm:$0xff]
    %v4566 = vld [vmem:[#allocation7 + $0x20] sm:$0xff]
    %v4567 = vld [vmem:[#allocation7 + $0x28] sm:$0xff]
    %v4568 = vld [vmem:[#allocation7 + $0x30] sm:$0xff]
    %v4569 = vld [vmem:[#allocation7 + $0x38] sm:$0xff]
    %v4570 = vadd.f32 %v3835, %v4562
    %v4571 = vadd.f32 %v3838, %v4563
    %v4572 = vadd.f32 %v3882, %v4564
    %v4573 = vadd.f32 %v3885, %v4565
    %v4574 = vadd.f32 %v3929, %v4566
    %v4575 = vadd.f32 %v3932, %v4567
    %v4576 = vadd.f32 %v3976, %v4568
    %v4577 = vadd.f32 %v3979, %v4569
    %v4578 = vadd.f32 %v4023, %v4562
    %v4579 = vadd.f32 %v4026, %v4563
    %v4580 = vadd.f32 %v4070, %v4564
    %v4581 = vadd.f32 %v4073, %v4565
    %v4582 = vadd.f32 %v4117, %v4566
    %v4583 = vadd.f32 %v4120, %v4567
    %v4584 = vadd.f32 %v4164, %v4568
    %v4585 = vadd.f32 %v4167, %v4569
    %v4586 = vadd.f32 %v4211, %v4562
    %v4587 = vadd.f32 %v4214, %v4563
    %v4588 = vadd.f32 %v4258, %v4564
    %v4589 = vadd.f32 %v4261, %v4565
    %v4590 = vadd.f32 %v4305, %v4566
    %v4591 = vadd.f32 %v4308, %v4567
    %v4592 = vadd.f32 %v4352, %v4568
    %v4593 = vadd.f32 %v4355, %v4569
    %v4594 = vadd.f32 %v4399, %v4562
    %v4595 = vadd.f32 %v4402, %v4563
    %v4596 = vadd.f32 %v4446, %v4564
    %v4597 = vadd.f32 %v4449, %v4565
    %v4598 = vadd.f32 %v4493, %v4566
    %v4599 = vadd.f32 %v4496, %v4567
    %v4600 = vadd.f32 %v4540, %v4568
    %v4601 = vadd.f32 %v4543, %v4569
    %v4602 = vadd.f32 %v4570, %v4554
    %v4603 = vadd.f32 %v4571, %v4555
    %v4604 = vadd.f32 %v4572, %v4554
    %v4605 = vadd.f32 %v4573, %v4555
    %v4606 = vadd.f32 %v4574, %v4554
    %v4607 = vadd.f32 %v4575, %v4555
    %v4608 = vadd.f32 %v4576, %v4554
    %v4609 = vadd.f32 %v4577, %v4555
    %v4610 = vadd.f32 %v4578, %v4556
    %v4611 = vadd.f32 %v4579, %v4557
    %v4612 = vadd.f32 %v4580, %v4556
    %v4613 = vadd.f32 %v4581, %v4557
    %v4614 = vadd.f32 %v4582, %v4556
    %v4615 = vadd.f32 %v4583, %v4557
    %v4616 = vadd.f32 %v4584, %v4556
    %v4617 = vadd.f32 %v4585, %v4557
    %v4618 = vadd.f32 %v4586, %v4558
    %v4619 = vadd.f32 %v4587, %v4559
    %v4620 = vadd.f32 %v4588, %v4558
    %v4621 = vadd.f32 %v4589, %v4559
    %v4622 = vadd.f32 %v4590, %v4558
    %v4623 = vadd.f32 %v4591, %v4559
    %v4624 = vadd.f32 %v4592, %v4558
    %v4625 = vadd.f32 %v4593, %v4559
    %v4626 = vadd.f32 %v4594, %v4560
    %v4627 = vadd.f32 %v4595, %v4561
    %v4628 = vadd.f32 %v4596, %v4560
    %v4629 = vadd.f32 %v4597, %v4561
    %v4630 = vadd.f32 %v4598, %v4560
    %v4631 = vadd.f32 %v4599, %v4561
    %v4632 = vadd.f32 %v4600, %v4560
    %v4633 = vadd.f32 %v4601, %v4561
    %vm4634 = vcmask 130048
    %4635 = vst.msk [vmem:[#allocation9] sm:$0xff] %vm4634, %v4602
    %4636 = vst.msk [vmem:[#allocation9 + $0x8] sm:$0xff] %vm4634, %v4603
    %4637 = vst.msk [vmem:[#allocation9 + $0x10] sm:$0xff] %vm4634, %v4604
    %4638 = vst.msk [vmem:[#allocation9 + $0x18] sm:$0xff] %vm4634, %v4605
    %4639 = vst.msk [vmem:[#allocation9 + $0x20] sm:$0xff] %vm4634, %v4606
    %4640 = vst.msk [vmem:[#allocation9 + $0x28] sm:$0xff] %vm4634, %v4607
    %4641 = vst.msk [vmem:[#allocation9 + $0x30] sm:$0xff] %vm4634, %v4608
    %4642 = vst.msk [vmem:[#allocation9 + $0x38] sm:$0xff] %vm4634, %v4609
    %4643 = vst.msk [vmem:[#allocation9 + $0x40] sm:$0xff] %vm4634, %v4610
    %4644 = vst.msk [vmem:[#allocation9 + $0x48] sm:$0xff] %vm4634, %v4611
    %4645 = vst.msk [vmem:[#allocation9 + $0x50] sm:$0xff] %vm4634, %v4612
    %4646 = vst.msk [vmem:[#allocation9 + $0x58] sm:$0xff] %vm4634, %v4613
    %4647 = vst.msk [vmem:[#allocation9 + $0x60] sm:$0xff] %vm4634, %v4614
    %4648 = vst.msk [vmem:[#allocation9 + $0x68] sm:$0xff] %vm4634, %v4615
    %4649 = vst.msk [vmem:[#allocation9 + $0x70] sm:$0xff] %vm4634, %v4616
    %4650 = vst.msk [vmem:[#allocation9 + $0x78] sm:$0xff] %vm4634, %v4617
    %4651 = vst.msk [vmem:[#allocation9 + $0x80] sm:$0xff] %vm4634, %v4618
    %4652 = vst.msk [vmem:[#allocation9 + $0x88] sm:$0xff] %vm4634, %v4619
    %4653 = vst.msk [vmem:[#allocation9 + $0x90] sm:$0xff] %vm4634, %v4620
    %4654 = vst.msk [vmem:[#allocation9 + $0x98] sm:$0xff] %vm4634, %v4621
    %4655 = vst.msk [vmem:[#allocation9 + $0xa0] sm:$0xff] %vm4634, %v4622
    %4656 = vst.msk [vmem:[#allocation9 + $0xa8] sm:$0xff] %vm4634, %v4623
    %4657 = vst.msk [vmem:[#allocation9 + $0xb0] sm:$0xff] %vm4634, %v4624
    %4658 = vst.msk [vmem:[#allocation9 + $0xb8] sm:$0xff] %vm4634, %v4625
    %4659 = vst.msk [vmem:[#allocation9 + $0xc0] sm:$0xff] %vm4634, %v4626
    %4660 = vst.msk [vmem:[#allocation9 + $0xc8] sm:$0xff] %vm4634, %v4627
    %4661 = vst.msk [vmem:[#allocation9 + $0xd0] sm:$0xff] %vm4634, %v4628
    %4662 = vst.msk [vmem:[#allocation9 + $0xd8] sm:$0xff] %vm4634, %v4629
    %4663 = vst.msk [vmem:[#allocation9 + $0xe0] sm:$0xff] %vm4634, %v4630
    %4664 = vst.msk [vmem:[#allocation9 + $0xe8] sm:$0xff] %vm4634, %v4631
    %4665 = vst.msk [vmem:[#allocation9 + $0xf0] sm:$0xff] %vm4634, %v4632
    %4666 = vst.msk [vmem:[#allocation9 + $0xf8] sm:$0xff] %vm4634, %v4633
    %v4667 = vsel %vm4634, %v4602, -inf
    %4668 = vmax.xlane.f32.xlu0 %v4667
    %v4669 = vpop.xlane.xlu0 %4668
    %v4670 = vsel %vm4634, %v4603, -inf
    %4671 = vmax.xlane.f32.xlu0 %v4670
    %v4672 = vpop.xlane.xlu0 %4671
    %v4673 = vsel %vm4634, %v4604, -inf
    %4674 = vmax.xlane.f32.xlu0 %v4673
    %v4675 = vpop.xlane.xlu0 %4674
    %v4676 = vsel %vm4634, %v4605, -inf
    %4677 = vmax.xlane.f32.xlu0 %v4676
    %v4678 = vpop.xlane.xlu0 %4677
    %v4679 = vsel %vm4634, %v4606, -inf
    %4680 = vmax.xlane.f32.xlu0 %v4679
    %v4681 = vpop.xlane.xlu0 %4680
    %v4682 = vsel %vm4634, %v4607, -inf
    %4683 = vmax.xlane.f32.xlu0 %v4682
    %v4684 = vpop.xlane.xlu0 %4683
    %v4685 = vsel %vm4634, %v4608, -inf
    %4686 = vmax.xlane.f32.xlu0 %v4685
    %v4687 = vpop.xlane.xlu0 %4686
    %v4688 = vsel %vm4634, %v4609, -inf
    %4689 = vmax.xlane.f32.xlu0 %v4688
    %v4690 = vpop.xlane.xlu0 %4689
    %v4691 = vsel %vm4634, %v4610, -inf
    %4692 = vmax.xlane.f32.xlu0 %v4691
    %v4693 = vpop.xlane.xlu0 %4692
    %v4694 = vsel %vm4634, %v4611, -inf
    %4695 = vmax.xlane.f32.xlu0 %v4694
    %v4696 = vpop.xlane.xlu0 %4695
    %v4697 = vsel %vm4634, %v4612, -inf
    %4698 = vmax.xlane.f32.xlu0 %v4697
    %v4699 = vpop.xlane.xlu0 %4698
    %v4700 = vsel %vm4634, %v4613, -inf
    %4701 = vmax.xlane.f32.xlu0 %v4700
    %v4702 = vpop.xlane.xlu0 %4701
    %v4703 = vsel %vm4634, %v4614, -inf
    %4704 = vmax.xlane.f32.xlu0 %v4703
    %v4705 = vpop.xlane.xlu0 %4704
    %v4706 = vsel %vm4634, %v4615, -inf
    %4707 = vmax.xlane.f32.xlu0 %v4706
    %v4708 = vpop.xlane.xlu0 %4707
    %v4709 = vsel %vm4634, %v4616, -inf
    %4710 = vmax.xlane.f32.xlu0 %v4709
    %v4711 = vpop.xlane.xlu0 %4710
    %v4712 = vsel %vm4634, %v4617, -inf
    %4713 = vmax.xlane.f32.xlu0 %v4712
    %v4714 = vpop.xlane.xlu0 %4713
    %v4715 = vsel %vm4634, %v4618, -inf
    %4716 = vmax.xlane.f32.xlu0 %v4715
    %v4717 = vpop.xlane.xlu0 %4716
    %v4718 = vsel %vm4634, %v4619, -inf
    %4719 = vmax.xlane.f32.xlu0 %v4718
    %v4720 = vpop.xlane.xlu0 %4719
    %v4721 = vsel %vm4634, %v4620, -inf
    %4722 = vmax.xlane.f32.xlu0 %v4721
    %v4723 = vpop.xlane.xlu0 %4722
    %v4724 = vsel %vm4634, %v4621, -inf
    %4725 = vmax.xlane.f32.xlu0 %v4724
    %v4726 = vpop.xlane.xlu0 %4725
    %v4727 = vsel %vm4634, %v4622, -inf
    %4728 = vmax.xlane.f32.xlu0 %v4727
    %v4729 = vpop.xlane.xlu0 %4728
    %v4730 = vsel %vm4634, %v4623, -inf
    %4731 = vmax.xlane.f32.xlu0 %v4730
    %v4732 = vpop.xlane.xlu0 %4731
    %v4733 = vsel %vm4634, %v4624, -inf
    %4734 = vmax.xlane.f32.xlu0 %v4733
    %v4735 = vpop.xlane.xlu0 %4734
    %v4736 = vsel %vm4634, %v4625, -inf
    %4737 = vmax.xlane.f32.xlu0 %v4736
    %v4738 = vpop.xlane.xlu0 %4737
    %v4739 = vsel %vm4634, %v4626, -inf
    %4740 = vmax.xlane.f32.xlu0 %v4739
    %v4741 = vpop.xlane.xlu0 %4740
    %v4742 = vsel %vm4634, %v4627, -inf
    %4743 = vmax.xlane.f32.xlu0 %v4742
    %v4744 = vpop.xlane.xlu0 %4743
    %v4745 = vsel %vm4634, %v4628, -inf
    %4746 = vmax.xlane.f32.xlu0 %v4745
    %v4747 = vpop.xlane.xlu0 %4746
    %v4748 = vsel %vm4634, %v4629, -inf
    %4749 = vmax.xlane.f32.xlu0 %v4748
    %v4750 = vpop.xlane.xlu0 %4749
    %v4751 = vsel %vm4634, %v4630, -inf
    %4752 = vmax.xlane.f32.xlu0 %v4751
    %v4753 = vpop.xlane.xlu0 %4752
    %v4754 = vsel %vm4634, %v4631, -inf
    %4755 = vmax.xlane.f32.xlu0 %v4754
    %v4756 = vpop.xlane.xlu0 %4755
    %v4757 = vsel %vm4634, %v4632, -inf
    %4758 = vmax.xlane.f32.xlu0 %v4757
    %v4759 = vpop.xlane.xlu0 %4758
    %v4760 = vsel %vm4634, %v4633, -inf
    %4761 = vmax.xlane.f32.xlu0 %v4760
    %v4762 = vpop.xlane.xlu0 %4761
    %v4763 = vsub.f32 %v4602, %v4669
    %v4764 = vsub.f32 %v4603, %v4672
    %v4765 = vsub.f32 %v4604, %v4675
    %v4766 = vsub.f32 %v4605, %v4678
    %v4767 = vsub.f32 %v4606, %v4681
    %v4768 = vsub.f32 %v4607, %v4684
    %v4769 = vsub.f32 %v4608, %v4687
    %v4770 = vsub.f32 %v4609, %v4690
    %v4771 = vsub.f32 %v4610, %v4693
    %v4772 = vsub.f32 %v4611, %v4696
    %v4773 = vsub.f32 %v4612, %v4699
    %v4774 = vsub.f32 %v4613, %v4702
    %v4775 = vsub.f32 %v4614, %v4705
    %v4776 = vsub.f32 %v4615, %v4708
    %v4777 = vsub.f32 %v4616, %v4711
    %v4778 = vsub.f32 %v4617, %v4714
    %v4779 = vsub.f32 %v4618, %v4717
    %v4780 = vsub.f32 %v4619, %v4720
    %v4781 = vsub.f32 %v4620, %v4723
    %v4782 = vsub.f32 %v4621, %v4726
    %v4783 = vsub.f32 %v4622, %v4729
    %v4784 = vsub.f32 %v4623, %v4732
    %v4785 = vsub.f32 %v4624, %v4735
    %v4786 = vsub.f32 %v4625, %v4738
    %v4787 = vsub.f32 %v4626, %v4741
    %v4788 = vsub.f32 %v4627, %v4744
    %v4789 = vsub.f32 %v4628, %v4747
    %v4790 = vsub.f32 %v4629, %v4750
    %v4791 = vsub.f32 %v4630, %v4753
    %v4792 = vsub.f32 %v4631, %v4756
    %v4793 = vsub.f32 %v4632, %v4759
    %v4794 = vsub.f32 %v4633, %v4762
    %v4795 = vmul.f32 %v4763, 1.442695
    %v4796 = vpow.pop %v4795
    %v4797 = vmul.f32 %v4764, 1.442695
    %v4798 = vpow.pop %v4797
    %v4799 = vmul.f32 %v4765, 1.442695
    %v4800 = vpow.pop %v4799
    %v4801 = vmul.f32 %v4766, 1.442695
    %v4802 = vpow.pop %v4801
    %v4803 = vmul.f32 %v4767, 1.442695
    %v4804 = vpow.pop %v4803
    %v4805 = vmul.f32 %v4768, 1.442695
    %v4806 = vpow.pop %v4805
    %v4807 = vmul.f32 %v4769, 1.442695
    %v4808 = vpow.pop %v4807
    %v4809 = vmul.f32 %v4770, 1.442695
    %v4810 = vpow.pop %v4809
    %v4811 = vmul.f32 %v4771, 1.442695
    %v4812 = vpow.pop %v4811
    %v4813 = vmul.f32 %v4772, 1.442695
    %v4814 = vpow.pop %v4813
    %v4815 = vmul.f32 %v4773, 1.442695
    %v4816 = vpow.pop %v4815
    %v4817 = vmul.f32 %v4774, 1.442695
    %v4818 = vpow.pop %v4817
    %v4819 = vmul.f32 %v4775, 1.442695
    %v4820 = vpow.pop %v4819
    %v4821 = vmul.f32 %v4776, 1.442695
    %v4822 = vpow.pop %v4821
    %v4823 = vmul.f32 %v4777, 1.442695
    %v4824 = vpow.pop %v4823
    %v4825 = vmul.f32 %v4778, 1.442695
    %v4826 = vpow.pop %v4825
    %v4827 = vmul.f32 %v4779, 1.442695
    %v4828 = vpow.pop %v4827
    %v4829 = vmul.f32 %v4780, 1.442695
    %v4830 = vpow.pop %v4829
    %v4831 = vmul.f32 %v4781, 1.442695
    %v4832 = vpow.pop %v4831
    %v4833 = vmul.f32 %v4782, 1.442695
    %v4834 = vpow.pop %v4833
    %v4835 = vmul.f32 %v4783, 1.442695
    %v4836 = vpow.pop %v4835
    %v4837 = vmul.f32 %v4784, 1.442695
    %v4838 = vpow.pop %v4837
    %v4839 = vmul.f32 %v4785, 1.442695
    %v4840 = vpow.pop %v4839
    %v4841 = vmul.f32 %v4786, 1.442695
    %v4842 = vpow.pop %v4841
    %v4843 = vmul.f32 %v4787, 1.442695
    %v4844 = vpow.pop %v4843
    %v4845 = vmul.f32 %v4788, 1.442695
    %v4846 = vpow.pop %v4845
    %v4847 = vmul.f32 %v4789, 1.442695
    %v4848 = vpow.pop %v4847
    %v4849 = vmul.f32 %v4790, 1.442695
    %v4850 = vpow.pop %v4849
    %v4851 = vmul.f32 %v4791, 1.442695
    %v4852 = vpow.pop %v4851
    %v4853 = vmul.f32 %v4792, 1.442695
    %v4854 = vpow.pop %v4853
    %v4855 = vmul.f32 %v4793, 1.442695
    %v4856 = vpow.pop %v4855
    %v4857 = vmul.f32 %v4794, 1.442695
    %v4858 = vpow.pop %v4857
    %v4859 = vsel %vm4634, %v4796, 0.0
    %4860 = vadd.xlane.f32.xlu0 %v4859
    %v4861 = vpop.xlane.xlu0 %4860
    %v4862 = vsel %vm4634, %v4798, 0.0
    %4863 = vadd.xlane.f32.xlu0 %v4862
    %v4864 = vpop.xlane.xlu0 %4863
    %v4865 = vsel %vm4634, %v4800, 0.0
    %4866 = vadd.xlane.f32.xlu0 %v4865
    %v4867 = vpop.xlane.xlu0 %4866
    %v4868 = vsel %vm4634, %v4802, 0.0
    %4869 = vadd.xlane.f32.xlu0 %v4868
    %v4870 = vpop.xlane.xlu0 %4869
    %v4871 = vsel %vm4634, %v4804, 0.0
    %4872 = vadd.xlane.f32.xlu0 %v4871
    %v4873 = vpop.xlane.xlu0 %4872
    %v4874 = vsel %vm4634, %v4806, 0.0
    %4875 = vadd.xlane.f32.xlu0 %v4874
    %v4876 = vpop.xlane.xlu0 %4875
    %v4877 = vsel %vm4634, %v4808, 0.0
    %4878 = vadd.xlane.f32.xlu0 %v4877
    %v4879 = vpop.xlane.xlu0 %4878
    %v4880 = vsel %vm4634, %v4810, 0.0
    %4881 = vadd.xlane.f32.xlu0 %v4880
    %v4882 = vpop.xlane.xlu0 %4881
    %v4883 = vsel %vm4634, %v4812, 0.0
    %4884 = vadd.xlane.f32.xlu0 %v4883
    %v4885 = vpop.xlane.xlu0 %4884
    %v4886 = vsel %vm4634, %v4814, 0.0
    %4887 = vadd.xlane.f32.xlu0 %v4886
    %v4888 = vpop.xlane.xlu0 %4887
    %v4889 = vsel %vm4634, %v4816, 0.0
    %4890 = vadd.xlane.f32.xlu0 %v4889
    %v4891 = vpop.xlane.xlu0 %4890
    %v4892 = vsel %vm4634, %v4818, 0.0
    %4893 = vadd.xlane.f32.xlu0 %v4892
    %v4894 = vpop.xlane.xlu0 %4893
    %v4895 = vsel %vm4634, %v4820, 0.0
    %4896 = vadd.xlane.f32.xlu0 %v4895
    %v4897 = vpop.xlane.xlu0 %4896
    %v4898 = vsel %vm4634, %v4822, 0.0
    %4899 = vadd.xlane.f32.xlu0 %v4898
    %v4900 = vpop.xlane.xlu0 %4899
    %v4901 = vsel %vm4634, %v4824, 0.0
    %4902 = vadd.xlane.f32.xlu0 %v4901
    %v4903 = vpop.xlane.xlu0 %4902
    %v4904 = vsel %vm4634, %v4826, 0.0
    %4905 = vadd.xlane.f32.xlu0 %v4904
    %v4906 = vpop.xlane.xlu0 %4905
    %v4907 = vsel %vm4634, %v4828, 0.0
    %4908 = vadd.xlane.f32.xlu0 %v4907
    %v4909 = vpop.xlane.xlu0 %4908
    %v4910 = vsel %vm4634, %v4830, 0.0
    %4911 = vadd.xlane.f32.xlu0 %v4910
    %v4912 = vpop.xlane.xlu0 %4911
    %v4913 = vsel %vm4634, %v4832, 0.0
    %4914 = vadd.xlane.f32.xlu0 %v4913
    %v4915 = vpop.xlane.xlu0 %4914
    %v4916 = vsel %vm4634, %v4834, 0.0
    %4917 = vadd.xlane.f32.xlu0 %v4916
    %v4918 = vpop.xlane.xlu0 %4917
    %v4919 = vsel %vm4634, %v4836, 0.0
    %4920 = vadd.xlane.f32.xlu0 %v4919
    %v4921 = vpop.xlane.xlu0 %4920
    %v4922 = vsel %vm4634, %v4838, 0.0
    %4923 = vadd.xlane.f32.xlu0 %v4922
    %v4924 = vpop.xlane.xlu0 %4923
    %v4925 = vsel %vm4634, %v4840, 0.0
    %4926 = vadd.xlane.f32.xlu0 %v4925
    %v4927 = vpop.xlane.xlu0 %4926
    %v4928 = vsel %vm4634, %v4842, 0.0
    %4929 = vadd.xlane.f32.xlu0 %v4928
    %v4930 = vpop.xlane.xlu0 %4929
    %v4931 = vsel %vm4634, %v4844, 0.0
    %4932 = vadd.xlane.f32.xlu0 %v4931
    %v4933 = vpop.xlane.xlu0 %4932
    %v4934 = vsel %vm4634, %v4846, 0.0
    %4935 = vadd.xlane.f32.xlu0 %v4934
    %v4936 = vpop.xlane.xlu0 %4935
    %v4937 = vsel %vm4634, %v4848, 0.0
    %4938 = vadd.xlane.f32.xlu0 %v4937
    %v4939 = vpop.xlane.xlu0 %4938
    %v4940 = vsel %vm4634, %v4850, 0.0
    %4941 = vadd.xlane.f32.xlu0 %v4940
    %v4942 = vpop.xlane.xlu0 %4941
    %v4943 = vsel %vm4634, %v4852, 0.0
    %4944 = vadd.xlane.f32.xlu0 %v4943
    %v4945 = vpop.xlane.xlu0 %4944
    %v4946 = vsel %vm4634, %v4854, 0.0
    %4947 = vadd.xlane.f32.xlu0 %v4946
    %v4948 = vpop.xlane.xlu0 %4947
    %v4949 = vsel %vm4634, %v4856, 0.0
    %4950 = vadd.xlane.f32.xlu0 %v4949
    %v4951 = vpop.xlane.xlu0 %4950
    %v4952 = vsel %vm4634, %v4858, 0.0
    %4953 = vadd.xlane.f32.xlu0 %v4952
    %v4954 = vpop.xlane.xlu0 %4953
    %v4955 = vrcp.pop %v4861
    %v4956 = vrcp.pop %v4864
    %v4957 = vrcp.pop %v4867
    %v4958 = vrcp.pop %v4870
    %v4959 = vrcp.pop %v4873
    %v4960 = vrcp.pop %v4876
    %v4961 = vrcp.pop %v4879
    %v4962 = vrcp.pop %v4882
    %v4963 = vrcp.pop %v4885
    %v4964 = vrcp.pop %v4888
    %v4965 = vrcp.pop %v4891
    %v4966 = vrcp.pop %v4894
    %v4967 = vrcp.pop %v4897
    %v4968 = vrcp.pop %v4900
    %v4969 = vrcp.pop %v4903
    %v4970 = vrcp.pop %v4906
    %v4971 = vrcp.pop %v4909
    %v4972 = vrcp.pop %v4912
    %v4973 = vrcp.pop %v4915
    %v4974 = vrcp.pop %v4918
    %v4975 = vrcp.pop %v4921
    %v4976 = vrcp.pop %v4924
    %v4977 = vrcp.pop %v4927
    %v4978 = vrcp.pop %v4930
    %v4979 = vrcp.pop %v4933
    %v4980 = vrcp.pop %v4936
    %v4981 = vrcp.pop %v4939
    %v4982 = vrcp.pop %v4942
    %v4983 = vrcp.pop %v4945
    %v4984 = vrcp.pop %v4948
    %v4985 = vrcp.pop %v4951
    %v4986 = vrcp.pop %v4954
    %v4987 = vmul.f32 %v4796, %v4955
    %v4988 = vmul.f32 %v4798, %v4956
    %v4989 = vmul.f32 %v4800, %v4957
    %v4990 = vmul.f32 %v4802, %v4958
    %v4991 = vmul.f32 %v4804, %v4959
    %v4992 = vmul.f32 %v4806, %v4960
    %v4993 = vmul.f32 %v4808, %v4961
    %v4994 = vmul.f32 %v4810, %v4962
    %v4995 = vmul.f32 %v4812, %v4963
    %v4996 = vmul.f32 %v4814, %v4964
    %v4997 = vmul.f32 %v4816, %v4965
    %v4998 = vmul.f32 %v4818, %v4966
    %v4999 = vmul.f32 %v4820, %v4967
    %v5000 = vmul.f32 %v4822, %v4968
    %v5001 = vmul.f32 %v4824, %v4969
    %v5002 = vmul.f32 %v4826, %v4970
    %v5003 = vmul.f32 %v4828, %v4971
    %v5004 = vmul.f32 %v4830, %v4972
    %v5005 = vmul.f32 %v4832, %v4973
    %v5006 = vmul.f32 %v4834, %v4974
    %v5007 = vmul.f32 %v4836, %v4975
    %v5008 = vmul.f32 %v4838, %v4976
    %v5009 = vmul.f32 %v4840, %v4977
    %v5010 = vmul.f32 %v4842, %v4978
    %v5011 = vmul.f32 %v4844, %v4979
    %v5012 = vmul.f32 %v4846, %v4980
    %v5013 = vmul.f32 %v4848, %v4981
    %v5014 = vmul.f32 %v4850, %v4982
    %v5015 = vmul.f32 %v4852, %v4983
    %v5016 = vmul.f32 %v4854, %v4984
    %v5017 = vmul.f32 %v4856, %v4985
    %v5018 = vmul.f32 %v4858, %v4986
    %v5019 = vpack.c.bf16 %v4988, %v4987
    %v5020 = vpack.c.bf16 %v4990, %v4989
    %v5021 = vpack.c.bf16 %v4992, %v4991
    %v5022 = vpack.c.bf16 %v4994, %v4993
    %v5023 = vpack.c.bf16 %v4996, %v4995
    %v5024 = vpack.c.bf16 %v4998, %v4997
    %v5025 = vpack.c.bf16 %v5000, %v4999
    %v5026 = vpack.c.bf16 %v5002, %v5001
    %v5027 = vpack.c.bf16 %v5004, %v5003
    %v5028 = vpack.c.bf16 %v5006, %v5005
    %v5029 = vpack.c.bf16 %v5008, %v5007
    %v5030 = vpack.c.bf16 %v5010, %v5009
    %v5031 = vpack.c.bf16 %v5012, %v5011
    %v5032 = vpack.c.bf16 %v5014, %v5013
    %v5033 = vpack.c.bf16 %v5016, %v5015
    %v5034 = vpack.c.bf16 %v5018, %v5017
    %v5036 = vsel %vm4634, %v5019, 0
    %5038 = vmatprep.subr.bf16.mxu0 0
    %5039 = vmatpush1.bf16.msra.mxu0 %v3777
    %5040 = vmatprep.subr.bf16.mxu0 0
    %5041 = vmatpush1.bf16.msra.mxu0 0
    %5042 = vmatprep.subr.bf16.mxu0 0
    %5043 = vmatpush1.bf16.msra.mxu0 0
    %5044 = vmatprep.subr.bf16.mxu0 0
    %5045 = vmatpush1.bf16.msra.mxu0 0
    %5046 = vmatprep.subr.bf16.mxu0 0
    %5047 = vmatpush1.bf16.msra.mxu0 0
    %5048 = vmatprep.subr.bf16.mxu0 0
    %5049 = vmatpush1.bf16.msra.mxu0 0
    %5050 = vmatprep.subr.bf16.mxu0 0
    %5051 = vmatpush1.bf16.msra.mxu0 0
    %5052 = vmatprep.subr.bf16.mxu0 0
    %5053 = vmatpush1.bf16.msra.mxu0 0
    %5054 = vmatprep.subr.bf16.mxu0 0
    %5055 = vmatpush1.bf16.msra.mxu0 0
    %5056 = vmatprep.subr.bf16.mxu0 0
    %5057 = vmatpush1.bf16.msra.mxu0 0
    %5058 = vmatprep.subr.bf16.mxu0 0
    %5059 = vmatpush1.bf16.msra.mxu0 0
    %5060 = vmatprep.subr.bf16.mxu0 0
    %5061 = vmatpush1.bf16.msra.mxu0 0
    %5062 = vmatprep.subr.bf16.mxu0 0
    %5063 = vmatpush1.bf16.msra.mxu0 0
    %5064 = vmatprep.subr.bf16.mxu0 0
    %5065 = vmatpush1.bf16.msra.mxu0 0
    %5066 = vmatprep.subr.bf16.mxu0 0
    %5067 = vmatpush1.bf16.msra.mxu0 0
    %5068 = vmatprep.subr.bf16.mxu0 0
    %5069 = vmatpush1.bf16.msra.mxu0 0
    %5070 = vmatprep.mubr.bf16.mxu0 0
    %5071 = vmatmul.mubr.bf16.gmra.mrb[0].mxu0 %v5036
    %v5072 = vpop.f32.mrb[0].mxu0
    %v5073 = vadd.f32 0.0, %v5072
    %v5074 = vpop.f32.mrb[0].mxu0
    %v5075 = vpop.f32.mrb[0].mxu0
    %v5076 = vadd.f32 0.0, %v5075
    %v5077 = vpop.f32.mrb[0].mxu0
    %5078 = vdwg.mxu0
    %v5080 = vsel %vm4634, %v5020, 0
    %5082 = vmatprep.subr.bf16.mxu0 0
    %5083 = vmatpush1.bf16.msra.mxu0 %v3778
    %5084 = vmatprep.subr.bf16.mxu0 0
    %5085 = vmatpush1.bf16.msra.mxu0 0
    %5086 = vmatprep.subr.bf16.mxu0 0
    %5087 = vmatpush1.bf16.msra.mxu0 0
    %5088 = vmatprep.subr.bf16.mxu0 0
    %5089 = vmatpush1.bf16.msra.mxu0 0
    %5090 = vmatprep.subr.bf16.mxu0 0
    %5091 = vmatpush1.bf16.msra.mxu0 0
    %5092 = vmatprep.subr.bf16.mxu0 0
    %5093 = vmatpush1.bf16.msra.mxu0 0
    %5094 = vmatprep.subr.bf16.mxu0 0
    %5095 = vmatpush1.bf16.msra.mxu0 0
    %5096 = vmatprep.subr.bf16.mxu0 0
    %5097 = vmatpush1.bf16.msra.mxu0 0
    %5098 = vmatprep.subr.bf16.mxu0 0
    %5099 = vmatpush1.bf16.msra.mxu0 0
    %5100 = vmatprep.subr.bf16.mxu0 0
    %5101 = vmatpush1.bf16.msra.mxu0 0
    %5102 = vmatprep.subr.bf16.mxu0 0
    %5103 = vmatpush1.bf16.msra.mxu0 0
    %5104 = vmatprep.subr.bf16.mxu0 0
    %5105 = vmatpush1.bf16.msra.mxu0 0
    %5106 = vmatprep.subr.bf16.mxu0 0
    %5107 = vmatpush1.bf16.msra.mxu0 0
    %5108 = vmatprep.subr.bf16.mxu0 0
    %5109 = vmatpush1.bf16.msra.mxu0 0
    %5110 = vmatprep.subr.bf16.mxu0 0
    %5111 = vmatpush1.bf16.msra.mxu0 0
    %5112 = vmatprep.subr.bf16.mxu0 0
    %5113 = vmatpush1.bf16.msra.mxu0 0
    %5114 = vmatprep.mubr.bf16.mxu0 0
    %5115 = vmatmul.mubr.bf16.gmra.mrb[0].mxu0 %v5080
    %v5116 = vpop.f32.mrb[0].mxu0
    %v5117 = vadd.f32 0.0, %v5116
    %v5118 = vpop.f32.mrb[0].mxu0
    %v5119 = vpop.f32.mrb[0].mxu0
    %v5120 = vadd.f32 0.0, %v5119
    %v5121 = vpop.f32.mrb[0].mxu0
    %5122 = vdwg.mxu0
    %v5124 = vsel %vm4634, %v5021, 0
    %5126 = vmatprep.subr.bf16.mxu0 0
    %5127 = vmatpush1.bf16.msra.mxu0 %v3779
    %5128 = vmatprep.subr.bf16.mxu0 0
    %5129 = vmatpush1.bf16.msra.mxu0 0
    %5130 = vmatprep.subr.bf16.mxu0 0
    %5131 = vmatpush1.bf16.msra.mxu0 0
    %5132 = vmatprep.subr.bf16.mxu0 0
    %5133 = vmatpush1.bf16.msra.mxu0 0
    %5134 = vmatprep.subr.bf16.mxu0 0
    %5135 = vmatpush1.bf16.msra.mxu0 0
    %5136 = vmatprep.subr.bf16.mxu0 0
    %5137 = vmatpush1.bf16.msra.mxu0 0
    %5138 = vmatprep.subr.bf16.mxu0 0
    %5139 = vmatpush1.bf16.msra.mxu0 0
    %5140 = vmatprep.subr.bf16.mxu0 0
    %5141 = vmatpush1.bf16.msra.mxu0 0
    %5142 = vmatprep.subr.bf16.mxu0 0
    %5143 = vmatpush1.bf16.msra.mxu0 0
    %5144 = vmatprep.subr.bf16.mxu0 0
    %5145 = vmatpush1.bf16.msra.mxu0 0
    %5146 = vmatprep.subr.bf16.mxu0 0
    %5147 = vmatpush1.bf16.msra.mxu0 0
    %5148 = vmatprep.subr.bf16.mxu0 0
    %5149 = vmatpush1.bf16.msra.mxu0 0
    %5150 = vmatprep.subr.bf16.mxu0 0
    %5151 = vmatpush1.bf16.msra.mxu0 0
    %5152 = vmatprep.subr.bf16.mxu0 0
    %5153 = vmatpush1.bf16.msra.mxu0 0
    %5154 = vmatprep.subr.bf16.mxu0 0
    %5155 = vmatpush1.bf16.msra.mxu0 0
    %5156 = vmatprep.subr.bf16.mxu0 0
    %5157 = vmatpush1.bf16.msra.mxu0 0
    %5158 = vmatprep.mubr.bf16.mxu0 0
    %5159 = vmatmul.mubr.bf16.gmra.mrb[0].mxu0 %v5124
    %v5160 = vpop.f32.mrb[0].mxu0
    %v5161 = vadd.f32 0.0, %v5160
    %v5162 = vpop.f32.mrb[0].mxu0
    %v5163 = vpop.f32.mrb[0].mxu0
    %v5164 = vadd.f32 0.0, %v5163
    %v5165 = vpop.f32.mrb[0].mxu0
    %5166 = vdwg.mxu0
    %v5168 = vsel %vm4634, %v5022, 0
    %5170 = vmatprep.subr.bf16.mxu0 0
    %5171 = vmatpush1.bf16.msra.mxu0 %v3780
    %5172 = vmatprep.subr.bf16.mxu0 0
    %5173 = vmatpush1.bf16.msra.mxu0 0
    %5174 = vmatprep.subr.bf16.mxu0 0
    %5175 = vmatpush1.bf16.msra.mxu0 0
    %5176 = vmatprep.subr.bf16.mxu0 0
    %5177 = vmatpush1.bf16.msra.mxu0 0
    %5178 = vmatprep.subr.bf16.mxu0 0
    %5179 = vmatpush1.bf16.msra.mxu0 0
    %5180 = vmatprep.subr.bf16.mxu0 0
    %5181 = vmatpush1.bf16.msra.mxu0 0
    %5182 = vmatprep.subr.bf16.mxu0 0
    %5183 = vmatpush1.bf16.msra.mxu0 0
    %5184 = vmatprep.subr.bf16.mxu0 0
    %5185 = vmatpush1.bf16.msra.mxu0 0
    %5186 = vmatprep.subr.bf16.mxu0 0
    %5187 = vmatpush1.bf16.msra.mxu0 0
    %5188 = vmatprep.subr.bf16.mxu0 0
    %5189 = vmatpush1.bf16.msra.mxu0 0
    %5190 = vmatprep.subr.bf16.mxu0 0
    %5191 = vmatpush1.bf16.msra.mxu0 0
    %5192 = vmatprep.subr.bf16.mxu0 0
    %5193 = vmatpush1.bf16.msra.mxu0 0
    %5194 = vmatprep.subr.bf16.mxu0 0
    %5195 = vmatpush1.bf16.msra.mxu0 0
    %5196 = vmatprep.subr.bf16.mxu0 0
    %5197 = vmatpush1.bf16.msra.mxu0 0
    %5198 = vmatprep.subr.bf16.mxu0 0
    %5199 = vmatpush1.bf16.msra.mxu0 0
    %5200 = vmatprep.subr.bf16.mxu0 0
    %5201 = vmatpush1.bf16.msra.mxu0 0
    %5202 = vmatprep.mubr.bf16.mxu0 0
    %5203 = vmatmul.mubr.bf16.gmra.mrb[0].mxu0 %v5168
    %v5204 = vpop.f32.mrb[0].mxu0
    %v5205 = vadd.f32 0.0, %v5204
    %v5206 = vpop.f32.mrb[0].mxu0
    %v5207 = vpop.f32.mrb[0].mxu0
    %v5208 = vadd.f32 0.0, %v5207
    %v5209 = vpop.f32.mrb[0].mxu0
    %5210 = vdwg.mxu0
    %v5212 = vsel %vm4634, %v5023, 0
    %5214 = vmatprep.subr.bf16.mxu0 0
    %5215 = vmatpush1.bf16.msra.mxu0 %v3781
    %5216 = vmatprep.subr.bf16.mxu0 0
    %5217 = vmatpush1.bf16.msra.mxu0 0
    %5218 = vmatprep.subr.bf16.mxu0 0
    %5219 = vmatpush1.bf16.msra.mxu0 0
    %5220 = vmatprep.subr.bf16.mxu0 0
    %5221 = vmatpush1.bf16.msra.mxu0 0
    %5222 = vmatprep.subr.bf16.mxu0 0
    %5223 = vmatpush1.bf16.msra.mxu0 0
    %5224 = vmatprep.subr.bf16.mxu0 0
    %5225 = vmatpush1.bf16.msra.mxu0 0
    %5226 = vmatprep.subr.bf16.mxu0 0
    %5227 = vmatpush1.bf16.msra.mxu0 0
    %5228 = vmatprep.subr.bf16.mxu0 0
    %5229 = vmatpush1.bf16.msra.mxu0 0
    %5230 = vmatprep.subr.bf16.mxu0 0
    %5231 = vmatpush1.bf16.msra.mxu0 0
    %5232 = vmatprep.subr.bf16.mxu0 0
    %5233 = vmatpush1.bf16.msra.mxu0 0
    %5234 = vmatprep.subr.bf16.mxu0 0
    %5235 = vmatpush1.bf16.msra.mxu0 0
    %5236 = vmatprep.subr.bf16.mxu0 0
    %5237 = vmatpush1.bf16.msra.mxu0 0
    %5238 = vmatprep.subr.bf16.mxu0 0
    %5239 = vmatpush1.bf16.msra.mxu0 0
    %5240 = vmatprep.subr.bf16.mxu0 0
    %5241 = vmatpush1.bf16.msra.mxu0 0
    %5242 = vmatprep.subr.bf16.mxu0 0
    %5243 = vmatpush1.bf16.msra.mxu0 0
    %5244 = vmatprep.subr.bf16.mxu0 0
    %5245 = vmatpush1.bf16.msra.mxu0 0
    %5246 = vmatprep.mubr.bf16.mxu0 0
    %5247 = vmatmul.mubr.bf16.gmra.mrb[0].mxu0 %v5212
    %v5248 = vpop.f32.mrb[0].mxu0
    %v5249 = vadd.f32 0.0, %v5248
    %v5250 = vpop.f32.mrb[0].mxu0
    %v5251 = vpop.f32.mrb[0].mxu0
    %v5252 = vadd.f32 0.0, %v5251
    %v5253 = vpop.f32.mrb[0].mxu0
    %5254 = vdwg.mxu0
    %v5256 = vsel %vm4634, %v5024, 0
    %5258 = vmatprep.subr.bf16.mxu0 0
    %5259 = vmatpush1.bf16.msra.mxu0 %v3782
    %5260 = vmatprep.subr.bf16.mxu0 0
    %5261 = vmatpush1.bf16.msra.mxu0 0
    %5262 = vmatprep.subr.bf16.mxu0 0
    %5263 = vmatpush1.bf16.msra.mxu0 0
    %5264 = vmatprep.subr.bf16.mxu0 0
    %5265 = vmatpush1.bf16.msra.mxu0 0
    %5266 = vmatprep.subr.bf16.mxu0 0
    %5267 = vmatpush1.bf16.msra.mxu0 0
    %5268 = vmatprep.subr.bf16.mxu0 0
    %5269 = vmatpush1.bf16.msra.mxu0 0
    %5270 = vmatprep.subr.bf16.mxu0 0
    %5271 = vmatpush1.bf16.msra.mxu0 0
    %5272 = vmatprep.subr.bf16.mxu0 0
    %5273 = vmatpush1.bf16.msra.mxu0 0
    %5274 = vmatprep.subr.bf16.mxu0 0
    %5275 = vmatpush1.bf16.msra.mxu0 0
    %5276 = vmatprep.subr.bf16.mxu0 0
    %5277 = vmatpush1.bf16.msra.mxu0 0
    %5278 = vmatprep.subr.bf16.mxu0 0
    %5279 = vmatpush1.bf16.msra.mxu0 0
    %5280 = vmatprep.subr.bf16.mxu0 0
    %5281 = vmatpush1.bf16.msra.mxu0 0
    %5282 = vmatprep.subr.bf16.mxu0 0
    %5283 = vmatpush1.bf16.msra.mxu0 0
    %5284 = vmatprep.subr.bf16.mxu0 0
    %5285 = vmatpush1.bf16.msra.mxu0 0
    %5286 = vmatprep.subr.bf16.mxu0 0
    %5287 = vmatpush1.bf16.msra.mxu0 0
    %5288 = vmatprep.subr.bf16.mxu0 0
    %5289 = vmatpush1.bf16.msra.mxu0 0
    %5290 = vmatprep.mubr.bf16.mxu0 0
    %5291 = vmatmul.mubr.bf16.gmra.mrb[0].mxu0 %v5256
    %v5292 = vpop.f32.mrb[0].mxu0
    %v5293 = vadd.f32 0.0, %v5292
    %v5294 = vpop.f32.mrb[0].mxu0
    %v5295 = vpop.f32.mrb[0].mxu0
    %v5296 = vadd.f32 0.0, %v5295
    %v5297 = vpop.f32.mrb[0].mxu0
    %5298 = vdwg.mxu0
    %v5300 = vsel %vm4634, %v5025, 0
    %5302 = vmatprep.subr.bf16.mxu0 0
    %5303 = vmatpush1.bf16.msra.mxu0 %v3783
    %5304 = vmatprep.subr.bf16.mxu0 0
    %5305 = vmatpush1.bf16.msra.mxu0 0
    %5306 = vmatprep.subr.bf16.mxu0 0
    %5307 = vmatpush1.bf16.msra.mxu0 0
    %5308 = vmatprep.subr.bf16.mxu0 0
    %5309 = vmatpush1.bf16.msra.mxu0 0
    %5310 = vmatprep.subr.bf16.mxu0 0
    %5311 = vmatpush1.bf16.msra.mxu0 0
    %5312 = vmatprep.subr.bf16.mxu0 0
    %5313 = vmatpush1.bf16.msra.mxu0 0
    %5314 = vmatprep.subr.bf16.mxu0 0
    %5315 = vmatpush1.bf16.msra.mxu0 0
    %5316 = vmatprep.subr.bf16.mxu0 0
    %5317 = vmatpush1.bf16.msra.mxu0 0
    %5318 = vmatprep.subr.bf16.mxu0 0
    %5319 = vmatpush1.bf16.msra.mxu0 0
    %5320 = vmatprep.subr.bf16.mxu0 0
    %5321 = vmatpush1.bf16.msra.mxu0 0
    %5322 = vmatprep.subr.bf16.mxu0 0
    %5323 = vmatpush1.bf16.msra.mxu0 0
    %5324 = vmatprep.subr.bf16.mxu0 0
    %5325 = vmatpush1.bf16.msra.mxu0 0
    %5326 = vmatprep.subr.bf16.mxu0 0
    %5327 = vmatpush1.bf16.msra.mxu0 0
    %5328 = vmatprep.subr.bf16.mxu0 0
    %5329 = vmatpush1.bf16.msra.mxu0 0
    %5330 = vmatprep.subr.bf16.mxu0 0
    %5331 = vmatpush1.bf16.msra.mxu0 0
    %5332 = vmatprep.subr.bf16.mxu0 0
    %5333 = vmatpush1.bf16.msra.mxu0 0
    %5334 = vmatprep.mubr.bf16.mxu0 0
    %5335 = vmatmul.mubr.bf16.gmra.mrb[0].mxu0 %v5300
    %v5336 = vpop.f32.mrb[0].mxu0
    %v5337 = vadd.f32 0.0, %v5336
    %v5338 = vpop.f32.mrb[0].mxu0
    %v5339 = vpop.f32.mrb[0].mxu0
    %v5340 = vadd.f32 0.0, %v5339
    %v5341 = vpop.f32.mrb[0].mxu0
    %5342 = vdwg.mxu0
    %v5344 = vsel %vm4634, %v5026, 0
    %5346 = vmatprep.subr.bf16.mxu0 0
    %5347 = vmatpush1.bf16.msra.mxu0 %v3784
    %5348 = vmatprep.subr.bf16.mxu0 0
    %5349 = vmatpush1.bf16.msra.mxu0 0
    %5350 = vmatprep.subr.bf16.mxu0 0
    %5351 = vmatpush1.bf16.msra.mxu0 0
    %5352 = vmatprep.subr.bf16.mxu0 0
    %5353 = vmatpush1.bf16.msra.mxu0 0
    %5354 = vmatprep.subr.bf16.mxu0 0
    %5355 = vmatpush1.bf16.msra.mxu0 0
    %5356 = vmatprep.subr.bf16.mxu0 0
    %5357 = vmatpush1.bf16.msra.mxu0 0
    %5358 = vmatprep.subr.bf16.mxu0 0
    %5359 = vmatpush1.bf16.msra.mxu0 0
    %5360 = vmatprep.subr.bf16.mxu0 0
    %5361 = vmatpush1.bf16.msra.mxu0 0
    %5362 = vmatprep.subr.bf16.mxu0 0
    %5363 = vmatpush1.bf16.msra.mxu0 0
    %5364 = vmatprep.subr.bf16.mxu0 0
    %5365 = vmatpush1.bf16.msra.mxu0 0
    %5366 = vmatprep.subr.bf16.mxu0 0
    %5367 = vmatpush1.bf16.msra.mxu0 0
    %5368 = vmatprep.subr.bf16.mxu0 0
    %5369 = vmatpush1.bf16.msra.mxu0 0
    %5370 = vmatprep.subr.bf16.mxu0 0
    %5371 = vmatpush1.bf16.msra.mxu0 0
    %5372 = vmatprep.subr.bf16.mxu0 0
    %5373 = vmatpush1.bf16.msra.mxu0 0
    %5374 = vmatprep.subr.bf16.mxu0 0
    %5375 = vmatpush1.bf16.msra.mxu0 0
    %5376 = vmatprep.subr.bf16.mxu0 0
    %5377 = vmatpush1.bf16.msra.mxu0 0
    %5378 = vmatprep.mubr.bf16.mxu0 0
    %5379 = vmatmul.mubr.bf16.gmra.mrb[0].mxu0 %v5344
    %v5380 = vpop.f32.mrb[0].mxu0
    %v5381 = vadd.f32 0.0, %v5380
    %v5382 = vpop.f32.mrb[0].mxu0
    %v5383 = vpop.f32.mrb[0].mxu0
    %v5384 = vadd.f32 0.0, %v5383
    %v5385 = vpop.f32.mrb[0].mxu0
    %5386 = vdwg.mxu0
    %v5388 = vsel %vm4634, %v5027, 0
    %5390 = vmatprep.subr.bf16.mxu0 0
    %5391 = vmatpush1.bf16.msra.mxu0 %v3785
    %5392 = vmatprep.subr.bf16.mxu0 0
    %5393 = vmatpush1.bf16.msra.mxu0 0
    %5394 = vmatprep.subr.bf16.mxu0 0
    %5395 = vmatpush1.bf16.msra.mxu0 0
    %5396 = vmatprep.subr.bf16.mxu0 0
    %5397 = vmatpush1.bf16.msra.mxu0 0
    %5398 = vmatprep.subr.bf16.mxu0 0
    %5399 = vmatpush1.bf16.msra.mxu0 0
    %5400 = vmatprep.subr.bf16.mxu0 0
    %5401 = vmatpush1.bf16.msra.mxu0 0
    %5402 = vmatprep.subr.bf16.mxu0 0
    %5403 = vmatpush1.bf16.msra.mxu0 0
    %5404 = vmatprep.subr.bf16.mxu0 0
    %5405 = vmatpush1.bf16.msra.mxu0 0
    %5406 = vmatprep.subr.bf16.mxu0 0
    %5407 = vmatpush1.bf16.msra.mxu0 0
    %5408 = vmatprep.subr.bf16.mxu0 0
    %5409 = vmatpush1.bf16.msra.mxu0 0
    %5410 = vmatprep.subr.bf16.mxu0 0
    %5411 = vmatpush1.bf16.msra.mxu0 0
    %5412 = vmatprep.subr.bf16.mxu0 0
    %5413 = vmatpush1.bf16.msra.mxu0 0
    %5414 = vmatprep.subr.bf16.mxu0 0
    %5415 = vmatpush1.bf16.msra.mxu0 0
    %5416 = vmatprep.subr.bf16.mxu0 0
    %5417 = vmatpush1.bf16.msra.mxu0 0
    %5418 = vmatprep.subr.bf16.mxu0 0
    %5419 = vmatpush1.bf16.msra.mxu0 0
    %5420 = vmatprep.subr.bf16.mxu0 0
    %5421 = vmatpush1.bf16.msra.mxu0 0
    %5422 = vmatprep.mubr.bf16.mxu0 0
    %5423 = vmatmul.mubr.bf16.gmra.mrb[0].mxu0 %v5388
    %v5424 = vpop.f32.mrb[0].mxu0
    %v5425 = vadd.f32 0.0, %v5424
    %v5426 = vpop.f32.mrb[0].mxu0
    %v5427 = vpop.f32.mrb[0].mxu0
    %v5428 = vadd.f32 0.0, %v5427
    %v5429 = vpop.f32.mrb[0].mxu0
    %5430 = vdwg.mxu0
    %v5432 = vsel %vm4634, %v5028, 0
    %5434 = vmatprep.subr.bf16.mxu0 0
    %5435 = vmatpush1.bf16.msra.mxu0 %v3786
    %5436 = vmatprep.subr.bf16.mxu0 0
    %5437 = vmatpush1.bf16.msra.mxu0 0
    %5438 = vmatprep.subr.bf16.mxu0 0
    %5439 = vmatpush1.bf16.msra.mxu0 0
    %5440 = vmatprep.subr.bf16.mxu0 0
    %5441 = vmatpush1.bf16.msra.mxu0 0
    %5442 = vmatprep.subr.bf16.mxu0 0
    %5443 = vmatpush1.bf16.msra.mxu0 0
    %5444 = vmatprep.subr.bf16.mxu0 0
    %5445 = vmatpush1.bf16.msra.mxu0 0
    %5446 = vmatprep.subr.bf16.mxu0 0
    %5447 = vmatpush1.bf16.msra.mxu0 0
    %5448 = vmatprep.subr.bf16.mxu0 0
    %5449 = vmatpush1.bf16.msra.mxu0 0
    %5450 = vmatprep.subr.bf16.mxu0 0
    %5451 = vmatpush1.bf16.msra.mxu0 0
    %5452 = vmatprep.subr.bf16.mxu0 0
    %5453 = vmatpush1.bf16.msra.mxu0 0
    %5454 = vmatprep.subr.bf16.mxu0 0
    %5455 = vmatpush1.bf16.msra.mxu0 0
    %5456 = vmatprep.subr.bf16.mxu0 0
    %5457 = vmatpush1.bf16.msra.mxu0 0
    %5458 = vmatprep.subr.bf16.mxu0 0
    %5459 = vmatpush1.bf16.msra.mxu0 0
    %5460 = vmatprep.subr.bf16.mxu0 0
    %5461 = vmatpush1.bf16.msra.mxu0 0
    %5462 = vmatprep.subr.bf16.mxu0 0
    %5463 = vmatpush1.bf16.msra.mxu0 0
    %5464 = vmatprep.subr.bf16.mxu0 0
    %5465 = vmatpush1.bf16.msra.mxu0 0
    %5466 = vmatprep.mubr.bf16.mxu0 0
    %5467 = vmatmul.mubr.bf16.gmra.mrb[0].mxu0 %v5432
    %v5468 = vpop.f32.mrb[0].mxu0
    %v5469 = vadd.f32 0.0, %v5468
    %v5470 = vpop.f32.mrb[0].mxu0
    %v5471 = vpop.f32.mrb[0].mxu0
    %v5472 = vadd.f32 0.0, %v5471
    %v5473 = vpop.f32.mrb[0].mxu0
    %5474 = vdwg.mxu0
    %v5476 = vsel %vm4634, %v5029, 0
    %5478 = vmatprep.subr.bf16.mxu0 0
    %5479 = vmatpush1.bf16.msra.mxu0 %v3787
    %5480 = vmatprep.subr.bf16.mxu0 0
    %5481 = vmatpush1.bf16.msra.mxu0 0
    %5482 = vmatprep.subr.bf16.mxu0 0
    %5483 = vmatpush1.bf16.msra.mxu0 0
    %5484 = vmatprep.subr.bf16.mxu0 0
    %5485 = vmatpush1.bf16.msra.mxu0 0
    %5486 = vmatprep.subr.bf16.mxu0 0
    %5487 = vmatpush1.bf16.msra.mxu0 0
    %5488 = vmatprep.subr.bf16.mxu0 0
    %5489 = vmatpush1.bf16.msra.mxu0 0
    %5490 = vmatprep.subr.bf16.mxu0 0
    %5491 = vmatpush1.bf16.msra.mxu0 0
    %5492 = vmatprep.subr.bf16.mxu0 0
    %5493 = vmatpush1.bf16.msra.mxu0 0
    %5494 = vmatprep.subr.bf16.mxu0 0
    %5495 = vmatpush1.bf16.msra.mxu0 0
    %5496 = vmatprep.subr.bf16.mxu0 0
    %5497 = vmatpush1.bf16.msra.mxu0 0
    %5498 = vmatprep.subr.bf16.mxu0 0
    %5499 = vmatpush1.bf16.msra.mxu0 0
    %5500 = vmatprep.subr.bf16.mxu0 0
    %5501 = vmatpush1.bf16.msra.mxu0 0
    %5502 = vmatprep.subr.bf16.mxu0 0
    %5503 = vmatpush1.bf16.msra.mxu0 0
    %5504 = vmatprep.subr.bf16.mxu0 0
    %5505 = vmatpush1.bf16.msra.mxu0 0
    %5506 = vmatprep.subr.bf16.mxu0 0
    %5507 = vmatpush1.bf16.msra.mxu0 0
    %5508 = vmatprep.subr.bf16.mxu0 0
    %5509 = vmatpush1.bf16.msra.mxu0 0
    %5510 = vmatprep.mubr.bf16.mxu0 0
    %5511 = vmatmul.mubr.bf16.gmra.mrb[0].mxu0 %v5476
    %v5512 = vpop.f32.mrb[0].mxu0
    %v5513 = vadd.f32 0.0, %v5512
    %v5514 = vpop.f32.mrb[0].mxu0
    %v5515 = vpop.f32.mrb[0].mxu0
    %v5516 = vadd.f32 0.0, %v5515
    %v5517 = vpop.f32.mrb[0].mxu0
    %5518 = vdwg.mxu0
    %v5520 = vsel %vm4634, %v5030, 0
    %5522 = vmatprep.subr.bf16.mxu0 0
    %5523 = vmatpush1.bf16.msra.mxu0 %v3788
    %5524 = vmatprep.subr.bf16.mxu0 0
    %5525 = vmatpush1.bf16.msra.mxu0 0
    %5526 = vmatprep.subr.bf16.mxu0 0
    %5527 = vmatpush1.bf16.msra.mxu0 0
    %5528 = vmatprep.subr.bf16.mxu0 0
    %5529 = vmatpush1.bf16.msra.mxu0 0
    %5530 = vmatprep.subr.bf16.mxu0 0
    %5531 = vmatpush1.bf16.msra.mxu0 0
    %5532 = vmatprep.subr.bf16.mxu0 0
    %5533 = vmatpush1.bf16.msra.mxu0 0
    %5534 = vmatprep.subr.bf16.mxu0 0
    %5535 = vmatpush1.bf16.msra.mxu0 0
    %5536 = vmatprep.subr.bf16.mxu0 0
    %5537 = vmatpush1.bf16.msra.mxu0 0
    %5538 = vmatprep.subr.bf16.mxu0 0
    %5539 = vmatpush1.bf16.msra.mxu0 0
    %5540 = vmatprep.subr.bf16.mxu0 0
    %5541 = vmatpush1.bf16.msra.mxu0 0
    %5542 = vmatprep.subr.bf16.mxu0 0
    %5543 = vmatpush1.bf16.msra.mxu0 0
    %5544 = vmatprep.subr.bf16.mxu0 0
    %5545 = vmatpush1.bf16.msra.mxu0 0
    %5546 = vmatprep.subr.bf16.mxu0 0
    %5547 = vmatpush1.bf16.msra.mxu0 0
    %5548 = vmatprep.subr.bf16.mxu0 0
    %5549 = vmatpush1.bf16.msra.mxu0 0
    %5550 = vmatprep.subr.bf16.mxu0 0
    %5551 = vmatpush1.bf16.msra.mxu0 0
    %5552 = vmatprep.subr.bf16.mxu0 0
    %5553 = vmatpush1.bf16.msra.mxu0 0
    %5554 = vmatprep.mubr.bf16.mxu0 0
    %5555 = vmatmul.mubr.bf16.gmra.mrb[0].mxu0 %v5520
    %v5556 = vpop.f32.mrb[0].mxu0
    %v5557 = vadd.f32 0.0, %v5556
    %v5558 = vpop.f32.mrb[0].mxu0
    %v5559 = vpop.f32.mrb[0].mxu0
    %v5560 = vadd.f32 0.0, %v5559
    %v5561 = vpop.f32.mrb[0].mxu0
    %5562 = vdwg.mxu0
    %v5564 = vsel %vm4634, %v5031, 0
    %5566 = vmatprep.subr.bf16.mxu0 0
    %5567 = vmatpush1.bf16.msra.mxu0 %v3789
    %5568 = vmatprep.subr.bf16.mxu0 0
    %5569 = vmatpush1.bf16.msra.mxu0 0
    %5570 = vmatprep.subr.bf16.mxu0 0
    %5571 = vmatpush1.bf16.msra.mxu0 0
    %5572 = vmatprep.subr.bf16.mxu0 0
    %5573 = vmatpush1.bf16.msra.mxu0 0
    %5574 = vmatprep.subr.bf16.mxu0 0
    %5575 = vmatpush1.bf16.msra.mxu0 0
    %5576 = vmatprep.subr.bf16.mxu0 0
    %5577 = vmatpush1.bf16.msra.mxu0 0
    %5578 = vmatprep.subr.bf16.mxu0 0
    %5579 = vmatpush1.bf16.msra.mxu0 0
    %5580 = vmatprep.subr.bf16.mxu0 0
    %5581 = vmatpush1.bf16.msra.mxu0 0
    %5582 = vmatprep.subr.bf16.mxu0 0
    %5583 = vmatpush1.bf16.msra.mxu0 0
    %5584 = vmatprep.subr.bf16.mxu0 0
    %5585 = vmatpush1.bf16.msra.mxu0 0
    %5586 = vmatprep.subr.bf16.mxu0 0
    %5587 = vmatpush1.bf16.msra.mxu0 0
    %5588 = vmatprep.subr.bf16.mxu0 0
    %5589 = vmatpush1.bf16.msra.mxu0 0
    %5590 = vmatprep.subr.bf16.mxu0 0
    %5591 = vmatpush1.bf16.msra.mxu0 0
    %5592 = vmatprep.subr.bf16.mxu0 0
    %5593 = vmatpush1.bf16.msra.mxu0 0
    %5594 = vmatprep.subr.bf16.mxu0 0
    %5595 = vmatpush1.bf16.msra.mxu0 0
    %5596 = vmatprep.subr.bf16.mxu0 0
    %5597 = vmatpush1.bf16.msra.mxu0 0
    %5598 = vmatprep.mubr.bf16.mxu0 0
    %5599 = vmatmul.mubr.bf16.gmra.mrb[0].mxu0 %v5564
    %v5600 = vpop.f32.mrb[0].mxu0
    %v5601 = vadd.f32 0.0, %v5600
    %v5602 = vpop.f32.mrb[0].mxu0
    %v5603 = vpop.f32.mrb[0].mxu0
    %v5604 = vadd.f32 0.0, %v5603
    %v5605 = vpop.f32.mrb[0].mxu0
    %5606 = vdwg.mxu0
    %v5608 = vsel %vm4634, %v5032, 0
    %5610 = vmatprep.subr.bf16.mxu0 0
    %5611 = vmatpush1.bf16.msra.mxu0 %v3790
    %5612 = vmatprep.subr.bf16.mxu0 0
    %5613 = vmatpush1.bf16.msra.mxu0 0
    %5614 = vmatprep.subr.bf16.mxu0 0
    %5615 = vmatpush1.bf16.msra.mxu0 0
    %5616 = vmatprep.subr.bf16.mxu0 0
    %5617 = vmatpush1.bf16.msra.mxu0 0
    %5618 = vmatprep.subr.bf16.mxu0 0
    %5619 = vmatpush1.bf16.msra.mxu0 0
    %5620 = vmatprep.subr.bf16.mxu0 0
    %5621 = vmatpush1.bf16.msra.mxu0 0
    %5622 = vmatprep.subr.bf16.mxu0 0
    %5623 = vmatpush1.bf16.msra.mxu0 0
    %5624 = vmatprep.subr.bf16.mxu0 0
    %5625 = vmatpush1.bf16.msra.mxu0 0
    %5626 = vmatprep.subr.bf16.mxu0 0
    %5627 = vmatpush1.bf16.msra.mxu0 0
    %5628 = vmatprep.subr.bf16.mxu0 0
    %5629 = vmatpush1.bf16.msra.mxu0 0
    %5630 = vmatprep.subr.bf16.mxu0 0
    %5631 = vmatpush1.bf16.msra.mxu0 0
    %5632 = vmatprep.subr.bf16.mxu0 0
    %5633 = vmatpush1.bf16.msra.mxu0 0
    %5634 = vmatprep.subr.bf16.mxu0 0
    %5635 = vmatpush1.bf16.msra.mxu0 0
    %5636 = vmatprep.subr.bf16.mxu0 0
    %5637 = vmatpush1.bf16.msra.mxu0 0
    %5638 = vmatprep.subr.bf16.mxu0 0
    %5639 = vmatpush1.bf16.msra.mxu0 0
    %5640 = vmatprep.subr.bf16.mxu0 0
    %5641 = vmatpush1.bf16.msra.mxu0 0
    %5642 = vmatprep.mubr.bf16.mxu0 0
    %5643 = vmatmul.mubr.bf16.gmra.mrb[0].mxu0 %v5608
    %v5644 = vpop.f32.mrb[0].mxu0
    %v5645 = vadd.f32 0.0, %v5644
    %v5646 = vpop.f32.mrb[0].mxu0
    %v5647 = vpop.f32.mrb[0].mxu0
    %v5648 = vadd.f32 0.0, %v5647
    %v5649 = vpop.f32.mrb[0].mxu0
    %5650 = vdwg.mxu0
    %v5652 = vsel %vm4634, %v5033, 0
    %5654 = vmatprep.subr.bf16.mxu0 0
    %5655 = vmatpush1.bf16.msra.mxu0 %v3791
    %5656 = vmatprep.subr.bf16.mxu0 0
    %5657 = vmatpush1.bf16.msra.mxu0 0
    %5658 = vmatprep.subr.bf16.mxu0 0
    %5659 = vmatpush1.bf16.msra.mxu0 0
    %5660 = vmatprep.subr.bf16.mxu0 0
    %5661 = vmatpush1.bf16.msra.mxu0 0
    %5662 = vmatprep.subr.bf16.mxu0 0
    %5663 = vmatpush1.bf16.msra.mxu0 0
    %5664 = vmatprep.subr.bf16.mxu0 0
    %5665 = vmatpush1.bf16.msra.mxu0 0
    %5666 = vmatprep.subr.bf16.mxu0 0
    %5667 = vmatpush1.bf16.msra.mxu0 0
    %5668 = vmatprep.subr.bf16.mxu0 0
    %5669 = vmatpush1.bf16.msra.mxu0 0
    %5670 = vmatprep.subr.bf16.mxu0 0
    %5671 = vmatpush1.bf16.msra.mxu0 0
    %5672 = vmatprep.subr.bf16.mxu0 0
    %5673 = vmatpush1.bf16.msra.mxu0 0
    %5674 = vmatprep.subr.bf16.mxu0 0
    %5675 = vmatpush1.bf16.msra.mxu0 0
    %5676 = vmatprep.subr.bf16.mxu0 0
    %5677 = vmatpush1.bf16.msra.mxu0 0
    %5678 = vmatprep.subr.bf16.mxu0 0
    %5679 = vmatpush1.bf16.msra.mxu0 0
    %5680 = vmatprep.subr.bf16.mxu0 0
    %5681 = vmatpush1.bf16.msra.mxu0 0
    %5682 = vmatprep.subr.bf16.mxu0 0
    %5683 = vmatpush1.bf16.msra.mxu0 0
    %5684 = vmatprep.subr.bf16.mxu0 0
    %5685 = vmatpush1.bf16.msra.mxu0 0
    %5686 = vmatprep.mubr.bf16.mxu0 0
    %5687 = vmatmul.mubr.bf16.gmra.mrb[0].mxu0 %v5652
    %v5688 = vpop.f32.mrb[0].mxu0
    %v5689 = vadd.f32 0.0, %v5688
    %v5690 = vpop.f32.mrb[0].mxu0
    %v5691 = vpop.f32.mrb[0].mxu0
    %v5692 = vadd.f32 0.0, %v5691
    %v5693 = vpop.f32.mrb[0].mxu0
    %5694 = vdwg.mxu0
    %v5696 = vsel %vm4634, %v5034, 0
    %5698 = vmatprep.subr.bf16.mxu0 0
    %5699 = vmatpush1.bf16.msra.mxu0 %v3792
    %5700 = vmatprep.subr.bf16.mxu0 0
    %5701 = vmatpush1.bf16.msra.mxu0 0
    %5702 = vmatprep.subr.bf16.mxu0 0
    %5703 = vmatpush1.bf16.msra.mxu0 0
    %5704 = vmatprep.subr.bf16.mxu0 0
    %5705 = vmatpush1.bf16.msra.mxu0 0
    %5706 = vmatprep.subr.bf16.mxu0 0
    %5707 = vmatpush1.bf16.msra.mxu0 0
    %5708 = vmatprep.subr.bf16.mxu0 0
    %5709 = vmatpush1.bf16.msra.mxu0 0
    %5710 = vmatprep.subr.bf16.mxu0 0
    %5711 = vmatpush1.bf16.msra.mxu0 0
    %5712 = vmatprep.subr.bf16.mxu0 0
    %5713 = vmatpush1.bf16.msra.mxu0 0
    %5714 = vmatprep.subr.bf16.mxu0 0
    %5715 = vmatpush1.bf16.msra.mxu0 0
    %5716 = vmatprep.subr.bf16.mxu0 0
    %5717 = vmatpush1.bf16.msra.mxu0 0
    %5718 = vmatprep.subr.bf16.mxu0 0
    %5719 = vmatpush1.bf16.msra.mxu0 0
    %5720 = vmatprep.subr.bf16.mxu0 0
    %5721 = vmatpush1.bf16.msra.mxu0 0
    %5722 = vmatprep.subr.bf16.mxu0 0
    %5723 = vmatpush1.bf16.msra.mxu0 0
    %5724 = vmatprep.subr.bf16.mxu0 0
    %5725 = vmatpush1.bf16.msra.mxu0 0
    %5726 = vmatprep.subr.bf16.mxu0 0
    %5727 = vmatpush1.bf16.msra.mxu0 0
    %5728 = vmatprep.subr.bf16.mxu0 0
    %5729 = vmatpush1.bf16.msra.mxu0 0
    %5730 = vmatprep.mubr.bf16.mxu0 0
    %5731 = vmatmul.mubr.bf16.gmra.mrb[0].mxu0 %v5696
    %v5732 = vpop.f32.mrb[0].mxu0
    %v5733 = vadd.f32 0.0, %v5732
    %v5734 = vpop.f32.mrb[0].mxu0
    %v5735 = vpop.f32.mrb[0].mxu0
    %v5736 = vadd.f32 0.0, %v5735
    %v5737 = vpop.f32.mrb[0].mxu0
    %5738 = vdwg.mxu0
    %v5739 = vcombine.low %v5073, %v5161
    %v5740 = vcombine.high %v5073, %v5161
    %v5742 = vunpack.c.l.s4 1983009808
    %v5743 = vunpack.c.0.s8 %v5742
    %v5744 = vlaneseq
    %v5745 = vshrl.u32 %v5744, 7
    %v5746 = vsub.s32 %v5743, %v5745
    %v5747 = vrot.slane %v5739, %v5746
    %v5749 = vunpack.c.l.s4 1983009808
    %v5750 = vunpack.c.0.s8 %v5749
    %v5751 = vlaneseq
    %v5752 = vshrl.u32 %v5751, 7
    %v5753 = vsub.s32 %v5750, %v5752
    %v5754 = vrot.slane %v5740, %v5753
    %v5755 = vcombine.low %v5117, %v5205
    %v5756 = vcombine.high %v5117, %v5205
    %v5758 = vunpack.c.l.s4 1983009808
    %v5759 = vunpack.c.0.s8 %v5758
    %v5760 = vlaneseq
    %v5761 = vshrl.u32 %v5760, 7
    %v5762 = vsub.s32 %v5759, %v5761
    %v5763 = vrot.slane %v5755, %v5762
    %v5765 = vunpack.c.l.s4 1983009808
    %v5766 = vunpack.c.0.s8 %v5765
    %v5767 = vlaneseq
    %v5768 = vshrl.u32 %v5767, 7
    %v5769 = vsub.s32 %v5766, %v5768
    %v5770 = vrot.slane %v5756, %v5769
    %v5771 = vcombine.low %v5747, %v5763
    %v5772 = vcombine.high %v5747, %v5763
    %v5774 = vunpack.c.l.s4 1934713408
    %v5775 = vunpack.c.0.s8 %v5774
    %v5776 = vlaneseq
    %v5777 = vshrl.u32 %v5776, 7
    %v5778 = vsub.s32 %v5775, %v5777
    %v5779 = vrot.slane %v5771, %v5778
    %v5781 = vunpack.c.l.s4 1934713408
    %v5782 = vunpack.c.0.s8 %v5781
    %v5783 = vlaneseq
    %v5784 = vshrl.u32 %v5783, 7
    %v5785 = vsub.s32 %v5782, %v5784
    %v5786 = vrot.slane %v5772, %v5785
    %v5787 = vcombine.low %v5754, %v5770
    %v5788 = vcombine.high %v5754, %v5770
    %v5790 = vunpack.c.l.s4 1934713408
    %v5791 = vunpack.c.0.s8 %v5790
    %v5792 = vlaneseq
    %v5793 = vshrl.u32 %v5792, 7
    %v5794 = vsub.s32 %v5791, %v5793
    %v5795 = vrot.slane %v5787, %v5794
    %v5797 = vunpack.c.l.s4 1934713408
    %v5798 = vunpack.c.0.s8 %v5797
    %v5799 = vlaneseq
    %v5800 = vshrl.u32 %v5799, 7
    %v5801 = vsub.s32 %v5798, %v5800
    %v5802 = vrot.slane %v5788, %v5801
    %v5803 = vcombine.high %v5779, 0.0
    %v5804 = vcombine.high %v5786, 0.0
    %v5805 = vcombine.high %v5795, 0.0
    %v5806 = vcombine.high %v5802, 0.0
    %v5807 = vcombine.low %v5076, %v5164
    %v5808 = vcombine.high %v5076, %v5164
    %v5810 = vunpack.c.l.s4 1983009808
    %v5811 = vunpack.c.0.s8 %v5810
    %v5812 = vlaneseq
    %v5813 = vshrl.u32 %v5812, 7
    %v5814 = vsub.s32 %v5811, %v5813
    %v5815 = vrot.slane %v5807, %v5814
    %v5817 = vunpack.c.l.s4 1983009808
    %v5818 = vunpack.c.0.s8 %v5817
    %v5819 = vlaneseq
    %v5820 = vshrl.u32 %v5819, 7
    %v5821 = vsub.s32 %v5818, %v5820
    %v5822 = vrot.slane %v5808, %v5821
    %v5823 = vcombine.low %v5120, %v5208
    %v5824 = vcombine.high %v5120, %v5208
    %v5826 = vunpack.c.l.s4 1983009808
    %v5827 = vunpack.c.0.s8 %v5826
    %v5828 = vlaneseq
    %v5829 = vshrl.u32 %v5828, 7
    %v5830 = vsub.s32 %v5827, %v5829
    %v5831 = vrot.slane %v5823, %v5830
    %v5833 = vunpack.c.l.s4 1983009808
    %v5834 = vunpack.c.0.s8 %v5833
    %v5835 = vlaneseq
    %v5836 = vshrl.u32 %v5835, 7
    %v5837 = vsub.s32 %v5834, %v5836
    %v5838 = vrot.slane %v5824, %v5837
    %v5839 = vcombine.low %v5815, %v5831
    %v5840 = vcombine.high %v5815, %v5831
    %v5842 = vunpack.c.l.s4 1934713408
    %v5843 = vunpack.c.0.s8 %v5842
    %v5844 = vlaneseq
    %v5845 = vshrl.u32 %v5844, 7
    %v5846 = vsub.s32 %v5843, %v5845
    %v5847 = vrot.slane %v5839, %v5846
    %v5849 = vunpack.c.l.s4 1934713408
    %v5850 = vunpack.c.0.s8 %v5849
    %v5851 = vlaneseq
    %v5852 = vshrl.u32 %v5851, 7
    %v5853 = vsub.s32 %v5850, %v5852
    %v5854 = vrot.slane %v5840, %v5853
    %v5855 = vcombine.low %v5822, %v5838
    %v5856 = vcombine.high %v5822, %v5838
    %v5858 = vunpack.c.l.s4 1934713408
    %v5859 = vunpack.c.0.s8 %v5858
    %v5860 = vlaneseq
    %v5861 = vshrl.u32 %v5860, 7
    %v5862 = vsub.s32 %v5859, %v5861
    %v5863 = vrot.slane %v5855, %v5862
    %v5865 = vunpack.c.l.s4 1934713408
    %v5866 = vunpack.c.0.s8 %v5865
    %v5867 = vlaneseq
    %v5868 = vshrl.u32 %v5867, 7
    %v5869 = vsub.s32 %v5866, %v5868
    %v5870 = vrot.slane %v5856, %v5869
    %v5871 = vcombine.high %v5847, 0.0
    %v5872 = vcombine.high %v5854, 0.0
    %v5873 = vcombine.high %v5863, 0.0
    %v5874 = vcombine.high %v5870, 0.0
    %v5875 = vcombine.low %v5249, %v5337
    %v5876 = vcombine.high %v5249, %v5337
    %v5878 = vunpack.c.l.s4 1983009808
    %v5879 = vunpack.c.0.s8 %v5878
    %v5880 = vlaneseq
    %v5881 = vshrl.u32 %v5880, 7
    %v5882 = vsub.s32 %v5879, %v5881
    %v5883 = vrot.slane %v5875, %v5882
    %v5885 = vunpack.c.l.s4 1983009808
    %v5886 = vunpack.c.0.s8 %v5885
    %v5887 = vlaneseq
    %v5888 = vshrl.u32 %v5887, 7
    %v5889 = vsub.s32 %v5886, %v5888
    %v5890 = vrot.slane %v5876, %v5889
    %v5891 = vcombine.low %v5293, %v5381
    %v5892 = vcombine.high %v5293, %v5381
    %v5894 = vunpack.c.l.s4 1983009808
    %v5895 = vunpack.c.0.s8 %v5894
    %v5896 = vlaneseq
    %v5897 = vshrl.u32 %v5896, 7
    %v5898 = vsub.s32 %v5895, %v5897
    %v5899 = vrot.slane %v5891, %v5898
    %v5901 = vunpack.c.l.s4 1983009808
    %v5902 = vunpack.c.0.s8 %v5901
    %v5903 = vlaneseq
    %v5904 = vshrl.u32 %v5903, 7
    %v5905 = vsub.s32 %v5902, %v5904
    %v5906 = vrot.slane %v5892, %v5905
    %v5907 = vcombine.low %v5883, %v5899
    %v5908 = vcombine.high %v5883, %v5899
    %v5910 = vunpack.c.l.s4 1934713408
    %v5911 = vunpack.c.0.s8 %v5910
    %v5912 = vlaneseq
    %v5913 = vshrl.u32 %v5912, 7
    %v5914 = vsub.s32 %v5911, %v5913
    %v5915 = vrot.slane %v5907, %v5914
    %v5917 = vunpack.c.l.s4 1934713408
    %v5918 = vunpack.c.0.s8 %v5917
    %v5919 = vlaneseq
    %v5920 = vshrl.u32 %v5919, 7
    %v5921 = vsub.s32 %v5918, %v5920
    %v5922 = vrot.slane %v5908, %v5921
    %v5923 = vcombine.low %v5890, %v5906
    %v5924 = vcombine.high %v5890, %v5906
    %v5926 = vunpack.c.l.s4 1934713408
    %v5927 = vunpack.c.0.s8 %v5926
    %v5928 = vlaneseq
    %v5929 = vshrl.u32 %v5928, 7
    %v5930 = vsub.s32 %v5927, %v5929
    %v5931 = vrot.slane %v5923, %v5930
    %v5933 = vunpack.c.l.s4 1934713408
    %v5934 = vunpack.c.0.s8 %v5933
    %v5935 = vlaneseq
    %v5936 = vshrl.u32 %v5935, 7
    %v5937 = vsub.s32 %v5934, %v5936
    %v5938 = vrot.slane %v5924, %v5937
    %v5939 = vcombine.high %v5915, 0.0
    %v5940 = vcombine.high %v5922, 0.0
    %v5941 = vcombine.high %v5931, 0.0
    %v5942 = vcombine.high %v5938, 0.0
    %v5943 = vcombine.low %v5252, %v5340
    %v5944 = vcombine.high %v5252, %v5340
    %v5946 = vunpack.c.l.s4 1983009808
    %v5947 = vunpack.c.0.s8 %v5946
    %v5948 = vlaneseq
    %v5949 = vshrl.u32 %v5948, 7
    %v5950 = vsub.s32 %v5947, %v5949
    %v5951 = vrot.slane %v5943, %v5950
    %v5953 = vunpack.c.l.s4 1983009808
    %v5954 = vunpack.c.0.s8 %v5953
    %v5955 = vlaneseq
    %v5956 = vshrl.u32 %v5955, 7
    %v5957 = vsub.s32 %v5954, %v5956
    %v5958 = vrot.slane %v5944, %v5957
    %v5959 = vcombine.low %v5296, %v5384
    %v5960 = vcombine.high %v5296, %v5384
    %v5962 = vunpack.c.l.s4 1983009808
    %v5963 = vunpack.c.0.s8 %v5962
    %v5964 = vlaneseq
    %v5965 = vshrl.u32 %v5964, 7
    %v5966 = vsub.s32 %v5963, %v5965
    %v5967 = vrot.slane %v5959, %v5966
    %v5969 = vunpack.c.l.s4 1983009808
    %v5970 = vunpack.c.0.s8 %v5969
    %v5971 = vlaneseq
    %v5972 = vshrl.u32 %v5971, 7
    %v5973 = vsub.s32 %v5970, %v5972
    %v5974 = vrot.slane %v5960, %v5973
    %v5975 = vcombine.low %v5951, %v5967
    %v5976 = vcombine.high %v5951, %v5967
    %v5978 = vunpack.c.l.s4 1934713408
    %v5979 = vunpack.c.0.s8 %v5978
    %v5980 = vlaneseq
    %v5981 = vshrl.u32 %v5980, 7
    %v5982 = vsub.s32 %v5979, %v5981
    %v5983 = vrot.slane %v5975, %v5982
    %v5985 = vunpack.c.l.s4 1934713408
    %v5986 = vunpack.c.0.s8 %v5985
    %v5987 = vlaneseq
    %v5988 = vshrl.u32 %v5987, 7
    %v5989 = vsub.s32 %v5986, %v5988
    %v5990 = vrot.slane %v5976, %v5989
    %v5991 = vcombine.low %v5958, %v5974
    %v5992 = vcombine.high %v5958, %v5974
    %v5994 = vunpack.c.l.s4 1934713408
    %v5995 = vunpack.c.0.s8 %v5994
    %v5996 = vlaneseq
    %v5997 = vshrl.u32 %v5996, 7
    %v5998 = vsub.s32 %v5995, %v5997
    %v5999 = vrot.slane %v5991, %v5998
    %v6001 = vunpack.c.l.s4 1934713408
    %v6002 = vunpack.c.0.s8 %v6001
    %v6003 = vlaneseq
    %v6004 = vshrl.u32 %v6003, 7
    %v6005 = vsub.s32 %v6002, %v6004
    %v6006 = vrot.slane %v5992, %v6005
    %v6007 = vcombine.high %v5983, 0.0
    %v6008 = vcombine.high %v5990, 0.0
    %v6009 = vcombine.high %v5999, 0.0
    %v6010 = vcombine.high %v6006, 0.0
    %v6011 = vcombine.low %v5425, %v5513
    %v6012 = vcombine.high %v5425, %v5513
    %v6014 = vunpack.c.l.s4 1983009808
    %v6015 = vunpack.c.0.s8 %v6014
    %v6016 = vlaneseq
    %v6017 = vshrl.u32 %v6016, 7
    %v6018 = vsub.s32 %v6015, %v6017
    %v6019 = vrot.slane %v6011, %v6018
    %v6021 = vunpack.c.l.s4 1983009808
    %v6022 = vunpack.c.0.s8 %v6021
    %v6023 = vlaneseq
    %v6024 = vshrl.u32 %v6023, 7
    %v6025 = vsub.s32 %v6022, %v6024
    %v6026 = vrot.slane %v6012, %v6025
    %v6027 = vcombine.low %v5469, %v5557
    %v6028 = vcombine.high %v5469, %v5557
    %v6030 = vunpack.c.l.s4 1983009808
    %v6031 = vunpack.c.0.s8 %v6030
    %v6032 = vlaneseq
    %v6033 = vshrl.u32 %v6032, 7
    %v6034 = vsub.s32 %v6031, %v6033
    %v6035 = vrot.slane %v6027, %v6034
    %v6037 = vunpack.c.l.s4 1983009808
    %v6038 = vunpack.c.0.s8 %v6037
    %v6039 = vlaneseq
    %v6040 = vshrl.u32 %v6039, 7
    %v6041 = vsub.s32 %v6038, %v6040
    %v6042 = vrot.slane %v6028, %v6041
    %v6043 = vcombine.low %v6019, %v6035
    %v6044 = vcombine.high %v6019, %v6035
    %v6046 = vunpack.c.l.s4 1934713408
    %v6047 = vunpack.c.0.s8 %v6046
    %v6048 = vlaneseq
    %v6049 = vshrl.u32 %v6048, 7
    %v6050 = vsub.s32 %v6047, %v6049
    %v6051 = vrot.slane %v6043, %v6050
    %v6053 = vunpack.c.l.s4 1934713408
    %v6054 = vunpack.c.0.s8 %v6053
    %v6055 = vlaneseq
    %v6056 = vshrl.u32 %v6055, 7
    %v6057 = vsub.s32 %v6054, %v6056
    %v6058 = vrot.slane %v6044, %v6057
    %v6059 = vcombine.low %v6026, %v6042
    %v6060 = vcombine.high %v6026, %v6042
    %v6062 = vunpack.c.l.s4 1934713408
    %v6063 = vunpack.c.0.s8 %v6062
    %v6064 = vlaneseq
    %v6065 = vshrl.u32 %v6064, 7
    %v6066 = vsub.s32 %v6063, %v6065
    %v6067 = vrot.slane %v6059, %v6066
    %v6069 = vunpack.c.l.s4 1934713408
    %v6070 = vunpack.c.0.s8 %v6069
    %v6071 = vlaneseq
    %v6072 = vshrl.u32 %v6071, 7
    %v6073 = vsub.s32 %v6070, %v6072
    %v6074 = vrot.slane %v6060, %v6073
    %v6075 = vcombine.high %v6051, 0.0
    %v6076 = vcombine.high %v6058, 0.0
    %v6077 = vcombine.high %v6067, 0.0
    %v6078 = vcombine.high %v6074, 0.0
    %v6079 = vcombine.low %v5428, %v5516
    %v6080 = vcombine.high %v5428, %v5516
    %v6082 = vunpack.c.l.s4 1983009808
    %v6083 = vunpack.c.0.s8 %v6082
    %v6084 = vlaneseq
    %v6085 = vshrl.u32 %v6084, 7
    %v6086 = vsub.s32 %v6083, %v6085
    %v6087 = vrot.slane %v6079, %v6086
    %v6089 = vunpack.c.l.s4 1983009808
    %v6090 = vunpack.c.0.s8 %v6089
    %v6091 = vlaneseq
    %v6092 = vshrl.u32 %v6091, 7
    %v6093 = vsub.s32 %v6090, %v6092
    %v6094 = vrot.slane %v6080, %v6093
    %v6095 = vcombine.low %v5472, %v5560
    %v6096 = vcombine.high %v5472, %v5560
    %v6098 = vunpack.c.l.s4 1983009808
    %v6099 = vunpack.c.0.s8 %v6098
    %v6100 = vlaneseq
    %v6101 = vshrl.u32 %v6100, 7
    %v6102 = vsub.s32 %v6099, %v6101
    %v6103 = vrot.slane %v6095, %v6102
    %v6105 = vunpack.c.l.s4 1983009808
    %v6106 = vunpack.c.0.s8 %v6105
    %v6107 = vlaneseq
    %v6108 = vshrl.u32 %v6107, 7
    %v6109 = vsub.s32 %v6106, %v6108
    %v6110 = vrot.slane %v6096, %v6109
    %v6111 = vcombine.low %v6087, %v6103
    %v6112 = vcombine.high %v6087, %v6103
    %v6114 = vunpack.c.l.s4 1934713408
    %v6115 = vunpack.c.0.s8 %v6114
    %v6116 = vlaneseq
    %v6117 = vshrl.u32 %v6116, 7
    %v6118 = vsub.s32 %v6115, %v6117
    %v6119 = vrot.slane %v6111, %v6118
    %v6121 = vunpack.c.l.s4 1934713408
    %v6122 = vunpack.c.0.s8 %v6121
    %v6123 = vlaneseq
    %v6124 = vshrl.u32 %v6123, 7
    %v6125 = vsub.s32 %v6122, %v6124
    %v6126 = vrot.slane %v6112, %v6125
    %v6127 = vcombine.low %v6094, %v6110
    %v6128 = vcombine.high %v6094, %v6110
    %v6130 = vunpack.c.l.s4 1934713408
    %v6131 = vunpack.c.0.s8 %v6130
    %v6132 = vlaneseq
    %v6133 = vshrl.u32 %v6132, 7
    %v6134 = vsub.s32 %v6131, %v6133
    %v6135 = vrot.slane %v6127, %v6134
    %v6137 = vunpack.c.l.s4 1934713408
    %v6138 = vunpack.c.0.s8 %v6137
    %v6139 = vlaneseq
    %v6140 = vshrl.u32 %v6139, 7
    %v6141 = vsub.s32 %v6138, %v6140
    %v6142 = vrot.slane %v6128, %v6141
    %v6143 = vcombine.high %v6119, 0.0
    %v6144 = vcombine.high %v6126, 0.0
    %v6145 = vcombine.high %v6135, 0.0
    %v6146 = vcombine.high %v6142, 0.0
    %v6147 = vcombine.low %v5601, %v5689
    %v6148 = vcombine.high %v5601, %v5689
    %v6150 = vunpack.c.l.s4 1983009808
    %v6151 = vunpack.c.0.s8 %v6150
    %v6152 = vlaneseq
    %v6153 = vshrl.u32 %v6152, 7
    %v6154 = vsub.s32 %v6151, %v6153
    %v6155 = vrot.slane %v6147, %v6154
    %v6157 = vunpack.c.l.s4 1983009808
    %v6158 = vunpack.c.0.s8 %v6157
    %v6159 = vlaneseq
    %v6160 = vshrl.u32 %v6159, 7
    %v6161 = vsub.s32 %v6158, %v6160
    %v6162 = vrot.slane %v6148, %v6161
    %v6163 = vcombine.low %v5645, %v5733
    %v6164 = vcombine.high %v5645, %v5733
    %v6166 = vunpack.c.l.s4 1983009808
    %v6167 = vunpack.c.0.s8 %v6166
    %v6168 = vlaneseq
    %v6169 = vshrl.u32 %v6168, 7
    %v6170 = vsub.s32 %v6167, %v6169
    %v6171 = vrot.slane %v6163, %v6170
    %v6173 = vunpack.c.l.s4 1983009808
    %v6174 = vunpack.c.0.s8 %v6173
    %v6175 = vlaneseq
    %v6176 = vshrl.u32 %v6175, 7
    %v6177 = vsub.s32 %v6174, %v6176
    %v6178 = vrot.slane %v6164, %v6177
    %v6179 = vcombine.low %v6155, %v6171
    %v6180 = vcombine.high %v6155, %v6171
    %v6182 = vunpack.c.l.s4 1934713408
    %v6183 = vunpack.c.0.s8 %v6182
    %v6184 = vlaneseq
    %v6185 = vshrl.u32 %v6184, 7
    %v6186 = vsub.s32 %v6183, %v6185
    %v6187 = vrot.slane %v6179, %v6186
    %v6189 = vunpack.c.l.s4 1934713408
    %v6190 = vunpack.c.0.s8 %v6189
    %v6191 = vlaneseq
    %v6192 = vshrl.u32 %v6191, 7
    %v6193 = vsub.s32 %v6190, %v6192
    %v6194 = vrot.slane %v6180, %v6193
    %v6195 = vcombine.low %v6162, %v6178
    %v6196 = vcombine.high %v6162, %v6178
    %v6198 = vunpack.c.l.s4 1934713408
    %v6199 = vunpack.c.0.s8 %v6198
    %v6200 = vlaneseq
    %v6201 = vshrl.u32 %v6200, 7
    %v6202 = vsub.s32 %v6199, %v6201
    %v6203 = vrot.slane %v6195, %v6202
    %v6205 = vunpack.c.l.s4 1934713408
    %v6206 = vunpack.c.0.s8 %v6205
    %v6207 = vlaneseq
    %v6208 = vshrl.u32 %v6207, 7
    %v6209 = vsub.s32 %v6206, %v6208
    %v6210 = vrot.slane %v6196, %v6209
    %v6211 = vcombine.high %v6187, 0.0
    %v6212 = vcombine.high %v6194, 0.0
    %v6213 = vcombine.high %v6203, 0.0
    %v6214 = vcombine.high %v6210, 0.0
    %v6215 = vcombine.low %v5604, %v5692
    %v6216 = vcombine.high %v5604, %v5692
    %v6218 = vunpack.c.l.s4 1983009808
    %v6219 = vunpack.c.0.s8 %v6218
    %v6220 = vlaneseq
    %v6221 = vshrl.u32 %v6220, 7
    %v6222 = vsub.s32 %v6219, %v6221
    %v6223 = vrot.slane %v6215, %v6222
    %v6225 = vunpack.c.l.s4 1983009808
    %v6226 = vunpack.c.0.s8 %v6225
    %v6227 = vlaneseq
    %v6228 = vshrl.u32 %v6227, 7
    %v6229 = vsub.s32 %v6226, %v6228
    %v6230 = vrot.slane %v6216, %v6229
    %v6231 = vcombine.low %v5648, %v5736
    %v6232 = vcombine.high %v5648, %v5736
    %v6234 = vunpack.c.l.s4 1983009808
    %v6235 = vunpack.c.0.s8 %v6234
    %v6236 = vlaneseq
    %v6237 = vshrl.u32 %v6236, 7
    %v6238 = vsub.s32 %v6235, %v6237
    %v6239 = vrot.slane %v6231, %v6238
    %v6241 = vunpack.c.l.s4 1983009808
    %v6242 = vunpack.c.0.s8 %v6241
    %v6243 = vlaneseq
    %v6244 = vshrl.u32 %v6243, 7
    %v6245 = vsub.s32 %v6242, %v6244
    %v6246 = vrot.slane %v6232, %v6245
    %v6247 = vcombine.low %v6223, %v6239
    %v6248 = vcombine.high %v6223, %v6239
    %v6250 = vunpack.c.l.s4 1934713408
    %v6251 = vunpack.c.0.s8 %v6250
    %v6252 = vlaneseq
    %v6253 = vshrl.u32 %v6252, 7
    %v6254 = vsub.s32 %v6251, %v6253
    %v6255 = vrot.slane %v6247, %v6254
    %v6257 = vunpack.c.l.s4 1934713408
    %v6258 = vunpack.c.0.s8 %v6257
    %v6259 = vlaneseq
    %v6260 = vshrl.u32 %v6259, 7
    %v6261 = vsub.s32 %v6258, %v6260
    %v6262 = vrot.slane %v6248, %v6261
    %v6263 = vcombine.low %v6230, %v6246
    %v6264 = vcombine.high %v6230, %v6246
    %v6266 = vunpack.c.l.s4 1934713408
    %v6267 = vunpack.c.0.s8 %v6266
    %v6268 = vlaneseq
    %v6269 = vshrl.u32 %v6268, 7
    %v6270 = vsub.s32 %v6267, %v6269
    %v6271 = vrot.slane %v6263, %v6270
    %v6273 = vunpack.c.l.s4 1934713408
    %v6274 = vunpack.c.0.s8 %v6273
    %v6275 = vlaneseq
    %v6276 = vshrl.u32 %v6275, 7
    %v6277 = vsub.s32 %v6274, %v6276
    %v6278 = vrot.slane %v6264, %v6277
    %v6279 = vcombine.high %v6255, 0.0
    %v6280 = vcombine.high %v6262, 0.0
    %v6281 = vcombine.high %v6271, 0.0
    %v6282 = vcombine.high %v6278, 0.0
    %v6283 = vcombine.low %v5779, %v5786
    %v6285 = vunpack.c.l.s4 1983009808
    %v6286 = vunpack.c.0.s8 %v6285
    %v6287 = vlaneseq
    %v6288 = vshrl.u32 %v6287, 7
    %v6289 = vsub.s32 %v6286, %v6288
    %v6290 = vrot.slane %v6283, %v6289
    %v6291 = vcombine.low %v5803, %v5804
    %v6293 = vunpack.c.l.s4 1983009808
    %v6294 = vunpack.c.0.s8 %v6293
    %v6295 = vlaneseq
    %v6296 = vshrl.u32 %v6295, 7
    %v6297 = vsub.s32 %v6294, %v6296
    %v6298 = vrot.slane %v6291, %v6297
    %v6299 = vcombine.low %v5795, %v5802
    %v6301 = vunpack.c.l.s4 1983009808
    %v6302 = vunpack.c.0.s8 %v6301
    %v6303 = vlaneseq
    %v6304 = vshrl.u32 %v6303, 7
    %v6305 = vsub.s32 %v6302, %v6304
    %v6306 = vrot.slane %v6299, %v6305
    %v6307 = vcombine.low %v5805, %v5806
    %v6309 = vunpack.c.l.s4 1983009808
    %v6310 = vunpack.c.0.s8 %v6309
    %v6311 = vlaneseq
    %v6312 = vshrl.u32 %v6311, 7
    %v6313 = vsub.s32 %v6310, %v6312
    %v6314 = vrot.slane %v6307, %v6313
    %v6315 = vcombine.low %v6290, %v6298
    %v6316 = vcombine.high %v6290, %v6298
    %v6318 = vunpack.c.l.s4 1934713408
    %v6319 = vunpack.c.0.s8 %v6318
    %v6320 = vlaneseq
    %v6321 = vshrl.u32 %v6320, 7
    %v6322 = vsub.s32 %v6319, %v6321
    %v6323 = vrot.slane %v6315, %v6322
    %v6325 = vunpack.c.l.s4 1934713408
    %v6326 = vunpack.c.0.s8 %v6325
    %v6327 = vlaneseq
    %v6328 = vshrl.u32 %v6327, 7
    %v6329 = vsub.s32 %v6326, %v6328
    %v6330 = vrot.slane %v6316, %v6329
    %v6331 = vcombine.low %v6306, %v6314
    %v6332 = vcombine.high %v6306, %v6314
    %v6334 = vunpack.c.l.s4 1934713408
    %v6335 = vunpack.c.0.s8 %v6334
    %v6336 = vlaneseq
    %v6337 = vshrl.u32 %v6336, 7
    %v6338 = vsub.s32 %v6335, %v6337
    %v6339 = vrot.slane %v6331, %v6338
    %v6341 = vunpack.c.l.s4 1934713408
    %v6342 = vunpack.c.0.s8 %v6341
    %v6343 = vlaneseq
    %v6344 = vshrl.u32 %v6343, 7
    %v6345 = vsub.s32 %v6342, %v6344
    %v6346 = vrot.slane %v6332, %v6345
    %v6347 = vcombine.low %v6323, %v6339
    %v6348 = vcombine.high %v6323, %v6339
    %v6349 = vcombine.low %v6330, %v6346
    %v6350 = vcombine.high %v6330, %v6346
    %v6351 = vcombine.low %v5847, %v5854
    %v6353 = vunpack.c.l.s4 1983009808
    %v6354 = vunpack.c.0.s8 %v6353
    %v6355 = vlaneseq
    %v6356 = vshrl.u32 %v6355, 7
    %v6357 = vsub.s32 %v6354, %v6356
    %v6358 = vrot.slane %v6351, %v6357
    %v6359 = vcombine.low %v5871, %v5872
    %v6361 = vunpack.c.l.s4 1983009808
    %v6362 = vunpack.c.0.s8 %v6361
    %v6363 = vlaneseq
    %v6364 = vshrl.u32 %v6363, 7
    %v6365 = vsub.s32 %v6362, %v6364
    %v6366 = vrot.slane %v6359, %v6365
    %v6367 = vcombine.low %v5863, %v5870
    %v6369 = vunpack.c.l.s4 1983009808
    %v6370 = vunpack.c.0.s8 %v6369
    %v6371 = vlaneseq
    %v6372 = vshrl.u32 %v6371, 7
    %v6373 = vsub.s32 %v6370, %v6372
    %v6374 = vrot.slane %v6367, %v6373
    %v6375 = vcombine.low %v5873, %v5874
    %v6377 = vunpack.c.l.s4 1983009808
    %v6378 = vunpack.c.0.s8 %v6377
    %v6379 = vlaneseq
    %v6380 = vshrl.u32 %v6379, 7
    %v6381 = vsub.s32 %v6378, %v6380
    %v6382 = vrot.slane %v6375, %v6381
    %v6383 = vcombine.low %v6358, %v6366
    %v6384 = vcombine.high %v6358, %v6366
    %v6386 = vunpack.c.l.s4 1934713408
    %v6387 = vunpack.c.0.s8 %v6386
    %v6388 = vlaneseq
    %v6389 = vshrl.u32 %v6388, 7
    %v6390 = vsub.s32 %v6387, %v6389
    %v6391 = vrot.slane %v6383, %v6390
    %v6393 = vunpack.c.l.s4 1934713408
    %v6394 = vunpack.c.0.s8 %v6393
    %v6395 = vlaneseq
    %v6396 = vshrl.u32 %v6395, 7
    %v6397 = vsub.s32 %v6394, %v6396
    %v6398 = vrot.slane %v6384, %v6397
    %v6399 = vcombine.low %v6374, %v6382
    %v6400 = vcombine.high %v6374, %v6382
    %v6402 = vunpack.c.l.s4 1934713408
    %v6403 = vunpack.c.0.s8 %v6402
    %v6404 = vlaneseq
    %v6405 = vshrl.u32 %v6404, 7
    %v6406 = vsub.s32 %v6403, %v6405
    %v6407 = vrot.slane %v6399, %v6406
    %v6409 = vunpack.c.l.s4 1934713408
    %v6410 = vunpack.c.0.s8 %v6409
    %v6411 = vlaneseq
    %v6412 = vshrl.u32 %v6411, 7
    %v6413 = vsub.s32 %v6410, %v6412
    %v6414 = vrot.slane %v6400, %v6413
    %v6415 = vcombine.low %v6391, %v6407
    %v6416 = vcombine.high %v6391, %v6407
    %v6417 = vcombine.low %v6398, %v6414
    %v6418 = vcombine.high %v6398, %v6414
    %v6419 = vcombine.low %v5915, %v5922
    %v6421 = vunpack.c.l.s4 1983009808
    %v6422 = vunpack.c.0.s8 %v6421
    %v6423 = vlaneseq
    %v6424 = vshrl.u32 %v6423, 7
    %v6425 = vsub.s32 %v6422, %v6424
    %v6426 = vrot.slane %v6419, %v6425
    %v6427 = vcombine.low %v5939, %v5940
    %v6429 = vunpack.c.l.s4 1983009808
    %v6430 = vunpack.c.0.s8 %v6429
    %v6431 = vlaneseq
    %v6432 = vshrl.u32 %v6431, 7
    %v6433 = vsub.s32 %v6430, %v6432
    %v6434 = vrot.slane %v6427, %v6433
    %v6435 = vcombine.low %v5931, %v5938
    %v6437 = vunpack.c.l.s4 1983009808
    %v6438 = vunpack.c.0.s8 %v6437
    %v6439 = vlaneseq
    %v6440 = vshrl.u32 %v6439, 7
    %v6441 = vsub.s32 %v6438, %v6440
    %v6442 = vrot.slane %v6435, %v6441
    %v6443 = vcombine.low %v5941, %v5942
    %v6445 = vunpack.c.l.s4 1983009808
    %v6446 = vunpack.c.0.s8 %v6445
    %v6447 = vlaneseq
    %v6448 = vshrl.u32 %v6447, 7
    %v6449 = vsub.s32 %v6446, %v6448
    %v6450 = vrot.slane %v6443, %v6449
    %v6451 = vcombine.low %v6426, %v6434
    %v6452 = vcombine.high %v6426, %v6434
    %v6454 = vunpack.c.l.s4 1934713408
    %v6455 = vunpack.c.0.s8 %v6454
    %v6456 = vlaneseq
    %v6457 = vshrl.u32 %v6456, 7
    %v6458 = vsub.s32 %v6455, %v6457
    %v6459 = vrot.slane %v6451, %v6458
    %v6461 = vunpack.c.l.s4 1934713408
    %v6462 = vunpack.c.0.s8 %v6461
    %v6463 = vlaneseq
    %v6464 = vshrl.u32 %v6463, 7
    %v6465 = vsub.s32 %v6462, %v6464
    %v6466 = vrot.slane %v6452, %v6465
    %v6467 = vcombine.low %v6442, %v6450
    %v6468 = vcombine.high %v6442, %v6450
    %v6470 = vunpack.c.l.s4 1934713408
    %v6471 = vunpack.c.0.s8 %v6470
    %v6472 = vlaneseq
    %v6473 = vshrl.u32 %v6472, 7
    %v6474 = vsub.s32 %v6471, %v6473
    %v6475 = vrot.slane %v6467, %v6474
    %v6477 = vunpack.c.l.s4 1934713408
    %v6478 = vunpack.c.0.s8 %v6477
    %v6479 = vlaneseq
    %v6480 = vshrl.u32 %v6479, 7
    %v6481 = vsub.s32 %v6478, %v6480
    %v6482 = vrot.slane %v6468, %v6481
    %v6483 = vcombine.low %v6459, %v6475
    %v6484 = vcombine.high %v6459, %v6475
    %v6485 = vcombine.low %v6466, %v6482
    %v6486 = vcombine.high %v6466, %v6482
    %v6487 = vcombine.low %v5983, %v5990
    %v6489 = vunpack.c.l.s4 1983009808
    %v6490 = vunpack.c.0.s8 %v6489
    %v6491 = vlaneseq
    %v6492 = vshrl.u32 %v6491, 7
    %v6493 = vsub.s32 %v6490, %v6492
    %v6494 = vrot.slane %v6487, %v6493
    %v6495 = vcombine.low %v6007, %v6008
    %v6497 = vunpack.c.l.s4 1983009808
    %v6498 = vunpack.c.0.s8 %v6497
    %v6499 = vlaneseq
    %v6500 = vshrl.u32 %v6499, 7
    %v6501 = vsub.s32 %v6498, %v6500
    %v6502 = vrot.slane %v6495, %v6501
    %v6503 = vcombine.low %v5999, %v6006
    %v6505 = vunpack.c.l.s4 1983009808
    %v6506 = vunpack.c.0.s8 %v6505
    %v6507 = vlaneseq
    %v6508 = vshrl.u32 %v6507, 7
    %v6509 = vsub.s32 %v6506, %v6508
    %v6510 = vrot.slane %v6503, %v6509
    %v6511 = vcombine.low %v6009, %v6010
    %v6513 = vunpack.c.l.s4 1983009808
    %v6514 = vunpack.c.0.s8 %v6513
    %v6515 = vlaneseq
    %v6516 = vshrl.u32 %v6515, 7
    %v6517 = vsub.s32 %v6514, %v6516
    %v6518 = vrot.slane %v6511, %v6517
    %v6519 = vcombine.low %v6494, %v6502
    %v6520 = vcombine.high %v6494, %v6502
    %v6522 = vunpack.c.l.s4 1934713408
    %v6523 = vunpack.c.0.s8 %v6522
    %v6524 = vlaneseq
    %v6525 = vshrl.u32 %v6524, 7
    %v6526 = vsub.s32 %v6523, %v6525
    %v6527 = vrot.slane %v6519, %v6526
    %v6529 = vunpack.c.l.s4 1934713408
    %v6530 = vunpack.c.0.s8 %v6529
    %v6531 = vlaneseq
    %v6532 = vshrl.u32 %v6531, 7
    %v6533 = vsub.s32 %v6530, %v6532
    %v6534 = vrot.slane %v6520, %v6533
    %v6535 = vcombine.low %v6510, %v6518
    %v6536 = vcombine.high %v6510, %v6518
    %v6538 = vunpack.c.l.s4 1934713408
    %v6539 = vunpack.c.0.s8 %v6538
    %v6540 = vlaneseq
    %v6541 = vshrl.u32 %v6540, 7
    %v6542 = vsub.s32 %v6539, %v6541
    %v6543 = vrot.slane %v6535, %v6542
    %v6545 = vunpack.c.l.s4 1934713408
    %v6546 = vunpack.c.0.s8 %v6545
    %v6547 = vlaneseq
    %v6548 = vshrl.u32 %v6547, 7
    %v6549 = vsub.s32 %v6546, %v6548
    %v6550 = vrot.slane %v6536, %v6549
    %v6551 = vcombine.low %v6527, %v6543
    %v6552 = vcombine.high %v6527, %v6543
    %v6553 = vcombine.low %v6534, %v6550
    %v6554 = vcombine.high %v6534, %v6550
    %v6555 = vcombine.low %v6051, %v6058
    %v6557 = vunpack.c.l.s4 1983009808
    %v6558 = vunpack.c.0.s8 %v6557
    %v6559 = vlaneseq
    %v6560 = vshrl.u32 %v6559, 7
    %v6561 = vsub.s32 %v6558, %v6560
    %v6562 = vrot.slane %v6555, %v6561
    %v6563 = vcombine.low %v6075, %v6076
    %v6565 = vunpack.c.l.s4 1983009808
    %v6566 = vunpack.c.0.s8 %v6565
    %v6567 = vlaneseq
    %v6568 = vshrl.u32 %v6567, 7
    %v6569 = vsub.s32 %v6566, %v6568
    %v6570 = vrot.slane %v6563, %v6569
    %v6571 = vcombine.low %v6067, %v6074
    %v6573 = vunpack.c.l.s4 1983009808
    %v6574 = vunpack.c.0.s8 %v6573
    %v6575 = vlaneseq
    %v6576 = vshrl.u32 %v6575, 7
    %v6577 = vsub.s32 %v6574, %v6576
    %v6578 = vrot.slane %v6571, %v6577
    %v6579 = vcombine.low %v6077, %v6078
    %v6581 = vunpack.c.l.s4 1983009808
    %v6582 = vunpack.c.0.s8 %v6581
    %v6583 = vlaneseq
    %v6584 = vshrl.u32 %v6583, 7
    %v6585 = vsub.s32 %v6582, %v6584
    %v6586 = vrot.slane %v6579, %v6585
    %v6587 = vcombine.low %v6562, %v6570
    %v6588 = vcombine.high %v6562, %v6570
    %v6590 = vunpack.c.l.s4 1934713408
    %v6591 = vunpack.c.0.s8 %v6590
    %v6592 = vlaneseq
    %v6593 = vshrl.u32 %v6592, 7
    %v6594 = vsub.s32 %v6591, %v6593
    %v6595 = vrot.slane %v6587, %v6594
    %v6597 = vunpack.c.l.s4 1934713408
    %v6598 = vunpack.c.0.s8 %v6597
    %v6599 = vlaneseq
    %v6600 = vshrl.u32 %v6599, 7
    %v6601 = vsub.s32 %v6598, %v6600
    %v6602 = vrot.slane %v6588, %v6601
    %v6603 = vcombine.low %v6578, %v6586
    %v6604 = vcombine.high %v6578, %v6586
    %v6606 = vunpack.c.l.s4 1934713408
    %v6607 = vunpack.c.0.s8 %v6606
    %v6608 = vlaneseq
    %v6609 = vshrl.u32 %v6608, 7
    %v6610 = vsub.s32 %v6607, %v6609
    %v6611 = vrot.slane %v6603, %v6610
    %v6613 = vunpack.c.l.s4 1934713408
    %v6614 = vunpack.c.0.s8 %v6613
    %v6615 = vlaneseq
    %v6616 = vshrl.u32 %v6615, 7
    %v6617 = vsub.s32 %v6614, %v6616
    %v6618 = vrot.slane %v6604, %v6617
    %v6619 = vcombine.low %v6595, %v6611
    %v6620 = vcombine.high %v6595, %v6611
    %v6621 = vcombine.low %v6602, %v6618
    %v6622 = vcombine.high %v6602, %v6618
    %v6623 = vcombine.low %v6119, %v6126
    %v6625 = vunpack.c.l.s4 1983009808
    %v6626 = vunpack.c.0.s8 %v6625
    %v6627 = vlaneseq
    %v6628 = vshrl.u32 %v6627, 7
    %v6629 = vsub.s32 %v6626, %v6628
    %v6630 = vrot.slane %v6623, %v6629
    %v6631 = vcombine.low %v6143, %v6144
    %v6633 = vunpack.c.l.s4 1983009808
    %v6634 = vunpack.c.0.s8 %v6633
    %v6635 = vlaneseq
    %v6636 = vshrl.u32 %v6635, 7
    %v6637 = vsub.s32 %v6634, %v6636
    %v6638 = vrot.slane %v6631, %v6637
    %v6639 = vcombine.low %v6135, %v6142
    %v6641 = vunpack.c.l.s4 1983009808
    %v6642 = vunpack.c.0.s8 %v6641
    %v6643 = vlaneseq
    %v6644 = vshrl.u32 %v6643, 7
    %v6645 = vsub.s32 %v6642, %v6644
    %v6646 = vrot.slane %v6639, %v6645
    %v6647 = vcombine.low %v6145, %v6146
    %v6649 = vunpack.c.l.s4 1983009808
    %v6650 = vunpack.c.0.s8 %v6649
    %v6651 = vlaneseq
    %v6652 = vshrl.u32 %v6651, 7
    %v6653 = vsub.s32 %v6650, %v6652
    %v6654 = vrot.slane %v6647, %v6653
    %v6655 = vcombine.low %v6630, %v6638
    %v6656 = vcombine.high %v6630, %v6638
    %v6658 = vunpack.c.l.s4 1934713408
    %v6659 = vunpack.c.0.s8 %v6658
    %v6660 = vlaneseq
    %v6661 = vshrl.u32 %v6660, 7
    %v6662 = vsub.s32 %v6659, %v6661
    %v6663 = vrot.slane %v6655, %v6662
    %v6665 = vunpack.c.l.s4 1934713408
    %v6666 = vunpack.c.0.s8 %v6665
    %v6667 = vlaneseq
    %v6668 = vshrl.u32 %v6667, 7
    %v6669 = vsub.s32 %v6666, %v6668
    %v6670 = vrot.slane %v6656, %v6669
    %v6671 = vcombine.low %v6646, %v6654
    %v6672 = vcombine.high %v6646, %v6654
    %v6674 = vunpack.c.l.s4 1934713408
    %v6675 = vunpack.c.0.s8 %v6674
    %v6676 = vlaneseq
    %v6677 = vshrl.u32 %v6676, 7
    %v6678 = vsub.s32 %v6675, %v6677
    %v6679 = vrot.slane %v6671, %v6678
    %v6681 = vunpack.c.l.s4 1934713408
    %v6682 = vunpack.c.0.s8 %v6681
    %v6683 = vlaneseq
    %v6684 = vshrl.u32 %v6683, 7
    %v6685 = vsub.s32 %v6682, %v6684
    %v6686 = vrot.slane %v6672, %v6685
    %v6687 = vcombine.low %v6663, %v6679
    %v6688 = vcombine.high %v6663, %v6679
    %v6689 = vcombine.low %v6670, %v6686
    %v6690 = vcombine.high %v6670, %v6686
    %v6691 = vcombine.low %v6187, %v6194
    %v6693 = vunpack.c.l.s4 1983009808
    %v6694 = vunpack.c.0.s8 %v6693
    %v6695 = vlaneseq
    %v6696 = vshrl.u32 %v6695, 7
    %v6697 = vsub.s32 %v6694, %v6696
    %v6698 = vrot.slane %v6691, %v6697
    %v6699 = vcombine.low %v6211, %v6212
    %v6701 = vunpack.c.l.s4 1983009808
    %v6702 = vunpack.c.0.s8 %v6701
    %v6703 = vlaneseq
    %v6704 = vshrl.u32 %v6703, 7
    %v6705 = vsub.s32 %v6702, %v6704
    %v6706 = vrot.slane %v6699, %v6705
    %v6707 = vcombine.low %v6203, %v6210
    %v6709 = vunpack.c.l.s4 1983009808
    %v6710 = vunpack.c.0.s8 %v6709
    %v6711 = vlaneseq
    %v6712 = vshrl.u32 %v6711, 7
    %v6713 = vsub.s32 %v6710, %v6712
    %v6714 = vrot.slane %v6707, %v6713
    %v6715 = vcombine.low %v6213, %v6214
    %v6717 = vunpack.c.l.s4 1983009808
    %v6718 = vunpack.c.0.s8 %v6717
    %v6719 = vlaneseq
    %v6720 = vshrl.u32 %v6719, 7
    %v6721 = vsub.s32 %v6718, %v6720
    %v6722 = vrot.slane %v6715, %v6721
    %v6723 = vcombine.low %v6698, %v6706
    %v6724 = vcombine.high %v6698, %v6706
    %v6726 = vunpack.c.l.s4 1934713408
    %v6727 = vunpack.c.0.s8 %v6726
    %v6728 = vlaneseq
    %v6729 = vshrl.u32 %v6728, 7
    %v6730 = vsub.s32 %v6727, %v6729
    %v6731 = vrot.slane %v6723, %v6730
    %v6733 = vunpack.c.l.s4 1934713408
    %v6734 = vunpack.c.0.s8 %v6733
    %v6735 = vlaneseq
    %v6736 = vshrl.u32 %v6735, 7
    %v6737 = vsub.s32 %v6734, %v6736
    %v6738 = vrot.slane %v6724, %v6737
    %v6739 = vcombine.low %v6714, %v6722
    %v6740 = vcombine.high %v6714, %v6722
    %v6742 = vunpack.c.l.s4 1934713408
    %v6743 = vunpack.c.0.s8 %v6742
    %v6744 = vlaneseq
    %v6745 = vshrl.u32 %v6744, 7
    %v6746 = vsub.s32 %v6743, %v6745
    %v6747 = vrot.slane %v6739, %v6746
    %v6749 = vunpack.c.l.s4 1934713408
    %v6750 = vunpack.c.0.s8 %v6749
    %v6751 = vlaneseq
    %v6752 = vshrl.u32 %v6751, 7
    %v6753 = vsub.s32 %v6750, %v6752
    %v6754 = vrot.slane %v6740, %v6753
    %v6755 = vcombine.low %v6731, %v6747
    %v6756 = vcombine.high %v6731, %v6747
    %v6757 = vcombine.low %v6738, %v6754
    %v6758 = vcombine.high %v6738, %v6754
    %v6759 = vcombine.low %v6255, %v6262
    %v6761 = vunpack.c.l.s4 1983009808
    %v6762 = vunpack.c.0.s8 %v6761
    %v6763 = vlaneseq
    %v6764 = vshrl.u32 %v6763, 7
    %v6765 = vsub.s32 %v6762, %v6764
    %v6766 = vrot.slane %v6759, %v6765
    %v6767 = vcombine.low %v6279, %v6280
    %v6769 = vunpack.c.l.s4 1983009808
    %v6770 = vunpack.c.0.s8 %v6769
    %v6771 = vlaneseq
    %v6772 = vshrl.u32 %v6771, 7
    %v6773 = vsub.s32 %v6770, %v6772
    %v6774 = vrot.slane %v6767, %v6773
    %v6775 = vcombine.low %v6271, %v6278
    %v6777 = vunpack.c.l.s4 1983009808
    %v6778 = vunpack.c.0.s8 %v6777
    %v6779 = vlaneseq
    %v6780 = vshrl.u32 %v6779, 7
    %v6781 = vsub.s32 %v6778, %v6780
    %v6782 = vrot.slane %v6775, %v6781
    %v6783 = vcombine.low %v6281, %v6282
    %v6785 = vunpack.c.l.s4 1983009808
    %v6786 = vunpack.c.0.s8 %v6785
    %v6787 = vlaneseq
    %v6788 = vshrl.u32 %v6787, 7
    %v6789 = vsub.s32 %v6786, %v6788
    %v6790 = vrot.slane %v6783, %v6789
    %v6791 = vcombine.low %v6766, %v6774
    %v6792 = vcombine.high %v6766, %v6774
    %v6794 = vunpack.c.l.s4 1934713408
    %v6795 = vunpack.c.0.s8 %v6794
    %v6796 = vlaneseq
    %v6797 = vshrl.u32 %v6796, 7
    %v6798 = vsub.s32 %v6795, %v6797
    %v6799 = vrot.slane %v6791, %v6798
    %v6801 = vunpack.c.l.s4 1934713408
    %v6802 = vunpack.c.0.s8 %v6801
    %v6803 = vlaneseq
    %v6804 = vshrl.u32 %v6803, 7
    %v6805 = vsub.s32 %v6802, %v6804
    %v6806 = vrot.slane %v6792, %v6805
    %v6807 = vcombine.low %v6782, %v6790
    %v6808 = vcombine.high %v6782, %v6790
    %v6810 = vunpack.c.l.s4 1934713408
    %v6811 = vunpack.c.0.s8 %v6810
    %v6812 = vlaneseq
    %v6813 = vshrl.u32 %v6812, 7
    %v6814 = vsub.s32 %v6811, %v6813
    %v6815 = vrot.slane %v6807, %v6814
    %v6817 = vunpack.c.l.s4 1934713408
    %v6818 = vunpack.c.0.s8 %v6817
    %v6819 = vlaneseq
    %v6820 = vshrl.u32 %v6819, 7
    %v6821 = vsub.s32 %v6818, %v6820
    %v6822 = vrot.slane %v6808, %v6821
    %v6823 = vcombine.low %v6799, %v6815
    %v6824 = vcombine.high %v6799, %v6815
    %v6825 = vcombine.low %v6806, %v6822
    %v6826 = vcombine.high %v6806, %v6822
    %6835 = vrot.lane.b32.xlu0 %v6348, 8
    %v6836 = vpop.permute.xlu0 %6835
    %6837 = vrot.lane.b32.xlu0 %v6416, 8
    %v6838 = vpop.permute.xlu0 %6837
    %6839 = vrot.lane.b32.xlu0 %v6484, 8
    %v6840 = vpop.permute.xlu0 %6839
    %6841 = vrot.lane.b32.xlu0 %v6552, 8
    %v6842 = vpop.permute.xlu0 %6841
    %6843 = vrot.lane.b32.xlu0 %v6620, 8
    %v6844 = vpop.permute.xlu0 %6843
    %6845 = vrot.lane.b32.xlu0 %v6688, 8
    %v6846 = vpop.permute.xlu0 %6845
    %6847 = vrot.lane.b32.xlu0 %v6756, 8
    %v6848 = vpop.permute.xlu0 %6847
    %6849 = vrot.lane.b32.xlu0 %v6824, 8
    %v6850 = vpop.permute.xlu0 %6849
    %6867 = vrot.lane.b32.xlu0 %v6349, 16
    %v6868 = vpop.permute.xlu0 %6867
    %6869 = vrot.lane.b32.xlu0 %v6417, 16
    %v6870 = vpop.permute.xlu0 %6869
    %6871 = vrot.lane.b32.xlu0 %v6485, 16
    %v6872 = vpop.permute.xlu0 %6871
    %6873 = vrot.lane.b32.xlu0 %v6553, 16
    %v6874 = vpop.permute.xlu0 %6873
    %6875 = vrot.lane.b32.xlu0 %v6621, 16
    %v6876 = vpop.permute.xlu0 %6875
    %6877 = vrot.lane.b32.xlu0 %v6689, 16
    %v6878 = vpop.permute.xlu0 %6877
    %6879 = vrot.lane.b32.xlu0 %v6757, 16
    %v6880 = vpop.permute.xlu0 %6879
    %6881 = vrot.lane.b32.xlu0 %v6825, 16
    %v6882 = vpop.permute.xlu0 %6881
    %6899 = vrot.lane.b32.xlu0 %v6350, 24
    %v6900 = vpop.permute.xlu0 %6899
    %6901 = vrot.lane.b32.xlu0 %v6418, 24
    %v6902 = vpop.permute.xlu0 %6901
    %6903 = vrot.lane.b32.xlu0 %v6486, 24
    %v6904 = vpop.permute.xlu0 %6903
    %6905 = vrot.lane.b32.xlu0 %v6554, 24
    %v6906 = vpop.permute.xlu0 %6905
    %6907 = vrot.lane.b32.xlu0 %v6622, 24
    %v6908 = vpop.permute.xlu0 %6907
    %6909 = vrot.lane.b32.xlu0 %v6690, 24
    %v6910 = vpop.permute.xlu0 %6909
    %6911 = vrot.lane.b32.xlu0 %v6758, 24
    %v6912 = vpop.permute.xlu0 %6911
    %6913 = vrot.lane.b32.xlu0 %v6826, 24
    %v6914 = vpop.permute.xlu0 %6913
    %v6923 = vsel %vm3793, %v6347, %v6836
    %v6924 = vsel %vm3793, %v6415, %v6838
    %v6925 = vsel %vm3793, %v6483, %v6840
    %v6926 = vsel %vm3793, %v6551, %v6842
    %v6927 = vsel %vm3793, %v6619, %v6844
    %v6928 = vsel %vm3793, %v6687, %v6846
    %v6929 = vsel %vm3793, %v6755, %v6848
    %v6930 = vsel %vm3793, %v6823, %v6850
    %v6931 = vsel %vm4634, %v6923, %v6868
    %v6932 = vsel %vm4634, %v6924, %v6870
    %v6933 = vsel %vm4634, %v6925, %v6872
    %v6934 = vsel %vm4634, %v6926, %v6874
    %v6935 = vsel %vm4634, %v6927, %v6876
    %v6936 = vsel %vm4634, %v6928, %v6878
    %v6937 = vsel %vm4634, %v6929, %v6880
    %v6938 = vsel %vm4634, %v6930, %v6882
    %vm6939 = vcmask 195584
    %v6940 = vsel %vm6939, %v6931, %v6900
    %v6941 = vsel %vm6939, %v6932, %v6902
    %v6942 = vsel %vm6939, %v6933, %v6904
    %v6943 = vsel %vm6939, %v6934, %v6906
    %v6944 = vsel %vm6939, %v6935, %v6908
    %v6945 = vsel %vm6939, %v6936, %v6910
    %v6946 = vsel %vm6939, %v6937, %v6912
    %v6947 = vsel %vm6939, %v6938, %v6914
    %v6948 = vpack.c.bf16 %v6941, %v6940
    %v6949 = vpack.c.bf16 %v6943, %v6942
    %v6950 = vpack.c.bf16 %v6945, %v6944
    %v6951 = vpack.c.bf16 %v6947, %v6946
    %v6952 = vld [vmem:[%s5] sm:$0xf]
    %v6953 = vld [vmem:[%s5 + $0x4] sm:$0xf]
    %v6954 = vld [vmem:[%s5 + $0x8] sm:$0xf]
    %v6955 = vld [vmem:[%s5 + $0xc] sm:$0xf]
    %v6956 = vld [vmem:[%s6] sm:$0x1]
    %v6958 = vlaneseq
    %v6959 = vshrl.u32 %v6958, 7
    %v6960 = vsub.s32 0, %v6959
    %v6961 = vrot.slane %v6956, %v6960
    %v6967 = vunpack.c.l.b16 %v6952
    %v6968 = vunpack.c.l.b16 %v6953
    %v6969 = vunpack.c.l.b16 %v6954
    %v6970 = vunpack.c.l.b16 %v6955
    %v6971 = vpack.c.b16 %v6968, %v6967
    %v6972 = vpack.c.b16 %v6970, %v6969
    %v6976 = vsel %vm131, %v6948, 0
    %v6979 = vsel %vm131, %v6949, 0
    %v6982 = vsel %vm131, %v6950, 0
    %v6985 = vsel %vm131, %v6951, 0
    %6987 = vmatprep.subr.bf16.mxu0 0
    %6988 = vmatpush1.bf16.msra.mxu0 %v6971
    %6989 = vmatprep.subr.bf16.mxu0 0
    %6990 = vmatpush1.bf16.msra.mxu0 %v6972
    %6991 = vmatprep.subr.bf16.mxu0 0
    %6992 = vmatpush1.bf16.msra.mxu0 0
    %6993 = vmatprep.subr.bf16.mxu0 0
    %6994 = vmatpush1.bf16.msra.mxu0 0
    %6995 = vmatprep.subr.bf16.mxu0 0
    %6996 = vmatpush1.bf16.msra.mxu0 0
    %6997 = vmatprep.subr.bf16.mxu0 0
    %6998 = vmatpush1.bf16.msra.mxu0 0
    %6999 = vmatprep.subr.bf16.mxu0 0
    %7000 = vmatpush1.bf16.msra.mxu0 0
    %7001 = vmatprep.subr.bf16.mxu0 0
    %7002 = vmatpush1.bf16.msra.mxu0 0
    %7003 = vmatprep.subr.bf16.mxu0 0
    %7004 = vmatpush1.bf16.msra.mxu0 0
    %7005 = vmatprep.subr.bf16.mxu0 0
    %7006 = vmatpush1.bf16.msra.mxu0 0
    %7007 = vmatprep.subr.bf16.mxu0 0
    %7008 = vmatpush1.bf16.msra.mxu0 0
    %7009 = vmatprep.subr.bf16.mxu0 0
    %7010 = vmatpush1.bf16.msra.mxu0 0
    %7011 = vmatprep.subr.bf16.mxu0 0
    %7012 = vmatpush1.bf16.msra.mxu0 0
    %7013 = vmatprep.subr.bf16.mxu0 0
    %7014 = vmatpush1.bf16.msra.mxu0 0
    %7015 = vmatprep.subr.bf16.mxu0 0
    %7016 = vmatpush1.bf16.msra.mxu0 0
    %7017 = vmatprep.subr.bf16.mxu0 0
    %7018 = vmatpush1.bf16.msra.mxu0 0
    %7019 = vmatprep.mubr.bf16.mxu0 0
    %7020 = vmatmul.mubr.bf16.gmra.mrb[0].mxu0 %v6976
    %v7021 = vpop.f32.mrb[0].mxu0
    %v7022 = vadd.f32 %v6961, %v7021
    %v7023 = vpop.f32.mrb[0].mxu0
    %v7024 = vpop.f32.mrb[0].mxu0
    %v7025 = vadd.f32 %v6961, %v7024
    %v7026 = vpop.f32.mrb[0].mxu0
    %7027 = vmatprep.mubr.bf16.mxu0 0
    %7028 = vmatmul.mubr.bf16.gmra.mrb[0].mxu0 %v6979
    %v7029 = vpop.f32.mrb[0].mxu0
    %v7030 = vadd.f32 %v6961, %v7029
    %v7031 = vpop.f32.mrb[0].mxu0
    %v7032 = vpop.f32.mrb[0].mxu0
    %v7033 = vadd.f32 %v6961, %v7032
    %v7034 = vpop.f32.mrb[0].mxu0
    %7035 = vmatprep.mubr.bf16.mxu0 0
    %7036 = vmatmul.mubr.bf16.gmra.mrb[0].mxu0 %v6982
    %v7037 = vpop.f32.mrb[0].mxu0
    %v7038 = vadd.f32 %v6961, %v7037
    %v7039 = vpop.f32.mrb[0].mxu0
    %v7040 = vpop.f32.mrb[0].mxu0
    %v7041 = vadd.f32 %v6961, %v7040
    %v7042 = vpop.f32.mrb[0].mxu0
    %7043 = vmatprep.mubr.bf16.mxu0 0
    %7044 = vmatmul.mubr.bf16.gmra.mrb[0].mxu0 %v6985
    %v7045 = vpop.f32.mrb[0].mxu0
    %v7046 = vadd.f32 %v6961, %v7045
    %v7047 = vpop.f32.mrb[0].mxu0
    %v7048 = vpop.f32.mrb[0].mxu0
    %v7049 = vadd.f32 %v6961, %v7048
    %v7050 = vpop.f32.mrb[0].mxu0
    %7051 = vdwg.mxu0
    %v7052 = vadd.f32 %v96, %v7022
    %v7053 = vadd.f32 %v97, %v7025
    %v7054 = vadd.f32 %v98, %v7030
    %v7055 = vadd.f32 %v99, %v7033
    %v7056 = vadd.f32 %v100, %v7038
    %v7057 = vadd.f32 %v101, %v7041
    %v7058 = vadd.f32 %v102, %v7046
    %v7059 = vadd.f32 %v103, %v7049
    %v7060 = vsel %vm131, %v7052, 0.0
    %7061 = vadd.xlane.f32.xlu0 %v7060
    %v7062 = vpop.xlane.xlu0 %7061
    %v7063 = vsel %vm131, %v7053, 0.0
    %7064 = vadd.xlane.f32.xlu0 %v7063
    %v7065 = vpop.xlane.xlu0 %7064
    %v7066 = vsel %vm131, %v7054, 0.0
    %7067 = vadd.xlane.f32.xlu0 %v7066
    %v7068 = vpop.xlane.xlu0 %7067
    %v7069 = vsel %vm131, %v7055, 0.0
    %7070 = vadd.xlane.f32.xlu0 %v7069
    %v7071 = vpop.xlane.xlu0 %7070
    %v7072 = vsel %vm131, %v7056, 0.0
    %7073 = vadd.xlane.f32.xlu0 %v7072
    %v7074 = vpop.xlane.xlu0 %7073
    %v7075 = vsel %vm131, %v7057, 0.0
    %7076 = vadd.xlane.f32.xlu0 %v7075
    %v7077 = vpop.xlane.xlu0 %7076
    %v7078 = vsel %vm131, %v7058, 0.0
    %7079 = vadd.xlane.f32.xlu0 %v7078
    %v7080 = vpop.xlane.xlu0 %7079
    %v7081 = vsel %vm131, %v7059, 0.0
    %7082 = vadd.xlane.f32.xlu0 %v7081
    %v7083 = vpop.xlane.xlu0 %7082
    %v7084 = vrcp.pop 32.0
    %v7085 = vmul.f32 %v7062, %v7084
    %v7086 = vmul.f32 %v7065, %v7084
    %v7087 = vmul.f32 %v7068, %v7084
    %v7088 = vmul.f32 %v7071, %v7084
    %v7089 = vmul.f32 %v7074, %v7084
    %v7090 = vmul.f32 %v7077, %v7084
    %v7091 = vmul.f32 %v7080, %v7084
    %v7092 = vmul.f32 %v7083, %v7084
    %v7093 = vsub.f32 %v7052, %v7085
    %v7094 = vsub.f32 %v7053, %v7086
    %v7095 = vsub.f32 %v7054, %v7087
    %v7096 = vsub.f32 %v7055, %v7088
    %v7097 = vsub.f32 %v7056, %v7089
    %v7098 = vsub.f32 %v7057, %v7090
    %v7099 = vsub.f32 %v7058, %v7091
    %v7100 = vsub.f32 %v7059, %v7092
    %v7101 = vmul.f32 %v7093, %v7093
    %v7102 = vmul.f32 %v7094, %v7094
    %v7103 = vmul.f32 %v7095, %v7095
    %v7104 = vmul.f32 %v7096, %v7096
    %v7105 = vmul.f32 %v7097, %v7097
    %v7106 = vmul.f32 %v7098, %v7098
    %v7107 = vmul.f32 %v7099, %v7099
    %v7108 = vmul.f32 %v7100, %v7100
    %v7109 = vsel %vm131, %v7101, 0.0
    %7110 = vadd.xlane.f32.xlu0 %v7109
    %v7111 = vpop.xlane.xlu0 %7110
    %v7112 = vsel %vm131, %v7102, 0.0
    %7113 = vadd.xlane.f32.xlu0 %v7112
    %v7114 = vpop.xlane.xlu0 %7113
    %v7115 = vsel %vm131, %v7103, 0.0
    %7116 = vadd.xlane.f32.xlu0 %v7115
    %v7117 = vpop.xlane.xlu0 %7116
    %v7118 = vsel %vm131, %v7104, 0.0
    %7119 = vadd.xlane.f32.xlu0 %v7118
    %v7120 = vpop.xlane.xlu0 %7119
    %v7121 = vsel %vm131, %v7105, 0.0
    %7122 = vadd.xlane.f32.xlu0 %v7121
    %v7123 = vpop.xlane.xlu0 %7122
    %v7124 = vsel %vm131, %v7106, 0.0
    %7125 = vadd.xlane.f32.xlu0 %v7124
    %v7126 = vpop.xlane.xlu0 %7125
    %v7127 = vsel %vm131, %v7107, 0.0
    %7128 = vadd.xlane.f32.xlu0 %v7127
    %v7129 = vpop.xlane.xlu0 %7128
    %v7130 = vsel %vm131, %v7108, 0.0
    %7131 = vadd.xlane.f32.xlu0 %v7130
    %v7132 = vpop.xlane.xlu0 %7131
    %v7133 = vmul.f32 %v7111, %v7084
    %v7134 = vmul.f32 %v7114, %v7084
    %v7135 = vmul.f32 %v7117, %v7084
    %v7136 = vmul.f32 %v7120, %v7084
    %v7137 = vmul.f32 %v7123, %v7084
    %v7138 = vmul.f32 %v7126, %v7084
    %v7139 = vmul.f32 %v7129, %v7084
    %v7140 = vmul.f32 %v7132, %v7084
    %v7141 = vadd.f32 %v7133, 1e-06
    %v7142 = vadd.f32 %v7134, 1e-06
    %v7143 = vadd.f32 %v7135, 1e-06
    %v7144 = vadd.f32 %v7136, 1e-06
    %v7145 = vadd.f32 %v7137, 1e-06
    %v7146 = vadd.f32 %v7138, 1e-06
    %v7147 = vadd.f32 %v7139, 1e-06
    %v7148 = vadd.f32 %v7140, 1e-06
    %v7149 = vrsqrt.pop %v7141
    %v7150 = vrsqrt.pop %v7142
    %v7151 = vrsqrt.pop %v7143
    %v7152 = vrsqrt.pop %v7144
    %v7153 = vrsqrt.pop %v7145
    %v7154 = vrsqrt.pop %v7146
    %v7155 = vrsqrt.pop %v7147
    %v7156 = vrsqrt.pop %v7148
    %v7157 = vmul.f32 %v7093, %v7149
    %v7158 = vmul.f32 %v7094, %v7150
    %v7159 = vmul.f32 %v7095, %v7151
    %v7160 = vmul.f32 %v7096, %v7152
    %v7161 = vmul.f32 %v7097, %v7153
    %v7162 = vmul.f32 %v7098, %v7154
    %v7163 = vmul.f32 %v7099, %v7155
    %v7164 = vmul.f32 %v7100, %v7156
    %v7165 = vld [vmem:[%s7] sm:$0x1]
    %v7167 = vlaneseq
    %v7168 = vshrl.u32 %v7167, 7
    %v7169 = vsub.s32 0, %v7168
    %v7170 = vrot.slane %v7165, %v7169
    %v7172 = vmul.f32 %v7157, %v7170
    %v7173 = vmul.f32 %v7158, %v7170
    %v7174 = vmul.f32 %v7159, %v7170
    %v7175 = vmul.f32 %v7160, %v7170
    %v7176 = vmul.f32 %v7161, %v7170
    %v7177 = vmul.f32 %v7162, %v7170
    %v7178 = vmul.f32 %v7163, %v7170
    %v7179 = vmul.f32 %v7164, %v7170
    %v7180 = vld [vmem:[%s8] sm:$0x1]
    %v7182 = vlaneseq
    %v7183 = vshrl.u32 %v7182, 7
    %v7184 = vsub.s32 0, %v7183
    %v7185 = vrot.slane %v7180, %v7184
    %v7187 = vadd.f32 %v7172, %v7185
    %v7188 = vadd.f32 %v7173, %v7185
    %v7189 = vadd.f32 %v7174, %v7185
    %v7190 = vadd.f32 %v7175, %v7185
    %v7191 = vadd.f32 %v7176, %v7185
    %v7192 = vadd.f32 %v7177, %v7185
    %v7193 = vadd.f32 %v7178, %v7185
    %v7194 = vadd.f32 %v7179, %v7185
    %v7195 = vpack.c.bf16 %v7188, %v7187
    %v7196 = vpack.c.bf16 %v7190, %v7189
    %v7197 = vpack.c.bf16 %v7192, %v7191
    %v7198 = vpack.c.bf16 %v7194, %v7193
    %v7199 = vld [vmem:[%s9] sm:$0xf]
    %v7200 = vld [vmem:[%s9 + $0x4] sm:$0xf]
    %v7201 = vld [vmem:[%s9 + $0x8] sm:$0xf]
    %v7202 = vld [vmem:[%s9 + $0xc] sm:$0xf]
    %v7203 = vld [vmem:[%s10] sm:$0x1]
    %v7205 = vlaneseq
    %v7206 = vshrl.u32 %v7205, 7
    %v7207 = vsub.s32 0, %v7206
    %v7208 = vrot.slane %v7203, %v7207
    %v7214 = vunpack.c.l.b16 %v7199
    %v7215 = vunpack.c.l.b16 %v7200
    %v7216 = vunpack.c.l.b16 %v7201
    %v7217 = vunpack.c.l.b16 %v7202
    %v7218 = vpack.c.b16 %v7215, %v7214
    %v7219 = vpack.c.b16 %v7217, %v7216
    %v7223 = vsel %vm131, %v7195, 0
    %v7226 = vsel %vm131, %v7196, 0
    %v7229 = vsel %vm131, %v7197, 0
    %v7232 = vsel %vm131, %v7198, 0
    %7234 = vmatprep.subr.bf16.mxu0 0
    %7235 = vmatpush1.bf16.msra.mxu0 %v7218
    %7236 = vmatprep.subr.bf16.mxu0 0
    %7237 = vmatpush1.bf16.msra.mxu0 %v7219
    %7238 = vmatprep.subr.bf16.mxu0 0
    %7239 = vmatpush1.bf16.msra.mxu0 0
    %7240 = vmatprep.subr.bf16.mxu0 0
    %7241 = vmatpush1.bf16.msra.mxu0 0
    %7242 = vmatprep.subr.bf16.mxu0 0
    %7243 = vmatpush1.bf16.msra.mxu0 0
    %7244 = vmatprep.subr.bf16.mxu0 0
    %7245 = vmatpush1.bf16.msra.mxu0 0
    %7246 = vmatprep.subr.bf16.mxu0 0
    %7247 = vmatpush1.bf16.msra.mxu0 0
    %7248 = vmatprep.subr.bf16.mxu0 0
    %7249 = vmatpush1.bf16.msra.mxu0 0
    %7250 = vmatprep.subr.bf16.mxu0 0
    %7251 = vmatpush1.bf16.msra.mxu0 0
    %7252 = vmatprep.subr.bf16.mxu0 0
    %7253 = vmatpush1.bf16.msra.mxu0 0
    %7254 = vmatprep.subr.bf16.mxu0 0
    %7255 = vmatpush1.bf16.msra.mxu0 0
    %7256 = vmatprep.subr.bf16.mxu0 0
    %7257 = vmatpush1.bf16.msra.mxu0 0
    %7258 = vmatprep.subr.bf16.mxu0 0
    %7259 = vmatpush1.bf16.msra.mxu0 0
    %7260 = vmatprep.subr.bf16.mxu0 0
    %7261 = vmatpush1.bf16.msra.mxu0 0
    %7262 = vmatprep.subr.bf16.mxu0 0
    %7263 = vmatpush1.bf16.msra.mxu0 0
    %7264 = vmatprep.subr.bf16.mxu0 0
    %7265 = vmatpush1.bf16.msra.mxu0 0
    %7266 = vmatprep.mubr.bf16.mxu0 0
    %7267 = vmatmul.mubr.bf16.gmra.mrb[0].mxu0 %v7223
    %v7268 = vpop.f32.mrb[0].mxu0
    %v7269 = vadd.f32 %v7208, %v7268
    %v7270 = vpop.f32.mrb[0].mxu0
    %v7271 = vpop.f32.mrb[0].mxu0
    %v7272 = vadd.f32 %v7208, %v7271
    %v7273 = vpop.f32.mrb[0].mxu0
    %7274 = vmatprep.mubr.bf16.mxu0 0
    %7275 = vmatmul.mubr.bf16.gmra.mrb[0].mxu0 %v7226
    %v7276 = vpop.f32.mrb[0].mxu0
    %v7277 = vadd.f32 %v7208, %v7276
    %v7278 = vpop.f32.mrb[0].mxu0
    %v7279 = vpop.f32.mrb[0].mxu0
    %v7280 = vadd.f32 %v7208, %v7279
    %v7281 = vpop.f32.mrb[0].mxu0
    %7282 = vmatprep.mubr.bf16.mxu0 0
    %7283 = vmatmul.mubr.bf16.gmra.mrb[0].mxu0 %v7229
    %v7284 = vpop.f32.mrb[0].mxu0
    %v7285 = vadd.f32 %v7208, %v7284
    %v7286 = vpop.f32.mrb[0].mxu0
    %v7287 = vpop.f32.mrb[0].mxu0
    %v7288 = vadd.f32 %v7208, %v7287
    %v7289 = vpop.f32.mrb[0].mxu0
    %7290 = vmatprep.mubr.bf16.mxu0 0
    %7291 = vmatmul.mubr.bf16.gmra.mrb[0].mxu0 %v7232
    %v7292 = vpop.f32.mrb[0].mxu0
    %v7293 = vadd.f32 %v7208, %v7292
    %v7294 = vpop.f32.mrb[0].mxu0
    %v7295 = vpop.f32.mrb[0].mxu0
    %v7296 = vadd.f32 %v7208, %v7295
    %v7297 = vpop.f32.mrb[0].mxu0
    %7298 = vdwg.mxu0
    %v7299 = vmax.f32 %v7269, 0.0
    %v7300 = vmax.f32 %v7272, 0.0
    %v7301 = vmax.f32 %v7277, 0.0
    %v7302 = vmax.f32 %v7280, 0.0
    %v7303 = vmax.f32 %v7285, 0.0
    %v7304 = vmax.f32 %v7288, 0.0
    %v7305 = vmax.f32 %v7293, 0.0
    %v7306 = vmax.f32 %v7296, 0.0
    %v7307 = vpack.c.bf16 %v7300, %v7299
    %v7308 = vpack.c.bf16 %v7302, %v7301
    %v7309 = vpack.c.bf16 %v7304, %v7303
    %v7310 = vpack.c.bf16 %v7306, %v7305
    %v7311 = vld [vmem:[%s11] sm:$0xf]
    %v7312 = vld [vmem:[%s11 + $0x4] sm:$0xf]
    %v7313 = vld [vmem:[%s11 + $0x8] sm:$0xf]
    %v7314 = vld [vmem:[%s11 + $0xc] sm:$0xf]
    %v7315 = vld [vmem:[%s11 + $0x10] sm:$0xf]
    %v7316 = vld [vmem:[%s11 + $0x14] sm:$0xf]
    %v7317 = vld [vmem:[%s11 + $0x18] sm:$0xf]
    %v7318 = vld [vmem:[%s11 + $0x1c] sm:$0xf]
    %v7319 = vld [vmem:[%s12] sm:$0x1]
    %v7321 = vlaneseq
    %v7322 = vshrl.u32 %v7321, 7
    %v7323 = vsub.s32 0, %v7322
    %v7324 = vrot.slane %v7319, %v7323
    %v7334 = vunpack.c.l.b16 %v7311
    %v7335 = vunpack.c.l.b16 %v7312
    %v7336 = vunpack.c.l.b16 %v7313
    %v7337 = vunpack.c.l.b16 %v7314
    %v7338 = vunpack.c.l.b16 %v7315
    %v7339 = vunpack.c.l.b16 %v7316
    %v7340 = vunpack.c.l.b16 %v7317
    %v7341 = vunpack.c.l.b16 %v7318
    %v7342 = vpack.c.b16 %v7335, %v7334
    %v7343 = vpack.c.b16 %v7337, %v7336
    %v7344 = vpack.c.b16 %v7339, %v7338
    %v7345 = vpack.c.b16 %v7341, %v7340
    %vm7350 = vcmask 523264
    %v7352 = vsel %vm7350, %v7307, 0
    %v7355 = vsel %vm7350, %v7308, 0
    %v7358 = vsel %vm7350, %v7309, 0
    %v7361 = vsel %vm7350, %v7310, 0
    %7363 = vmatprep.subr.bf16.mxu0 0
    %7364 = vmatpush1.bf16.msra.mxu0 %v7342
    %7365 = vmatprep.subr.bf16.mxu0 0
    %7366 = vmatpush1.bf16.msra.mxu0 %v7343
    %7367 = vmatprep.subr.bf16.mxu0 0
    %7368 = vmatpush1.bf16.msra.mxu0 %v7344
    %7369 = vmatprep.subr.bf16.mxu0 0
    %7370 = vmatpush1.bf16.msra.mxu0 %v7345
    %7371 = vmatprep.subr.bf16.mxu0 0
    %7372 = vmatpush1.bf16.msra.mxu0 0
    %7373 = vmatprep.subr.bf16.mxu0 0
    %7374 = vmatpush1.bf16.msra.mxu0 0
    %7375 = vmatprep.subr.bf16.mxu0 0
    %7376 = vmatpush1.bf16.msra.mxu0 0
    %7377 = vmatprep.subr.bf16.mxu0 0
    %7378 = vmatpush1.bf16.msra.mxu0 0
    %7379 = vmatprep.subr.bf16.mxu0 0
    %7380 = vmatpush1.bf16.msra.mxu0 0
    %7381 = vmatprep.subr.bf16.mxu0 0
    %7382 = vmatpush1.bf16.msra.mxu0 0
    %7383 = vmatprep.subr.bf16.mxu0 0
    %7384 = vmatpush1.bf16.msra.mxu0 0
    %7385 = vmatprep.subr.bf16.mxu0 0
    %7386 = vmatpush1.bf16.msra.mxu0 0
    %7387 = vmatprep.subr.bf16.mxu0 0
    %7388 = vmatpush1.bf16.msra.mxu0 0
    %7389 = vmatprep.subr.bf16.mxu0 0
    %7390 = vmatpush1.bf16.msra.mxu0 0
    %7391 = vmatprep.subr.bf16.mxu0 0
    %7392 = vmatpush1.bf16.msra.mxu0 0
    %7393 = vmatprep.subr.bf16.mxu0 0
    %7394 = vmatpush1.bf16.msra.mxu0 0
    %7395 = vmatprep.mubr.bf16.mxu0 0
    %7396 = vmatmul.mubr.bf16.gmra.mrb[0].mxu0 %v7352
    %v7397 = vpop.f32.mrb[0].mxu0
    %v7398 = vadd.f32 %v7324, %v7397
    %v7399 = vpop.f32.mrb[0].mxu0
    %v7400 = vpop.f32.mrb[0].mxu0
    %v7401 = vadd.f32 %v7324, %v7400
    %v7402 = vpop.f32.mrb[0].mxu0
    %7403 = vmatprep.mubr.bf16.mxu0 0
    %7404 = vmatmul.mubr.bf16.gmra.mrb[0].mxu0 %v7355
    %v7405 = vpop.f32.mrb[0].mxu0
    %v7406 = vadd.f32 %v7324, %v7405
    %v7407 = vpop.f32.mrb[0].mxu0
    %v7408 = vpop.f32.mrb[0].mxu0
    %v7409 = vadd.f32 %v7324, %v7408
    %v7410 = vpop.f32.mrb[0].mxu0
    %7411 = vmatprep.mubr.bf16.mxu0 0
    %7412 = vmatmul.mubr.bf16.gmra.mrb[0].mxu0 %v7358
    %v7413 = vpop.f32.mrb[0].mxu0
    %v7414 = vadd.f32 %v7324, %v7413
    %v7415 = vpop.f32.mrb[0].mxu0
    %v7416 = vpop.f32.mrb[0].mxu0
    %v7417 = vadd.f32 %v7324, %v7416
    %v7418 = vpop.f32.mrb[0].mxu0
    %7419 = vmatprep.mubr.bf16.mxu0 0
    %7420 = vmatmul.mubr.bf16.gmra.mrb[0].mxu0 %v7361
    %v7421 = vpop.f32.mrb[0].mxu0
    %v7422 = vadd.f32 %v7324, %v7421
    %v7423 = vpop.f32.mrb[0].mxu0
    %v7424 = vpop.f32.mrb[0].mxu0
    %v7425 = vadd.f32 %v7324, %v7424
    %v7426 = vpop.f32.mrb[0].mxu0
    %7427 = vdwg.mxu0
    %v7428 = vadd.f32 %v7398, %v7187
    %v7429 = vadd.f32 %v7401, %v7188
    %v7430 = vadd.f32 %v7406, %v7189
    %v7431 = vadd.f32 %v7409, %v7190
    %v7432 = vadd.f32 %v7414, %v7191
    %v7433 = vadd.f32 %v7417, %v7192
    %v7434 = vadd.f32 %v7422, %v7193
    %v7435 = vadd.f32 %v7425, %v7194
    %v7436 = vsel %vm131, %v7428, 0.0
    %7437 = vadd.xlane.f32.xlu0 %v7436
    %v7438 = vpop.xlane.xlu0 %7437
    %v7439 = vsel %vm131, %v7429, 0.0
    %7440 = vadd.xlane.f32.xlu0 %v7439
    %v7441 = vpop.xlane.xlu0 %7440
    %v7442 = vsel %vm131, %v7430, 0.0
    %7443 = vadd.xlane.f32.xlu0 %v7442
    %v7444 = vpop.xlane.xlu0 %7443
    %v7445 = vsel %vm131, %v7431, 0.0
    %7446 = vadd.xlane.f32.xlu0 %v7445
    %v7447 = vpop.xlane.xlu0 %7446
    %v7448 = vsel %vm131, %v7432, 0.0
    %7449 = vadd.xlane.f32.xlu0 %v7448
    %v7450 = vpop.xlane.xlu0 %7449
    %v7451 = vsel %vm131, %v7433, 0.0
    %7452 = vadd.xlane.f32.xlu0 %v7451
    %v7453 = vpop.xlane.xlu0 %7452
    %v7454 = vsel %vm131, %v7434, 0.0
    %7455 = vadd.xlane.f32.xlu0 %v7454
    %v7456 = vpop.xlane.xlu0 %7455
    %v7457 = vsel %vm131, %v7435, 0.0
    %7458 = vadd.xlane.f32.xlu0 %v7457
    %v7459 = vpop.xlane.xlu0 %7458
    %v7460 = vmul.f32 %v7438, %v7084
    %v7461 = vmul.f32 %v7441, %v7084
    %v7462 = vmul.f32 %v7444, %v7084
    %v7463 = vmul.f32 %v7447, %v7084
    %v7464 = vmul.f32 %v7450, %v7084
    %v7465 = vmul.f32 %v7453, %v7084
    %v7466 = vmul.f32 %v7456, %v7084
    %v7467 = vmul.f32 %v7459, %v7084
    %v7468 = vsub.f32 %v7428, %v7460
    %v7469 = vsub.f32 %v7429, %v7461
    %v7470 = vsub.f32 %v7430, %v7462
    %v7471 = vsub.f32 %v7431, %v7463
    %v7472 = vsub.f32 %v7432, %v7464
    %v7473 = vsub.f32 %v7433, %v7465
    %v7474 = vsub.f32 %v7434, %v7466
    %v7475 = vsub.f32 %v7435, %v7467
    %v7476 = vmul.f32 %v7468, %v7468
    %v7477 = vmul.f32 %v7469, %v7469
    %v7478 = vmul.f32 %v7470, %v7470
    %v7479 = vmul.f32 %v7471, %v7471
    %v7480 = vmul.f32 %v7472, %v7472
    %v7481 = vmul.f32 %v7473, %v7473
    %v7482 = vmul.f32 %v7474, %v7474
    %v7483 = vmul.f32 %v7475, %v7475
    %v7484 = vsel %vm131, %v7476, 0.0
    %7485 = vadd.xlane.f32.xlu0 %v7484
    %v7486 = vpop.xlane.xlu0 %7485
    %v7487 = vsel %vm131, %v7477, 0.0
    %7488 = vadd.xlane.f32.xlu0 %v7487
    %v7489 = vpop.xlane.xlu0 %7488
    %v7490 = vsel %vm131, %v7478, 0.0
    %7491 = vadd.xlane.f32.xlu0 %v7490
    %v7492 = vpop.xlane.xlu0 %7491
    %v7493 = vsel %vm131, %v7479, 0.0
    %7494 = vadd.xlane.f32.xlu0 %v7493
    %v7495 = vpop.xlane.xlu0 %7494
    %v7496 = vsel %vm131, %v7480, 0.0
    %7497 = vadd.xlane.f32.xlu0 %v7496
    %v7498 = vpop.xlane.xlu0 %7497
    %v7499 = vsel %vm131, %v7481, 0.0
    %7500 = vadd.xlane.f32.xlu0 %v7499
    %v7501 = vpop.xlane.xlu0 %7500
    %v7502 = vsel %vm131, %v7482, 0.0
    %7503 = vadd.xlane.f32.xlu0 %v7502
    %v7504 = vpop.xlane.xlu0 %7503
    %v7505 = vsel %vm131, %v7483, 0.0
    %7506 = vadd.xlane.f32.xlu0 %v7505
    %v7507 = vpop.xlane.xlu0 %7506
    %v7508 = vmul.f32 %v7486, %v7084
    %v7509 = vmul.f32 %v7489, %v7084
    %v7510 = vmul.f32 %v7492, %v7084
    %v7511 = vmul.f32 %v7495, %v7084
    %v7512 = vmul.f32 %v7498, %v7084
    %v7513 = vmul.f32 %v7501, %v7084
    %v7514 = vmul.f32 %v7504, %v7084
    %v7515 = vmul.f32 %v7507, %v7084
    %v7516 = vadd.f32 %v7508, 1e-06
    %v7517 = vadd.f32 %v7509, 1e-06
    %v7518 = vadd.f32 %v7510, 1e-06
    %v7519 = vadd.f32 %v7511, 1e-06
    %v7520 = vadd.f32 %v7512, 1e-06
    %v7521 = vadd.f32 %v7513, 1e-06
    %v7522 = vadd.f32 %v7514, 1e-06
    %v7523 = vadd.f32 %v7515, 1e-06
    %v7524 = vrsqrt.pop %v7516
    %v7525 = vrsqrt.pop %v7517
    %v7526 = vrsqrt.pop %v7518
    %v7527 = vrsqrt.pop %v7519
    %v7528 = vrsqrt.pop %v7520
    %v7529 = vrsqrt.pop %v7521
    %v7530 = vrsqrt.pop %v7522
    %v7531 = vrsqrt.pop %v7523
    %v7532 = vmul.f32 %v7468, %v7524
    %v7533 = vmul.f32 %v7469, %v7525
    %v7534 = vmul.f32 %v7470, %v7526
    %v7535 = vmul.f32 %v7471, %v7527
    %v7536 = vmul.f32 %v7472, %v7528
    %v7537 = vmul.f32 %v7473, %v7529
    %v7538 = vmul.f32 %v7474, %v7530
    %v7539 = vmul.f32 %v7475, %v7531
    %v7540 = vld [vmem:[%s13] sm:$0x1]
    %v7542 = vlaneseq
    %v7543 = vshrl.u32 %v7542, 7
    %v7544 = vsub.s32 0, %v7543
    %v7545 = vrot.slane %v7540, %v7544
    %v7547 = vmul.f32 %v7532, %v7545
    %v7548 = vmul.f32 %v7533, %v7545
    %v7549 = vmul.f32 %v7534, %v7545
    %v7550 = vmul.f32 %v7535, %v7545
    %v7551 = vmul.f32 %v7536, %v7545
    %v7552 = vmul.f32 %v7537, %v7545
    %v7553 = vmul.f32 %v7538, %v7545
    %v7554 = vmul.f32 %v7539, %v7545
    %v7555 = vld [vmem:[%s14] sm:$0x1]
    %v7557 = vlaneseq
    %v7558 = vshrl.u32 %v7557, 7
    %v7559 = vsub.s32 0, %v7558
    %v7560 = vrot.slane %v7555, %v7559
    %v7562 = vadd.f32 %v7547, %v7560
    %v7563 = vadd.f32 %v7548, %v7560
    %v7564 = vadd.f32 %v7549, %v7560
    %v7565 = vadd.f32 %v7550, %v7560
    %v7566 = vadd.f32 %v7551, %v7560
    %v7567 = vadd.f32 %v7552, %v7560
    %v7568 = vadd.f32 %v7553, %v7560
    %v7569 = vadd.f32 %v7554, %v7560
    %7570 = vst.msk [vmem:[#allocation8] sm:$0xff] %vm131, %v7562
    %7571 = vst.msk [vmem:[#allocation8 + $0x8] sm:$0xff] %vm131, %v7563
    %7572 = vst.msk [vmem:[#allocation8 + $0x10] sm:$0xff] %vm131, %v7564
    %7573 = vst.msk [vmem:[#allocation8 + $0x18] sm:$0xff] %vm131, %v7565
    %7574 = vst.msk [vmem:[#allocation8 + $0x20] sm:$0xff] %vm131, %v7566
    %7575 = vst.msk [vmem:[#allocation8 + $0x28] sm:$0xff] %vm131, %v7567
    %7576 = vst.msk [vmem:[#allocation8 + $0x30] sm:$0xff] %vm131, %v7568
    %7577 = vst.msk [vmem:[#allocation8 + $0x38] sm:$0xff] %vm131, %v7569
    // Predicated region
    $region74: #{tpu_custom_call.1} parent=1 // pred_check
      _
    $region75: #{tpu_custom_call.1} parent=1 // pred_check_branch
      %7579 = sbr.rel (0) target = $region77
    $region76: #{tpu_custom_call.1} parent=1 // pred_region
      %s7581 = ssub.s32 1024, 1024
      %7582 = vsyncadd [#allocation4], %s7581
      %s7583 = sshll.u32 [#allocation8], 4
      %s7584 = int_to_ptr.vmem [resolvable:$true] %s7583
      %7589 = dma.vmem_to_hbm [thread:$0]  %s7584, 1024, %s15, [#allocation4], 128, 128, 8
    $region77: #{tpu_custom_call.1} parent=1 // pred_fallthru
      _
    // Predicated region
    $region78: #{tpu_custom_call.1} parent=1 // pred_check
      _
    $region79: #{tpu_custom_call.1} parent=1 // pred_check_branch
      %7591 = sbr.rel (0) target = $region81
    $region80: #{tpu_custom_call.1} parent=1 // pred_region
      %s7593 = ssub.s32 4096, 4096
      %7594 = vsyncadd [#allocation10], %s7593
      %s7595 = sshll.u32 [#allocation9], 4
      %s7596 = int_to_ptr.vmem [resolvable:$true] %s7595
      %7601 = dma.vmem_to_hbm [thread:$0]  %s7596, 4096, %s16, [#allocation10], 128, 128, 8
    $region81: #{tpu_custom_call.1} parent=1 // pred_fallthru
      _
    // Predicated region
    $region82: #{tpu_custom_call.1} parent=1 // pred_check
      _
    $region83: #{tpu_custom_call.1} parent=1 // pred_check_branch
      %7603 = sbr.rel (0) target = $region85
    $region84: #{tpu_custom_call.1} parent=1 // pred_region
      %7604 = dma.done [#allocation4], 1024
    $region85: #{tpu_custom_call.1} parent=1 // pred_fallthru
      _
    // Predicated region
    $region86: #{tpu_custom_call.1} parent=1 // pred_check
      _
    $region87: #{tpu_custom_call.1} parent=1 // pred_check_branch
      %7606 = sbr.rel (0) target = $region89
    $region88: #{tpu_custom_call.1} parent=1 // pred_region
      %7607 = dma.done [#allocation10], 4096
    $region89: #{tpu_custom_call.1} parent=1 // pred_fallthru
      _
    %7608 = vsyncpa [#allocation3], 1
    %7609 = vsyncpa [#allocation6], 1
    %7610 = vsyncpa [#allocation4], 1
    %7611 = vsyncpa [#allocation10], 1

</llo_original>
